<compile_context>
chip_gen: v7x
topology: tpu7x:2x2x1
jax: 0.10.0
libtpu: 0.0.40
codegen_flags: <defaults>
</compile_context>

<pallas_src>
import math

import numpy as np
import jax
import jax.numpy as jnp
from jax.experimental import pallas as pl
from jax.experimental.pallas import tpu as pltpu

GROUPS = 24        # `groups` global in DeNet.py
LN_EPS = 1e-5
GN_EPS = 1e-5


def _gelu_tanh(x):
    # TODO(synk): torch nn.GELU defaults to the exact erf form; Mosaic has no erf lowering,
    # so the tanh approximation is used here (max abs deviation ~3e-3).
    c = math.sqrt(2.0 / math.pi)
    return 0.5 * x * (1.0 + jnp.tanh(c * (x + 0.044715 * x * x * x)))


# ----------------------------------------------------------------------------------------
# Kernel 1: fused Conv2d(3x3, stride 1, pad 1) + bias + GroupNorm + ReLU, NCHW layout,
#           flattened spatial on lanes, 9 taps -> one im2col matmul.
# ----------------------------------------------------------------------------------------
def upconv_gn_relu(x_up, w, b, gamma, beta, *, groups):
    """x_up: (B, Cin, H, W) f32 (already 2x nearest-upsampled).  Returns (B, Cout, H*W)."""
    B, Cin, H, W = x_up.shape
    Cout = w.shape[0]
    HW = H * W
    PAD = W + 1                      # flat-index halo covering all 9 tap offsets
    HWP = HW + 2 * PAD

    # flatten spatial (row-major, free) and add a flat zero halo for the vertical taps
    x_flat = jnp.pad(x_up.reshape(B, Cin, HW), ((0, 0), (0, 0), (PAD, PAD)))

    # (Cout, Cin, 3, 3) -> (Cout, 9*Cin) with K index = (kh*3 + kw)*Cin + cin
    w2d = jnp.transpose(w, (0, 2, 3, 1)).reshape(Cout, 9 * Cin)
    b2d = b.reshape(Cout, 1)
    g2d = gamma.reshape(Cout, 1)
    be2d = beta.reshape(Cout, 1)

    # lane masks killing the horizontal wrap-around of the flattened taps (index = dw + 1)
    col = np.arange(HW) % W
    masks = jnp.asarray(
        np.stack([(col >= 1), np.ones(HW, bool), (col <= W - 2)]).astype(np.float32))

    def kernel(x_ref, w_ref, b_ref, g_ref, be_ref, m_ref, o_ref):
        _, Co, hw = o_ref.shape
        x = x_ref[0]                                     # (Cin, HW + 2*PAD)
        m = m_ref[...]                                   # (3, HW)
        taps = []
        for dh in (-1, 0, 1):
            for dw in (-1, 0, 1):
                off = PAD + dh * W + dw                  # static offsets
                sl = x[:, off:off + hw]                  # (Cin, HW) lane slice
                taps.append(sl * m[dw + 1:dw + 2, :])    # zero wrapped columns
        patches = jnp.concatenate(taps, axis=0)          # (9*Cin, HW) im2col (sublane concat)
        acc = jnp.dot(w_ref[...], patches, preferred_element_type=jnp.float32)
        acc = acc + b_ref[...]                           # (Cout, HW)

        # GroupNorm: per-sample stats over (Cout//groups) channels x HW positions
        cg = Co // groups
        ch_mean = jnp.mean(acc, axis=1, keepdims=True)                         # (Cout, 1)
        grp_mean = jnp.mean(ch_mean.reshape(groups, cg), axis=1, keepdims=True)
        mean = jnp.broadcast_to(grp_mean, (groups, cg)).reshape(Co, 1)
        cent = acc - mean
        ch_var = jnp.mean(cent * cent, axis=1, keepdims=True)                  # (Cout, 1)
        grp_var = jnp.mean(ch_var.reshape(groups, cg), axis=1, keepdims=True)
        var = jnp.broadcast_to(grp_var, (groups, cg)).reshape(Co, 1)
        y = cent * jax.lax.rsqrt(var + GN_EPS)
        y = y * g_ref[...] + be_ref[...]
        o_ref[0] = jnp.maximum(y, 0.0).astype(o_ref.dtype)

    return pl.pallas_call(
        kernel,
        out_shape=jax.ShapeDtypeStruct((B, Cout, HW), jnp.float32),
        grid=(B,),
        in_specs=[
            pl.BlockSpec((1, Cin, HWP), lambda i: (i, 0, 0)),
            pl.BlockSpec((Cout, 9 * Cin), lambda i: (0, 0)),
            pl.BlockSpec((Cout, 1), lambda i: (0, 0)),
            pl.BlockSpec((Cout, 1), lambda i: (0, 0)),
            pl.BlockSpec((Cout, 1), lambda i: (0, 0)),
            pl.BlockSpec((3, HW), lambda i: (0, 0)),
        ],
        out_specs=pl.BlockSpec((1, Cout, HW), lambda i: (i, 0, 0)),
        compiler_params=pltpu.CompilerParams(dimension_semantics=("parallel",)),
    )(x_flat, w2d, b2d, g2d, be2d, masks)


# ----------------------------------------------------------------------------------------
# Kernel 2: fused LayerNorm1 + window MSA (+rel-pos bias, +shift mask) + proj + residual.
# ----------------------------------------------------------------------------------------
def swin_attention_block(xw, mask, rpb, p, *, num_heads):
    """xw: (B_, N, C) pre-norm window tokens; mask: (B_, N, N); rpb: (num_heads, N, N)."""
    Bw, N, C = xw.shape
    hd = C // num_heads
    scale = hd ** -0.5

    ln_g = p['ln1_g'].reshape(1, C)
    ln_b = p['ln1_b'].reshape(1, C)
    bqkv = p['bqkv'].reshape(1, 3 * C)
    bproj = p['bproj'].reshape(1, C)

    def kernel(x_ref, g_ref, b_ref, wqkv_ref, bqkv_ref, wp_ref, bp_ref,
               rpb_ref, mask_ref, o_ref):
        x = x_ref[0]                                          # (N, C)
        mu = jnp.mean(x, axis=1, keepdims=True)
        var = jnp.mean((x - mu) ** 2, axis=1, keepdims=True)
        xn = (x - mu) * jax.lax.rsqrt(var + LN_EPS)
        xn = xn * g_ref[...] + b_ref[...]
        qkv = jnp.dot(xn, wqkv_ref[...],
                      preferred_element_type=jnp.float32) + bqkv_ref[...]      # (N, 3C)
        wp = wp_ref[...]                                      # (C, C) (in, out)
        msk = mask_ref[0]                                     # (N, N)
        y = jnp.zeros((N, C), jnp.float32)
        for h in range(num_heads):
            q = qkv[:, h * hd:(h + 1) * hd] * scale
            k = qkv[:, C + h * hd:C + (h + 1) * hd]
            v = qkv[:, 2 * C + h * hd:2 * C + (h + 1) * hd]
            a = jax.lax.dot_general(q, k, (((1,), (1,)), ((), ())),
                                    preferred_element_type=jnp.float32)        # q @ k.T
            a = a + rpb_ref[h] + msk
            a = a - jnp.max(a, axis=1, keepdims=True)
            e = jnp.exp(a)
            a = e / jnp.sum(e, axis=1, keepdims=True)
            o_h = jnp.dot(a, v, preferred_element_type=jnp.float32)            # (N, hd)
            # fold the head-concat into the output projection
            y = y + jnp.dot(o_h, wp[h * hd:(h + 1) * hd, :],
                            preferred_element_type=jnp.float32)
        y = y + bp_ref[...]
        o_ref[0] = (x + y).astype(o_ref.dtype)                # residual on pre-norm tokens

    return pl.pallas_call(
        kernel,
        out_shape=jax.ShapeDtypeStruct((Bw, N, C), jnp.float32),
        grid=(Bw,),
        in_specs=[
            pl.BlockSpec((1, N, C), lambda i: (i, 0, 0)),
            pl.BlockSpec((1, C), lambda i: (0, 0)),
            pl.BlockSpec((1, C), lambda i: (0, 0)),
            pl.BlockSpec((C, 3 * C), lambda i: (0, 0)),
            pl.BlockSpec((1, 3 * C), lambda i: (0, 0)),
            pl.BlockSpec((C, C), lambda i: (0, 0)),
            pl.BlockSpec((1, C), lambda i: (0, 0)),
            pl.BlockSpec((num_heads, N, N), lambda i: (0, 0, 0)),
            pl.BlockSpec((1, N, N), lambda i: (i, 0, 0)),
        ],
        out_specs=pl.BlockSpec((1, N, C), lambda i: (i, 0, 0)),
        compiler_params=pltpu.CompilerParams(dimension_semantics=("parallel",)),
    )(xw, ln_g, ln_b, p['wqkv'], bqkv, p['wproj'], bproj, rpb, mask)


# ----------------------------------------------------------------------------------------
# Kernel 3: fused LayerNorm2 + Linear(C->hidden) + GELU + Linear(hidden->C) + residual.
# ----------------------------------------------------------------------------------------
def mlp_block(tokens, p):
    B, L, C = tokens.shape
    Hd = p['w1'].shape[1]

    def kernel(x_ref, g_ref, b_ref, w1_ref, b1_ref, w2_ref, b2_ref, o_ref):
        x = x_ref[0]                                          # (L, C)
        mu = jnp.mean(x, axis=1, keepdims=True)
        var = jnp.mean((x - mu) ** 2, axis=1, keepdims=True)
        xn = (x - mu) * jax.lax.rsqrt(var + LN_EPS)
        xn = xn * g_ref[...] + b_ref[...]
        h = jnp.dot(xn, w1_ref[...], preferred_element_type=jnp.float32) + b1_ref[...]
        h = _gelu_tanh(h)
        y = jnp.dot(h, w2_ref[...], preferred_element_type=jnp.float32) + b2_ref[...]
        o_ref[0] = (x + y).astype(o_ref.dtype)

    return pl.pallas_call(
        kernel,
        out_shape=jax.ShapeDtypeStruct((B, L, C), jnp.float32),
        grid=(B,),
        in_specs=[
            pl.BlockSpec((1, L, C), lambda i: (i, 0, 0)),
            pl.BlockSpec((1, C), lambda i: (0, 0)),
            pl.BlockSpec((1, C), lambda i: (0, 0)),
            pl.BlockSpec((C, Hd), lambda i: (0, 0)),
            pl.BlockSpec((1, Hd), lambda i: (0, 0)),
            pl.BlockSpec((Hd, C), lambda i: (0, 0)),
            pl.BlockSpec((1, C), lambda i: (0, 0)),
        ],
        out_specs=pl.BlockSpec((1, L, C), lambda i: (i, 0, 0)),
        compiler_params=pltpu.CompilerParams(dimension_semantics=("parallel",)),
    )(tokens, p['ln2_g'].reshape(1, C), p['ln2_b'].reshape(1, C),
      p['w1'], p['b1'].reshape(1, Hd), p['w2'], p['b2'].reshape(1, C))


# ----------------------------------------------------------------------------------------
# Kernel 4: Conv2d(1x1) + ReLU; fuses the channels-last -> NCHW permute.
# ----------------------------------------------------------------------------------------
def conv1x1_relu(tokens, w, b):
    """tokens: (B, L, C) -> (B, Cout, L)."""
    B, L, C = tokens.shape
    Cout = w.shape[0]
    w2d = w.reshape(Cout, C)
    b2d = b.reshape(Cout, 1)

    def kernel(x_ref, w_ref, b_ref, o_ref):
        x = x_ref[0]                                          # (L, C)
        y = jax.lax.dot_general(w_ref[...], x, (((1,), (1,)), ((), ())),
                                preferred_element_type=jnp.float32)            # (Cout, L)
        o_ref[0] = jnp.maximum(y + b_ref[...], 0.0).astype(o_ref.dtype)

    return pl.pallas_call(
        kernel,
        out_shape=jax.ShapeDtypeStruct((B, Cout, L), jnp.float32),
        grid=(B,),
        in_specs=[
            pl.BlockSpec((1, L, C), lambda i: (i, 0, 0)),
            pl.BlockSpec((Cout, C), lambda i: (0, 0)),
            pl.BlockSpec((Cout, 1), lambda i: (0, 0)),
        ],
        out_specs=pl.BlockSpec((1, Cout, L), lambda i: (i, 0, 0)),
        compiler_params=pltpu.CompilerParams(dimension_semantics=("parallel",)),
    )(tokens, w2d, b2d)


# ----------------------------------------------------------------------------------------
# Layout glue (mirrors the PyTorch helpers).
# ----------------------------------------------------------------------------------------
def window_partition(x, ws):
    B, H, W, C = x.shape
    x = x.reshape(B, H // ws, ws, W // ws, ws, C)
    return jnp.transpose(x, (0, 1, 3, 2, 4, 5)).reshape(-1, ws, ws, C)


def window_reverse(wins, ws, H, W):
    B = wins.shape[0] // ((H // ws) * (W // ws))
    x = wins.reshape(B, H // ws, W // ws, ws, ws, -1)
    return jnp.transpose(x, (0, 1, 3, 2, 4, 5)).reshape(B, H, W, -1)


def shifted_window_mask(Hp, Wp, ws, shift):
    """SW-MSA additive mask (nW, ws*ws, ws*ws), mirrors BasicLayer.forward."""
    img = np.zeros((Hp, Wp), np.float32)
    slices = (slice(0, -ws), slice(-ws, -shift), slice(-shift, None))
    cnt = 0
    for hs in slices:
        for wsl in slices:
            img[hs, wsl] = cnt
            cnt += 1
    mw = img.reshape(Hp // ws, ws, Wp // ws, ws).transpose(0, 2, 1, 3).reshape(-1, ws * ws)
    am = mw[:, None, :] - mw[:, :, None]
    return jnp.asarray(np.where(am != 0, -100.0, 0.0).astype(np.float32))


def relative_position_index(ws):
    coords = np.stack(np.meshgrid(np.arange(ws), np.arange(ws), indexing='ij'))
    flat = coords.reshape(2, -1)
    rel = (flat[:, :, None] - flat[:, None, :]).transpose(1, 2, 0)
    rel[:, :, 0] += ws - 1
    rel[:, :, 1] += ws - 1
    rel[:, :, 0] *= 2 * ws - 1
    return rel.sum(-1)                                        # (N, N) int


def relative_position_bias(table, ws):
    N = ws * ws
    idx = relative_position_index(ws).reshape(-1)
    return jnp.transpose(table[idx].reshape(N, N, -1), (2, 0, 1))   # (nH, N, N)


def swin_block_forward(tokens, H, W, p, *, ws, shift, num_heads):
    # TODO(synk): when H/W are not multiples of window_size, torch pads AFTER norm1; here the
    # norm is fused per window, so exact parity is guaranteed for the no-padding case used below.
    B, L, C = tokens.shape
    x = tokens.reshape(B, H, W, C)
    pad_b = (ws - H % ws) % ws
    pad_r = (ws - W % ws) % ws
    x = jnp.pad(x, ((0, 0), (0, pad_b), (0, pad_r), (0, 0)))
    Hp, Wp = H + pad_b, W + pad_r
    nW = (Hp // ws) * (Wp // ws)
    N = ws * ws
    if shift > 0:
        x = jnp.roll(x, shift=(-shift, -shift), axis=(1, 2))
        mask = shifted_window_mask(Hp, Wp, ws, shift)
    else:
        mask = jnp.zeros((nW, N, N), jnp.float32)
    mask = jnp.broadcast_to(mask[None], (B, nW, N, N)).reshape(B * nW, N, N)
    xw = window_partition(x, ws).reshape(B * nW, N, C)
    rpb = relative_position_bias(p['rpb_table'], ws)
    yw = swin_attention_block(xw, mask, rpb, p, num_heads=num_heads)
    y = window_reverse(yw.reshape(B * nW, ws, ws, C), ws, Hp, Wp)
    if shift > 0:
        y = jnp.roll(y, shift=(shift, shift), axis=(1, 2))
    y = y[:, :H, :W, :].reshape(B, L, C)
    return mlp_block(y, p)


def swin_decoder_forward(x, params, *, window_size=7, num_heads=6, depths=2):
    """Pallas forward of SwinDecoder; x: (B, embed_dim, H, W) -> (B, embed_dim//4, 2H, 2W)."""
    B, C, H, W = x.shape
    # up_conv: Upsample(2x nearest) + Conv3x3 + GroupNorm + ReLU
    # TODO(synk): the nearest upsample is wrapper glue (jnp.repeat); it could be folded into
    # the conv kernel's tap slicing to save one HBM pass of the 4x activation.
    x_up = jnp.repeat(jnp.repeat(x, 2, axis=2), 2, axis=3)
    H2, W2 = 2 * H, 2 * W
    y = upconv_gn_relu(x_up, params['up_w'], params['up_b'],
                       params['up_gamma'], params['up_beta'], groups=GROUPS)   # (B, C//2, L)
    # x.reshape(B, C//2, H*W*4).permute(0, 2, 1)
    tokens = jnp.transpose(y, (0, 2, 1))                                       # (B, L, C//2)
    # BasicLayer: alternating W-MSA / SW-MSA blocks (dropout / drop_path = identity in eval)
    for i in range(depths):
        shift = 0 if i % 2 == 0 else window_size // 2
        tokens = swin_block_forward(tokens, H2, W2, params['blocks'][i],
                                    ws=window_size, shift=shift, num_heads=num_heads)
    # permute back to channel-first + Conv1x1 + ReLU (fused in the kernel)
    out = conv1x1_relu(tokens, params['c1_w'], params['c1_b'])                 # (B, C//4, L)
    return out.reshape(B, -1, H2, W2)


# ----------------------------------------------------------------------------------------
# Pure-JAX reference (mirrors the PyTorch forward) for the numerical check.
# ----------------------------------------------------------------------------------------
def _layernorm(t, g, b):
    mu = t.mean(-1, keepdims=True)
    var = ((t - mu) ** 2).mean(-1, keepdims=True)
    return (t - mu) * jax.lax.rsqrt(var + LN_EPS) * g + b


def ref_swin_block(tokens, H, W, p, *, ws, shift, num_heads):
    B, L, C = tokens.shape
    hd = C // num_heads
    scale = hd ** -0.5
    shortcut = tokens
    x = _layernorm(tokens, p['ln1_g'], p['ln1_b']).reshape(B, H, W, C)
    pad_b = (ws - H % ws) % ws
    pad_r = (ws - W % ws) % ws
    x = jnp.pad(x, ((0, 0), (0, pad_b), (0, pad_r), (0, 0)))
    Hp, Wp = H + pad_b, W + pad_r
    nW = (Hp // ws) * (Wp // ws)
    N = ws * ws
    if shift > 0:
        x = jnp.roll(x, shift=(-shift, -shift), axis=(1, 2))
        mask = shifted_window_mask(Hp, Wp, ws, shift)
    else:
        mask = jnp.zeros((nW, N, N), jnp.float32)
    xw = window_partition(x, ws).reshape(-1, N, C)
    qkv = xw @ p['wqkv'] + p['bqkv']
    qkv = qkv.reshape(-1, N, 3, num_heads, hd).transpose(2, 0, 3, 1, 4)
    q, k, v = qkv[0] * scale, qkv[1], qkv[2]
    attn = jnp.einsum('bhnd,bhmd->bhnm', q, k)
    attn = attn + relative_position_bias(p['rpb_table'], ws)[None]
    attn = attn.reshape(B, nW, num_heads, N, N) + mask[None, :, None]
    attn = jax.nn.softmax(attn.reshape(-1, num_heads, N, N), axis=-1)
    out = jnp.einsum('bhnm,bhmd->bhnd', attn, v).transpose(0, 2, 1, 3).reshape(-1, N, C)
    out = out @ p['wproj'] + p['bproj']
    y = window_reverse(out.reshape(-1, ws, ws, C), ws, Hp, Wp)
    if shift > 0:
        y = jnp.roll(y, shift=(shift, shift), axis=(1, 2))
    x = shortcut + y[:, :H, :W, :].reshape(B, L, C)
    h = _layernorm(x, p['ln2_g'], p['ln2_b'])
    h = _gelu_tanh(h @ p['w1'] + p['b1']) @ p['w2'] + p['b2']
    return x + h


def ref_forward(x, params, *, window_size=7, num_heads=6, depths=2):
    B, C, H, W = x.shape
    xu = jnp.repeat(jnp.repeat(x, 2, axis=2), 2, axis=3)
    y = jax.lax.conv_general_dilated(xu, params['up_w'], (1, 1), ((1, 1), (1, 1)),
                                     dimension_numbers=("NCHW", "OIHW", "NCHW"))
    y = y + params['up_b'][None, :, None, None]
    Co = y.shape[1]
    cg = Co // GROUPS
    yg = y.reshape(B, GROUPS, cg, -1)
    mu = yg.mean(axis=(2, 3), keepdims=True)
    var = ((yg - mu) ** 2).mean(axis=(2, 3), keepdims=True)
    y = ((yg - mu) * jax.lax.rsqrt(var + GN_EPS)).reshape(B, Co, 2 * H, 2 * W)
    y = y * params['up_gamma'][None, :, None, None] + params['up_beta'][None, :, None, None]
    y = jnp.maximum(y, 0.0)
    H2, W2 = 2 * H, 2 * W
    tokens = jnp.transpose(y.reshape(B, Co, H2 * W2), (0, 2, 1))
    for i in range(depths):
        shift = 0 if i % 2 == 0 else window_size // 2
        tokens = ref_swin_block(tokens, H2, W2, params['blocks'][i],
                                ws=window_size, shift=shift, num_heads=num_heads)
    xc = jnp.transpose(tokens, (0, 2, 1)).reshape(B, Co, H2, W2)
    w1 = params['c1_w'].reshape(params['c1_w'].shape[0], Co)
    out = jnp.einsum('oc,bchw->bohw', w1, xc) + params['c1_b'][None, :, None, None]
    return jnp.maximum(out, 0.0)


# ----------------------------------------------------------------------------------------
# Deterministic synthetic parameters (PyTorch-shaped) and driver.
# ----------------------------------------------------------------------------------------
def init_params(key, embed_dim, *, num_heads=6, window_size=7, depths=2, mlp_ratio=4.0):
    C = embed_dim // 2
    hidden = int(C * mlp_ratio)
    keys = iter(jax.random.split(key, 64))

    def uniform(k, shape, fan_in):
        bnd = 1.0 / math.sqrt(fan_in)
        return jax.random.uniform(k, shape, jnp.float32, -bnd, bnd)

    params = {
        'up_w': uniform(next(keys), (C, embed_dim, 3, 3), embed_dim * 9),
        'up_b': uniform(next(keys), (C,), embed_dim * 9),
        'up_gamma': 1.0 + 0.1 * jax.random.normal(next(keys), (C,), jnp.float32),
        'up_beta': 0.1 * jax.random.normal(next(keys), (C,), jnp.float32),
        'c1_w': uniform(next(keys), (embed_dim // 4, C, 1, 1), C),
        'c1_b': uniform(next(keys), (embed_dim // 4,), C),
        'blocks': [],
    }
    for _ in range(depths):
        blk = {
            'ln1_g': 1.0 + 0.1 * jax.random.normal(next(keys), (C,), jnp.float32),
            'ln1_b': 0.1 * jax.random.normal(next(keys), (C,), jnp.float32),
            'wqkv': uniform(next(keys), (C, 3 * C), C),
            'bqkv': uniform(next(keys), (3 * C,), C),
            'wproj': uniform(next(keys), (C, C), C),
            'bproj': uniform(next(keys), (C,), C),
            'rpb_table': 0.02 * jax.random.normal(
                next(keys), ((2 * window_size - 1) ** 2, num_heads), jnp.float32),
            'ln2_g': 1.0 + 0.1 * jax.random.normal(next(keys), (C,), jnp.float32),
            'ln2_b': 0.1 * jax.random.normal(next(keys), (C,), jnp.float32),
            'w1': uniform(next(keys), (C, hidden), C),
            'b1': uniform(next(keys), (hidden,), C),
            'w2': uniform(next(keys), (hidden, C), hidden),
            'b2': uniform(next(keys), (C,), hidden),
        }
        params['blocks'].append(blk)
    return params


if __name__ == "__main__":
    # embed_dim=48: embed_dim//2=24 channels (divisible by groups=24 and num_heads=6),
    # spatial 7x7 -> 14x14 after upsample (multiple of window_size=7, no window padding).
    B, embed_dim, H, W = 2, 48, 7, 7
    key = jax.random.PRNGKey(0)
    kx, kp = jax.random.split(key)
    x = jax.random.normal(kx, (B, embed_dim, H, W), jnp.float32)
    params = init_params(kp, embed_dim)

    out = jax.block_until_ready(jax.jit(swin_decoder_forward)(x, params))
    assert out.shape == (B, embed_dim // 4, 2 * H, 2 * W)

    ref = jax.block_until_ready(jax.jit(ref_forward)(x, params))
    err = float(jnp.max(jnp.abs(out - ref)))
    assert err < 2e-3, f"max abs err {err}"

    print("KERNEL_OK")
</pallas_src>

<mosaic_0001>
module attributes {stable_mosaic.version = 11 : i64} {
  func.func @kernel(%arg0: i32, %arg1: memref<1x48x226xf32, #tpu.memory_space<vmem>>, %arg2: memref<24x432xf32, #tpu.memory_space<vmem>>, %arg3: memref<24x1xf32, #tpu.memory_space<vmem>>, %arg4: memref<24x1xf32, #tpu.memory_space<vmem>>, %arg5: memref<24x1xf32, #tpu.memory_space<vmem>>, %arg6: memref<3x196xf32, #tpu.memory_space<vmem>>, %arg7: memref<1x24x196xf32, #tpu.memory_space<vmem>>) attributes {dimension_semantics = [#tpu.dimension_semantics<parallel>], iteration_bounds = array<i64: 2>, scalar_prefetch = 0 : i64, scratch_operands = 0 : i64, tpu.core_type = #tpu.core_type<tc>, window_params = [{transform_indices = @transform_0, window_bounds = array<i64: 1, 48, 226>}, {pipeline_mode = #tpu.pipeline_mode<synchronous>, transform_indices = @transform_1, window_bounds = array<i64: 24, 432>}, {pipeline_mode = #tpu.pipeline_mode<synchronous>, transform_indices = @transform_2, window_bounds = array<i64: 24, 1>}, {pipeline_mode = #tpu.pipeline_mode<synchronous>, transform_indices = @transform_3, window_bounds = array<i64: 24, 1>}, {pipeline_mode = #tpu.pipeline_mode<synchronous>, transform_indices = @transform_4, window_bounds = array<i64: 24, 1>}, {pipeline_mode = #tpu.pipeline_mode<synchronous>, transform_indices = @transform_5, window_bounds = array<i64: 3, 196>}, {transform_indices = @transform_6, window_bounds = array<i64: 1, 24, 196>}]} {
    %c0 = arith.constant 0 : index
    %c0_0 = arith.constant 0 : index
    %c0_1 = arith.constant 0 : index
    %0 = vector.load %arg1[%c0, %c0_0, %c0_1] : memref<1x48x226xf32, #tpu.memory_space<vmem>>, vector<1x48x226xf32>
    %1 = vector.shape_cast %0 : vector<1x48x226xf32> to vector<48x226xf32>
    %c0_2 = arith.constant 0 : index
    %c0_3 = arith.constant 0 : index
    %2 = vector.load %arg6[%c0_2, %c0_3] : memref<3x196xf32, #tpu.memory_space<vmem>>, vector<3x196xf32>
    %3 = vector.extract_strided_slice %1 {offsets = [0, 0], sizes = [48, 196], strides = [1, 1]} : vector<48x226xf32> to vector<48x196xf32>
    %4 = vector.extract_strided_slice %2 {offsets = [0, 0], sizes = [1, 196], strides = [1, 1]} : vector<3x196xf32> to vector<1x196xf32>
    %5 = vector.broadcast %4 : vector<1x196xf32> to vector<48x196xf32>
    %6 = arith.mulf %3, %5 : vector<48x196xf32>
    %7 = vector.extract_strided_slice %1 {offsets = [0, 1], sizes = [48, 196], strides = [1, 1]} : vector<48x226xf32> to vector<48x196xf32>
    %8 = vector.extract_strided_slice %2 {offsets = [1, 0], sizes = [1, 196], strides = [1, 1]} : vector<3x196xf32> to vector<1x196xf32>
    %9 = vector.broadcast %8 : vector<1x196xf32> to vector<48x196xf32>
    %10 = arith.mulf %7, %9 : vector<48x196xf32>
    %11 = vector.extract_strided_slice %1 {offsets = [0, 2], sizes = [48, 196], strides = [1, 1]} : vector<48x226xf32> to vector<48x196xf32>
    %12 = vector.extract_strided_slice %2 {offsets = [2, 0], sizes = [1, 196], strides = [1, 1]} : vector<3x196xf32> to vector<1x196xf32>
    %13 = vector.broadcast %12 : vector<1x196xf32> to vector<48x196xf32>
    %14 = arith.mulf %11, %13 : vector<48x196xf32>
    %15 = vector.extract_strided_slice %1 {offsets = [0, 14], sizes = [48, 196], strides = [1, 1]} : vector<48x226xf32> to vector<48x196xf32>
    %16 = vector.extract_strided_slice %2 {offsets = [0, 0], sizes = [1, 196], strides = [1, 1]} : vector<3x196xf32> to vector<1x196xf32>
    %17 = vector.broadcast %16 : vector<1x196xf32> to vector<48x196xf32>
    %18 = arith.mulf %15, %17 : vector<48x196xf32>
    %19 = vector.extract_strided_slice %1 {offsets = [0, 15], sizes = [48, 196], strides = [1, 1]} : vector<48x226xf32> to vector<48x196xf32>
    %20 = vector.extract_strided_slice %2 {offsets = [1, 0], sizes = [1, 196], strides = [1, 1]} : vector<3x196xf32> to vector<1x196xf32>
    %21 = vector.broadcast %20 : vector<1x196xf32> to vector<48x196xf32>
    %22 = arith.mulf %19, %21 : vector<48x196xf32>
    %23 = vector.extract_strided_slice %1 {offsets = [0, 16], sizes = [48, 196], strides = [1, 1]} : vector<48x226xf32> to vector<48x196xf32>
    %24 = vector.extract_strided_slice %2 {offsets = [2, 0], sizes = [1, 196], strides = [1, 1]} : vector<3x196xf32> to vector<1x196xf32>
    %25 = vector.broadcast %24 : vector<1x196xf32> to vector<48x196xf32>
    %26 = arith.mulf %23, %25 : vector<48x196xf32>
    %27 = vector.extract_strided_slice %1 {offsets = [0, 28], sizes = [48, 196], strides = [1, 1]} : vector<48x226xf32> to vector<48x196xf32>
    %28 = vector.extract_strided_slice %2 {offsets = [0, 0], sizes = [1, 196], strides = [1, 1]} : vector<3x196xf32> to vector<1x196xf32>
    %29 = vector.broadcast %28 : vector<1x196xf32> to vector<48x196xf32>
    %30 = arith.mulf %27, %29 : vector<48x196xf32>
    %31 = vector.extract_strided_slice %1 {offsets = [0, 29], sizes = [48, 196], strides = [1, 1]} : vector<48x226xf32> to vector<48x196xf32>
    %32 = vector.extract_strided_slice %2 {offsets = [1, 0], sizes = [1, 196], strides = [1, 1]} : vector<3x196xf32> to vector<1x196xf32>
    %33 = vector.broadcast %32 : vector<1x196xf32> to vector<48x196xf32>
    %34 = arith.mulf %31, %33 : vector<48x196xf32>
    %35 = vector.extract_strided_slice %1 {offsets = [0, 30], sizes = [48, 196], strides = [1, 1]} : vector<48x226xf32> to vector<48x196xf32>
    %36 = vector.extract_strided_slice %2 {offsets = [2, 0], sizes = [1, 196], strides = [1, 1]} : vector<3x196xf32> to vector<1x196xf32>
    %37 = vector.broadcast %36 : vector<1x196xf32> to vector<48x196xf32>
    %38 = arith.mulf %35, %37 : vector<48x196xf32>
    %39 = tpu.concatenate %6, %10, %14, %18, %22, %26, %30, %34, %38 in 0 : vector<48x196xf32>, vector<48x196xf32>, vector<48x196xf32>, vector<48x196xf32>, vector<48x196xf32>, vector<48x196xf32>, vector<48x196xf32>, vector<48x196xf32>, vector<48x196xf32> -> vector<432x196xf32>
    %c0_4 = arith.constant 0 : index
    %c0_5 = arith.constant 0 : index
    %40 = vector.load %arg2[%c0_4, %c0_5] : memref<24x432xf32, #tpu.memory_space<vmem>>, vector<24x432xf32>
    %cst = arith.constant dense<0.000000e+00> : vector<24x196xf32>
    %41 = tpu.matmul %40, %39, %cst {dimension_numbers = #tpu.dot_dimension_numbers<[1], [0], [0], [1], [0, 0, 1, 1], [], []>} : vector<24x432xf32>, vector<432x196xf32>, vector<24x196xf32> -> vector<24x196xf32>
    %c0_6 = arith.constant 0 : index
    %c0_7 = arith.constant 0 : index
    %42 = vector.load %arg3[%c0_6, %c0_7] : memref<24x1xf32, #tpu.memory_space<vmem>>, vector<24x1xf32>
    %43 = vector.broadcast %42 : vector<24x1xf32> to vector<24x196xf32>
    %44 = arith.addf %41, %43 : vector<24x196xf32>
    %cst_8 = arith.constant dense<0.000000e+00> : vector<24xf32>
    %45 = vector.multi_reduction <add>, %44, %cst_8 [1] : vector<24x196xf32> to vector<24xf32>
    %46 = vector.shape_cast %45 : vector<24xf32> to vector<24x1xf32>
    %cst_9 = arith.constant 1.960000e+02 : f32
    %47 = vector.broadcast %cst_9 : f32 to vector<24x1xf32>
    %48 = arith.divf %46, %47 : vector<24x1xf32>
    %cst_10 = arith.constant dense<0.000000e+00> : vector<24xf32>
    %49 = vector.multi_reduction <add>, %48, %cst_10 [1] : vector<24x1xf32> to vector<24xf32>
    %50 = vector.shape_cast %49 : vector<24xf32> to vector<24x1xf32>
    %cst_11 = arith.constant 1.000000e+00 : f32
    %51 = vector.broadcast %cst_11 : f32 to vector<24x1xf32>
    %52 = arith.divf %50, %51 : vector<24x1xf32>
    %53 = vector.broadcast %52 : vector<24x1xf32> to vector<24x196xf32>
    %54 = arith.subf %44, %53 : vector<24x196xf32>
    %55 = arith.mulf %54, %54 : vector<24x196xf32>
    %cst_12 = arith.constant dense<0.000000e+00> : vector<24xf32>
    %56 = vector.multi_reduction <add>, %55, %cst_12 [1] : vector<24x196xf32> to vector<24xf32>
    %57 = vector.shape_cast %56 : vector<24xf32> to vector<24x1xf32>
    %cst_13 = arith.constant 1.960000e+02 : f32
    %58 = vector.broadcast %cst_13 : f32 to vector<24x1xf32>
    %59 = arith.divf %57, %58 : vector<24x1xf32>
    %cst_14 = arith.constant dense<0.000000e+00> : vector<24xf32>
    %60 = vector.multi_reduction <add>, %59, %cst_14 [1] : vector<24x1xf32> to vector<24xf32>
    %61 = vector.shape_cast %60 : vector<24xf32> to vector<24x1xf32>
    %cst_15 = arith.constant 1.000000e+00 : f32
    %62 = vector.broadcast %cst_15 : f32 to vector<24x1xf32>
    %63 = arith.divf %61, %62 : vector<24x1xf32>
    %cst_16 = arith.constant 9.99999974E-6 : f32
    %64 = vector.broadcast %cst_16 : f32 to vector<24x1xf32>
    %65 = arith.addf %63, %64 : vector<24x1xf32>
    %66 = math.rsqrt %65 : vector<24x1xf32>
    %67 = vector.broadcast %66 : vector<24x1xf32> to vector<24x196xf32>
    %68 = arith.mulf %54, %67 : vector<24x196xf32>
    %c0_17 = arith.constant 0 : index
    %c0_18 = arith.constant 0 : index
    %69 = vector.load %arg4[%c0_17, %c0_18] : memref<24x1xf32, #tpu.memory_space<vmem>>, vector<24x1xf32>
    %70 = vector.broadcast %69 : vector<24x1xf32> to vector<24x196xf32>
    %71 = arith.mulf %68, %70 : vector<24x196xf32>
    %c0_19 = arith.constant 0 : index
    %c0_20 = arith.constant 0 : index
    %72 = vector.load %arg5[%c0_19, %c0_20] : memref<24x1xf32, #tpu.memory_space<vmem>>, vector<24x1xf32>
    %73 = vector.broadcast %72 : vector<24x1xf32> to vector<24x196xf32>
    %74 = arith.addf %71, %73 : vector<24x196xf32>
    %cst_21 = arith.constant 0.000000e+00 : f32
    %75 = vector.broadcast %cst_21 : f32 to vector<24x196xf32>
    %76 = arith.maximumf %74, %75 : vector<24x196xf32>
    %c0_22 = arith.constant 0 : index
    %c0_23 = arith.constant 0 : index
    %c0_24 = arith.constant 0 : index
    %77 = vector.load %arg7[%c0_22, %c0_23, %c0_24] : memref<1x24x196xf32, #tpu.memory_space<vmem>>, vector<1x24x196xf32>
    %78 = vector.shape_cast %77 : vector<1x24x196xf32> to vector<24x196xf32>
    %79 = vector.shape_cast %76 : vector<24x196xf32> to vector<1x24x196xf32>
    tpu.vector_store %arg7[%c0_22, %c0_23, %c0_24], %79 {strides = array<i32>} : memref<1x24x196xf32, #tpu.memory_space<vmem>>, vector<1x24x196xf32>,
    return
  }
  func.func @transform_0(%arg0: i32) -> (i32, i32, i32) {
    %c0_i32 = arith.constant 0 : i32
    %c0_i32_0 = arith.constant 0 : i32
    %c0_i32_1 = arith.constant 0 : i32
    return %arg0, %c0_i32, %c0_i32_0 : i32, i32, i32
  }
  func.func @transform_1(%arg0: i32) -> (i32, i32) {
    %c0_i32 = arith.constant 0 : i32
    %c0_i32_0 = arith.constant 0 : i32
    %c0_i32_1 = arith.constant 0 : i32
    return %c0_i32, %c0_i32_0 : i32, i32
  }
  func.func @transform_2(%arg0: i32) -> (i32, i32) {
    %c0_i32 = arith.constant 0 : i32
    %c0_i32_0 = arith.constant 0 : i32
    %c0_i32_1 = arith.constant 0 : i32
    return %c0_i32, %c0_i32_0 : i32, i32
  }
  func.func @transform_3(%arg0: i32) -> (i32, i32) {
    %c0_i32 = arith.constant 0 : i32
    %c0_i32_0 = arith.constant 0 : i32
    %c0_i32_1 = arith.constant 0 : i32
    return %c0_i32, %c0_i32_0 : i32, i32
  }
  func.func @transform_4(%arg0: i32) -> (i32, i32) {
    %c0_i32 = arith.constant 0 : i32
    %c0_i32_0 = arith.constant 0 : i32
    %c0_i32_1 = arith.constant 0 : i32
    return %c0_i32, %c0_i32_0 : i32, i32
  }
  func.func @transform_5(%arg0: i32) -> (i32, i32) {
    %c0_i32 = arith.constant 0 : i32
    %c0_i32_0 = arith.constant 0 : i32
    %c0_i32_1 = arith.constant 0 : i32
    return %c0_i32, %c0_i32_0 : i32, i32
  }
  func.func @transform_6(%arg0: i32) -> (i32, i32, i32) {
    %c0_i32 = arith.constant 0 : i32
    %c0_i32_0 = arith.constant 0 : i32
    %c0_i32_1 = arith.constant 0 : i32
    return %arg0, %c0_i32, %c0_i32_0 : i32, i32, i32
  }
}

module attributes {stable_mosaic.version = 11 : i64} {
  func.func @kernel(%arg0: i32, %arg1: memref<1x49x24xf32, #tpu.memory_space<vmem>>, %arg2: memref<1x24xf32, #tpu.memory_space<vmem>>, %arg3: memref<1x24xf32, #tpu.memory_space<vmem>>, %arg4: memref<24x72xf32, #tpu.memory_space<vmem>>, %arg5: memref<1x72xf32, #tpu.memory_space<vmem>>, %arg6: memref<24x24xf32, #tpu.memory_space<vmem>>, %arg7: memref<1x24xf32, #tpu.memory_space<vmem>>, %arg8: memref<6x49x49xf32, #tpu.memory_space<vmem>>, %arg9: memref<1x49x49xf32, #tpu.memory_space<vmem>>, %arg10: memref<1x49x24xf32, #tpu.memory_space<vmem>>) attributes {dimension_semantics = [#tpu.dimension_semantics<parallel>], iteration_bounds = array<i64: 8>, scalar_prefetch = 0 : i64, scratch_operands = 0 : i64, tpu.core_type = #tpu.core_type<tc>, window_params = [{transform_indices = @transform_0, window_bounds = array<i64: 1, 49, 24>}, {pipeline_mode = #tpu.pipeline_mode<synchronous>, transform_indices = @transform_1, window_bounds = array<i64: 1, 24>}, {pipeline_mode = #tpu.pipeline_mode<synchronous>, transform_indices = @transform_2, window_bounds = array<i64: 1, 24>}, {pipeline_mode = #tpu.pipeline_mode<synchronous>, transform_indices = @transform_3, window_bounds = array<i64: 24, 72>}, {pipeline_mode = #tpu.pipeline_mode<synchronous>, transform_indices = @transform_4, window_bounds = array<i64: 1, 72>}, {pipeline_mode = #tpu.pipeline_mode<synchronous>, transform_indices = @transform_5, window_bounds = array<i64: 24, 24>}, {pipeline_mode = #tpu.pipeline_mode<synchronous>, transform_indices = @transform_6, window_bounds = array<i64: 1, 24>}, {pipeline_mode = #tpu.pipeline_mode<synchronous>, transform_indices = @transform_7, window_bounds = array<i64: 6, 49, 49>}, {transform_indices = @transform_8, window_bounds = array<i64: 1, 49, 49>}, {transform_indices = @transform_9, window_bounds = array<i64: 1, 49, 24>}]} {
    %c0 = arith.constant 0 : index
    %c0_0 = arith.constant 0 : index
    %c0_1 = arith.constant 0 : index
    %0 = vector.load %arg1[%c0, %c0_0, %c0_1] : memref<1x49x24xf32, #tpu.memory_space<vmem>>, vector<1x49x24xf32>
    %1 = vector.shape_cast %0 : vector<1x49x24xf32> to vector<49x24xf32>
    %cst = arith.constant dense<0.000000e+00> : vector<49xf32>
    %2 = vector.multi_reduction <add>, %1, %cst [1] : vector<49x24xf32> to vector<49xf32>
    %3 = vector.shape_cast %2 : vector<49xf32> to vector<49x1xf32>
    %cst_2 = arith.constant 2.400000e+01 : f32
    %4 = vector.broadcast %cst_2 : f32 to vector<49x1xf32>
    %5 = arith.divf %3, %4 : vector<49x1xf32>
    %6 = vector.broadcast %5 : vector<49x1xf32> to vector<49x24xf32>
    %7 = arith.subf %1, %6 : vector<49x24xf32>
    %8 = arith.mulf %7, %7 : vector<49x24xf32>
    %cst_3 = arith.constant dense<0.000000e+00> : vector<49xf32>
    %9 = vector.multi_reduction <add>, %8, %cst_3 [1] : vector<49x24xf32> to vector<49xf32>
    %10 = vector.shape_cast %9 : vector<49xf32> to vector<49x1xf32>
    %cst_4 = arith.constant 2.400000e+01 : f32
    %11 = vector.broadcast %cst_4 : f32 to vector<49x1xf32>
    %12 = arith.divf %10, %11 : vector<49x1xf32>
    %13 = vector.broadcast %5 : vector<49x1xf32> to vector<49x24xf32>
    %14 = arith.subf %1, %13 : vector<49x24xf32>
    %cst_5 = arith.constant 9.99999974E-6 : f32
    %15 = vector.broadcast %cst_5 : f32 to vector<49x1xf32>
    %16 = arith.addf %12, %15 : vector<49x1xf32>
    %17 = math.rsqrt %16 : vector<49x1xf32>
    %18 = vector.broadcast %17 : vector<49x1xf32> to vector<49x24xf32>
    %19 = arith.mulf %14, %18 : vector<49x24xf32>
    %c0_6 = arith.constant 0 : index
    %c0_7 = arith.constant 0 : index
    %20 = vector.load %arg2[%c0_6, %c0_7] : memref<1x24xf32, #tpu.memory_space<vmem>>, vector<1x24xf32>
    %21 = vector.broadcast %20 : vector<1x24xf32> to vector<49x24xf32>
    %22 = arith.mulf %19, %21 : vector<49x24xf32>
    %c0_8 = arith.constant 0 : index
    %c0_9 = arith.constant 0 : index
    %23 = vector.load %arg3[%c0_8, %c0_9] : memref<1x24xf32, #tpu.memory_space<vmem>>, vector<1x24xf32>
    %24 = vector.broadcast %23 : vector<1x24xf32> to vector<49x24xf32>
    %25 = arith.addf %22, %24 : vector<49x24xf32>
    %c0_10 = arith.constant 0 : index
    %c0_11 = arith.constant 0 : index
    %26 = vector.load %arg4[%c0_10, %c0_11] : memref<24x72xf32, #tpu.memory_space<vmem>>, vector<24x72xf32>
    %cst_12 = arith.constant dense<0.000000e+00> : vector<49x72xf32>
    %27 = tpu.matmul %25, %26, %cst_12 {dimension_numbers = #tpu.dot_dimension_numbers<[1], [0], [0], [1], [0, 0, 1, 1], [], []>} : vector<49x24xf32>, vector<24x72xf32>, vector<49x72xf32> -> vector<49x72xf32>
    %c0_13 = arith.constant 0 : index
    %c0_14 = arith.constant 0 : index
    %28 = vector.load %arg5[%c0_13, %c0_14] : memref<1x72xf32, #tpu.memory_space<vmem>>, vector<1x72xf32>
    %29 = vector.broadcast %28 : vector<1x72xf32> to vector<49x72xf32>
    %30 = arith.addf %27, %29 : vector<49x72xf32>
    %c0_15 = arith.constant 0 : index
    %c0_16 = arith.constant 0 : index
    %31 = vector.load %arg6[%c0_15, %c0_16] : memref<24x24xf32, #tpu.memory_space<vmem>>, vector<24x24xf32>
    %c0_17 = arith.constant 0 : index
    %c0_18 = arith.constant 0 : index
    %c0_19 = arith.constant 0 : index
    %32 = vector.load %arg9[%c0_17, %c0_18, %c0_19] : memref<1x49x49xf32, #tpu.memory_space<vmem>>, vector<1x49x49xf32>
    %33 = vector.shape_cast %32 : vector<1x49x49xf32> to vector<49x49xf32>
    %cst_20 = arith.constant 0.000000e+00 : f32
    %34 = vector.broadcast %cst_20 : f32 to vector<49x24xf32>
    %35 = vector.extract_strided_slice %30 {offsets = [0, 0], sizes = [49, 4], strides = [1, 1]} : vector<49x72xf32> to vector<49x4xf32>
    %cst_21 = arith.constant 5.000000e-01 : f32
    %36 = vector.broadcast %cst_21 : f32 to vector<49x4xf32>
    %37 = arith.mulf %35, %36 : vector<49x4xf32>
    %38 = vector.extract_strided_slice %30 {offsets = [0, 24], sizes = [49, 4], strides = [1, 1]} : vector<49x72xf32> to vector<49x4xf32>
    %39 = vector.extract_strided_slice %30 {offsets = [0, 48], sizes = [49, 4], strides = [1, 1]} : vector<49x72xf32> to vector<49x4xf32>
    %cst_22 = arith.constant dense<0.000000e+00> : vector<49x49xf32>
    %40 = tpu.matmul %37, %38, %cst_22 {dimension_numbers = #tpu.dot_dimension_numbers<[1], [1], [0], [0], [0, 0, 1, 0], [], []>} : vector<49x4xf32>, vector<49x4xf32>, vector<49x49xf32> -> vector<49x49xf32>
    %c0_23 = arith.constant 0 : index
    %c0_24 = arith.constant 0 : index
    %c0_25 = arith.constant 0 : index
    %41 = vector.load %arg8[%c0_23, %c0_24, %c0_25] : memref<6x49x49xf32, #tpu.memory_space<vmem>>, vector<1x49x49xf32>
    %42 = vector.shape_cast %41 : vector<1x49x49xf32> to vector<49x49xf32>
    %43 = arith.addf %40, %42 : vector<49x49xf32>
    %44 = arith.addf %43, %33 : vector<49x49xf32>
    %cst_26 = arith.constant dense<0xFF800000> : vector<49xf32>
    %45 = vector.multi_reduction <maximumf>, %44, %cst_26 [1] : vector<49x49xf32> to vector<49xf32>
    %46 = vector.shape_cast %45 : vector<49xf32> to vector<49x1xf32>
    %47 = vector.broadcast %46 : vector<49x1xf32> to vector<49x49xf32>
    %48 = arith.subf %44, %47 : vector<49x49xf32>
    %49 = math.exp %48 : vector<49x49xf32>
    %cst_27 = arith.constant dense<0.000000e+00> : vector<49xf32>
    %50 = vector.multi_reduction <add>, %49, %cst_27 [1] : vector<49x49xf32> to vector<49xf32>
    %51 = vector.shape_cast %50 : vector<49xf32> to vector<49x1xf32>
    %52 = vector.broadcast %51 : vector<49x1xf32> to vector<49x49xf32>
    %53 = arith.divf %49, %52 : vector<49x49xf32>
    %cst_28 = arith.constant dense<0.000000e+00> : vector<49x4xf32>
    %54 = tpu.matmul %53, %39, %cst_28 {dimension_numbers = #tpu.dot_dimension_numbers<[1], [0], [0], [1], [0, 0, 1, 1], [], []>} : vector<49x49xf32>, vector<49x4xf32>, vector<49x4xf32> -> vector<49x4xf32>
    %55 = vector.extract_strided_slice %31 {offsets = [0, 0], sizes = [4, 24], strides = [1, 1]} : vector<24x24xf32> to vector<4x24xf32>
    %cst_29 = arith.constant dense<0.000000e+00> : vector<49x24xf32>
    %56 = tpu.matmul %54, %55, %cst_29 {dimension_numbers = #tpu.dot_dimension_numbers<[1], [0], [0], [1], [0, 0, 1, 1], [], []>} : vector<49x4xf32>, vector<4x24xf32>, vector<49x24xf32> -> vector<49x24xf32>
    %57 = arith.addf %34, %56 : vector<49x24xf32>
    %58 = vector.extract_strided_slice %30 {offsets = [0, 4], sizes = [49, 4], strides = [1, 1]} : vector<49x72xf32> to vector<49x4xf32>
    %cst_30 = arith.constant 5.000000e-01 : f32
    %59 = vector.broadcast %cst_30 : f32 to vector<49x4xf32>
    %60 = arith.mulf %58, %59 : vector<49x4xf32>
    %61 = vector.extract_strided_slice %30 {offsets = [0, 28], sizes = [49, 4], strides = [1, 1]} : vector<49x72xf32> to vector<49x4xf32>
    %62 = vector.extract_strided_slice %30 {offsets = [0, 52], sizes = [49, 4], strides = [1, 1]} : vector<49x72xf32> to vector<49x4xf32>
    %cst_31 = arith.constant dense<0.000000e+00> : vector<49x49xf32>
    %63 = tpu.matmul %60, %61, %cst_31 {dimension_numbers = #tpu.dot_dimension_numbers<[1], [1], [0], [0], [0, 0, 1, 0], [], []>} : vector<49x4xf32>, vector<49x4xf32>, vector<49x49xf32> -> vector<49x49xf32>
    %c1 = arith.constant 1 : index
    %c0_32 = arith.constant 0 : index
    %c0_33 = arith.constant 0 : index
    %64 = vector.load %arg8[%c1, %c0_32, %c0_33] : memref<6x49x49xf32, #tpu.memory_space<vmem>>, vector<1x49x49xf32>
    %65 = vector.shape_cast %64 : vector<1x49x49xf32> to vector<49x49xf32>
    %66 = arith.addf %63, %65 : vector<49x49xf32>
    %67 = arith.addf %66, %33 : vector<49x49xf32>
    %cst_34 = arith.constant dense<0xFF800000> : vector<49xf32>
    %68 = vector.multi_reduction <maximumf>, %67, %cst_34 [1] : vector<49x49xf32> to vector<49xf32>
    %69 = vector.shape_cast %68 : vector<49xf32> to vector<49x1xf32>
    %70 = vector.broadcast %69 : vector<49x1xf32> to vector<49x49xf32>
    %71 = arith.subf %67, %70 : vector<49x49xf32>
    %72 = math.exp %71 : vector<49x49xf32>
    %cst_35 = arith.constant dense<0.000000e+00> : vector<49xf32>
    %73 = vector.multi_reduction <add>, %72, %cst_35 [1] : vector<49x49xf32> to vector<49xf32>
    %74 = vector.shape_cast %73 : vector<49xf32> to vector<49x1xf32>
    %75 = vector.broadcast %74 : vector<49x1xf32> to vector<49x49xf32>
    %76 = arith.divf %72, %75 : vector<49x49xf32>
    %cst_36 = arith.constant dense<0.000000e+00> : vector<49x4xf32>
    %77 = tpu.matmul %76, %62, %cst_36 {dimension_numbers = #tpu.dot_dimension_numbers<[1], [0], [0], [1], [0, 0, 1, 1], [], []>} : vector<49x49xf32>, vector<49x4xf32>, vector<49x4xf32> -> vector<49x4xf32>
    %78 = vector.extract_strided_slice %31 {offsets = [4, 0], sizes = [4, 24], strides = [1, 1]} : vector<24x24xf32> to vector<4x24xf32>
    %cst_37 = arith.constant dense<0.000000e+00> : vector<49x24xf32>
    %79 = tpu.matmul %77, %78, %cst_37 {dimension_numbers = #tpu.dot_dimension_numbers<[1], [0], [0], [1], [0, 0, 1, 1], [], []>} : vector<49x4xf32>, vector<4x24xf32>, vector<49x24xf32> -> vector<49x24xf32>
    %80 = arith.addf %57, %79 : vector<49x24xf32>
    %81 = vector.extract_strided_slice %30 {offsets = [0, 8], sizes = [49, 4], strides = [1, 1]} : vector<49x72xf32> to vector<49x4xf32>
    %cst_38 = arith.constant 5.000000e-01 : f32
    %82 = vector.broadcast %cst_38 : f32 to vector<49x4xf32>
    %83 = arith.mulf %81, %82 : vector<49x4xf32>
    %84 = vector.extract_strided_slice %30 {offsets = [0, 32], sizes = [49, 4], strides = [1, 1]} : vector<49x72xf32> to vector<49x4xf32>
    %85 = vector.extract_strided_slice %30 {offsets = [0, 56], sizes = [49, 4], strides = [1, 1]} : vector<49x72xf32> to vector<49x4xf32>
    %cst_39 = arith.constant dense<0.000000e+00> : vector<49x49xf32>
    %86 = tpu.matmul %83, %84, %cst_39 {dimension_numbers = #tpu.dot_dimension_numbers<[1], [1], [0], [0], [0, 0, 1, 0], [], []>} : vector<49x4xf32>, vector<49x4xf32>, vector<49x49xf32> -> vector<49x49xf32>
    %c2 = arith.constant 2 : index
    %c0_40 = arith.constant 0 : index
    %c0_41 = arith.constant 0 : index
    %87 = vector.load %arg8[%c2, %c0_40, %c0_41] : memref<6x49x49xf32, #tpu.memory_space<vmem>>, vector<1x49x49xf32>
    %88 = vector.shape_cast %87 : vector<1x49x49xf32> to vector<49x49xf32>
    %89 = arith.addf %86, %88 : vector<49x49xf32>
    %90 = arith.addf %89, %33 : vector<49x49xf32>
    %cst_42 = arith.constant dense<0xFF800000> : vector<49xf32>
    %91 = vector.multi_reduction <maximumf>, %90, %cst_42 [1] : vector<49x49xf32> to vector<49xf32>
    %92 = vector.shape_cast %91 : vector<49xf32> to vector<49x1xf32>
    %93 = vector.broadcast %92 : vector<49x1xf32> to vector<49x49xf32>
    %94 = arith.subf %90, %93 : vector<49x49xf32>
    %95 = math.exp %94 : vector<49x49xf32>
    %cst_43 = arith.constant dense<0.000000e+00> : vector<49xf32>
    %96 = vector.multi_reduction <add>, %95, %cst_43 [1] : vector<49x49xf32> to vector<49xf32>
    %97 = vector.shape_cast %96 : vector<49xf32> to vector<49x1xf32>
    %98 = vector.broadcast %97 : vector<49x1xf32> to vector<49x49xf32>
    %99 = arith.divf %95, %98 : vector<49x49xf32>
    %cst_44 = arith.constant dense<0.000000e+00> : vector<49x4xf32>
    %100 = tpu.matmul %99, %85, %cst_44 {dimension_numbers = #tpu.dot_dimension_numbers<[1], [0], [0], [1], [0, 0, 1, 1], [], []>} : vector<49x49xf32>, vector<49x4xf32>, vector<49x4xf32> -> vector<49x4xf32>
    %101 = vector.extract_strided_slice %31 {offsets = [8, 0], sizes = [4, 24], strides = [1, 1]} : vector<24x24xf32> to vector<4x24xf32>
    %cst_45 = arith.constant dense<0.000000e+00> : vector<49x24xf32>
    %102 = tpu.matmul %100, %101, %cst_45 {dimension_numbers = #tpu.dot_dimension_numbers<[1], [0], [0], [1], [0, 0, 1, 1], [], []>} : vector<49x4xf32>, vector<4x24xf32>, vector<49x24xf32> -> vector<49x24xf32>
    %103 = arith.addf %80, %102 : vector<49x24xf32>
    %104 = vector.extract_strided_slice %30 {offsets = [0, 12], sizes = [49, 4], strides = [1, 1]} : vector<49x72xf32> to vector<49x4xf32>
    %cst_46 = arith.constant 5.000000e-01 : f32
    %105 = vector.broadcast %cst_46 : f32 to vector<49x4xf32>
    %106 = arith.mulf %104, %105 : vector<49x4xf32>
    %107 = vector.extract_strided_slice %30 {offsets = [0, 36], sizes = [49, 4], strides = [1, 1]} : vector<49x72xf32> to vector<49x4xf32>
    %108 = vector.extract_strided_slice %30 {offsets = [0, 60], sizes = [49, 4], strides = [1, 1]} : vector<49x72xf32> to vector<49x4xf32>
    %cst_47 = arith.constant dense<0.000000e+00> : vector<49x49xf32>
    %109 = tpu.matmul %106, %107, %cst_47 {dimension_numbers = #tpu.dot_dimension_numbers<[1], [1], [0], [0], [0, 0, 1, 0], [], []>} : vector<49x4xf32>, vector<49x4xf32>, vector<49x49xf32> -> vector<49x49xf32>
    %c3 = arith.constant 3 : index
    %c0_48 = arith.constant 0 : index
    %c0_49 = arith.constant 0 : index
    %110 = vector.load %arg8[%c3, %c0_48, %c0_49] : memref<6x49x49xf32, #tpu.memory_space<vmem>>, vector<1x49x49xf32>
    %111 = vector.shape_cast %110 : vector<1x49x49xf32> to vector<49x49xf32>
    %112 = arith.addf %109, %111 : vector<49x49xf32>
    %113 = arith.addf %112, %33 : vector<49x49xf32>
    %cst_50 = arith.constant dense<0xFF800000> : vector<49xf32>
    %114 = vector.multi_reduction <maximumf>, %113, %cst_50 [1] : vector<49x49xf32> to vector<49xf32>
    %115 = vector.shape_cast %114 : vector<49xf32> to vector<49x1xf32>
    %116 = vector.broadcast %115 : vector<49x1xf32> to vector<49x49xf32>
    %117 = arith.subf %113, %116 : vector<49x49xf32>
    %118 = math.exp %117 : vector<49x49xf32>
    %cst_51 = arith.constant dense<0.000000e+00> : vector<49xf32>
    %119 = vector.multi_reduction <add>, %118, %cst_51 [1] : vector<49x49xf32> to vector<49xf32>
    %120 = vector.shape_cast %119 : vector<49xf32> to vector<49x1xf32>
    %121 = vector.broadcast %120 : vector<49x1xf32> to vector<49x49xf32>
    %122 = arith.divf %118, %121 : vector<49x49xf32>
    %cst_52 = arith.constant dense<0.000000e+00> : vector<49x4xf32>
    %123 = tpu.matmul %122, %108, %cst_52 {dimension_numbers = #tpu.dot_dimension_numbers<[1], [0], [0], [1], [0, 0, 1, 1], [], []>} : vector<49x49xf32>, vector<49x4xf32>, vector<49x4xf32> -> vector<49x4xf32>
    %124 = vector.extract_strided_slice %31 {offsets = [12, 0], sizes = [4, 24], strides = [1, 1]} : vector<24x24xf32> to vector<4x24xf32>
    %cst_53 = arith.constant dense<0.000000e+00> : vector<49x24xf32>
    %125 = tpu.matmul %123, %124, %cst_53 {dimension_numbers = #tpu.dot_dimension_numbers<[1], [0], [0], [1], [0, 0, 1, 1], [], []>} : vector<49x4xf32>, vector<4x24xf32>, vector<49x24xf32> -> vector<49x24xf32>
    %126 = arith.addf %103, %125 : vector<49x24xf32>
    %127 = vector.extract_strided_slice %30 {offsets = [0, 16], sizes = [49, 4], strides = [1, 1]} : vector<49x72xf32> to vector<49x4xf32>
    %cst_54 = arith.constant 5.000000e-01 : f32
    %128 = vector.broadcast %cst_54 : f32 to vector<49x4xf32>
    %129 = arith.mulf %127, %128 : vector<49x4xf32>
    %130 = vector.extract_strided_slice %30 {offsets = [0, 40], sizes = [49, 4], strides = [1, 1]} : vector<49x72xf32> to vector<49x4xf32>
    %131 = vector.extract_strided_slice %30 {offsets = [0, 64], sizes = [49, 4], strides = [1, 1]} : vector<49x72xf32> to vector<49x4xf32>
    %cst_55 = arith.constant dense<0.000000e+00> : vector<49x49xf32>
    %132 = tpu.matmul %129, %130, %cst_55 {dimension_numbers = #tpu.dot_dimension_numbers<[1], [1], [0], [0], [0, 0, 1, 0], [], []>} : vector<49x4xf32>, vector<49x4xf32>, vector<49x49xf32> -> vector<49x49xf32>
    %c4 = arith.constant 4 : index
    %c0_56 = arith.constant 0 : index
    %c0_57 = arith.constant 0 : index
    %133 = vector.load %arg8[%c4, %c0_56, %c0_57] : memref<6x49x49xf32, #tpu.memory_space<vmem>>, vector<1x49x49xf32>
    %134 = vector.shape_cast %133 : vector<1x49x49xf32> to vector<49x49xf32>
    %135 = arith.addf %132, %134 : vector<49x49xf32>
    %136 = arith.addf %135, %33 : vector<49x49xf32>
    %cst_58 = arith.constant dense<0xFF800000> : vector<49xf32>
    %137 = vector.multi_reduction <maximumf>, %136, %cst_58 [1] : vector<49x49xf32> to vector<49xf32>
    %138 = vector.shape_cast %137 : vector<49xf32> to vector<49x1xf32>
    %139 = vector.broadcast %138 : vector<49x1xf32> to vector<49x49xf32>
    %140 = arith.subf %136, %139 : vector<49x49xf32>
    %141 = math.exp %140 : vector<49x49xf32>
    %cst_59 = arith.constant dense<0.000000e+00> : vector<49xf32>
    %142 = vector.multi_reduction <add>, %141, %cst_59 [1] : vector<49x49xf32> to vector<49xf32>
    %143 = vector.shape_cast %142 : vector<49xf32> to vector<49x1xf32>
    %144 = vector.broadcast %143 : vector<49x1xf32> to vector<49x49xf32>
    %145 = arith.divf %141, %144 : vector<49x49xf32>
    %cst_60 = arith.constant dense<0.000000e+00> : vector<49x4xf32>
    %146 = tpu.matmul %145, %131, %cst_60 {dimension_numbers = #tpu.dot_dimension_numbers<[1], [0], [0], [1], [0, 0, 1, 1], [], []>} : vector<49x49xf32>, vector<49x4xf32>, vector<49x4xf32> -> vector<49x4xf32>
    %147 = vector.extract_strided_slice %31 {offsets = [16, 0], sizes = [4, 24], strides = [1, 1]} : vector<24x24xf32> to vector<4x24xf32>
    %cst_61 = arith.constant dense<0.000000e+00> : vector<49x24xf32>
    %148 = tpu.matmul %146, %147, %cst_61 {dimension_numbers = #tpu.dot_dimension_numbers<[1], [0], [0], [1], [0, 0, 1, 1], [], []>} : vector<49x4xf32>, vector<4x24xf32>, vector<49x24xf32> -> vector<49x24xf32>
    %149 = arith.addf %126, %148 : vector<49x24xf32>
    %150 = vector.extract_strided_slice %30 {offsets = [0, 20], sizes = [49, 4], strides = [1, 1]} : vector<49x72xf32> to vector<49x4xf32>
    %cst_62 = arith.constant 5.000000e-01 : f32
    %151 = vector.broadcast %cst_62 : f32 to vector<49x4xf32>
    %152 = arith.mulf %150, %151 : vector<49x4xf32>
    %153 = vector.extract_strided_slice %30 {offsets = [0, 44], sizes = [49, 4], strides = [1, 1]} : vector<49x72xf32> to vector<49x4xf32>
    %154 = vector.extract_strided_slice %30 {offsets = [0, 68], sizes = [49, 4], strides = [1, 1]} : vector<49x72xf32> to vector<49x4xf32>
    %cst_63 = arith.constant dense<0.000000e+00> : vector<49x49xf32>
    %155 = tpu.matmul %152, %153, %cst_63 {dimension_numbers = #tpu.dot_dimension_numbers<[1], [1], [0], [0], [0, 0, 1, 0], [], []>} : vector<49x4xf32>, vector<49x4xf32>, vector<49x49xf32> -> vector<49x49xf32>
    %c5 = arith.constant 5 : index
    %c0_64 = arith.constant 0 : index
    %c0_65 = arith.constant 0 : index
    %156 = vector.load %arg8[%c5, %c0_64, %c0_65] : memref<6x49x49xf32, #tpu.memory_space<vmem>>, vector<1x49x49xf32>
    %157 = vector.shape_cast %156 : vector<1x49x49xf32> to vector<49x49xf32>
    %158 = arith.addf %155, %157 : vector<49x49xf32>
    %159 = arith.addf %158, %33 : vector<49x49xf32>
    %cst_66 = arith.constant dense<0xFF800000> : vector<49xf32>
    %160 = vector.multi_reduction <maximumf>, %159, %cst_66 [1] : vector<49x49xf32> to vector<49xf32>
    %161 = vector.shape_cast %160 : vector<49xf32> to vector<49x1xf32>
    %162 = vector.broadcast %161 : vector<49x1xf32> to vector<49x49xf32>
    %163 = arith.subf %159, %162 : vector<49x49xf32>
    %164 = math.exp %163 : vector<49x49xf32>
    %cst_67 = arith.constant dense<0.000000e+00> : vector<49xf32>
    %165 = vector.multi_reduction <add>, %164, %cst_67 [1] : vector<49x49xf32> to vector<49xf32>
    %166 = vector.shape_cast %165 : vector<49xf32> to vector<49x1xf32>
    %167 = vector.broadcast %166 : vector<49x1xf32> to vector<49x49xf32>
    %168 = arith.divf %164, %167 : vector<49x49xf32>
    %cst_68 = arith.constant dense<0.000000e+00> : vector<49x4xf32>
    %169 = tpu.matmul %168, %154, %cst_68 {dimension_numbers = #tpu.dot_dimension_numbers<[1], [0], [0], [1], [0, 0, 1, 1], [], []>} : vector<49x49xf32>, vector<49x4xf32>, vector<49x4xf32> -> vector<49x4xf32>
    %170 = vector.extract_strided_slice %31 {offsets = [20, 0], sizes = [4, 24], strides = [1, 1]} : vector<24x24xf32> to vector<4x24xf32>
    %cst_69 = arith.constant dense<0.000000e+00> : vector<49x24xf32>
    %171 = tpu.matmul %169, %170, %cst_69 {dimension_numbers = #tpu.dot_dimension_numbers<[1], [0], [0], [1], [0, 0, 1, 1], [], []>} : vector<49x4xf32>, vector<4x24xf32>, vector<49x24xf32> -> vector<49x24xf32>
    %172 = arith.addf %149, %171 : vector<49x24xf32>
    %c0_70 = arith.constant 0 : index
    %c0_71 = arith.constant 0 : index
    %173 = vector.load %arg7[%c0_70, %c0_71] : memref<1x24xf32, #tpu.memory_space<vmem>>, vector<1x24xf32>
    %174 = vector.broadcast %173 : vector<1x24xf32> to vector<49x24xf32>
    %175 = arith.addf %172, %174 : vector<49x24xf32>
    %176 = arith.addf %1, %175 : vector<49x24xf32>
    %c0_72 = arith.constant 0 : index
    %c0_73 = arith.constant 0 : index
    %c0_74 = arith.constant 0 : index
    %177 = vector.load %arg10[%c0_72, %c0_73, %c0_74] : memref<1x49x24xf32, #tpu.memory_space<vmem>>, vector<1x49x24xf32>
    %178 = vector.shape_cast %177 : vector<1x49x24xf32> to vector<49x24xf32>
    %179 = vector.shape_cast %176 : vector<49x24xf32> to vector<1x49x24xf32>
    tpu.vector_store %arg10[%c0_72, %c0_73, %c0_74], %179 {strides = array<i32>} : memref<1x49x24xf32, #tpu.memory_space<vmem>>, vector<1x49x24xf32>,
    return
  }
  func.func @transform_0(%arg0: i32) -> (i32, i32, i32) {
    %c0_i32 = arith.constant 0 : i32
    %c0_i32_0 = arith.constant 0 : i32
    %c0_i32_1 = arith.constant 0 : i32
    return %arg0, %c0_i32, %c0_i32_0 : i32, i32, i32
  }
  func.func @transform_1(%arg0: i32) -> (i32, i32) {
    %c0_i32 = arith.constant 0 : i32
    %c0_i32_0 = arith.constant 0 : i32
    %c0_i32_1 = arith.constant 0 : i32
    return %c0_i32, %c0_i32_0 : i32, i32
  }
  func.func @transform_2(%arg0: i32) -> (i32, i32) {
    %c0_i32 = arith.constant 0 : i32
    %c0_i32_0 = arith.constant 0 : i32
    %c0_i32_1 = arith.constant 0 : i32
    return %c0_i32, %c0_i32_0 : i32, i32
  }
  func.func @transform_3(%arg0: i32) -> (i32, i32) {
    %c0_i32 = arith.constant 0 : i32
    %c0_i32_0 = arith.constant 0 : i32
    %c0_i32_1 = arith.constant 0 : i32
    return %c0_i32, %c0_i32_0 : i32, i32
  }
  func.func @transform_4(%arg0: i32) -> (i32, i32) {
    %c0_i32 = arith.constant 0 : i32
    %c0_i32_0 = arith.constant 0 : i32
    %c0_i32_1 = arith.constant 0 : i32
    return %c0_i32, %c0_i32_0 : i32, i32
  }
  func.func @transform_5(%arg0: i32) -> (i32, i32) {
    %c0_i32 = arith.constant 0 : i32
    %c0_i32_0 = arith.constant 0 : i32
    %c0_i32_1 = arith.constant 0 : i32
    return %c0_i32, %c0_i32_0 : i32, i32
  }
  func.func @transform_6(%arg0: i32) -> (i32, i32) {
    %c0_i32 = arith.constant 0 : i32
    %c0_i32_0 = arith.constant 0 : i32
    %c0_i32_1 = arith.constant 0 : i32
    return %c0_i32, %c0_i32_0 : i32, i32
  }
  func.func @transform_7(%arg0: i32) -> (i32, i32, i32) {
    %c0_i32 = arith.constant 0 : i32
    %c0_i32_0 = arith.constant 0 : i32
    %c0_i32_1 = arith.constant 0 : i32
    %c0_i32_2 = arith.constant 0 : i32
    return %c0_i32, %c0_i32_0, %c0_i32_1 : i32, i32, i32
  }
  func.func @transform_8(%arg0: i32) -> (i32, i32, i32) {
    %c0_i32 = arith.constant 0 : i32
    %c0_i32_0 = arith.constant 0 : i32
    %c0_i32_1 = arith.constant 0 : i32
    return %arg0, %c0_i32, %c0_i32_0 : i32, i32, i32
  }
  func.func @transform_9(%arg0: i32) -> (i32, i32, i32) {
    %c0_i32 = arith.constant 0 : i32
    %c0_i32_0 = arith.constant 0 : i32
    %c0_i32_1 = arith.constant 0 : i32
    return %arg0, %c0_i32, %c0_i32_0 : i32, i32, i32
  }
}

module attributes {stable_mosaic.version = 11 : i64} {
  func.func @kernel(%arg0: i32, %arg1: memref<1x196x24xf32, #tpu.memory_space<vmem>>, %arg2: memref<1x24xf32, #tpu.memory_space<vmem>>, %arg3: memref<1x24xf32, #tpu.memory_space<vmem>>, %arg4: memref<24x96xf32, #tpu.memory_space<vmem>>, %arg5: memref<1x96xf32, #tpu.memory_space<vmem>>, %arg6: memref<96x24xf32, #tpu.memory_space<vmem>>, %arg7: memref<1x24xf32, #tpu.memory_space<vmem>>, %arg8: memref<1x196x24xf32, #tpu.memory_space<vmem>>) attributes {dimension_semantics = [#tpu.dimension_semantics<parallel>], iteration_bounds = array<i64: 2>, scalar_prefetch = 0 : i64, scratch_operands = 0 : i64, tpu.core_type = #tpu.core_type<tc>, window_params = [{transform_indices = @transform_0, window_bounds = array<i64: 1, 196, 24>}, {pipeline_mode = #tpu.pipeline_mode<synchronous>, transform_indices = @transform_1, window_bounds = array<i64: 1, 24>}, {pipeline_mode = #tpu.pipeline_mode<synchronous>, transform_indices = @transform_2, window_bounds = array<i64: 1, 24>}, {pipeline_mode = #tpu.pipeline_mode<synchronous>, transform_indices = @transform_3, window_bounds = array<i64: 24, 96>}, {pipeline_mode = #tpu.pipeline_mode<synchronous>, transform_indices = @transform_4, window_bounds = array<i64: 1, 96>}, {pipeline_mode = #tpu.pipeline_mode<synchronous>, transform_indices = @transform_5, window_bounds = array<i64: 96, 24>}, {pipeline_mode = #tpu.pipeline_mode<synchronous>, transform_indices = @transform_6, window_bounds = array<i64: 1, 24>}, {transform_indices = @transform_7, window_bounds = array<i64: 1, 196, 24>}]} {
    %c0 = arith.constant 0 : index
    %c0_0 = arith.constant 0 : index
    %c0_1 = arith.constant 0 : index
    %0 = vector.load %arg1[%c0, %c0_0, %c0_1] : memref<1x196x24xf32, #tpu.memory_space<vmem>>, vector<1x196x24xf32>
    %1 = vector.shape_cast %0 : vector<1x196x24xf32> to vector<196x24xf32>
    %cst = arith.constant dense<0.000000e+00> : vector<196xf32>
    %2 = vector.multi_reduction <add>, %1, %cst [1] : vector<196x24xf32> to vector<196xf32>
    %3 = vector.shape_cast %2 : vector<196xf32> to vector<196x1xf32>
    %cst_2 = arith.constant 2.400000e+01 : f32
    %4 = vector.broadcast %cst_2 : f32 to vector<196x1xf32>
    %5 = arith.divf %3, %4 : vector<196x1xf32>
    %6 = vector.broadcast %5 : vector<196x1xf32> to vector<196x24xf32>
    %7 = arith.subf %1, %6 : vector<196x24xf32>
    %8 = arith.mulf %7, %7 : vector<196x24xf32>
    %cst_3 = arith.constant dense<0.000000e+00> : vector<196xf32>
    %9 = vector.multi_reduction <add>, %8, %cst_3 [1] : vector<196x24xf32> to vector<196xf32>
    %10 = vector.shape_cast %9 : vector<196xf32> to vector<196x1xf32>
    %cst_4 = arith.constant 2.400000e+01 : f32
    %11 = vector.broadcast %cst_4 : f32 to vector<196x1xf32>
    %12 = arith.divf %10, %11 : vector<196x1xf32>
    %13 = vector.broadcast %5 : vector<196x1xf32> to vector<196x24xf32>
    %14 = arith.subf %1, %13 : vector<196x24xf32>
    %cst_5 = arith.constant 9.99999974E-6 : f32
    %15 = vector.broadcast %cst_5 : f32 to vector<196x1xf32>
    %16 = arith.addf %12, %15 : vector<196x1xf32>
    %17 = math.rsqrt %16 : vector<196x1xf32>
    %18 = vector.broadcast %17 : vector<196x1xf32> to vector<196x24xf32>
    %19 = arith.mulf %14, %18 : vector<196x24xf32>
    %c0_6 = arith.constant 0 : index
    %c0_7 = arith.constant 0 : index
    %20 = vector.load %arg2[%c0_6, %c0_7] : memref<1x24xf32, #tpu.memory_space<vmem>>, vector<1x24xf32>
    %21 = vector.broadcast %20 : vector<1x24xf32> to vector<196x24xf32>
    %22 = arith.mulf %19, %21 : vector<196x24xf32>
    %c0_8 = arith.constant 0 : index
    %c0_9 = arith.constant 0 : index
    %23 = vector.load %arg3[%c0_8, %c0_9] : memref<1x24xf32, #tpu.memory_space<vmem>>, vector<1x24xf32>
    %24 = vector.broadcast %23 : vector<1x24xf32> to vector<196x24xf32>
    %25 = arith.addf %22, %24 : vector<196x24xf32>
    %c0_10 = arith.constant 0 : index
    %c0_11 = arith.constant 0 : index
    %26 = vector.load %arg4[%c0_10, %c0_11] : memref<24x96xf32, #tpu.memory_space<vmem>>, vector<24x96xf32>
    %cst_12 = arith.constant dense<0.000000e+00> : vector<196x96xf32>
    %27 = tpu.matmul %25, %26, %cst_12 {dimension_numbers = #tpu.dot_dimension_numbers<[1], [0], [0], [1], [0, 0, 1, 1], [], []>} : vector<196x24xf32>, vector<24x96xf32>, vector<196x96xf32> -> vector<196x96xf32>
    %c0_13 = arith.constant 0 : index
    %c0_14 = arith.constant 0 : index
    %28 = vector.load %arg5[%c0_13, %c0_14] : memref<1x96xf32, #tpu.memory_space<vmem>>, vector<1x96xf32>
    %29 = vector.broadcast %28 : vector<1x96xf32> to vector<196x96xf32>
    %30 = arith.addf %27, %29 : vector<196x96xf32>
    %cst_15 = arith.constant 5.000000e-01 : f32
    %31 = vector.broadcast %cst_15 : f32 to vector<196x96xf32>
    %32 = arith.mulf %31, %30 : vector<196x96xf32>
    %cst_16 = arith.constant 4.471500e-02 : f32
    %33 = vector.broadcast %cst_16 : f32 to vector<196x96xf32>
    %34 = arith.mulf %33, %30 : vector<196x96xf32>
    %35 = arith.mulf %34, %30 : vector<196x96xf32>
    %36 = arith.mulf %35, %30 : vector<196x96xf32>
    %37 = arith.addf %30, %36 : vector<196x96xf32>
    %cst_17 = arith.constant 0.797884583 : f32
    %38 = vector.broadcast %cst_17 : f32 to vector<196x96xf32>
    %39 = arith.mulf %38, %37 : vector<196x96xf32>
    %40 = math.tanh %39 : vector<196x96xf32>
    %cst_18 = arith.constant 1.000000e+00 : f32
    %41 = vector.broadcast %cst_18 : f32 to vector<196x96xf32>
    %42 = arith.addf %41, %40 : vector<196x96xf32>
    %43 = arith.mulf %32, %42 : vector<196x96xf32>
    %c0_19 = arith.constant 0 : index
    %c0_20 = arith.constant 0 : index
    %44 = vector.load %arg6[%c0_19, %c0_20] : memref<96x24xf32, #tpu.memory_space<vmem>>, vector<96x24xf32>
    %cst_21 = arith.constant dense<0.000000e+00> : vector<196x24xf32>
    %45 = tpu.matmul %43, %44, %cst_21 {dimension_numbers = #tpu.dot_dimension_numbers<[1], [0], [0], [1], [0, 0, 1, 1], [], []>} : vector<196x96xf32>, vector<96x24xf32>, vector<196x24xf32> -> vector<196x24xf32>
    %c0_22 = arith.constant 0 : index
    %c0_23 = arith.constant 0 : index
    %46 = vector.load %arg7[%c0_22, %c0_23] : memref<1x24xf32, #tpu.memory_space<vmem>>, vector<1x24xf32>
    %47 = vector.broadcast %46 : vector<1x24xf32> to vector<196x24xf32>
    %48 = arith.addf %45, %47 : vector<196x24xf32>
    %49 = arith.addf %1, %48 : vector<196x24xf32>
    %c0_24 = arith.constant 0 : index
    %c0_25 = arith.constant 0 : index
    %c0_26 = arith.constant 0 : index
    %50 = vector.load %arg8[%c0_24, %c0_25, %c0_26] : memref<1x196x24xf32, #tpu.memory_space<vmem>>, vector<1x196x24xf32>
    %51 = vector.shape_cast %50 : vector<1x196x24xf32> to vector<196x24xf32>
    %52 = vector.shape_cast %49 : vector<196x24xf32> to vector<1x196x24xf32>
    tpu.vector_store %arg8[%c0_24, %c0_25, %c0_26], %52 {strides = array<i32>} : memref<1x196x24xf32, #tpu.memory_space<vmem>>, vector<1x196x24xf32>,
    return
  }
  func.func @transform_0(%arg0: i32) -> (i32, i32, i32) {
    %c0_i32 = arith.constant 0 : i32
    %c0_i32_0 = arith.constant 0 : i32
    %c0_i32_1 = arith.constant 0 : i32
    return %arg0, %c0_i32, %c0_i32_0 : i32, i32, i32
  }
  func.func @transform_1(%arg0: i32) -> (i32, i32) {
    %c0_i32 = arith.constant 0 : i32
    %c0_i32_0 = arith.constant 0 : i32
    %c0_i32_1 = arith.constant 0 : i32
    return %c0_i32, %c0_i32_0 : i32, i32
  }
  func.func @transform_2(%arg0: i32) -> (i32, i32) {
    %c0_i32 = arith.constant 0 : i32
    %c0_i32_0 = arith.constant 0 : i32
    %c0_i32_1 = arith.constant 0 : i32
    return %c0_i32, %c0_i32_0 : i32, i32
  }
  func.func @transform_3(%arg0: i32) -> (i32, i32) {
    %c0_i32 = arith.constant 0 : i32
    %c0_i32_0 = arith.constant 0 : i32
    %c0_i32_1 = arith.constant 0 : i32
    return %c0_i32, %c0_i32_0 : i32, i32
  }
  func.func @transform_4(%arg0: i32) -> (i32, i32) {
    %c0_i32 = arith.constant 0 : i32
    %c0_i32_0 = arith.constant 0 : i32
    %c0_i32_1 = arith.constant 0 : i32
    return %c0_i32, %c0_i32_0 : i32, i32
  }
  func.func @transform_5(%arg0: i32) -> (i32, i32) {
    %c0_i32 = arith.constant 0 : i32
    %c0_i32_0 = arith.constant 0 : i32
    %c0_i32_1 = arith.constant 0 : i32
    return %c0_i32, %c0_i32_0 : i32, i32
  }
  func.func @transform_6(%arg0: i32) -> (i32, i32) {
    %c0_i32 = arith.constant 0 : i32
    %c0_i32_0 = arith.constant 0 : i32
    %c0_i32_1 = arith.constant 0 : i32
    return %c0_i32, %c0_i32_0 : i32, i32
  }
  func.func @transform_7(%arg0: i32) -> (i32, i32, i32) {
    %c0_i32 = arith.constant 0 : i32
    %c0_i32_0 = arith.constant 0 : i32
    %c0_i32_1 = arith.constant 0 : i32
    return %arg0, %c0_i32, %c0_i32_0 : i32, i32, i32
  }
}

module attributes {stable_mosaic.version = 11 : i64} {
  func.func @kernel(%arg0: i32, %arg1: memref<1x196x24xf32, #tpu.memory_space<vmem>>, %arg2: memref<12x24xf32, #tpu.memory_space<vmem>>, %arg3: memref<12x1xf32, #tpu.memory_space<vmem>>, %arg4: memref<1x12x196xf32, #tpu.memory_space<vmem>>) attributes {dimension_semantics = [#tpu.dimension_semantics<parallel>], iteration_bounds = array<i64: 2>, scalar_prefetch = 0 : i64, scratch_operands = 0 : i64, tpu.core_type = #tpu.core_type<tc>, window_params = [{transform_indices = @transform_0, window_bounds = array<i64: 1, 196, 24>}, {pipeline_mode = #tpu.pipeline_mode<synchronous>, transform_indices = @transform_1, window_bounds = array<i64: 12, 24>}, {pipeline_mode = #tpu.pipeline_mode<synchronous>, transform_indices = @transform_2, window_bounds = array<i64: 12, 1>}, {transform_indices = @transform_3, window_bounds = array<i64: 1, 12, 196>}]} {
    %c0 = arith.constant 0 : index
    %c0_0 = arith.constant 0 : index
    %c0_1 = arith.constant 0 : index
    %0 = vector.load %arg1[%c0, %c0_0, %c0_1] : memref<1x196x24xf32, #tpu.memory_space<vmem>>, vector<1x196x24xf32>
    %1 = vector.shape_cast %0 : vector<1x196x24xf32> to vector<196x24xf32>
    %c0_2 = arith.constant 0 : index
    %c0_3 = arith.constant 0 : index
    %2 = vector.load %arg2[%c0_2, %c0_3] : memref<12x24xf32, #tpu.memory_space<vmem>>, vector<12x24xf32>
    %cst = arith.constant dense<0.000000e+00> : vector<12x196xf32>
    %3 = tpu.matmul %2, %1, %cst {dimension_numbers = #tpu.dot_dimension_numbers<[1], [1], [0], [0], [0, 0, 1, 0], [], []>} : vector<12x24xf32>, vector<196x24xf32>, vector<12x196xf32> -> vector<12x196xf32>
    %c0_4 = arith.constant 0 : index
    %c0_5 = arith.constant 0 : index
    %4 = vector.load %arg3[%c0_4, %c0_5] : memref<12x1xf32, #tpu.memory_space<vmem>>, vector<12x1xf32>
    %5 = vector.broadcast %4 : vector<12x1xf32> to vector<12x196xf32>
    %6 = arith.addf %3, %5 : vector<12x196xf32>
    %cst_6 = arith.constant 0.000000e+00 : f32
    %7 = vector.broadcast %cst_6 : f32 to vector<12x196xf32>
    %8 = arith.maximumf %6, %7 : vector<12x196xf32>
    %c0_7 = arith.constant 0 : index
    %c0_8 = arith.constant 0 : index
    %c0_9 = arith.constant 0 : index
    %9 = vector.load %arg4[%c0_7, %c0_8, %c0_9] : memref<1x12x196xf32, #tpu.memory_space<vmem>>, vector<1x12x196xf32>
    %10 = vector.shape_cast %9 : vector<1x12x196xf32> to vector<12x196xf32>
    %11 = vector.shape_cast %8 : vector<12x196xf32> to vector<1x12x196xf32>
    tpu.vector_store %arg4[%c0_7, %c0_8, %c0_9], %11 {strides = array<i32>} : memref<1x12x196xf32, #tpu.memory_space<vmem>>, vector<1x12x196xf32>,
    return
  }
  func.func @transform_0(%arg0: i32) -> (i32, i32, i32) {
    %c0_i32 = arith.constant 0 : i32
    %c0_i32_0 = arith.constant 0 : i32
    %c0_i32_1 = arith.constant 0 : i32
    return %arg0, %c0_i32, %c0_i32_0 : i32, i32, i32
  }
  func.func @transform_1(%arg0: i32) -> (i32, i32) {
    %c0_i32 = arith.constant 0 : i32
    %c0_i32_0 = arith.constant 0 : i32
    %c0_i32_1 = arith.constant 0 : i32
    return %c0_i32, %c0_i32_0 : i32, i32
  }
  func.func @transform_2(%arg0: i32) -> (i32, i32) {
    %c0_i32 = arith.constant 0 : i32
    %c0_i32_0 = arith.constant 0 : i32
    %c0_i32_1 = arith.constant 0 : i32
    return %c0_i32, %c0_i32_0 : i32, i32
  }
  func.func @transform_3(%arg0: i32) -> (i32, i32, i32) {
    %c0_i32 = arith.constant 0 : i32
    %c0_i32_0 = arith.constant 0 : i32
    %c0_i32_1 = arith.constant 0 : i32
    return %arg0, %c0_i32, %c0_i32_0 : i32, i32, i32
  }
}

</mosaic_0001>

<llo_original>
// kernel: swin_decoder_forward.6
$region0: #{swin_decoder_forward.6}
  #allocation0 [shape = 'u32[]', space=smem, size = 0x4, offset = 0x4, fixed_abs, tag = 'smem constant byte address 0x4 - core index']
  #allocation1 [shape = 'u32[144,128]{1,0:T(1,128)}', space=vmem, size = 0x12000, scoped, tag = 'internal scratch']
  %s0 = inlined_call_operand.vmem [shape: f32[2,48,226], index: 0, kind: input, shape index: {}]
  %s1 = inlined_call_operand.vmem [shape: f32[24,432], index: 1, kind: input, shape index: {}]
  %s2 = inlined_call_operand.vmem [shape: f32[24,1], index: 2, kind: input, shape index: {}]
  %s3 = inlined_call_operand.vmem [shape: f32[24,1], index: 3, kind: input, shape index: {}]
  %s4 = inlined_call_operand.vmem [shape: f32[24,1], index: 4, kind: input, shape index: {}]
  %s5 = inlined_call_operand.vmem [shape: f32[3,196], index: 5, kind: input, shape index: {}]
  %s6 = inlined_call_operand.vmem [shape: f32[2,24,196], index: 6, kind: output, shape index: {}]
  %s7 = sld [smem:[#allocation0]]
  $region57: #{swin_decoder_forward.6} parent=0
    _
  %s9 = ssub.s32 1, %s7
  %s10 = scalar_select 0, %s9, %s7
  loop: start=0, step=1, limit=4
  $region2: #{swin_decoder_forward.6} parent=0 // loop_pre_header
    _
  $region3: #{swin_decoder_forward.6} parent=0 // loop_header
    %s12 = sphi 0, %s16
    %p13 = scmp.ge.s32.totalorder %s12, 4
    %s22 = sphi 0, %s24
    %s25 = sphi 0, %s22
    %s26 = sphi 0, %s25
    %s42 = sphi 0, %s26
    %s46 = sphi 0, %s46
    %s48 = sphi 0, %s46
    %s49 = sphi 0, %s48
    %s63 = sphi 0, %s49
    %s67 = sphi 0, %s67
    %s69 = sphi 0, %s67
    %s70 = sphi 0, %s69
    %s84 = sphi 0, %s70
    %s88 = sphi 0, %s88
    %s90 = sphi 0, %s88
    %s91 = sphi 0, %s90
    %s105 = sphi 0, %s91
    %s109 = sphi 0, %s109
    %s111 = sphi 0, %s109
    %s112 = sphi 0, %s111
    %s126 = sphi 0, %s112
    %s130 = sphi 0, %s130
    %s132 = sphi 0, %s130
    %s133 = sphi 0, %s132
    %s147 = sphi 0, %s133
    %s153 = sphi 0, %s155
    %s156 = sphi 0, %s153
    %s157 = sphi 0, %s156
    %s173 = sphi 0, %s157
  $region4: #{swin_decoder_forward.6} parent=0 // loop_header_branch
    %15 = sbr.rel (%p13) target = $region8
  $region5: #{swin_decoder_forward.6} parent=0 // loop_body
    %s17 = ssub.s32 %s12, 1
    %s18 = ssub.s32 %s12, 2
    %s19 = sadd.s32 %s12, 1
    %s20 = ssub.s32 %s12, %s19
    %p21 = scmp.eq.s32.totalorder %s20, 0
    %s23 = sadd.s32 %s22, 1
    %s24 = scalar_select %p21, %s22, %s23
    %p27 = pneg %p21
    %p28 = scmp.eq.s32.totalorder %s12, 1
    %p29 = por %p27, %p28
    %p30 = scmp.ne.s32.totalorder %s22, %s25
    %p31 = scmp.eq.s32.totalorder %s12, 0
    %p32 = por %p30, %p31
    %p33 = scmp.ne.s32.totalorder %s22, %s25
    %p34 = scmp.eq.s32.totalorder %s17, 1
    %p35 = por %p33, %p34
    %p36 = scmp.ne.s32.totalorder %s25, %s26
    %p37 = scmp.eq.s32.totalorder %s17, 0
    %p38 = por %p36, %p37
    %p39 = scmp.ne.s32.totalorder %s25, %s26
    %p40 = scmp.eq.s32.totalorder %s18, 1
    %p41 = por %p39, %p40
    %p43 = scmp.ne.s32.totalorder %s26, %s42
    %p44 = scmp.eq.s32.totalorder %s18, 0
    %p45 = por %p43, %p44
    %s47 = sadd.s32 %s46, 1
    %p50 = scmp.eq.s32.totalorder %s12, 1
    %p51 = scmp.ne.s32.totalorder %s46, %s48
    %p52 = scmp.eq.s32.totalorder %s12, 0
    %p53 = por %p51, %p52
    %p54 = scmp.ne.s32.totalorder %s46, %s48
    %p55 = scmp.eq.s32.totalorder %s17, 1
    %p56 = por %p54, %p55
    %p57 = scmp.ne.s32.totalorder %s48, %s49
    %p58 = scmp.eq.s32.totalorder %s17, 0
    %p59 = por %p57, %p58
    %p60 = scmp.ne.s32.totalorder %s48, %s49
    %p61 = scmp.eq.s32.totalorder %s18, 1
    %p62 = por %p60, %p61
    %p64 = scmp.ne.s32.totalorder %s49, %s63
    %p65 = scmp.eq.s32.totalorder %s18, 0
    %p66 = por %p64, %p65
    %s68 = sadd.s32 %s67, 1
    %p71 = scmp.eq.s32.totalorder %s12, 1
    %p72 = scmp.ne.s32.totalorder %s67, %s69
    %p73 = scmp.eq.s32.totalorder %s12, 0
    %p74 = por %p72, %p73
    %p75 = scmp.ne.s32.totalorder %s67, %s69
    %p76 = scmp.eq.s32.totalorder %s17, 1
    %p77 = por %p75, %p76
    %p78 = scmp.ne.s32.totalorder %s69, %s70
    %p79 = scmp.eq.s32.totalorder %s17, 0
    %p80 = por %p78, %p79
    %p81 = scmp.ne.s32.totalorder %s69, %s70
    %p82 = scmp.eq.s32.totalorder %s18, 1
    %p83 = por %p81, %p82
    %p85 = scmp.ne.s32.totalorder %s70, %s84
    %p86 = scmp.eq.s32.totalorder %s18, 0
    %p87 = por %p85, %p86
    %s89 = sadd.s32 %s88, 1
    %p92 = scmp.eq.s32.totalorder %s12, 1
    %p93 = scmp.ne.s32.totalorder %s88, %s90
    %p94 = scmp.eq.s32.totalorder %s12, 0
    %p95 = por %p93, %p94
    %p96 = scmp.ne.s32.totalorder %s88, %s90
    %p97 = scmp.eq.s32.totalorder %s17, 1
    %p98 = por %p96, %p97
    %p99 = scmp.ne.s32.totalorder %s90, %s91
    %p100 = scmp.eq.s32.totalorder %s17, 0
    %p101 = por %p99, %p100
    %p102 = scmp.ne.s32.totalorder %s90, %s91
    %p103 = scmp.eq.s32.totalorder %s18, 1
    %p104 = por %p102, %p103
    %p106 = scmp.ne.s32.totalorder %s91, %s105
    %p107 = scmp.eq.s32.totalorder %s18, 0
    %p108 = por %p106, %p107
    %s110 = sadd.s32 %s109, 1
    %p113 = scmp.eq.s32.totalorder %s12, 1
    %p114 = scmp.ne.s32.totalorder %s109, %s111
    %p115 = scmp.eq.s32.totalorder %s12, 0
    %p116 = por %p114, %p115
    %p117 = scmp.ne.s32.totalorder %s109, %s111
    %p118 = scmp.eq.s32.totalorder %s17, 1
    %p119 = por %p117, %p118
    %p120 = scmp.ne.s32.totalorder %s111, %s112
    %p121 = scmp.eq.s32.totalorder %s17, 0
    %p122 = por %p120, %p121
    %p123 = scmp.ne.s32.totalorder %s111, %s112
    %p124 = scmp.eq.s32.totalorder %s18, 1
    %p125 = por %p123, %p124
    %p127 = scmp.ne.s32.totalorder %s112, %s126
    %p128 = scmp.eq.s32.totalorder %s18, 0
    %p129 = por %p127, %p128
    %s131 = sadd.s32 %s130, 1
    %p134 = scmp.eq.s32.totalorder %s12, 1
    %p135 = scmp.ne.s32.totalorder %s130, %s132
    %p136 = scmp.eq.s32.totalorder %s12, 0
    %p137 = por %p135, %p136
    %p138 = scmp.ne.s32.totalorder %s130, %s132
    %p139 = scmp.eq.s32.totalorder %s17, 1
    %p140 = por %p138, %p139
    %p141 = scmp.ne.s32.totalorder %s132, %s133
    %p142 = scmp.eq.s32.totalorder %s17, 0
    %p143 = por %p141, %p142
    %p144 = scmp.ne.s32.totalorder %s132, %s133
    %p145 = scmp.eq.s32.totalorder %s18, 1
    %p146 = por %p144, %p145
    %p148 = scmp.ne.s32.totalorder %s133, %s147
    %p149 = scmp.eq.s32.totalorder %s18, 0
    %p150 = por %p148, %p149
    %s151 = ssub.s32 %s12, %s19
    %p152 = scmp.eq.s32.totalorder %s151, 0
    %s154 = sadd.s32 %s153, 1
    %s155 = scalar_select %p152, %s153, %s154
    %p158 = pneg %p152
    %p159 = scmp.eq.s32.totalorder %s12, 1
    %p160 = por %p158, %p159
    %p161 = scmp.ne.s32.totalorder %s153, %s156
    %p162 = scmp.eq.s32.totalorder %s12, 0
    %p163 = por %p161, %p162
    %p164 = scmp.ne.s32.totalorder %s153, %s156
    %p165 = scmp.eq.s32.totalorder %s17, 1
    %p166 = por %p164, %p165
    %p167 = scmp.ne.s32.totalorder %s156, %s157
    %p168 = scmp.eq.s32.totalorder %s17, 0
    %p169 = por %p167, %p168
    %p170 = scmp.ne.s32.totalorder %s156, %s157
    %p171 = scmp.eq.s32.totalorder %s18, 1
    %p172 = por %p170, %p171
    %p174 = scmp.ne.s32.totalorder %s157, %s173
    %p175 = scmp.eq.s32.totalorder %s18, 0
    %p176 = por %p174, %p175
    %p177 = scmp.le.s32.totalorder 1, %s12
    %p178 = scmp.lt.s32.totalorder %s12, 3
    %p179 = pnand %p177, %p178
    %p180 = pneg %p179
    // Predicated region
    $region9: #{swin_decoder_forward.6} parent=5 // pred_check
      _
    $region10: #{swin_decoder_forward.6} parent=5 // pred_check_branch
      %182 = sbr.rel (%p179) target = $region12
    $region11: #{swin_decoder_forward.6} parent=5 // pred_region
      %s183 = ssub.s32 %s12, 1
      // Predicated region
      $region13: #{swin_decoder_forward.6} parent=11 // pred_check
        %p184 = pneg %p59
      $region14: #{swin_decoder_forward.6} parent=11 // pred_check_branch
        %186 = sbr.rel (%p184) target = $region16
      $region15: #{swin_decoder_forward.6} parent=11 // pred_region
        _
      $region16: #{swin_decoder_forward.6} parent=11 // pred_fallthru
        _
      // Predicated region
      $region17: #{swin_decoder_forward.6} parent=11 // pred_check
        %p187 = pneg %p80
      $region18: #{swin_decoder_forward.6} parent=11 // pred_check_branch
        %189 = sbr.rel (%p187) target = $region20
      $region19: #{swin_decoder_forward.6} parent=11 // pred_region
        _
      $region20: #{swin_decoder_forward.6} parent=11 // pred_fallthru
        _
      // Predicated region
      $region21: #{swin_decoder_forward.6} parent=11 // pred_check
        %p190 = pneg %p101
      $region22: #{swin_decoder_forward.6} parent=11 // pred_check_branch
        %192 = sbr.rel (%p190) target = $region24
      $region23: #{swin_decoder_forward.6} parent=11 // pred_region
        _
      $region24: #{swin_decoder_forward.6} parent=11 // pred_fallthru
        _
      // Predicated region
      $region25: #{swin_decoder_forward.6} parent=11 // pred_check
        %p193 = pneg %p122
      $region26: #{swin_decoder_forward.6} parent=11 // pred_check_branch
        %195 = sbr.rel (%p193) target = $region28
      $region27: #{swin_decoder_forward.6} parent=11 // pred_region
        _
      $region28: #{swin_decoder_forward.6} parent=11 // pred_fallthru
        _
      // Predicated region
      $region29: #{swin_decoder_forward.6} parent=11 // pred_check
        %p196 = pneg %p143
      $region30: #{swin_decoder_forward.6} parent=11 // pred_check_branch
        %198 = sbr.rel (%p196) target = $region32
      $region31: #{swin_decoder_forward.6} parent=11 // pred_region
        _
      $region32: #{swin_decoder_forward.6} parent=11 // pred_fallthru
        _
    $region12: #{swin_decoder_forward.6} parent=5 // pred_fallthru
      _
    %p199 = scmp.lt.s32.totalorder %s12, 2
    // Predicated region
    $region33: #{swin_decoder_forward.6} parent=5 // pred_check
      %p200 = pneg %p199
    $region34: #{swin_decoder_forward.6} parent=5 // pred_check_branch
      %202 = sbr.rel (%p200) target = $region36
    $region35: #{swin_decoder_forward.6} parent=5 // pred_region
      // Predicated region
      $region37: #{swin_decoder_forward.6} parent=35 // pred_check
        %p203 = pneg %p32
      $region38: #{swin_decoder_forward.6} parent=35 // pred_check_branch
        %205 = sbr.rel (%p203) target = $region40
      $region39: #{swin_decoder_forward.6} parent=35 // pred_region
        %p206 = scmp.lt.s32.totalorder %s12, 1
        %s207 = scalar_select %p206, %s12, 1
        %s208 = smul.addr %s207, 12
        %s209 = smul.addr %s208, 8
        %s210 = scalar_lea.vmem %s0, %s209
      $region40: #{swin_decoder_forward.6} parent=35 // pred_fallthru
        _
    $region36: #{swin_decoder_forward.6} parent=5 // pred_fallthru
      _
    %p211 = scmp.le.s32.totalorder 1, %s12
    %p212 = scmp.lt.s32.totalorder %s12, 3
    %p213 = pnand %p211, %p212
    %p214 = pneg %p213
    // Predicated region
    $region41: #{swin_decoder_forward.6} parent=5 // pred_check
      _
    $region42: #{swin_decoder_forward.6} parent=5 // pred_check_branch
      %216 = sbr.rel (%p213) target = $region44
    $region43: #{swin_decoder_forward.6} parent=5 // pred_region
      %s217 = ssub.s32 %s12, 1
      %p218 = scmp.lt.s32.totalorder %s17, 1
      %s219 = scalar_select %p218, %s17, 1
      %s220 = smul.addr %s219, 12
      %s221 = smul.addr %s220, 8
      %s222 = scalar_lea.vmem %s0, %s221
      %p223 = pneg %p38
      %p224 = pneg %p35
      %p225 = pneg %p59
      %p226 = pneg %p56
      %p227 = pneg %p80
      %p228 = pneg %p77
      %p229 = pneg %p101
      %p230 = pneg %p98
      %p231 = pneg %p122
      %p232 = pneg %p119
      %p233 = pneg %p143
      %p234 = pneg %p140
      %p235 = pneg %p169
      %p236 = pneg %p166
      %p237 = scmp.lt.s32.totalorder %s17, 1
      %s238 = scalar_select %p237, %s17, 1
      %s239 = smul.addr %s238, 6
      %s240 = smul.addr %s239, 8
      %s241 = scalar_lea.vmem %s6, %s240
      %p242 = scmp.lt.s32.totalorder %s17, 1
      %s243 = scalar_select %p242, %s17, 1
      %s244 = smul.addr %s243, 12
      %s245 = smul.addr %s244, 8
      %s246 = scalar_lea.vmem %s0, %s245
      %p247 = scmp.lt.s32.totalorder %s17, 1
      %s248 = scalar_select %p247, %s17, 1
      %s249 = smul.addr %s248, 6
      %s250 = smul.addr %s249, 8
      %s251 = scalar_lea.vmem %s6, %s250
      %v252 = vld [vmem:[%s246] sm:$0xff]
      %v253 = vld [vmem:[%s246 + $0x8] sm:$0xff]
      %v254 = vld [vmem:[%s246 + $0x10] sm:$0xff]
      %v255 = vld [vmem:[%s246 + $0x18] sm:$0xff]
      %v256 = vld [vmem:[%s246 + $0x20] sm:$0xff]
      %v257 = vld [vmem:[%s246 + $0x28] sm:$0xff]
      %v258 = vld [vmem:[%s246 + $0x30] sm:$0xff]
      %v259 = vld [vmem:[%s246 + $0x38] sm:$0xff]
      %v260 = vld [vmem:[%s246 + $0x40] sm:$0xff]
      %v261 = vld [vmem:[%s246 + $0x48] sm:$0xff]
      %v262 = vld [vmem:[%s246 + $0x50] sm:$0xff]
      %v263 = vld [vmem:[%s246 + $0x58] sm:$0xff]
      %v264 = vld [vmem:[%s5] sm:$0x77]
      %v266 = vlaneseq
      %v267 = vshrl.u32 %v266, 7
      %v268 = vsub.s32 0, %v267
      %v269 = vrot.slane %v264, %v268
      %v270 = vlaneseq
      %v271 = vshrl.u32 %v270, 7
      %v272 = vsub.s32 4, %v271
      %v273 = vrot.slane %v264, %v272
      %v276 = vlaneseq
      %v277 = vshrl.u32 %v276, 7
      %v278 = vsub.s32 0, %v277
      %v279 = vrot.slane %v269, %v278
      %v280 = vlaneseq
      %v281 = vshrl.u32 %v280, 7
      %v282 = vsub.s32 0, %v281
      %v283 = vrot.slane %v273, %v282
      %v284 = vmul.f32 %v252, %v279
      %v285 = vmul.f32 %v253, %v283
      %v286 = vmul.f32 %v254, %v279
      %v287 = vmul.f32 %v255, %v283
      %v288 = vmul.f32 %v256, %v279
      %v289 = vmul.f32 %v257, %v283
      %v290 = vmul.f32 %v258, %v279
      %v291 = vmul.f32 %v259, %v283
      %v292 = vmul.f32 %v260, %v279
      %v293 = vmul.f32 %v261, %v283
      %v294 = vmul.f32 %v262, %v279
      %v295 = vmul.f32 %v263, %v283
      %v296 = vlaneseq
      %v297 = vshrl.u32 %v296, 7
      %v298 = vsub.s32 1, %v297
      %v299 = vrot.slane %v264, %v298
      %v300 = vlaneseq
      %v301 = vshrl.u32 %v300, 7
      %v302 = vsub.s32 5, %v301
      %v303 = vrot.slane %v264, %v302
      %v306 = vlaneseq
      %v307 = vshrl.u32 %v306, 7
      %v308 = vsub.s32 1, %v307
      %v309 = vrot.slane %v299, %v308
      %v310 = vlaneseq
      %v311 = vshrl.u32 %v310, 7
      %v312 = vsub.s32 1, %v311
      %v313 = vrot.slane %v303, %v312
      %316 = vrot.lane.b32.xlu0 %v309, 1
      %v317 = vpop.permute.xlu0 %316
      %318 = vrot.lane.b32.xlu0 %v313, 1
      %v319 = vpop.permute.xlu0 %318
      %vm320 = vcmask 7168
      %v321 = vsel %vm320, %v317, %v319
      %v324 = vmul.f32 %v252, %v317
      %v325 = vmul.f32 %v253, %v321
      %v326 = vmul.f32 %v254, %v317
      %v327 = vmul.f32 %v255, %v321
      %v328 = vmul.f32 %v256, %v317
      %v329 = vmul.f32 %v257, %v321
      %v330 = vmul.f32 %v258, %v317
      %v331 = vmul.f32 %v259, %v321
      %v332 = vmul.f32 %v260, %v317
      %v333 = vmul.f32 %v261, %v321
      %v334 = vmul.f32 %v262, %v317
      %v335 = vmul.f32 %v263, %v321
      %v336 = vlaneseq
      %v337 = vshrl.u32 %v336, 7
      %v338 = vsub.s32 2, %v337
      %v339 = vrot.slane %v264, %v338
      %v340 = vlaneseq
      %v341 = vshrl.u32 %v340, 7
      %v342 = vsub.s32 6, %v341
      %v343 = vrot.slane %v264, %v342
      %v346 = vlaneseq
      %v347 = vshrl.u32 %v346, 7
      %v348 = vsub.s32 2, %v347
      %v349 = vrot.slane %v339, %v348
      %v350 = vlaneseq
      %v351 = vshrl.u32 %v350, 7
      %v352 = vsub.s32 2, %v351
      %v353 = vrot.slane %v343, %v352
      %356 = vrot.lane.b32.xlu0 %v349, 2
      %v357 = vpop.permute.xlu0 %356
      %358 = vrot.lane.b32.xlu0 %v353, 2
      %v359 = vpop.permute.xlu0 %358
      %vm360 = vcmask 15360
      %v361 = vsel %vm360, %v357, %v359
      %v364 = vmul.f32 %v252, %v357
      %v365 = vmul.f32 %v253, %v361
      %v366 = vmul.f32 %v254, %v357
      %v367 = vmul.f32 %v255, %v361
      %v368 = vmul.f32 %v256, %v357
      %v369 = vmul.f32 %v257, %v361
      %v370 = vmul.f32 %v258, %v357
      %v371 = vmul.f32 %v259, %v361
      %v372 = vmul.f32 %v260, %v357
      %v373 = vmul.f32 %v261, %v361
      %v374 = vmul.f32 %v262, %v357
      %v375 = vmul.f32 %v263, %v361
      %378 = vrot.lane.b32.xlu0 %v279, 14
      %v379 = vpop.permute.xlu0 %378
      %380 = vrot.lane.b32.xlu0 %v283, 14
      %v381 = vpop.permute.xlu0 %380
      %vm382 = vcmask 113664
      %v383 = vsel %vm382, %v379, %v381
      %v386 = vmul.f32 %v252, %v379
      %v387 = vmul.f32 %v253, %v383
      %v388 = vmul.f32 %v254, %v379
      %v389 = vmul.f32 %v255, %v383
      %v390 = vmul.f32 %v256, %v379
      %v391 = vmul.f32 %v257, %v383
      %v392 = vmul.f32 %v258, %v379
      %v393 = vmul.f32 %v259, %v383
      %v394 = vmul.f32 %v260, %v379
      %v395 = vmul.f32 %v261, %v383
      %v396 = vmul.f32 %v262, %v379
      %v397 = vmul.f32 %v263, %v383
      %398 = vrot.lane.b32.xlu0 %v309, 15
      %v399 = vpop.permute.xlu0 %398
      %400 = vrot.lane.b32.xlu0 %v313, 15
      %v401 = vpop.permute.xlu0 %400
      %vm402 = vcmask 121856
      %v403 = vsel %vm402, %v399, %v401
      %v406 = vmul.f32 %v252, %v399
      %v407 = vmul.f32 %v253, %v403
      %v408 = vmul.f32 %v254, %v399
      %v409 = vmul.f32 %v255, %v403
      %v410 = vmul.f32 %v256, %v399
      %v411 = vmul.f32 %v257, %v403
      %v412 = vmul.f32 %v258, %v399
      %v413 = vmul.f32 %v259, %v403
      %v414 = vmul.f32 %v260, %v399
      %v415 = vmul.f32 %v261, %v403
      %v416 = vmul.f32 %v262, %v399
      %v417 = vmul.f32 %v263, %v403
      %418 = vrot.lane.b32.xlu0 %v349, 16
      %v419 = vpop.permute.xlu0 %418
      %420 = vrot.lane.b32.xlu0 %v353, 16
      %v421 = vpop.permute.xlu0 %420
      %vm422 = vcmask 130048
      %v423 = vsel %vm422, %v419, %v421
      %v426 = vmul.f32 %v252, %v419
      %v427 = vmul.f32 %v253, %v423
      %v428 = vmul.f32 %v254, %v419
      %v429 = vmul.f32 %v255, %v423
      %v430 = vmul.f32 %v256, %v419
      %v431 = vmul.f32 %v257, %v423
      %v432 = vmul.f32 %v258, %v419
      %v433 = vmul.f32 %v259, %v423
      %v434 = vmul.f32 %v260, %v419
      %v435 = vmul.f32 %v261, %v423
      %v436 = vmul.f32 %v262, %v419
      %v437 = vmul.f32 %v263, %v423
      %438 = vrot.lane.b32.xlu0 %v279, 28
      %v439 = vpop.permute.xlu0 %438
      %440 = vrot.lane.b32.xlu0 %v283, 28
      %v441 = vpop.permute.xlu0 %440
      %vm442 = vcmask 228352
      %v443 = vsel %vm442, %v439, %v441
      %v446 = vmul.f32 %v252, %v439
      %v447 = vmul.f32 %v253, %v443
      %v448 = vmul.f32 %v254, %v439
      %v449 = vmul.f32 %v255, %v443
      %v450 = vmul.f32 %v256, %v439
      %v451 = vmul.f32 %v257, %v443
      %v452 = vmul.f32 %v258, %v439
      %v453 = vmul.f32 %v259, %v443
      %v454 = vmul.f32 %v260, %v439
      %v455 = vmul.f32 %v261, %v443
      %v456 = vmul.f32 %v262, %v439
      %v457 = vmul.f32 %v263, %v443
      %458 = vrot.lane.b32.xlu0 %v309, 29
      %v459 = vpop.permute.xlu0 %458
      %460 = vrot.lane.b32.xlu0 %v313, 29
      %v461 = vpop.permute.xlu0 %460
      %vm462 = vcmask 236544
      %v463 = vsel %vm462, %v459, %v461
      %v466 = vmul.f32 %v252, %v459
      %v467 = vmul.f32 %v253, %v463
      %v468 = vmul.f32 %v254, %v459
      %v469 = vmul.f32 %v255, %v463
      %v470 = vmul.f32 %v256, %v459
      %v471 = vmul.f32 %v257, %v463
      %v472 = vmul.f32 %v258, %v459
      %v473 = vmul.f32 %v259, %v463
      %v474 = vmul.f32 %v260, %v459
      %v475 = vmul.f32 %v261, %v463
      %v476 = vmul.f32 %v262, %v459
      %v477 = vmul.f32 %v263, %v463
      %478 = vrot.lane.b32.xlu0 %v349, 30
      %v479 = vpop.permute.xlu0 %478
      %480 = vrot.lane.b32.xlu0 %v353, 30
      %v481 = vpop.permute.xlu0 %480
      %vm482 = vcmask 244736
      %v483 = vsel %vm482, %v479, %v481
      %v486 = vmul.f32 %v252, %v479
      %v487 = vmul.f32 %v253, %v483
      %v488 = vmul.f32 %v254, %v479
      %v489 = vmul.f32 %v255, %v483
      %v490 = vmul.f32 %v256, %v479
      %v491 = vmul.f32 %v257, %v483
      %v492 = vmul.f32 %v258, %v479
      %v493 = vmul.f32 %v259, %v483
      %v494 = vmul.f32 %v260, %v479
      %v495 = vmul.f32 %v261, %v483
      %v496 = vmul.f32 %v262, %v479
      %v497 = vmul.f32 %v263, %v483
      %510 = vrot.lane.b32.xlu0 %v324, 127
      %v511 = vpop.permute.xlu0 %510
      %512 = vrot.lane.b32.xlu0 %v325, 127
      %v513 = vpop.permute.xlu0 %512
      %514 = vrot.lane.b32.xlu0 %v326, 127
      %v515 = vpop.permute.xlu0 %514
      %516 = vrot.lane.b32.xlu0 %v327, 127
      %v517 = vpop.permute.xlu0 %516
      %518 = vrot.lane.b32.xlu0 %v328, 127
      %v519 = vpop.permute.xlu0 %518
      %520 = vrot.lane.b32.xlu0 %v329, 127
      %v521 = vpop.permute.xlu0 %520
      %522 = vrot.lane.b32.xlu0 %v330, 127
      %v523 = vpop.permute.xlu0 %522
      %524 = vrot.lane.b32.xlu0 %v331, 127
      %v525 = vpop.permute.xlu0 %524
      %526 = vrot.lane.b32.xlu0 %v332, 127
      %v527 = vpop.permute.xlu0 %526
      %528 = vrot.lane.b32.xlu0 %v333, 127
      %v529 = vpop.permute.xlu0 %528
      %530 = vrot.lane.b32.xlu0 %v334, 127
      %v531 = vpop.permute.xlu0 %530
      %532 = vrot.lane.b32.xlu0 %v335, 127
      %v533 = vpop.permute.xlu0 %532
      %vm534 = vcmask 1039360
      %v535 = vsel %vm534, %v511, %v513
      %v536 = vsel %vm534, %v515, %v517
      %v537 = vsel %vm534, %v519, %v521
      %v538 = vsel %vm534, %v523, %v525
      %v539 = vsel %vm534, %v527, %v529
      %v540 = vsel %vm534, %v531, %v533
      %565 = vrot.lane.b32.xlu0 %v364, 126
      %v566 = vpop.permute.xlu0 %565
      %567 = vrot.lane.b32.xlu0 %v365, 126
      %v568 = vpop.permute.xlu0 %567
      %569 = vrot.lane.b32.xlu0 %v366, 126
      %v570 = vpop.permute.xlu0 %569
      %571 = vrot.lane.b32.xlu0 %v367, 126
      %v572 = vpop.permute.xlu0 %571
      %573 = vrot.lane.b32.xlu0 %v368, 126
      %v574 = vpop.permute.xlu0 %573
      %575 = vrot.lane.b32.xlu0 %v369, 126
      %v576 = vpop.permute.xlu0 %575
      %577 = vrot.lane.b32.xlu0 %v370, 126
      %v578 = vpop.permute.xlu0 %577
      %579 = vrot.lane.b32.xlu0 %v371, 126
      %v580 = vpop.permute.xlu0 %579
      %581 = vrot.lane.b32.xlu0 %v372, 126
      %v582 = vpop.permute.xlu0 %581
      %583 = vrot.lane.b32.xlu0 %v373, 126
      %v584 = vpop.permute.xlu0 %583
      %585 = vrot.lane.b32.xlu0 %v374, 126
      %v586 = vpop.permute.xlu0 %585
      %587 = vrot.lane.b32.xlu0 %v375, 126
      %v588 = vpop.permute.xlu0 %587
      %vm589 = vcmask 1031168
      %v590 = vsel %vm589, %v566, %v568
      %v591 = vsel %vm589, %v570, %v572
      %v592 = vsel %vm589, %v574, %v576
      %v593 = vsel %vm589, %v578, %v580
      %v594 = vsel %vm589, %v582, %v584
      %v595 = vsel %vm589, %v586, %v588
      %620 = vrot.lane.b32.xlu0 %v386, 114
      %v621 = vpop.permute.xlu0 %620
      %622 = vrot.lane.b32.xlu0 %v387, 114
      %v623 = vpop.permute.xlu0 %622
      %624 = vrot.lane.b32.xlu0 %v388, 114
      %v625 = vpop.permute.xlu0 %624
      %626 = vrot.lane.b32.xlu0 %v389, 114
      %v627 = vpop.permute.xlu0 %626
      %628 = vrot.lane.b32.xlu0 %v390, 114
      %v629 = vpop.permute.xlu0 %628
      %630 = vrot.lane.b32.xlu0 %v391, 114
      %v631 = vpop.permute.xlu0 %630
      %632 = vrot.lane.b32.xlu0 %v392, 114
      %v633 = vpop.permute.xlu0 %632
      %634 = vrot.lane.b32.xlu0 %v393, 114
      %v635 = vpop.permute.xlu0 %634
      %636 = vrot.lane.b32.xlu0 %v394, 114
      %v637 = vpop.permute.xlu0 %636
      %638 = vrot.lane.b32.xlu0 %v395, 114
      %v639 = vpop.permute.xlu0 %638
      %640 = vrot.lane.b32.xlu0 %v396, 114
      %v641 = vpop.permute.xlu0 %640
      %642 = vrot.lane.b32.xlu0 %v397, 114
      %v643 = vpop.permute.xlu0 %642
      %vm644 = vcmask 932864
      %v645 = vsel %vm644, %v621, %v623
      %v646 = vsel %vm644, %v625, %v627
      %v647 = vsel %vm644, %v629, %v631
      %v648 = vsel %vm644, %v633, %v635
      %v649 = vsel %vm644, %v637, %v639
      %v650 = vsel %vm644, %v641, %v643
      %675 = vrot.lane.b32.xlu0 %v406, 113
      %v676 = vpop.permute.xlu0 %675
      %677 = vrot.lane.b32.xlu0 %v407, 113
      %v678 = vpop.permute.xlu0 %677
      %679 = vrot.lane.b32.xlu0 %v408, 113
      %v680 = vpop.permute.xlu0 %679
      %681 = vrot.lane.b32.xlu0 %v409, 113
      %v682 = vpop.permute.xlu0 %681
      %683 = vrot.lane.b32.xlu0 %v410, 113
      %v684 = vpop.permute.xlu0 %683
      %685 = vrot.lane.b32.xlu0 %v411, 113
      %v686 = vpop.permute.xlu0 %685
      %687 = vrot.lane.b32.xlu0 %v412, 113
      %v688 = vpop.permute.xlu0 %687
      %689 = vrot.lane.b32.xlu0 %v413, 113
      %v690 = vpop.permute.xlu0 %689
      %691 = vrot.lane.b32.xlu0 %v414, 113
      %v692 = vpop.permute.xlu0 %691
      %693 = vrot.lane.b32.xlu0 %v415, 113
      %v694 = vpop.permute.xlu0 %693
      %695 = vrot.lane.b32.xlu0 %v416, 113
      %v696 = vpop.permute.xlu0 %695
      %697 = vrot.lane.b32.xlu0 %v417, 113
      %v698 = vpop.permute.xlu0 %697
      %vm699 = vcmask 924672
      %v700 = vsel %vm699, %v676, %v678
      %v701 = vsel %vm699, %v680, %v682
      %v702 = vsel %vm699, %v684, %v686
      %v703 = vsel %vm699, %v688, %v690
      %v704 = vsel %vm699, %v692, %v694
      %v705 = vsel %vm699, %v696, %v698
      %730 = vrot.lane.b32.xlu0 %v426, 112
      %v731 = vpop.permute.xlu0 %730
      %732 = vrot.lane.b32.xlu0 %v427, 112
      %v733 = vpop.permute.xlu0 %732
      %734 = vrot.lane.b32.xlu0 %v428, 112
      %v735 = vpop.permute.xlu0 %734
      %736 = vrot.lane.b32.xlu0 %v429, 112
      %v737 = vpop.permute.xlu0 %736
      %738 = vrot.lane.b32.xlu0 %v430, 112
      %v739 = vpop.permute.xlu0 %738
      %740 = vrot.lane.b32.xlu0 %v431, 112
      %v741 = vpop.permute.xlu0 %740
      %742 = vrot.lane.b32.xlu0 %v432, 112
      %v743 = vpop.permute.xlu0 %742
      %744 = vrot.lane.b32.xlu0 %v433, 112
      %v745 = vpop.permute.xlu0 %744
      %746 = vrot.lane.b32.xlu0 %v434, 112
      %v747 = vpop.permute.xlu0 %746
      %748 = vrot.lane.b32.xlu0 %v435, 112
      %v749 = vpop.permute.xlu0 %748
      %750 = vrot.lane.b32.xlu0 %v436, 112
      %v751 = vpop.permute.xlu0 %750
      %752 = vrot.lane.b32.xlu0 %v437, 112
      %v753 = vpop.permute.xlu0 %752
      %vm754 = vcmask 916480
      %v755 = vsel %vm754, %v731, %v733
      %v756 = vsel %vm754, %v735, %v737
      %v757 = vsel %vm754, %v739, %v741
      %v758 = vsel %vm754, %v743, %v745
      %v759 = vsel %vm754, %v747, %v749
      %v760 = vsel %vm754, %v751, %v753
      %785 = vrot.lane.b32.xlu0 %v446, 100
      %v786 = vpop.permute.xlu0 %785
      %787 = vrot.lane.b32.xlu0 %v447, 100
      %v788 = vpop.permute.xlu0 %787
      %789 = vrot.lane.b32.xlu0 %v448, 100
      %v790 = vpop.permute.xlu0 %789
      %791 = vrot.lane.b32.xlu0 %v449, 100
      %v792 = vpop.permute.xlu0 %791
      %793 = vrot.lane.b32.xlu0 %v450, 100
      %v794 = vpop.permute.xlu0 %793
      %795 = vrot.lane.b32.xlu0 %v451, 100
      %v796 = vpop.permute.xlu0 %795
      %797 = vrot.lane.b32.xlu0 %v452, 100
      %v798 = vpop.permute.xlu0 %797
      %799 = vrot.lane.b32.xlu0 %v453, 100
      %v800 = vpop.permute.xlu0 %799
      %801 = vrot.lane.b32.xlu0 %v454, 100
      %v802 = vpop.permute.xlu0 %801
      %803 = vrot.lane.b32.xlu0 %v455, 100
      %v804 = vpop.permute.xlu0 %803
      %805 = vrot.lane.b32.xlu0 %v456, 100
      %v806 = vpop.permute.xlu0 %805
      %807 = vrot.lane.b32.xlu0 %v457, 100
      %v808 = vpop.permute.xlu0 %807
      %vm809 = vcmask 818176
      %v810 = vsel %vm809, %v786, %v788
      %v811 = vsel %vm809, %v790, %v792
      %v812 = vsel %vm809, %v794, %v796
      %v813 = vsel %vm809, %v798, %v800
      %v814 = vsel %vm809, %v802, %v804
      %v815 = vsel %vm809, %v806, %v808
      %840 = vrot.lane.b32.xlu0 %v466, 99
      %v841 = vpop.permute.xlu0 %840
      %842 = vrot.lane.b32.xlu0 %v467, 99
      %v843 = vpop.permute.xlu0 %842
      %844 = vrot.lane.b32.xlu0 %v468, 99
      %v845 = vpop.permute.xlu0 %844
      %846 = vrot.lane.b32.xlu0 %v469, 99
      %v847 = vpop.permute.xlu0 %846
      %848 = vrot.lane.b32.xlu0 %v470, 99
      %v849 = vpop.permute.xlu0 %848
      %850 = vrot.lane.b32.xlu0 %v471, 99
      %v851 = vpop.permute.xlu0 %850
      %852 = vrot.lane.b32.xlu0 %v472, 99
      %v853 = vpop.permute.xlu0 %852
      %854 = vrot.lane.b32.xlu0 %v473, 99
      %v855 = vpop.permute.xlu0 %854
      %856 = vrot.lane.b32.xlu0 %v474, 99
      %v857 = vpop.permute.xlu0 %856
      %858 = vrot.lane.b32.xlu0 %v475, 99
      %v859 = vpop.permute.xlu0 %858
      %860 = vrot.lane.b32.xlu0 %v476, 99
      %v861 = vpop.permute.xlu0 %860
      %862 = vrot.lane.b32.xlu0 %v477, 99
      %v863 = vpop.permute.xlu0 %862
      %vm864 = vcmask 809984
      %v865 = vsel %vm864, %v841, %v843
      %v866 = vsel %vm864, %v845, %v847
      %v867 = vsel %vm864, %v849, %v851
      %v868 = vsel %vm864, %v853, %v855
      %v869 = vsel %vm864, %v857, %v859
      %v870 = vsel %vm864, %v861, %v863
      %895 = vrot.lane.b32.xlu0 %v486, 98
      %v896 = vpop.permute.xlu0 %895
      %897 = vrot.lane.b32.xlu0 %v487, 98
      %v898 = vpop.permute.xlu0 %897
      %899 = vrot.lane.b32.xlu0 %v488, 98
      %v900 = vpop.permute.xlu0 %899
      %901 = vrot.lane.b32.xlu0 %v489, 98
      %v902 = vpop.permute.xlu0 %901
      %903 = vrot.lane.b32.xlu0 %v490, 98
      %v904 = vpop.permute.xlu0 %903
      %905 = vrot.lane.b32.xlu0 %v491, 98
      %v906 = vpop.permute.xlu0 %905
      %907 = vrot.lane.b32.xlu0 %v492, 98
      %v908 = vpop.permute.xlu0 %907
      %909 = vrot.lane.b32.xlu0 %v493, 98
      %v910 = vpop.permute.xlu0 %909
      %911 = vrot.lane.b32.xlu0 %v494, 98
      %v912 = vpop.permute.xlu0 %911
      %913 = vrot.lane.b32.xlu0 %v495, 98
      %v914 = vpop.permute.xlu0 %913
      %915 = vrot.lane.b32.xlu0 %v496, 98
      %v916 = vpop.permute.xlu0 %915
      %917 = vrot.lane.b32.xlu0 %v497, 98
      %v918 = vpop.permute.xlu0 %917
      %vm919 = vcmask 801792
      %v920 = vsel %vm919, %v896, %v898
      %v921 = vsel %vm919, %v900, %v902
      %v922 = vsel %vm919, %v904, %v906
      %v923 = vsel %vm919, %v908, %v910
      %v924 = vsel %vm919, %v912, %v914
      %v925 = vsel %vm919, %v916, %v918
      %v938 = vld [vmem:[%s1] sm:$0xff]
      %v939 = vld [vmem:[%s1 + $0x8] sm:$0xff]
      %v940 = vld [vmem:[%s1 + $0x10] sm:$0xff]
      %v941 = vld [vmem:[%s1 + $0x18] sm:$0xff]
      %v942 = vld [vmem:[%s1 + $0x20] sm:$0xff]
      %v943 = vld [vmem:[%s1 + $0x28] sm:$0xff]
      %v944 = vld [vmem:[%s1 + $0x30] sm:$0xff]
      %v945 = vld [vmem:[%s1 + $0x38] sm:$0xff]
      %v946 = vld [vmem:[%s1 + $0x40] sm:$0xff]
      %v947 = vld [vmem:[%s1 + $0x48] sm:$0xff]
      %v948 = vld [vmem:[%s1 + $0x50] sm:$0xff]
      %v949 = vld [vmem:[%s1 + $0x58] sm:$0xff]
      %v950 = vld [vmem:[%s2] sm:$0xff]
      %v951 = vld [vmem:[%s2 + $0x8] sm:$0xff]
      %v952 = vld [vmem:[%s2 + $0x10] sm:$0xff]
      %954 = vset.pattern.permute.xlu0 0
      %955 = vperm.xlu0 %954, %v950
      %v956 = vpop.permute.xlu0 %955
      %959 = vset.pattern.permute.xlu0 0
      %960 = vperm.xlu0 %959, %v951
      %v961 = vpop.permute.xlu0 %960
      %964 = vset.pattern.permute.xlu0 0
      %965 = vperm.xlu0 %964, %v952
      %v966 = vpop.permute.xlu0 %965
      %vm968 = vcmask 392192
      %v970 = vsel %vm968, %v941, 0
      %v973 = vsel %vm968, %v945, 0
      %v976 = vsel %vm968, %v949, 0
      %978 = vmatprep.subr.mxu0 %v285
      %979 = vmatpush1.msra.mxu0 %v284
      %980 = vmatprep.subr.mxu0 %v287
      %981 = vmatpush1.msra.mxu0 %v286
      %982 = vmatprep.subr.mxu0 %v289
      %983 = vmatpush1.msra.mxu0 %v288
      %984 = vmatprep.subr.mxu0 %v291
      %985 = vmatpush1.msra.mxu0 %v290
      %986 = vmatprep.subr.mxu0 %v293
      %987 = vmatpush1.msra.mxu0 %v292
      %988 = vmatprep.subr.mxu0 %v295
      %989 = vmatpush1.msra.mxu0 %v294
      %990 = vmatprep.subr.mxu0 %v513
      %991 = vmatpush1.msra.mxu0 %v535
      %992 = vmatprep.subr.mxu0 %v517
      %993 = vmatpush1.msra.mxu0 %v536
      %994 = vmatprep.subr.mxu0 %v521
      %995 = vmatpush1.msra.mxu0 %v537
      %996 = vmatprep.subr.mxu0 %v525
      %997 = vmatpush1.msra.mxu0 %v538
      %998 = vmatprep.subr.mxu0 %v529
      %999 = vmatpush1.msra.mxu0 %v539
      %1000 = vmatprep.subr.mxu0 %v533
      %1001 = vmatpush1.msra.mxu0 %v540
      %1002 = vmatprep.subr.mxu0 %v568
      %1003 = vmatpush1.msra.mxu0 %v590
      %1004 = vmatprep.subr.mxu0 %v572
      %1005 = vmatpush1.msra.mxu0 %v591
      %1006 = vmatprep.subr.mxu0 %v576
      %1007 = vmatpush1.msra.mxu0 %v592
      %1008 = vmatprep.subr.mxu0 %v580
      %1009 = vmatpush1.msra.mxu0 %v593
      %1010 = vmatprep.subr.mxu0 %v584
      %1011 = vmatpush1.msra.mxu0 %v594
      %1012 = vmatprep.subr.mxu0 %v588
      %1013 = vmatpush1.msra.mxu0 %v595
      %1014 = vmatprep.subr.mxu0 %v623
      %1015 = vmatpush1.msra.mxu0 %v645
      %1016 = vmatprep.subr.mxu0 %v627
      %1017 = vmatpush1.msra.mxu0 %v646
      %1018 = vmatprep.subr.mxu0 %v631
      %1019 = vmatpush1.msra.mxu0 %v647
      %1020 = vmatprep.subr.mxu0 %v635
      %1021 = vmatpush1.msra.mxu0 %v648
      %1022 = vmatprep.subr.mxu0 %v639
      %1023 = vmatpush1.msra.mxu0 %v649
      %1024 = vmatprep.subr.mxu0 %v643
      %1025 = vmatpush1.msra.mxu0 %v650
      %1026 = vmatprep.subr.mxu0 %v678
      %1027 = vmatpush1.msra.mxu0 %v700
      %1028 = vmatprep.subr.mxu0 %v682
      %1029 = vmatpush1.msra.mxu0 %v701
      %1030 = vmatprep.subr.mxu0 %v686
      %1031 = vmatpush1.msra.mxu0 %v702
      %1032 = vmatprep.subr.mxu0 %v690
      %1033 = vmatpush1.msra.mxu0 %v703
      %1034 = vmatprep.subr.mxu0 %v694
      %1035 = vmatpush1.msra.mxu0 %v704
      %1036 = vmatprep.subr.mxu0 %v698
      %1037 = vmatpush1.msra.mxu0 %v705
      %1038 = vmatprep.subr.mxu0 %v733
      %1039 = vmatpush1.msra.mxu0 %v755
      %1040 = vmatprep.subr.mxu0 %v737
      %1041 = vmatpush1.msra.mxu0 %v756
      %1042 = vmatprep.mubr.f32.mxu0 %v939
      %1043 = vmatmul.mubr.f32.gmra.mrb[0].mxu0 %v938
      %v1044 = vpop.f32.mrb[0].mxu0
      %v1045 = vadd.f32 %v956, %v1044
      %v1046 = vpop.f32.mrb[0].mxu0
      %v1047 = vadd.f32 %v956, %v1046
      %1048 = vmatprep.mubr.f32.mxu0 %v943
      %1049 = vmatmul.mubr.f32.gmra.mrb[0].mxu0 %v942
      %v1050 = vpop.f32.mrb[0].mxu0
      %v1051 = vadd.f32 %v961, %v1050
      %v1052 = vpop.f32.mrb[0].mxu0
      %v1053 = vadd.f32 %v961, %v1052
      %1054 = vmatprep.mubr.f32.mxu0 %v947
      %1055 = vmatmul.mubr.f32.gmra.mrb[0].mxu0 %v946
      %v1056 = vpop.f32.mrb[0].mxu0
      %v1057 = vadd.f32 %v966, %v1056
      %v1058 = vpop.f32.mrb[0].mxu0
      %v1059 = vadd.f32 %v966, %v1058
      %1060 = vdwg.mxu0
      %1061 = vmatprep.subr.mxu0 %v741
      %1062 = vmatpush1.msra.mxu0 %v757
      %1063 = vmatprep.subr.mxu0 %v745
      %1064 = vmatpush1.msra.mxu0 %v758
      %1065 = vmatprep.subr.mxu0 %v749
      %1066 = vmatpush1.msra.mxu0 %v759
      %1067 = vmatprep.subr.mxu0 %v753
      %1068 = vmatpush1.msra.mxu0 %v760
      %1069 = vmatprep.subr.mxu0 %v788
      %1070 = vmatpush1.msra.mxu0 %v810
      %1071 = vmatprep.subr.mxu0 %v792
      %1072 = vmatpush1.msra.mxu0 %v811
      %1073 = vmatprep.subr.mxu0 %v796
      %1074 = vmatpush1.msra.mxu0 %v812
      %1075 = vmatprep.subr.mxu0 %v800
      %1076 = vmatpush1.msra.mxu0 %v813
      %1077 = vmatprep.subr.mxu0 %v804
      %1078 = vmatpush1.msra.mxu0 %v814
      %1079 = vmatprep.subr.mxu0 %v808
      %1080 = vmatpush1.msra.mxu0 %v815
      %1081 = vmatprep.subr.mxu0 %v843
      %1082 = vmatpush1.msra.mxu0 %v865
      %1083 = vmatprep.subr.mxu0 %v847
      %1084 = vmatpush1.msra.mxu0 %v866
      %1085 = vmatprep.subr.mxu0 %v851
      %1086 = vmatpush1.msra.mxu0 %v867
      %1087 = vmatprep.subr.mxu0 %v855
      %1088 = vmatpush1.msra.mxu0 %v868
      %1089 = vmatprep.subr.mxu0 %v859
      %1090 = vmatpush1.msra.mxu0 %v869
      %1091 = vmatprep.subr.mxu0 %v863
      %1092 = vmatpush1.msra.mxu0 %v870
      %1093 = vmatprep.subr.mxu0 %v898
      %1094 = vmatpush1.msra.mxu0 %v920
      %1095 = vmatprep.subr.mxu0 %v902
      %1096 = vmatpush1.msra.mxu0 %v921
      %1097 = vmatprep.subr.mxu0 %v906
      %1098 = vmatpush1.msra.mxu0 %v922
      %1099 = vmatprep.subr.mxu0 %v910
      %1100 = vmatpush1.msra.mxu0 %v923
      %1101 = vmatprep.subr.mxu0 %v914
      %1102 = vmatpush1.msra.mxu0 %v924
      %1103 = vmatprep.subr.mxu0 %v918
      %1104 = vmatpush1.msra.mxu0 %v925
      %1105 = vmatprep.subr.mxu0 0.0
      %1106 = vmatpush1.msra.mxu0 0.0
      %1107 = vmatprep.subr.mxu0 0.0
      %1108 = vmatpush1.msra.mxu0 0.0
      %1109 = vmatprep.subr.mxu0 0.0
      %1110 = vmatpush1.msra.mxu0 0.0
      %1111 = vmatprep.subr.mxu0 0.0
      %1112 = vmatpush1.msra.mxu0 0.0
      %1113 = vmatprep.subr.mxu0 0.0
      %1114 = vmatpush1.msra.mxu0 0.0
      %1115 = vmatprep.subr.mxu0 0.0
      %1116 = vmatpush1.msra.mxu0 0.0
      %1117 = vmatprep.subr.mxu0 0.0
      %1118 = vmatpush1.msra.mxu0 0.0
      %1119 = vmatprep.subr.mxu0 0.0
      %1120 = vmatpush1.msra.mxu0 0.0
      %1121 = vmatprep.subr.mxu0 0.0
      %1122 = vmatpush1.msra.mxu0 0.0
      %1123 = vmatprep.subr.mxu0 0.0
      %1124 = vmatpush1.msra.mxu0 0.0
      %1125 = vmatprep.mubr.f32.mxu0 %v970
      %1126 = vmatmul.mubr.f32.gmra.mrb[0].mxu0 %v940
      %v1127 = vpop.f32.mrb[0].mxu0
      %v1128 = vadd.f32 %v1045, %v1127
      %v1129 = vpop.f32.mrb[0].mxu0
      %v1130 = vadd.f32 %v1047, %v1129
      %1131 = vmatprep.mubr.f32.mxu0 %v973
      %1132 = vmatmul.mubr.f32.gmra.mrb[0].mxu0 %v944
      %v1133 = vpop.f32.mrb[0].mxu0
      %v1134 = vadd.f32 %v1051, %v1133
      %v1135 = vpop.f32.mrb[0].mxu0
      %v1136 = vadd.f32 %v1053, %v1135
      %1137 = vmatprep.mubr.f32.mxu0 %v976
      %1138 = vmatmul.mubr.f32.gmra.mrb[0].mxu0 %v948
      %v1139 = vpop.f32.mrb[0].mxu0
      %v1140 = vadd.f32 %v1057, %v1139
      %v1141 = vpop.f32.mrb[0].mxu0
      %v1142 = vadd.f32 %v1059, %v1141
      %1143 = vdwg.mxu0
      %vm1144 = vcmask 556032
      %v1145 = vsel %vm1144, %v1130, 0.0
      %v1146 = vadd.f32 %v1128, %v1145
      %1147 = vadd.xlane.f32.xlu0 %v1146
      %v1148 = vpop.xlane.xlu0 %1147
      %v1149 = vsel %vm1144, %v1136, 0.0
      %v1150 = vadd.f32 %v1134, %v1149
      %1151 = vadd.xlane.f32.xlu0 %v1150
      %v1152 = vpop.xlane.xlu0 %1151
      %v1153 = vsel %vm1144, %v1142, 0.0
      %v1154 = vadd.f32 %v1140, %v1153
      %1155 = vadd.xlane.f32.xlu0 %v1154
      %v1156 = vpop.xlane.xlu0 %1155
      %v1157 = vrcp.pop 196.0
      %v1158 = vmul.f32 %v1148, %v1157
      %v1159 = vmul.f32 %v1152, %v1157
      %v1160 = vmul.f32 %v1156, %v1157
      %v1161 = vadd.f32 %v1158, 0.0
      %v1162 = vadd.f32 %v1159, 0.0
      %v1163 = vadd.f32 %v1160, 0.0
      %v1164 = vsub.f32 %v1128, %v1161
      %v1165 = vsub.f32 %v1130, %v1161
      %v1166 = vsub.f32 %v1134, %v1162
      %v1167 = vsub.f32 %v1136, %v1162
      %v1168 = vsub.f32 %v1140, %v1163
      %v1169 = vsub.f32 %v1142, %v1163
      %v1170 = vmul.f32 %v1164, %v1164
      %v1171 = vmul.f32 %v1165, %v1165
      %v1172 = vmul.f32 %v1166, %v1166
      %v1173 = vmul.f32 %v1167, %v1167
      %v1174 = vmul.f32 %v1168, %v1168
      %v1175 = vmul.f32 %v1169, %v1169
      %v1176 = vsel %vm1144, %v1171, 0.0
      %v1177 = vadd.f32 %v1170, %v1176
      %1178 = vadd.xlane.f32.xlu0 %v1177
      %v1179 = vpop.xlane.xlu0 %1178
      %v1180 = vsel %vm1144, %v1173, 0.0
      %v1181 = vadd.f32 %v1172, %v1180
      %1182 = vadd.xlane.f32.xlu0 %v1181
      %v1183 = vpop.xlane.xlu0 %1182
      %v1184 = vsel %vm1144, %v1175, 0.0
      %v1185 = vadd.f32 %v1174, %v1184
      %1186 = vadd.xlane.f32.xlu0 %v1185
      %v1187 = vpop.xlane.xlu0 %1186
      %v1188 = vmul.f32 %v1179, %v1157
      %v1189 = vmul.f32 %v1183, %v1157
      %v1190 = vmul.f32 %v1187, %v1157
      %v1191 = vadd.f32 %v1188, 0.0
      %v1192 = vadd.f32 %v1189, 0.0
      %v1193 = vadd.f32 %v1190, 0.0
      %v1194 = vadd.f32 %v1191, 1e-05
      %v1195 = vadd.f32 %v1192, 1e-05
      %v1196 = vadd.f32 %v1193, 1e-05
      %v1197 = vrsqrt.pop %v1194
      %v1198 = vrsqrt.pop %v1195
      %v1199 = vrsqrt.pop %v1196
      %v1200 = vmul.f32 %v1164, %v1197
      %v1201 = vmul.f32 %v1165, %v1197
      %v1202 = vmul.f32 %v1166, %v1198
      %v1203 = vmul.f32 %v1167, %v1198
      %v1204 = vmul.f32 %v1168, %v1199
      %v1205 = vmul.f32 %v1169, %v1199
      %v1206 = vld [vmem:[%s3] sm:$0xff]
      %v1207 = vld [vmem:[%s3 + $0x8] sm:$0xff]
      %v1208 = vld [vmem:[%s3 + $0x10] sm:$0xff]
      %1210 = vset.pattern.permute.xlu0 0
      %1211 = vperm.xlu0 %1210, %v1206
      %v1212 = vpop.permute.xlu0 %1211
      %1215 = vset.pattern.permute.xlu0 0
      %1216 = vperm.xlu0 %1215, %v1207
      %v1217 = vpop.permute.xlu0 %1216
      %1220 = vset.pattern.permute.xlu0 0
      %1221 = vperm.xlu0 %1220, %v1208
      %v1222 = vpop.permute.xlu0 %1221
      %v1224 = vmul.f32 %v1200, %v1212
      %v1225 = vmul.f32 %v1201, %v1212
      %v1226 = vmul.f32 %v1202, %v1217
      %v1227 = vmul.f32 %v1203, %v1217
      %v1228 = vmul.f32 %v1204, %v1222
      %v1229 = vmul.f32 %v1205, %v1222
      %v1230 = vld [vmem:[%s4] sm:$0xff]
      %v1231 = vld [vmem:[%s4 + $0x8] sm:$0xff]
      %v1232 = vld [vmem:[%s4 + $0x10] sm:$0xff]
      %1234 = vset.pattern.permute.xlu0 0
      %1235 = vperm.xlu0 %1234, %v1230
      %v1236 = vpop.permute.xlu0 %1235
      %1239 = vset.pattern.permute.xlu0 0
      %1240 = vperm.xlu0 %1239, %v1231
      %v1241 = vpop.permute.xlu0 %1240
      %1244 = vset.pattern.permute.xlu0 0
      %1245 = vperm.xlu0 %1244, %v1232
      %v1246 = vpop.permute.xlu0 %1245
      %v1248 = vadd.f32 %v1224, %v1236
      %v1249 = vadd.f32 %v1225, %v1236
      %v1250 = vadd.f32 %v1226, %v1241
      %v1251 = vadd.f32 %v1227, %v1241
      %v1252 = vadd.f32 %v1228, %v1246
      %v1253 = vadd.f32 %v1229, %v1246
      %v1254 = vmax.f32 %v1248, 0.0
      %v1255 = vmax.f32 %v1249, 0.0
      %v1256 = vmax.f32 %v1250, 0.0
      %v1257 = vmax.f32 %v1251, 0.0
      %v1258 = vmax.f32 %v1252, 0.0
      %v1259 = vmax.f32 %v1253, 0.0
      %1260 = vst [vmem:[%s251] sm:$0xff] %v1254
      %1261 = vst.msk [vmem:[%s251 + $0x8] sm:$0xff] %vm1144, %v1255
      %1262 = vst [vmem:[%s251 + $0x10] sm:$0xff] %v1256
      %1263 = vst.msk [vmem:[%s251 + $0x18] sm:$0xff] %vm1144, %v1257
      %1264 = vst [vmem:[%s251 + $0x20] sm:$0xff] %v1258
      %1265 = vst.msk [vmem:[%s251 + $0x28] sm:$0xff] %vm1144, %v1259
      %p1266 = scmp.lt.s32.totalorder %s17, 1
      %s1267 = scalar_select %p1266, %s17, 1
      %s1268 = smul.addr %s1267, 6
      %s1269 = smul.addr %s1268, 8
      %s1270 = scalar_lea.vmem %s6, %s1269
      // Predicated region
      $region45: #{swin_decoder_forward.6} parent=43 // pred_check
        %p1271 = pneg %p166
      $region46: #{swin_decoder_forward.6} parent=43 // pred_check_branch
        %1273 = sbr.rel (%p1271) target = $region48
      $region47: #{swin_decoder_forward.6} parent=43 // pred_region
        _
      $region48: #{swin_decoder_forward.6} parent=43 // pred_fallthru
        _
    $region44: #{swin_decoder_forward.6} parent=5 // pred_fallthru
      _
    %p1274 = scmp.le.s32.totalorder 2, %s12
    // Predicated region
    $region49: #{swin_decoder_forward.6} parent=5 // pred_check
      %p1275 = pneg %p1274
    $region50: #{swin_decoder_forward.6} parent=5 // pred_check_branch
      %1277 = sbr.rel (%p1275) target = $region52
    $region51: #{swin_decoder_forward.6} parent=5 // pred_region
      %s1278 = ssub.s32 %s12, 2
      // Predicated region
      $region53: #{swin_decoder_forward.6} parent=51 // pred_check
        %p1279 = pneg %p172
      $region54: #{swin_decoder_forward.6} parent=51 // pred_check_branch
        %1281 = sbr.rel (%p1279) target = $region56
      $region55: #{swin_decoder_forward.6} parent=51 // pred_region
        %p1282 = scmp.lt.s32.totalorder %s18, 1
        %s1283 = scalar_select %p1282, %s18, 1
        %s1284 = smul.addr %s1283, 6
        %s1285 = smul.addr %s1284, 8
        %s1286 = scalar_lea.vmem %s6, %s1285
      $region56: #{swin_decoder_forward.6} parent=51 // pred_fallthru
        _
    $region52: #{swin_decoder_forward.6} parent=5 // pred_fallthru
      _
  $region6: #{swin_decoder_forward.6} parent=0 // loop_footer
    %s16 = sadd.s32 1, %s12
  $region7: #{swin_decoder_forward.6} parent=0 // loop_footer_branch
    %11 = sbr.rel target = $region3
  $region8: #{swin_decoder_forward.6} parent=0 // loop_exit
    _

// kernel: swin_decoder_forward.8
$region0: #{swin_decoder_forward.8}
  #allocation0 [shape = 'u32[]', space=smem, size = 0x4, offset = 0x4, fixed_abs, tag = 'smem constant byte address 0x4 - core index']
  #allocation1 [shape = 'u32[144,128]{1,0:T(1,128)}', space=vmem, size = 0x12000, scoped, tag = 'internal scratch']
  %s0 = inlined_call_operand.vmem [shape: f32[2,196,24], index: 0, kind: input, shape index: {}]
  %s1 = inlined_call_operand.vmem [shape: f32[1,24], index: 1, kind: input, shape index: {}]
  %s2 = inlined_call_operand.vmem [shape: f32[1,24], index: 2, kind: input, shape index: {}]
  %s3 = inlined_call_operand.vmem [shape: f32[24,96], index: 3, kind: input, shape index: {}]
  %s4 = inlined_call_operand.vmem [shape: f32[1,96], index: 4, kind: input, shape index: {}]
  %s5 = inlined_call_operand.vmem [shape: f32[96,24], index: 5, kind: input, shape index: {}]
  %s6 = inlined_call_operand.vmem [shape: f32[1,24], index: 6, kind: input, shape index: {}]
  %s7 = inlined_call_operand.vmem [shape: f32[2,196,24], index: 7, kind: output, shape index: {}]
  %s8 = sld [smem:[#allocation0]]
  $region61: #{swin_decoder_forward.8} parent=0
    _
  %s10 = ssub.s32 1, %s8
  %s11 = scalar_select 0, %s10, %s8
  loop: start=0, step=1, limit=4
  $region2: #{swin_decoder_forward.8} parent=0 // loop_pre_header
    _
  $region3: #{swin_decoder_forward.8} parent=0 // loop_header
    %s13 = sphi 0, %s17
    %p14 = scmp.ge.s32.totalorder %s13, 4
    %s23 = sphi 0, %s25
    %s26 = sphi 0, %s23
    %s27 = sphi 0, %s26
    %s43 = sphi 0, %s27
    %s47 = sphi 0, %s47
    %s49 = sphi 0, %s47
    %s50 = sphi 0, %s49
    %s64 = sphi 0, %s50
    %s68 = sphi 0, %s68
    %s70 = sphi 0, %s68
    %s71 = sphi 0, %s70
    %s85 = sphi 0, %s71
    %s89 = sphi 0, %s89
    %s91 = sphi 0, %s89
    %s92 = sphi 0, %s91
    %s106 = sphi 0, %s92
    %s110 = sphi 0, %s110
    %s112 = sphi 0, %s110
    %s113 = sphi 0, %s112
    %s127 = sphi 0, %s113
    %s131 = sphi 0, %s131
    %s133 = sphi 0, %s131
    %s134 = sphi 0, %s133
    %s148 = sphi 0, %s134
    %s152 = sphi 0, %s152
    %s154 = sphi 0, %s152
    %s155 = sphi 0, %s154
    %s169 = sphi 0, %s155
    %s175 = sphi 0, %s177
    %s178 = sphi 0, %s175
    %s179 = sphi 0, %s178
    %s195 = sphi 0, %s179
  $region4: #{swin_decoder_forward.8} parent=0 // loop_header_branch
    %16 = sbr.rel (%p14) target = $region8
  $region5: #{swin_decoder_forward.8} parent=0 // loop_body
    %s18 = ssub.s32 %s13, 1
    %s19 = ssub.s32 %s13, 2
    %s20 = sadd.s32 %s13, 1
    %s21 = ssub.s32 %s13, %s20
    %p22 = scmp.eq.s32.totalorder %s21, 0
    %s24 = sadd.s32 %s23, 1
    %s25 = scalar_select %p22, %s23, %s24
    %p28 = pneg %p22
    %p29 = scmp.eq.s32.totalorder %s13, 1
    %p30 = por %p28, %p29
    %p31 = scmp.ne.s32.totalorder %s23, %s26
    %p32 = scmp.eq.s32.totalorder %s13, 0
    %p33 = por %p31, %p32
    %p34 = scmp.ne.s32.totalorder %s23, %s26
    %p35 = scmp.eq.s32.totalorder %s18, 1
    %p36 = por %p34, %p35
    %p37 = scmp.ne.s32.totalorder %s26, %s27
    %p38 = scmp.eq.s32.totalorder %s18, 0
    %p39 = por %p37, %p38
    %p40 = scmp.ne.s32.totalorder %s26, %s27
    %p41 = scmp.eq.s32.totalorder %s19, 1
    %p42 = por %p40, %p41
    %p44 = scmp.ne.s32.totalorder %s27, %s43
    %p45 = scmp.eq.s32.totalorder %s19, 0
    %p46 = por %p44, %p45
    %s48 = sadd.s32 %s47, 1
    %p51 = scmp.eq.s32.totalorder %s13, 1
    %p52 = scmp.ne.s32.totalorder %s47, %s49
    %p53 = scmp.eq.s32.totalorder %s13, 0
    %p54 = por %p52, %p53
    %p55 = scmp.ne.s32.totalorder %s47, %s49
    %p56 = scmp.eq.s32.totalorder %s18, 1
    %p57 = por %p55, %p56
    %p58 = scmp.ne.s32.totalorder %s49, %s50
    %p59 = scmp.eq.s32.totalorder %s18, 0
    %p60 = por %p58, %p59
    %p61 = scmp.ne.s32.totalorder %s49, %s50
    %p62 = scmp.eq.s32.totalorder %s19, 1
    %p63 = por %p61, %p62
    %p65 = scmp.ne.s32.totalorder %s50, %s64
    %p66 = scmp.eq.s32.totalorder %s19, 0
    %p67 = por %p65, %p66
    %s69 = sadd.s32 %s68, 1
    %p72 = scmp.eq.s32.totalorder %s13, 1
    %p73 = scmp.ne.s32.totalorder %s68, %s70
    %p74 = scmp.eq.s32.totalorder %s13, 0
    %p75 = por %p73, %p74
    %p76 = scmp.ne.s32.totalorder %s68, %s70
    %p77 = scmp.eq.s32.totalorder %s18, 1
    %p78 = por %p76, %p77
    %p79 = scmp.ne.s32.totalorder %s70, %s71
    %p80 = scmp.eq.s32.totalorder %s18, 0
    %p81 = por %p79, %p80
    %p82 = scmp.ne.s32.totalorder %s70, %s71
    %p83 = scmp.eq.s32.totalorder %s19, 1
    %p84 = por %p82, %p83
    %p86 = scmp.ne.s32.totalorder %s71, %s85
    %p87 = scmp.eq.s32.totalorder %s19, 0
    %p88 = por %p86, %p87
    %s90 = sadd.s32 %s89, 1
    %p93 = scmp.eq.s32.totalorder %s13, 1
    %p94 = scmp.ne.s32.totalorder %s89, %s91
    %p95 = scmp.eq.s32.totalorder %s13, 0
    %p96 = por %p94, %p95
    %p97 = scmp.ne.s32.totalorder %s89, %s91
    %p98 = scmp.eq.s32.totalorder %s18, 1
    %p99 = por %p97, %p98
    %p100 = scmp.ne.s32.totalorder %s91, %s92
    %p101 = scmp.eq.s32.totalorder %s18, 0
    %p102 = por %p100, %p101
    %p103 = scmp.ne.s32.totalorder %s91, %s92
    %p104 = scmp.eq.s32.totalorder %s19, 1
    %p105 = por %p103, %p104
    %p107 = scmp.ne.s32.totalorder %s92, %s106
    %p108 = scmp.eq.s32.totalorder %s19, 0
    %p109 = por %p107, %p108
    %s111 = sadd.s32 %s110, 1
    %p114 = scmp.eq.s32.totalorder %s13, 1
    %p115 = scmp.ne.s32.totalorder %s110, %s112
    %p116 = scmp.eq.s32.totalorder %s13, 0
    %p117 = por %p115, %p116
    %p118 = scmp.ne.s32.totalorder %s110, %s112
    %p119 = scmp.eq.s32.totalorder %s18, 1
    %p120 = por %p118, %p119
    %p121 = scmp.ne.s32.totalorder %s112, %s113
    %p122 = scmp.eq.s32.totalorder %s18, 0
    %p123 = por %p121, %p122
    %p124 = scmp.ne.s32.totalorder %s112, %s113
    %p125 = scmp.eq.s32.totalorder %s19, 1
    %p126 = por %p124, %p125
    %p128 = scmp.ne.s32.totalorder %s113, %s127
    %p129 = scmp.eq.s32.totalorder %s19, 0
    %p130 = por %p128, %p129
    %s132 = sadd.s32 %s131, 1
    %p135 = scmp.eq.s32.totalorder %s13, 1
    %p136 = scmp.ne.s32.totalorder %s131, %s133
    %p137 = scmp.eq.s32.totalorder %s13, 0
    %p138 = por %p136, %p137
    %p139 = scmp.ne.s32.totalorder %s131, %s133
    %p140 = scmp.eq.s32.totalorder %s18, 1
    %p141 = por %p139, %p140
    %p142 = scmp.ne.s32.totalorder %s133, %s134
    %p143 = scmp.eq.s32.totalorder %s18, 0
    %p144 = por %p142, %p143
    %p145 = scmp.ne.s32.totalorder %s133, %s134
    %p146 = scmp.eq.s32.totalorder %s19, 1
    %p147 = por %p145, %p146
    %p149 = scmp.ne.s32.totalorder %s134, %s148
    %p150 = scmp.eq.s32.totalorder %s19, 0
    %p151 = por %p149, %p150
    %s153 = sadd.s32 %s152, 1
    %p156 = scmp.eq.s32.totalorder %s13, 1
    %p157 = scmp.ne.s32.totalorder %s152, %s154
    %p158 = scmp.eq.s32.totalorder %s13, 0
    %p159 = por %p157, %p158
    %p160 = scmp.ne.s32.totalorder %s152, %s154
    %p161 = scmp.eq.s32.totalorder %s18, 1
    %p162 = por %p160, %p161
    %p163 = scmp.ne.s32.totalorder %s154, %s155
    %p164 = scmp.eq.s32.totalorder %s18, 0
    %p165 = por %p163, %p164
    %p166 = scmp.ne.s32.totalorder %s154, %s155
    %p167 = scmp.eq.s32.totalorder %s19, 1
    %p168 = por %p166, %p167
    %p170 = scmp.ne.s32.totalorder %s155, %s169
    %p171 = scmp.eq.s32.totalorder %s19, 0
    %p172 = por %p170, %p171
    %s173 = ssub.s32 %s13, %s20
    %p174 = scmp.eq.s32.totalorder %s173, 0
    %s176 = sadd.s32 %s175, 1
    %s177 = scalar_select %p174, %s175, %s176
    %p180 = pneg %p174
    %p181 = scmp.eq.s32.totalorder %s13, 1
    %p182 = por %p180, %p181
    %p183 = scmp.ne.s32.totalorder %s175, %s178
    %p184 = scmp.eq.s32.totalorder %s13, 0
    %p185 = por %p183, %p184
    %p186 = scmp.ne.s32.totalorder %s175, %s178
    %p187 = scmp.eq.s32.totalorder %s18, 1
    %p188 = por %p186, %p187
    %p189 = scmp.ne.s32.totalorder %s178, %s179
    %p190 = scmp.eq.s32.totalorder %s18, 0
    %p191 = por %p189, %p190
    %p192 = scmp.ne.s32.totalorder %s178, %s179
    %p193 = scmp.eq.s32.totalorder %s19, 1
    %p194 = por %p192, %p193
    %p196 = scmp.ne.s32.totalorder %s179, %s195
    %p197 = scmp.eq.s32.totalorder %s19, 0
    %p198 = por %p196, %p197
    %p199 = scmp.le.s32.totalorder 1, %s13
    %p200 = scmp.lt.s32.totalorder %s13, 3
    %p201 = pnand %p199, %p200
    %p202 = pneg %p201
    // Predicated region
    $region9: #{swin_decoder_forward.8} parent=5 // pred_check
      _
    $region10: #{swin_decoder_forward.8} parent=5 // pred_check_branch
      %204 = sbr.rel (%p201) target = $region12
    $region11: #{swin_decoder_forward.8} parent=5 // pred_region
      %s205 = ssub.s32 %s13, 1
      // Predicated region
      $region13: #{swin_decoder_forward.8} parent=11 // pred_check
        %p206 = pneg %p60
      $region14: #{swin_decoder_forward.8} parent=11 // pred_check_branch
        %208 = sbr.rel (%p206) target = $region16
      $region15: #{swin_decoder_forward.8} parent=11 // pred_region
        _
      $region16: #{swin_decoder_forward.8} parent=11 // pred_fallthru
        _
      // Predicated region
      $region17: #{swin_decoder_forward.8} parent=11 // pred_check
        %p209 = pneg %p81
      $region18: #{swin_decoder_forward.8} parent=11 // pred_check_branch
        %211 = sbr.rel (%p209) target = $region20
      $region19: #{swin_decoder_forward.8} parent=11 // pred_region
        _
      $region20: #{swin_decoder_forward.8} parent=11 // pred_fallthru
        _
      // Predicated region
      $region21: #{swin_decoder_forward.8} parent=11 // pred_check
        %p212 = pneg %p102
      $region22: #{swin_decoder_forward.8} parent=11 // pred_check_branch
        %214 = sbr.rel (%p212) target = $region24
      $region23: #{swin_decoder_forward.8} parent=11 // pred_region
        _
      $region24: #{swin_decoder_forward.8} parent=11 // pred_fallthru
        _
      // Predicated region
      $region25: #{swin_decoder_forward.8} parent=11 // pred_check
        %p215 = pneg %p123
      $region26: #{swin_decoder_forward.8} parent=11 // pred_check_branch
        %217 = sbr.rel (%p215) target = $region28
      $region27: #{swin_decoder_forward.8} parent=11 // pred_region
        _
      $region28: #{swin_decoder_forward.8} parent=11 // pred_fallthru
        _
      // Predicated region
      $region29: #{swin_decoder_forward.8} parent=11 // pred_check
        %p218 = pneg %p144
      $region30: #{swin_decoder_forward.8} parent=11 // pred_check_branch
        %220 = sbr.rel (%p218) target = $region32
      $region31: #{swin_decoder_forward.8} parent=11 // pred_region
        _
      $region32: #{swin_decoder_forward.8} parent=11 // pred_fallthru
        _
      // Predicated region
      $region33: #{swin_decoder_forward.8} parent=11 // pred_check
        %p221 = pneg %p165
      $region34: #{swin_decoder_forward.8} parent=11 // pred_check_branch
        %223 = sbr.rel (%p221) target = $region36
      $region35: #{swin_decoder_forward.8} parent=11 // pred_region
        _
      $region36: #{swin_decoder_forward.8} parent=11 // pred_fallthru
        _
    $region12: #{swin_decoder_forward.8} parent=5 // pred_fallthru
      _
    %p224 = scmp.lt.s32.totalorder %s13, 2
    // Predicated region
    $region37: #{swin_decoder_forward.8} parent=5 // pred_check
      %p225 = pneg %p224
    $region38: #{swin_decoder_forward.8} parent=5 // pred_check_branch
      %227 = sbr.rel (%p225) target = $region40
    $region39: #{swin_decoder_forward.8} parent=5 // pred_region
      // Predicated region
      $region41: #{swin_decoder_forward.8} parent=39 // pred_check
        %p228 = pneg %p33
      $region42: #{swin_decoder_forward.8} parent=39 // pred_check_branch
        %230 = sbr.rel (%p228) target = $region44
      $region43: #{swin_decoder_forward.8} parent=39 // pred_region
        %p231 = scmp.lt.s32.totalorder %s13, 1
        %s232 = scalar_select %p231, %s13, 1
        %s233 = smul.addr %s232, 25
        %s234 = smul.addr %s233, 8
        %s235 = scalar_lea.vmem %s0, %s234
      $region44: #{swin_decoder_forward.8} parent=39 // pred_fallthru
        _
    $region40: #{swin_decoder_forward.8} parent=5 // pred_fallthru
      _
    %p236 = scmp.le.s32.totalorder 1, %s13
    %p237 = scmp.lt.s32.totalorder %s13, 3
    %p238 = pnand %p236, %p237
    %p239 = pneg %p238
    // Predicated region
    $region45: #{swin_decoder_forward.8} parent=5 // pred_check
      _
    $region46: #{swin_decoder_forward.8} parent=5 // pred_check_branch
      %241 = sbr.rel (%p238) target = $region48
    $region47: #{swin_decoder_forward.8} parent=5 // pred_region
      %s242 = ssub.s32 %s13, 1
      %p243 = scmp.lt.s32.totalorder %s18, 1
      %s244 = scalar_select %p243, %s18, 1
      %s245 = smul.addr %s244, 25
      %s246 = smul.addr %s245, 8
      %s247 = scalar_lea.vmem %s0, %s246
      %p248 = pneg %p39
      %p249 = pneg %p36
      %p250 = pneg %p60
      %p251 = pneg %p57
      %p252 = pneg %p81
      %p253 = pneg %p78
      %p254 = pneg %p102
      %p255 = pneg %p99
      %p256 = pneg %p123
      %p257 = pneg %p120
      %p258 = pneg %p144
      %p259 = pneg %p141
      %p260 = pneg %p165
      %p261 = pneg %p162
      %p262 = pneg %p191
      %p263 = pneg %p188
      %p264 = scmp.lt.s32.totalorder %s18, 1
      %s265 = scalar_select %p264, %s18, 1
      %s266 = smul.addr %s265, 25
      %s267 = smul.addr %s266, 8
      %s268 = scalar_lea.vmem %s7, %s267
      %p269 = scmp.lt.s32.totalorder %s18, 1
      %s270 = scalar_select %p269, %s18, 1
      %s271 = smul.addr %s270, 25
      %s272 = smul.addr %s271, 8
      %s273 = scalar_lea.vmem %s0, %s272
      %p274 = scmp.lt.s32.totalorder %s18, 1
      %s275 = scalar_select %p274, %s18, 1
      %s276 = smul.addr %s275, 25
      %s277 = smul.addr %s276, 8
      %s278 = scalar_lea.vmem %s7, %s277
      %v279 = vld [vmem:[%s273] sm:$0xff]
      %v280 = vld [vmem:[%s273 + $0x8] sm:$0xff]
      %v281 = vld [vmem:[%s273 + $0x10] sm:$0xff]
      %v282 = vld [vmem:[%s273 + $0x18] sm:$0xff]
      %v283 = vld [vmem:[%s273 + $0x20] sm:$0xff]
      %v284 = vld [vmem:[%s273 + $0x28] sm:$0xff]
      %v285 = vld [vmem:[%s273 + $0x30] sm:$0xff]
      %v286 = vld [vmem:[%s273 + $0x38] sm:$0xff]
      %v287 = vld [vmem:[%s273 + $0x40] sm:$0xff]
      %v288 = vld [vmem:[%s273 + $0x48] sm:$0xff]
      %v289 = vld [vmem:[%s273 + $0x50] sm:$0xff]
      %v290 = vld [vmem:[%s273 + $0x58] sm:$0xff]
      %v291 = vld [vmem:[%s273 + $0x60] sm:$0xff]
      %v292 = vld [vmem:[%s273 + $0x68] sm:$0xff]
      %v293 = vld [vmem:[%s273 + $0x70] sm:$0xff]
      %v294 = vld [vmem:[%s273 + $0x78] sm:$0xff]
      %v295 = vld [vmem:[%s273 + $0x80] sm:$0xff]
      %v296 = vld [vmem:[%s273 + $0x88] sm:$0xff]
      %v297 = vld [vmem:[%s273 + $0x90] sm:$0xff]
      %v298 = vld [vmem:[%s273 + $0x98] sm:$0xff]
      %v299 = vld [vmem:[%s273 + $0xa0] sm:$0xff]
      %v300 = vld [vmem:[%s273 + $0xa8] sm:$0xff]
      %v301 = vld [vmem:[%s273 + $0xb0] sm:$0xff]
      %v302 = vld [vmem:[%s273 + $0xb8] sm:$0xff]
      %v303 = vld [vmem:[%s273 + $0xc0] sm:$0xf]
      %vm304 = vcmask 195584
      %v305 = vsel %vm304, %v279, 0.0
      %306 = vadd.xlane.f32.xlu0 %v305
      %v307 = vpop.xlane.xlu0 %306
      %v308 = vsel %vm304, %v280, 0.0
      %309 = vadd.xlane.f32.xlu0 %v308
      %v310 = vpop.xlane.xlu0 %309
      %v311 = vsel %vm304, %v281, 0.0
      %312 = vadd.xlane.f32.xlu0 %v311
      %v313 = vpop.xlane.xlu0 %312
      %v314 = vsel %vm304, %v282, 0.0
      %315 = vadd.xlane.f32.xlu0 %v314
      %v316 = vpop.xlane.xlu0 %315
      %v317 = vsel %vm304, %v283, 0.0
      %318 = vadd.xlane.f32.xlu0 %v317
      %v319 = vpop.xlane.xlu0 %318
      %v320 = vsel %vm304, %v284, 0.0
      %321 = vadd.xlane.f32.xlu0 %v320
      %v322 = vpop.xlane.xlu0 %321
      %v323 = vsel %vm304, %v285, 0.0
      %324 = vadd.xlane.f32.xlu0 %v323
      %v325 = vpop.xlane.xlu0 %324
      %v326 = vsel %vm304, %v286, 0.0
      %327 = vadd.xlane.f32.xlu0 %v326
      %v328 = vpop.xlane.xlu0 %327
      %v329 = vsel %vm304, %v287, 0.0
      %330 = vadd.xlane.f32.xlu0 %v329
      %v331 = vpop.xlane.xlu0 %330
      %v332 = vsel %vm304, %v288, 0.0
      %333 = vadd.xlane.f32.xlu0 %v332
      %v334 = vpop.xlane.xlu0 %333
      %v335 = vsel %vm304, %v289, 0.0
      %336 = vadd.xlane.f32.xlu0 %v335
      %v337 = vpop.xlane.xlu0 %336
      %v338 = vsel %vm304, %v290, 0.0
      %339 = vadd.xlane.f32.xlu0 %v338
      %v340 = vpop.xlane.xlu0 %339
      %v341 = vsel %vm304, %v291, 0.0
      %342 = vadd.xlane.f32.xlu0 %v341
      %v343 = vpop.xlane.xlu0 %342
      %v344 = vsel %vm304, %v292, 0.0
      %345 = vadd.xlane.f32.xlu0 %v344
      %v346 = vpop.xlane.xlu0 %345
      %v347 = vsel %vm304, %v293, 0.0
      %348 = vadd.xlane.f32.xlu0 %v347
      %v349 = vpop.xlane.xlu0 %348
      %v350 = vsel %vm304, %v294, 0.0
      %351 = vadd.xlane.f32.xlu0 %v350
      %v352 = vpop.xlane.xlu0 %351
      %v353 = vsel %vm304, %v295, 0.0
      %354 = vadd.xlane.f32.xlu0 %v353
      %v355 = vpop.xlane.xlu0 %354
      %v356 = vsel %vm304, %v296, 0.0
      %357 = vadd.xlane.f32.xlu0 %v356
      %v358 = vpop.xlane.xlu0 %357
      %v359 = vsel %vm304, %v297, 0.0
      %360 = vadd.xlane.f32.xlu0 %v359
      %v361 = vpop.xlane.xlu0 %360
      %v362 = vsel %vm304, %v298, 0.0
      %363 = vadd.xlane.f32.xlu0 %v362
      %v364 = vpop.xlane.xlu0 %363
      %v365 = vsel %vm304, %v299, 0.0
      %366 = vadd.xlane.f32.xlu0 %v365
      %v367 = vpop.xlane.xlu0 %366
      %v368 = vsel %vm304, %v300, 0.0
      %369 = vadd.xlane.f32.xlu0 %v368
      %v370 = vpop.xlane.xlu0 %369
      %v371 = vsel %vm304, %v301, 0.0
      %372 = vadd.xlane.f32.xlu0 %v371
      %v373 = vpop.xlane.xlu0 %372
      %v374 = vsel %vm304, %v302, 0.0
      %375 = vadd.xlane.f32.xlu0 %v374
      %v376 = vpop.xlane.xlu0 %375
      %vm377 = vcmask 191488
      %v378 = vsel %vm377, %v303, 0.0
      %379 = vadd.xlane.f32.xlu0 %v378
      %v380 = vpop.xlane.xlu0 %379
      %v381 = vrcp.pop 24.0
      %v382 = vmul.f32 %v307, %v381
      %v383 = vmul.f32 %v310, %v381
      %v384 = vmul.f32 %v313, %v381
      %v385 = vmul.f32 %v316, %v381
      %v386 = vmul.f32 %v319, %v381
      %v387 = vmul.f32 %v322, %v381
      %v388 = vmul.f32 %v325, %v381
      %v389 = vmul.f32 %v328, %v381
      %v390 = vmul.f32 %v331, %v381
      %v391 = vmul.f32 %v334, %v381
      %v392 = vmul.f32 %v337, %v381
      %v393 = vmul.f32 %v340, %v381
      %v394 = vmul.f32 %v343, %v381
      %v395 = vmul.f32 %v346, %v381
      %v396 = vmul.f32 %v349, %v381
      %v397 = vmul.f32 %v352, %v381
      %v398 = vmul.f32 %v355, %v381
      %v399 = vmul.f32 %v358, %v381
      %v400 = vmul.f32 %v361, %v381
      %v401 = vmul.f32 %v364, %v381
      %v402 = vmul.f32 %v367, %v381
      %v403 = vmul.f32 %v370, %v381
      %v404 = vmul.f32 %v373, %v381
      %v405 = vmul.f32 %v376, %v381
      %v406 = vmul.f32 %v380, %v381
      %v407 = vsub.f32 %v279, %v382
      %v408 = vsub.f32 %v280, %v383
      %v409 = vsub.f32 %v281, %v384
      %v410 = vsub.f32 %v282, %v385
      %v411 = vsub.f32 %v283, %v386
      %v412 = vsub.f32 %v284, %v387
      %v413 = vsub.f32 %v285, %v388
      %v414 = vsub.f32 %v286, %v389
      %v415 = vsub.f32 %v287, %v390
      %v416 = vsub.f32 %v288, %v391
      %v417 = vsub.f32 %v289, %v392
      %v418 = vsub.f32 %v290, %v393
      %v419 = vsub.f32 %v291, %v394
      %v420 = vsub.f32 %v292, %v395
      %v421 = vsub.f32 %v293, %v396
      %v422 = vsub.f32 %v294, %v397
      %v423 = vsub.f32 %v295, %v398
      %v424 = vsub.f32 %v296, %v399
      %v425 = vsub.f32 %v297, %v400
      %v426 = vsub.f32 %v298, %v401
      %v427 = vsub.f32 %v299, %v402
      %v428 = vsub.f32 %v300, %v403
      %v429 = vsub.f32 %v301, %v404
      %v430 = vsub.f32 %v302, %v405
      %v431 = vsub.f32 %v303, %v406
      %v432 = vmul.f32 %v407, %v407
      %v433 = vmul.f32 %v408, %v408
      %v434 = vmul.f32 %v409, %v409
      %v435 = vmul.f32 %v410, %v410
      %v436 = vmul.f32 %v411, %v411
      %v437 = vmul.f32 %v412, %v412
      %v438 = vmul.f32 %v413, %v413
      %v439 = vmul.f32 %v414, %v414
      %v440 = vmul.f32 %v415, %v415
      %v441 = vmul.f32 %v416, %v416
      %v442 = vmul.f32 %v417, %v417
      %v443 = vmul.f32 %v418, %v418
      %v444 = vmul.f32 %v419, %v419
      %v445 = vmul.f32 %v420, %v420
      %v446 = vmul.f32 %v421, %v421
      %v447 = vmul.f32 %v422, %v422
      %v448 = vmul.f32 %v423, %v423
      %v449 = vmul.f32 %v424, %v424
      %v450 = vmul.f32 %v425, %v425
      %v451 = vmul.f32 %v426, %v426
      %v452 = vmul.f32 %v427, %v427
      %v453 = vmul.f32 %v428, %v428
      %v454 = vmul.f32 %v429, %v429
      %v455 = vmul.f32 %v430, %v430
      %v456 = vmul.f32 %v431, %v431
      %v457 = vsel %vm304, %v432, 0.0
      %458 = vadd.xlane.f32.xlu0 %v457
      %v459 = vpop.xlane.xlu0 %458
      %v460 = vsel %vm304, %v433, 0.0
      %461 = vadd.xlane.f32.xlu0 %v460
      %v462 = vpop.xlane.xlu0 %461
      %v463 = vsel %vm304, %v434, 0.0
      %464 = vadd.xlane.f32.xlu0 %v463
      %v465 = vpop.xlane.xlu0 %464
      %v466 = vsel %vm304, %v435, 0.0
      %467 = vadd.xlane.f32.xlu0 %v466
      %v468 = vpop.xlane.xlu0 %467
      %v469 = vsel %vm304, %v436, 0.0
      %470 = vadd.xlane.f32.xlu0 %v469
      %v471 = vpop.xlane.xlu0 %470
      %v472 = vsel %vm304, %v437, 0.0
      %473 = vadd.xlane.f32.xlu0 %v472
      %v474 = vpop.xlane.xlu0 %473
      %v475 = vsel %vm304, %v438, 0.0
      %476 = vadd.xlane.f32.xlu0 %v475
      %v477 = vpop.xlane.xlu0 %476
      %v478 = vsel %vm304, %v439, 0.0
      %479 = vadd.xlane.f32.xlu0 %v478
      %v480 = vpop.xlane.xlu0 %479
      %v481 = vsel %vm304, %v440, 0.0
      %482 = vadd.xlane.f32.xlu0 %v481
      %v483 = vpop.xlane.xlu0 %482
      %v484 = vsel %vm304, %v441, 0.0
      %485 = vadd.xlane.f32.xlu0 %v484
      %v486 = vpop.xlane.xlu0 %485
      %v487 = vsel %vm304, %v442, 0.0
      %488 = vadd.xlane.f32.xlu0 %v487
      %v489 = vpop.xlane.xlu0 %488
      %v490 = vsel %vm304, %v443, 0.0
      %491 = vadd.xlane.f32.xlu0 %v490
      %v492 = vpop.xlane.xlu0 %491
      %v493 = vsel %vm304, %v444, 0.0
      %494 = vadd.xlane.f32.xlu0 %v493
      %v495 = vpop.xlane.xlu0 %494
      %v496 = vsel %vm304, %v445, 0.0
      %497 = vadd.xlane.f32.xlu0 %v496
      %v498 = vpop.xlane.xlu0 %497
      %v499 = vsel %vm304, %v446, 0.0
      %500 = vadd.xlane.f32.xlu0 %v499
      %v501 = vpop.xlane.xlu0 %500
      %v502 = vsel %vm304, %v447, 0.0
      %503 = vadd.xlane.f32.xlu0 %v502
      %v504 = vpop.xlane.xlu0 %503
      %v505 = vsel %vm304, %v448, 0.0
      %506 = vadd.xlane.f32.xlu0 %v505
      %v507 = vpop.xlane.xlu0 %506
      %v508 = vsel %vm304, %v449, 0.0
      %509 = vadd.xlane.f32.xlu0 %v508
      %v510 = vpop.xlane.xlu0 %509
      %v511 = vsel %vm304, %v450, 0.0
      %512 = vadd.xlane.f32.xlu0 %v511
      %v513 = vpop.xlane.xlu0 %512
      %v514 = vsel %vm304, %v451, 0.0
      %515 = vadd.xlane.f32.xlu0 %v514
      %v516 = vpop.xlane.xlu0 %515
      %v517 = vsel %vm304, %v452, 0.0
      %518 = vadd.xlane.f32.xlu0 %v517
      %v519 = vpop.xlane.xlu0 %518
      %v520 = vsel %vm304, %v453, 0.0
      %521 = vadd.xlane.f32.xlu0 %v520
      %v522 = vpop.xlane.xlu0 %521
      %v523 = vsel %vm304, %v454, 0.0
      %524 = vadd.xlane.f32.xlu0 %v523
      %v525 = vpop.xlane.xlu0 %524
      %v526 = vsel %vm304, %v455, 0.0
      %527 = vadd.xlane.f32.xlu0 %v526
      %v528 = vpop.xlane.xlu0 %527
      %v529 = vsel %vm377, %v456, 0.0
      %530 = vadd.xlane.f32.xlu0 %v529
      %v531 = vpop.xlane.xlu0 %530
      %v532 = vmul.f32 %v459, %v381
      %v533 = vmul.f32 %v462, %v381
      %v534 = vmul.f32 %v465, %v381
      %v535 = vmul.f32 %v468, %v381
      %v536 = vmul.f32 %v471, %v381
      %v537 = vmul.f32 %v474, %v381
      %v538 = vmul.f32 %v477, %v381
      %v539 = vmul.f32 %v480, %v381
      %v540 = vmul.f32 %v483, %v381
      %v541 = vmul.f32 %v486, %v381
      %v542 = vmul.f32 %v489, %v381
      %v543 = vmul.f32 %v492, %v381
      %v544 = vmul.f32 %v495, %v381
      %v545 = vmul.f32 %v498, %v381
      %v546 = vmul.f32 %v501, %v381
      %v547 = vmul.f32 %v504, %v381
      %v548 = vmul.f32 %v507, %v381
      %v549 = vmul.f32 %v510, %v381
      %v550 = vmul.f32 %v513, %v381
      %v551 = vmul.f32 %v516, %v381
      %v552 = vmul.f32 %v519, %v381
      %v553 = vmul.f32 %v522, %v381
      %v554 = vmul.f32 %v525, %v381
      %v555 = vmul.f32 %v528, %v381
      %v556 = vmul.f32 %v531, %v381
      %v557 = vadd.f32 %v532, 1e-05
      %v558 = vadd.f32 %v533, 1e-05
      %v559 = vadd.f32 %v534, 1e-05
      %v560 = vadd.f32 %v535, 1e-05
      %v561 = vadd.f32 %v536, 1e-05
      %v562 = vadd.f32 %v537, 1e-05
      %v563 = vadd.f32 %v538, 1e-05
      %v564 = vadd.f32 %v539, 1e-05
      %v565 = vadd.f32 %v540, 1e-05
      %v566 = vadd.f32 %v541, 1e-05
      %v567 = vadd.f32 %v542, 1e-05
      %v568 = vadd.f32 %v543, 1e-05
      %v569 = vadd.f32 %v544, 1e-05
      %v570 = vadd.f32 %v545, 1e-05
      %v571 = vadd.f32 %v546, 1e-05
      %v572 = vadd.f32 %v547, 1e-05
      %v573 = vadd.f32 %v548, 1e-05
      %v574 = vadd.f32 %v549, 1e-05
      %v575 = vadd.f32 %v550, 1e-05
      %v576 = vadd.f32 %v551, 1e-05
      %v577 = vadd.f32 %v552, 1e-05
      %v578 = vadd.f32 %v553, 1e-05
      %v579 = vadd.f32 %v554, 1e-05
      %v580 = vadd.f32 %v555, 1e-05
      %v581 = vadd.f32 %v556, 1e-05
      %v582 = vrsqrt.pop %v557
      %v583 = vrsqrt.pop %v558
      %v584 = vrsqrt.pop %v559
      %v585 = vrsqrt.pop %v560
      %v586 = vrsqrt.pop %v561
      %v587 = vrsqrt.pop %v562
      %v588 = vrsqrt.pop %v563
      %v589 = vrsqrt.pop %v564
      %v590 = vrsqrt.pop %v565
      %v591 = vrsqrt.pop %v566
      %v592 = vrsqrt.pop %v567
      %v593 = vrsqrt.pop %v568
      %v594 = vrsqrt.pop %v569
      %v595 = vrsqrt.pop %v570
      %v596 = vrsqrt.pop %v571
      %v597 = vrsqrt.pop %v572
      %v598 = vrsqrt.pop %v573
      %v599 = vrsqrt.pop %v574
      %v600 = vrsqrt.pop %v575
      %v601 = vrsqrt.pop %v576
      %v602 = vrsqrt.pop %v577
      %v603 = vrsqrt.pop %v578
      %v604 = vrsqrt.pop %v579
      %v605 = vrsqrt.pop %v580
      %v606 = vrsqrt.pop %v581
      %v607 = vmul.f32 %v407, %v582
      %v608 = vmul.f32 %v408, %v583
      %v609 = vmul.f32 %v409, %v584
      %v610 = vmul.f32 %v410, %v585
      %v611 = vmul.f32 %v411, %v586
      %v612 = vmul.f32 %v412, %v587
      %v613 = vmul.f32 %v413, %v588
      %v614 = vmul.f32 %v414, %v589
      %v615 = vmul.f32 %v415, %v590
      %v616 = vmul.f32 %v416, %v591
      %v617 = vmul.f32 %v417, %v592
      %v618 = vmul.f32 %v418, %v593
      %v619 = vmul.f32 %v419, %v594
      %v620 = vmul.f32 %v420, %v595
      %v621 = vmul.f32 %v421, %v596
      %v622 = vmul.f32 %v422, %v597
      %v623 = vmul.f32 %v423, %v598
      %v624 = vmul.f32 %v424, %v599
      %v625 = vmul.f32 %v425, %v600
      %v626 = vmul.f32 %v426, %v601
      %v627 = vmul.f32 %v427, %v602
      %v628 = vmul.f32 %v428, %v603
      %v629 = vmul.f32 %v429, %v604
      %v630 = vmul.f32 %v430, %v605
      %v631 = vmul.f32 %v431, %v606
      %v632 = vld [vmem:[%s1] sm:$0x1]
      %v634 = vlaneseq
      %v635 = vshrl.u32 %v634, 7
      %v636 = vsub.s32 0, %v635
      %v637 = vrot.slane %v632, %v636
      %v639 = vmul.f32 %v607, %v637
      %v640 = vmul.f32 %v608, %v637
      %v641 = vmul.f32 %v609, %v637
      %v642 = vmul.f32 %v610, %v637
      %v643 = vmul.f32 %v611, %v637
      %v644 = vmul.f32 %v612, %v637
      %v645 = vmul.f32 %v613, %v637
      %v646 = vmul.f32 %v614, %v637
      %v647 = vmul.f32 %v615, %v637
      %v648 = vmul.f32 %v616, %v637
      %v649 = vmul.f32 %v617, %v637
      %v650 = vmul.f32 %v618, %v637
      %v651 = vmul.f32 %v619, %v637
      %v652 = vmul.f32 %v620, %v637
      %v653 = vmul.f32 %v621, %v637
      %v654 = vmul.f32 %v622, %v637
      %v655 = vmul.f32 %v623, %v637
      %v656 = vmul.f32 %v624, %v637
      %v657 = vmul.f32 %v625, %v637
      %v658 = vmul.f32 %v626, %v637
      %v659 = vmul.f32 %v627, %v637
      %v660 = vmul.f32 %v628, %v637
      %v661 = vmul.f32 %v629, %v637
      %v662 = vmul.f32 %v630, %v637
      %v663 = vmul.f32 %v631, %v637
      %v664 = vld [vmem:[%s2] sm:$0x1]
      %v666 = vlaneseq
      %v667 = vshrl.u32 %v666, 7
      %v668 = vsub.s32 0, %v667
      %v669 = vrot.slane %v664, %v668
      %v671 = vadd.f32 %v639, %v669
      %v672 = vadd.f32 %v640, %v669
      %v673 = vadd.f32 %v641, %v669
      %v674 = vadd.f32 %v642, %v669
      %v675 = vadd.f32 %v643, %v669
      %v676 = vadd.f32 %v644, %v669
      %v677 = vadd.f32 %v645, %v669
      %v678 = vadd.f32 %v646, %v669
      %v679 = vadd.f32 %v647, %v669
      %v680 = vadd.f32 %v648, %v669
      %v681 = vadd.f32 %v649, %v669
      %v682 = vadd.f32 %v650, %v669
      %v683 = vadd.f32 %v651, %v669
      %v684 = vadd.f32 %v652, %v669
      %v685 = vadd.f32 %v653, %v669
      %v686 = vadd.f32 %v654, %v669
      %v687 = vadd.f32 %v655, %v669
      %v688 = vadd.f32 %v656, %v669
      %v689 = vadd.f32 %v657, %v669
      %v690 = vadd.f32 %v658, %v669
      %v691 = vadd.f32 %v659, %v669
      %v692 = vadd.f32 %v660, %v669
      %v693 = vadd.f32 %v661, %v669
      %v694 = vadd.f32 %v662, %v669
      %v695 = vadd.f32 %v663, %v669
      %v696 = vld [vmem:[%s3] sm:$0xff]
      %v697 = vld [vmem:[%s3 + $0x8] sm:$0xff]
      %v698 = vld [vmem:[%s3 + $0x10] sm:$0xff]
      %v699 = vld [vmem:[%s4] sm:$0x1]
      %v701 = vlaneseq
      %v702 = vshrl.u32 %v701, 7
      %v703 = vsub.s32 0, %v702
      %v704 = vrot.slane %v699, %v703
      %v707 = vsel %vm304, %v671, 0
      %v710 = vsel %vm304, %v672, 0
      %v713 = vsel %vm304, %v673, 0
      %v716 = vsel %vm304, %v674, 0
      %v719 = vsel %vm304, %v675, 0
      %v722 = vsel %vm304, %v676, 0
      %v725 = vsel %vm304, %v677, 0
      %v728 = vsel %vm304, %v678, 0
      %v731 = vsel %vm304, %v679, 0
      %v734 = vsel %vm304, %v680, 0
      %v737 = vsel %vm304, %v681, 0
      %v740 = vsel %vm304, %v682, 0
      %v743 = vsel %vm304, %v683, 0
      %v746 = vsel %vm304, %v684, 0
      %v749 = vsel %vm304, %v685, 0
      %v752 = vsel %vm304, %v686, 0
      %v755 = vsel %vm304, %v687, 0
      %v758 = vsel %vm304, %v688, 0
      %v761 = vsel %vm304, %v689, 0
      %v764 = vsel %vm304, %v690, 0
      %v767 = vsel %vm304, %v691, 0
      %v770 = vsel %vm304, %v692, 0
      %v773 = vsel %vm304, %v693, 0
      %v776 = vsel %vm304, %v694, 0
      %v779 = vsel %vm304, %v695, 0
      %781 = vmatprep.subr.mxu0 0.0
      %782 = vmatpush1.msra.mxu0 %v696
      %783 = vmatprep.subr.mxu0 0.0
      %784 = vmatpush1.msra.mxu0 %v697
      %785 = vmatprep.subr.mxu0 0.0
      %786 = vmatpush1.msra.mxu0 %v698
      %787 = vmatprep.subr.mxu0 0.0
      %788 = vmatpush1.msra.mxu0 0.0
      %789 = vmatprep.subr.mxu0 0.0
      %790 = vmatpush1.msra.mxu0 0.0
      %791 = vmatprep.subr.mxu0 0.0
      %792 = vmatpush1.msra.mxu0 0.0
      %793 = vmatprep.subr.mxu0 0.0
      %794 = vmatpush1.msra.mxu0 0.0
      %795 = vmatprep.subr.mxu0 0.0
      %796 = vmatpush1.msra.mxu0 0.0
      %797 = vmatprep.subr.mxu0 0.0
      %798 = vmatpush1.msra.mxu0 0.0
      %799 = vmatprep.subr.mxu0 0.0
      %800 = vmatpush1.msra.mxu0 0.0
      %801 = vmatprep.subr.mxu0 0.0
      %802 = vmatpush1.msra.mxu0 0.0
      %803 = vmatprep.subr.mxu0 0.0
      %804 = vmatpush1.msra.mxu0 0.0
      %805 = vmatprep.subr.mxu0 0.0
      %806 = vmatpush1.msra.mxu0 0.0
      %807 = vmatprep.subr.mxu0 0.0
      %808 = vmatpush1.msra.mxu0 0.0
      %809 = vmatprep.subr.mxu0 0.0
      %810 = vmatpush1.msra.mxu0 0.0
      %811 = vmatprep.subr.mxu0 0.0
      %812 = vmatpush1.msra.mxu0 0.0
      %813 = vmatprep.subr.mxu0 0.0
      %814 = vmatpush1.msra.mxu0 0.0
      %815 = vmatprep.subr.mxu0 0.0
      %816 = vmatpush1.msra.mxu0 0.0
      %817 = vmatprep.subr.mxu0 0.0
      %818 = vmatpush1.msra.mxu0 0.0
      %819 = vmatprep.subr.mxu0 0.0
      %820 = vmatpush1.msra.mxu0 0.0
      %821 = vmatprep.subr.mxu0 0.0
      %822 = vmatpush1.msra.mxu0 0.0
      %823 = vmatprep.subr.mxu0 0.0
      %824 = vmatpush1.msra.mxu0 0.0
      %825 = vmatprep.subr.mxu0 0.0
      %826 = vmatpush1.msra.mxu0 0.0
      %827 = vmatprep.subr.mxu0 0.0
      %828 = vmatpush1.msra.mxu0 0.0
      %829 = vmatprep.subr.mxu0 0.0
      %830 = vmatpush1.msra.mxu0 0.0
      %831 = vmatprep.subr.mxu0 0.0
      %832 = vmatpush1.msra.mxu0 0.0
      %833 = vmatprep.subr.mxu0 0.0
      %834 = vmatpush1.msra.mxu0 0.0
      %835 = vmatprep.subr.mxu0 0.0
      %836 = vmatpush1.msra.mxu0 0.0
      %837 = vmatprep.subr.mxu0 0.0
      %838 = vmatpush1.msra.mxu0 0.0
      %839 = vmatprep.subr.mxu0 0.0
      %840 = vmatpush1.msra.mxu0 0.0
      %841 = vmatprep.subr.mxu0 0.0
      %842 = vmatpush1.msra.mxu0 0.0
      %843 = vmatprep.subr.mxu0 0.0
      %844 = vmatpush1.msra.mxu0 0.0
      %845 = vmatprep.mubr.f32.mxu0 0.0
      %846 = vmatmul.mubr.f32.gmra.mrb[0].mxu0 %v707
      %v847 = vpop.f32.mrb[0].mxu0
      %v848 = vadd.f32 %v704, %v847
      %v849 = vpop.f32.mrb[0].mxu0
      %850 = vmatprep.mubr.f32.mxu0 0.0
      %851 = vmatmul.mubr.f32.gmra.mrb[0].mxu0 %v710
      %v852 = vpop.f32.mrb[0].mxu0
      %v853 = vadd.f32 %v704, %v852
      %v854 = vpop.f32.mrb[0].mxu0
      %855 = vmatprep.mubr.f32.mxu0 0.0
      %856 = vmatmul.mubr.f32.gmra.mrb[0].mxu0 %v713
      %v857 = vpop.f32.mrb[0].mxu0
      %v858 = vadd.f32 %v704, %v857
      %v859 = vpop.f32.mrb[0].mxu0
      %860 = vmatprep.mubr.f32.mxu0 0.0
      %861 = vmatmul.mubr.f32.gmra.mrb[0].mxu0 %v716
      %v862 = vpop.f32.mrb[0].mxu0
      %v863 = vadd.f32 %v704, %v862
      %v864 = vpop.f32.mrb[0].mxu0
      %865 = vmatprep.mubr.f32.mxu0 0.0
      %866 = vmatmul.mubr.f32.gmra.mrb[0].mxu0 %v719
      %v867 = vpop.f32.mrb[0].mxu0
      %v868 = vadd.f32 %v704, %v867
      %v869 = vpop.f32.mrb[0].mxu0
      %870 = vmatprep.mubr.f32.mxu0 0.0
      %871 = vmatmul.mubr.f32.gmra.mrb[0].mxu0 %v722
      %v872 = vpop.f32.mrb[0].mxu0
      %v873 = vadd.f32 %v704, %v872
      %v874 = vpop.f32.mrb[0].mxu0
      %875 = vmatprep.mubr.f32.mxu0 0.0
      %876 = vmatmul.mubr.f32.gmra.mrb[0].mxu0 %v725
      %v877 = vpop.f32.mrb[0].mxu0
      %v878 = vadd.f32 %v704, %v877
      %v879 = vpop.f32.mrb[0].mxu0
      %880 = vmatprep.mubr.f32.mxu0 0.0
      %881 = vmatmul.mubr.f32.gmra.mrb[0].mxu0 %v728
      %v882 = vpop.f32.mrb[0].mxu0
      %v883 = vadd.f32 %v704, %v882
      %v884 = vpop.f32.mrb[0].mxu0
      %885 = vmatprep.mubr.f32.mxu0 0.0
      %886 = vmatmul.mubr.f32.gmra.mrb[0].mxu0 %v731
      %v887 = vpop.f32.mrb[0].mxu0
      %v888 = vadd.f32 %v704, %v887
      %v889 = vpop.f32.mrb[0].mxu0
      %890 = vmatprep.mubr.f32.mxu0 0.0
      %891 = vmatmul.mubr.f32.gmra.mrb[0].mxu0 %v734
      %v892 = vpop.f32.mrb[0].mxu0
      %v893 = vadd.f32 %v704, %v892
      %v894 = vpop.f32.mrb[0].mxu0
      %895 = vmatprep.mubr.f32.mxu0 0.0
      %896 = vmatmul.mubr.f32.gmra.mrb[0].mxu0 %v737
      %v897 = vpop.f32.mrb[0].mxu0
      %v898 = vadd.f32 %v704, %v897
      %v899 = vpop.f32.mrb[0].mxu0
      %900 = vmatprep.mubr.f32.mxu0 0.0
      %901 = vmatmul.mubr.f32.gmra.mrb[0].mxu0 %v740
      %v902 = vpop.f32.mrb[0].mxu0
      %v903 = vadd.f32 %v704, %v902
      %v904 = vpop.f32.mrb[0].mxu0
      %905 = vmatprep.mubr.f32.mxu0 0.0
      %906 = vmatmul.mubr.f32.gmra.mrb[0].mxu0 %v743
      %v907 = vpop.f32.mrb[0].mxu0
      %v908 = vadd.f32 %v704, %v907
      %v909 = vpop.f32.mrb[0].mxu0
      %910 = vmatprep.mubr.f32.mxu0 0.0
      %911 = vmatmul.mubr.f32.gmra.mrb[0].mxu0 %v746
      %v912 = vpop.f32.mrb[0].mxu0
      %v913 = vadd.f32 %v704, %v912
      %v914 = vpop.f32.mrb[0].mxu0
      %915 = vmatprep.mubr.f32.mxu0 0.0
      %916 = vmatmul.mubr.f32.gmra.mrb[0].mxu0 %v749
      %v917 = vpop.f32.mrb[0].mxu0
      %v918 = vadd.f32 %v704, %v917
      %v919 = vpop.f32.mrb[0].mxu0
      %920 = vmatprep.mubr.f32.mxu0 0.0
      %921 = vmatmul.mubr.f32.gmra.mrb[0].mxu0 %v752
      %v922 = vpop.f32.mrb[0].mxu0
      %v923 = vadd.f32 %v704, %v922
      %v924 = vpop.f32.mrb[0].mxu0
      %925 = vmatprep.mubr.f32.mxu0 0.0
      %926 = vmatmul.mubr.f32.gmra.mrb[0].mxu0 %v755
      %v927 = vpop.f32.mrb[0].mxu0
      %v928 = vadd.f32 %v704, %v927
      %v929 = vpop.f32.mrb[0].mxu0
      %930 = vmatprep.mubr.f32.mxu0 0.0
      %931 = vmatmul.mubr.f32.gmra.mrb[0].mxu0 %v758
      %v932 = vpop.f32.mrb[0].mxu0
      %v933 = vadd.f32 %v704, %v932
      %v934 = vpop.f32.mrb[0].mxu0
      %935 = vmatprep.mubr.f32.mxu0 0.0
      %936 = vmatmul.mubr.f32.gmra.mrb[0].mxu0 %v761
      %v937 = vpop.f32.mrb[0].mxu0
      %v938 = vadd.f32 %v704, %v937
      %v939 = vpop.f32.mrb[0].mxu0
      %940 = vmatprep.mubr.f32.mxu0 0.0
      %941 = vmatmul.mubr.f32.gmra.mrb[0].mxu0 %v764
      %v942 = vpop.f32.mrb[0].mxu0
      %v943 = vadd.f32 %v704, %v942
      %v944 = vpop.f32.mrb[0].mxu0
      %945 = vmatprep.mubr.f32.mxu0 0.0
      %946 = vmatmul.mubr.f32.gmra.mrb[0].mxu0 %v767
      %v947 = vpop.f32.mrb[0].mxu0
      %v948 = vadd.f32 %v704, %v947
      %v949 = vpop.f32.mrb[0].mxu0
      %950 = vmatprep.mubr.f32.mxu0 0.0
      %951 = vmatmul.mubr.f32.gmra.mrb[0].mxu0 %v770
      %v952 = vpop.f32.mrb[0].mxu0
      %v953 = vadd.f32 %v704, %v952
      %v954 = vpop.f32.mrb[0].mxu0
      %955 = vmatprep.mubr.f32.mxu0 0.0
      %956 = vmatmul.mubr.f32.gmra.mrb[0].mxu0 %v773
      %v957 = vpop.f32.mrb[0].mxu0
      %v958 = vadd.f32 %v704, %v957
      %v959 = vpop.f32.mrb[0].mxu0
      %960 = vmatprep.mubr.f32.mxu0 0.0
      %961 = vmatmul.mubr.f32.gmra.mrb[0].mxu0 %v776
      %v962 = vpop.f32.mrb[0].mxu0
      %v963 = vadd.f32 %v704, %v962
      %v964 = vpop.f32.mrb[0].mxu0
      %965 = vmatprep.mubr.f32.mxu0 0.0
      %966 = vmatmul.mubr.f32.gmra.mrb[0].mxu0 %v779
      %v967 = vpop.f32.mrb[0].mxu0
      %v968 = vadd.f32 %v704, %v967
      %v969 = vpop.f32.mrb[0].mxu0
      %970 = vdwg.mxu0
      %v971 = vmul.f32 %v848, 0.5
      %v972 = vmul.f32 %v853, 0.5
      %v973 = vmul.f32 %v858, 0.5
      %v974 = vmul.f32 %v863, 0.5
      %v975 = vmul.f32 %v868, 0.5
      %v976 = vmul.f32 %v873, 0.5
      %v977 = vmul.f32 %v878, 0.5
      %v978 = vmul.f32 %v883, 0.5
      %v979 = vmul.f32 %v888, 0.5
      %v980 = vmul.f32 %v893, 0.5
      %v981 = vmul.f32 %v898, 0.5
      %v982 = vmul.f32 %v903, 0.5
      %v983 = vmul.f32 %v908, 0.5
      %v984 = vmul.f32 %v913, 0.5
      %v985 = vmul.f32 %v918, 0.5
      %v986 = vmul.f32 %v923, 0.5
      %v987 = vmul.f32 %v928, 0.5
      %v988 = vmul.f32 %v933, 0.5
      %v989 = vmul.f32 %v938, 0.5
      %v990 = vmul.f32 %v943, 0.5
      %v991 = vmul.f32 %v948, 0.5
      %v992 = vmul.f32 %v953, 0.5
      %v993 = vmul.f32 %v958, 0.5
      %v994 = vmul.f32 %v963, 0.5
      %v995 = vmul.f32 %v968, 0.5
      %v996 = vmul.f32 %v848, 0.044715
      %v997 = vmul.f32 %v853, 0.044715
      %v998 = vmul.f32 %v858, 0.044715
      %v999 = vmul.f32 %v863, 0.044715
      %v1000 = vmul.f32 %v868, 0.044715
      %v1001 = vmul.f32 %v873, 0.044715
      %v1002 = vmul.f32 %v878, 0.044715
      %v1003 = vmul.f32 %v883, 0.044715
      %v1004 = vmul.f32 %v888, 0.044715
      %v1005 = vmul.f32 %v893, 0.044715
      %v1006 = vmul.f32 %v898, 0.044715
      %v1007 = vmul.f32 %v903, 0.044715
      %v1008 = vmul.f32 %v908, 0.044715
      %v1009 = vmul.f32 %v913, 0.044715
      %v1010 = vmul.f32 %v918, 0.044715
      %v1011 = vmul.f32 %v923, 0.044715
      %v1012 = vmul.f32 %v928, 0.044715
      %v1013 = vmul.f32 %v933, 0.044715
      %v1014 = vmul.f32 %v938, 0.044715
      %v1015 = vmul.f32 %v943, 0.044715
      %v1016 = vmul.f32 %v948, 0.044715
      %v1017 = vmul.f32 %v953, 0.044715
      %v1018 = vmul.f32 %v958, 0.044715
      %v1019 = vmul.f32 %v963, 0.044715
      %v1020 = vmul.f32 %v968, 0.044715
      %v1021 = vmul.f32 %v996, %v848
      %v1022 = vmul.f32 %v997, %v853
      %v1023 = vmul.f32 %v998, %v858
      %v1024 = vmul.f32 %v999, %v863
      %v1025 = vmul.f32 %v1000, %v868
      %v1026 = vmul.f32 %v1001, %v873
      %v1027 = vmul.f32 %v1002, %v878
      %v1028 = vmul.f32 %v1003, %v883
      %v1029 = vmul.f32 %v1004, %v888
      %v1030 = vmul.f32 %v1005, %v893
      %v1031 = vmul.f32 %v1006, %v898
      %v1032 = vmul.f32 %v1007, %v903
      %v1033 = vmul.f32 %v1008, %v908
      %v1034 = vmul.f32 %v1009, %v913
      %v1035 = vmul.f32 %v1010, %v918
      %v1036 = vmul.f32 %v1011, %v923
      %v1037 = vmul.f32 %v1012, %v928
      %v1038 = vmul.f32 %v1013, %v933
      %v1039 = vmul.f32 %v1014, %v938
      %v1040 = vmul.f32 %v1015, %v943
      %v1041 = vmul.f32 %v1016, %v948
      %v1042 = vmul.f32 %v1017, %v953
      %v1043 = vmul.f32 %v1018, %v958
      %v1044 = vmul.f32 %v1019, %v963
      %v1045 = vmul.f32 %v1020, %v968
      %v1046 = vmul.f32 %v1021, %v848
      %v1047 = vmul.f32 %v1022, %v853
      %v1048 = vmul.f32 %v1023, %v858
      %v1049 = vmul.f32 %v1024, %v863
      %v1050 = vmul.f32 %v1025, %v868
      %v1051 = vmul.f32 %v1026, %v873
      %v1052 = vmul.f32 %v1027, %v878
      %v1053 = vmul.f32 %v1028, %v883
      %v1054 = vmul.f32 %v1029, %v888
      %v1055 = vmul.f32 %v1030, %v893
      %v1056 = vmul.f32 %v1031, %v898
      %v1057 = vmul.f32 %v1032, %v903
      %v1058 = vmul.f32 %v1033, %v908
      %v1059 = vmul.f32 %v1034, %v913
      %v1060 = vmul.f32 %v1035, %v918
      %v1061 = vmul.f32 %v1036, %v923
      %v1062 = vmul.f32 %v1037, %v928
      %v1063 = vmul.f32 %v1038, %v933
      %v1064 = vmul.f32 %v1039, %v938
      %v1065 = vmul.f32 %v1040, %v943
      %v1066 = vmul.f32 %v1041, %v948
      %v1067 = vmul.f32 %v1042, %v953
      %v1068 = vmul.f32 %v1043, %v958
      %v1069 = vmul.f32 %v1044, %v963
      %v1070 = vmul.f32 %v1045, %v968
      %v1071 = vadd.f32 %v848, %v1046
      %v1072 = vadd.f32 %v853, %v1047
      %v1073 = vadd.f32 %v858, %v1048
      %v1074 = vadd.f32 %v863, %v1049
      %v1075 = vadd.f32 %v868, %v1050
      %v1076 = vadd.f32 %v873, %v1051
      %v1077 = vadd.f32 %v878, %v1052
      %v1078 = vadd.f32 %v883, %v1053
      %v1079 = vadd.f32 %v888, %v1054
      %v1080 = vadd.f32 %v893, %v1055
      %v1081 = vadd.f32 %v898, %v1056
      %v1082 = vadd.f32 %v903, %v1057
      %v1083 = vadd.f32 %v908, %v1058
      %v1084 = vadd.f32 %v913, %v1059
      %v1085 = vadd.f32 %v918, %v1060
      %v1086 = vadd.f32 %v923, %v1061
      %v1087 = vadd.f32 %v928, %v1062
      %v1088 = vadd.f32 %v933, %v1063
      %v1089 = vadd.f32 %v938, %v1064
      %v1090 = vadd.f32 %v943, %v1065
      %v1091 = vadd.f32 %v948, %v1066
      %v1092 = vadd.f32 %v953, %v1067
      %v1093 = vadd.f32 %v958, %v1068
      %v1094 = vadd.f32 %v963, %v1069
      %v1095 = vadd.f32 %v968, %v1070
      %v1096 = vmul.f32 %v1071, 0.7978846
      %v1097 = vmul.f32 %v1072, 0.7978846
      %v1098 = vmul.f32 %v1073, 0.7978846
      %v1099 = vmul.f32 %v1074, 0.7978846
      %v1100 = vmul.f32 %v1075, 0.7978846
      %v1101 = vmul.f32 %v1076, 0.7978846
      %v1102 = vmul.f32 %v1077, 0.7978846
      %v1103 = vmul.f32 %v1078, 0.7978846
      %v1104 = vmul.f32 %v1079, 0.7978846
      %v1105 = vmul.f32 %v1080, 0.7978846
      %v1106 = vmul.f32 %v1081, 0.7978846
      %v1107 = vmul.f32 %v1082, 0.7978846
      %v1108 = vmul.f32 %v1083, 0.7978846
      %v1109 = vmul.f32 %v1084, 0.7978846
      %v1110 = vmul.f32 %v1085, 0.7978846
      %v1111 = vmul.f32 %v1086, 0.7978846
      %v1112 = vmul.f32 %v1087, 0.7978846
      %v1113 = vmul.f32 %v1088, 0.7978846
      %v1114 = vmul.f32 %v1089, 0.7978846
      %v1115 = vmul.f32 %v1090, 0.7978846
      %v1116 = vmul.f32 %v1091, 0.7978846
      %v1117 = vmul.f32 %v1092, 0.7978846
      %v1118 = vmul.f32 %v1093, 0.7978846
      %v1119 = vmul.f32 %v1094, 0.7978846
      %v1120 = vmul.f32 %v1095, 0.7978846
      %v1121 = vtanh.pop %v1096
      %v1122 = vtanh.pop %v1097
      %v1123 = vtanh.pop %v1098
      %v1124 = vtanh.pop %v1099
      %v1125 = vtanh.pop %v1100
      %v1126 = vtanh.pop %v1101
      %v1127 = vtanh.pop %v1102
      %v1128 = vtanh.pop %v1103
      %v1129 = vtanh.pop %v1104
      %v1130 = vtanh.pop %v1105
      %v1131 = vtanh.pop %v1106
      %v1132 = vtanh.pop %v1107
      %v1133 = vtanh.pop %v1108
      %v1134 = vtanh.pop %v1109
      %v1135 = vtanh.pop %v1110
      %v1136 = vtanh.pop %v1111
      %v1137 = vtanh.pop %v1112
      %v1138 = vtanh.pop %v1113
      %v1139 = vtanh.pop %v1114
      %v1140 = vtanh.pop %v1115
      %v1141 = vtanh.pop %v1116
      %v1142 = vtanh.pop %v1117
      %v1143 = vtanh.pop %v1118
      %v1144 = vtanh.pop %v1119
      %v1145 = vtanh.pop %v1120
      %v1146 = vadd.f32 %v1121, 1.0
      %v1147 = vadd.f32 %v1122, 1.0
      %v1148 = vadd.f32 %v1123, 1.0
      %v1149 = vadd.f32 %v1124, 1.0
      %v1150 = vadd.f32 %v1125, 1.0
      %v1151 = vadd.f32 %v1126, 1.0
      %v1152 = vadd.f32 %v1127, 1.0
      %v1153 = vadd.f32 %v1128, 1.0
      %v1154 = vadd.f32 %v1129, 1.0
      %v1155 = vadd.f32 %v1130, 1.0
      %v1156 = vadd.f32 %v1131, 1.0
      %v1157 = vadd.f32 %v1132, 1.0
      %v1158 = vadd.f32 %v1133, 1.0
      %v1159 = vadd.f32 %v1134, 1.0
      %v1160 = vadd.f32 %v1135, 1.0
      %v1161 = vadd.f32 %v1136, 1.0
      %v1162 = vadd.f32 %v1137, 1.0
      %v1163 = vadd.f32 %v1138, 1.0
      %v1164 = vadd.f32 %v1139, 1.0
      %v1165 = vadd.f32 %v1140, 1.0
      %v1166 = vadd.f32 %v1141, 1.0
      %v1167 = vadd.f32 %v1142, 1.0
      %v1168 = vadd.f32 %v1143, 1.0
      %v1169 = vadd.f32 %v1144, 1.0
      %v1170 = vadd.f32 %v1145, 1.0
      %v1171 = vmul.f32 %v971, %v1146
      %v1172 = vmul.f32 %v972, %v1147
      %v1173 = vmul.f32 %v973, %v1148
      %v1174 = vmul.f32 %v974, %v1149
      %v1175 = vmul.f32 %v975, %v1150
      %v1176 = vmul.f32 %v976, %v1151
      %v1177 = vmul.f32 %v977, %v1152
      %v1178 = vmul.f32 %v978, %v1153
      %v1179 = vmul.f32 %v979, %v1154
      %v1180 = vmul.f32 %v980, %v1155
      %v1181 = vmul.f32 %v981, %v1156
      %v1182 = vmul.f32 %v982, %v1157
      %v1183 = vmul.f32 %v983, %v1158
      %v1184 = vmul.f32 %v984, %v1159
      %v1185 = vmul.f32 %v985, %v1160
      %v1186 = vmul.f32 %v986, %v1161
      %v1187 = vmul.f32 %v987, %v1162
      %v1188 = vmul.f32 %v988, %v1163
      %v1189 = vmul.f32 %v989, %v1164
      %v1190 = vmul.f32 %v990, %v1165
      %v1191 = vmul.f32 %v991, %v1166
      %v1192 = vmul.f32 %v992, %v1167
      %v1193 = vmul.f32 %v993, %v1168
      %v1194 = vmul.f32 %v994, %v1169
      %v1195 = vmul.f32 %v995, %v1170
      %v1196 = vld [vmem:[%s5] sm:$0xff]
      %v1197 = vld [vmem:[%s5 + $0x8] sm:$0xff]
      %v1198 = vld [vmem:[%s5 + $0x10] sm:$0xff]
      %v1199 = vld [vmem:[%s5 + $0x18] sm:$0xff]
      %v1200 = vld [vmem:[%s5 + $0x20] sm:$0xff]
      %v1201 = vld [vmem:[%s5 + $0x28] sm:$0xff]
      %v1202 = vld [vmem:[%s5 + $0x30] sm:$0xff]
      %v1203 = vld [vmem:[%s5 + $0x38] sm:$0xff]
      %v1204 = vld [vmem:[%s5 + $0x40] sm:$0xff]
      %v1205 = vld [vmem:[%s5 + $0x48] sm:$0xff]
      %v1206 = vld [vmem:[%s5 + $0x50] sm:$0xff]
      %v1207 = vld [vmem:[%s5 + $0x58] sm:$0xff]
      %v1208 = vld [vmem:[%s6] sm:$0x1]
      %v1210 = vlaneseq
      %v1211 = vshrl.u32 %v1210, 7
      %v1212 = vsub.s32 0, %v1211
      %v1213 = vrot.slane %v1208, %v1212
      %vm1215 = vcmask 785408
      %v1217 = vsel %vm1215, %v1171, 0
      %v1220 = vsel %vm1215, %v1172, 0
      %v1223 = vsel %vm1215, %v1173, 0
      %v1226 = vsel %vm1215, %v1174, 0
      %v1229 = vsel %vm1215, %v1175, 0
      %v1232 = vsel %vm1215, %v1176, 0
      %v1235 = vsel %vm1215, %v1177, 0
      %v1238 = vsel %vm1215, %v1178, 0
      %v1241 = vsel %vm1215, %v1179, 0
      %v1244 = vsel %vm1215, %v1180, 0
      %v1247 = vsel %vm1215, %v1181, 0
      %v1250 = vsel %vm1215, %v1182, 0
      %v1253 = vsel %vm1215, %v1183, 0
      %v1256 = vsel %vm1215, %v1184, 0
      %v1259 = vsel %vm1215, %v1185, 0
      %v1262 = vsel %vm1215, %v1186, 0
      %v1265 = vsel %vm1215, %v1187, 0
      %v1268 = vsel %vm1215, %v1188, 0
      %v1271 = vsel %vm1215, %v1189, 0
      %v1274 = vsel %vm1215, %v1190, 0
      %v1277 = vsel %vm1215, %v1191, 0
      %v1280 = vsel %vm1215, %v1192, 0
      %v1283 = vsel %vm1215, %v1193, 0
      %v1286 = vsel %vm1215, %v1194, 0
      %v1289 = vsel %vm1215, %v1195, 0
      %1291 = vmatprep.subr.mxu0 0.0
      %1292 = vmatpush1.msra.mxu0 %v1196
      %1293 = vmatprep.subr.mxu0 0.0
      %1294 = vmatpush1.msra.mxu0 %v1197
      %1295 = vmatprep.subr.mxu0 0.0
      %1296 = vmatpush1.msra.mxu0 %v1198
      %1297 = vmatprep.subr.mxu0 0.0
      %1298 = vmatpush1.msra.mxu0 %v1199
      %1299 = vmatprep.subr.mxu0 0.0
      %1300 = vmatpush1.msra.mxu0 %v1200
      %1301 = vmatprep.subr.mxu0 0.0
      %1302 = vmatpush1.msra.mxu0 %v1201
      %1303 = vmatprep.subr.mxu0 0.0
      %1304 = vmatpush1.msra.mxu0 %v1202
      %1305 = vmatprep.subr.mxu0 0.0
      %1306 = vmatpush1.msra.mxu0 %v1203
      %1307 = vmatprep.subr.mxu0 0.0
      %1308 = vmatpush1.msra.mxu0 %v1204
      %1309 = vmatprep.subr.mxu0 0.0
      %1310 = vmatpush1.msra.mxu0 %v1205
      %1311 = vmatprep.subr.mxu0 0.0
      %1312 = vmatpush1.msra.mxu0 %v1206
      %1313 = vmatprep.subr.mxu0 0.0
      %1314 = vmatpush1.msra.mxu0 %v1207
      %1315 = vmatprep.subr.mxu0 0.0
      %1316 = vmatpush1.msra.mxu0 0.0
      %1317 = vmatprep.subr.mxu0 0.0
      %1318 = vmatpush1.msra.mxu0 0.0
      %1319 = vmatprep.subr.mxu0 0.0
      %1320 = vmatpush1.msra.mxu0 0.0
      %1321 = vmatprep.subr.mxu0 0.0
      %1322 = vmatpush1.msra.mxu0 0.0
      %1323 = vmatprep.subr.mxu0 0.0
      %1324 = vmatpush1.msra.mxu0 0.0
      %1325 = vmatprep.subr.mxu0 0.0
      %1326 = vmatpush1.msra.mxu0 0.0
      %1327 = vmatprep.subr.mxu0 0.0
      %1328 = vmatpush1.msra.mxu0 0.0
      %1329 = vmatprep.subr.mxu0 0.0
      %1330 = vmatpush1.msra.mxu0 0.0
      %1331 = vmatprep.subr.mxu0 0.0
      %1332 = vmatpush1.msra.mxu0 0.0
      %1333 = vmatprep.subr.mxu0 0.0
      %1334 = vmatpush1.msra.mxu0 0.0
      %1335 = vmatprep.subr.mxu0 0.0
      %1336 = vmatpush1.msra.mxu0 0.0
      %1337 = vmatprep.subr.mxu0 0.0
      %1338 = vmatpush1.msra.mxu0 0.0
      %1339 = vmatprep.subr.mxu0 0.0
      %1340 = vmatpush1.msra.mxu0 0.0
      %1341 = vmatprep.subr.mxu0 0.0
      %1342 = vmatpush1.msra.mxu0 0.0
      %1343 = vmatprep.subr.mxu0 0.0
      %1344 = vmatpush1.msra.mxu0 0.0
      %1345 = vmatprep.subr.mxu0 0.0
      %1346 = vmatpush1.msra.mxu0 0.0
      %1347 = vmatprep.subr.mxu0 0.0
      %1348 = vmatpush1.msra.mxu0 0.0
      %1349 = vmatprep.subr.mxu0 0.0
      %1350 = vmatpush1.msra.mxu0 0.0
      %1351 = vmatprep.subr.mxu0 0.0
      %1352 = vmatpush1.msra.mxu0 0.0
      %1353 = vmatprep.subr.mxu0 0.0
      %1354 = vmatpush1.msra.mxu0 0.0
      %1355 = vmatprep.mubr.f32.mxu0 0.0
      %1356 = vmatmul.mubr.f32.gmra.mrb[0].mxu0 %v1217
      %v1357 = vpop.f32.mrb[0].mxu0
      %v1358 = vadd.f32 %v1213, %v1357
      %v1359 = vpop.f32.mrb[0].mxu0
      %1360 = vmatprep.mubr.f32.mxu0 0.0
      %1361 = vmatmul.mubr.f32.gmra.mrb[0].mxu0 %v1220
      %v1362 = vpop.f32.mrb[0].mxu0
      %v1363 = vadd.f32 %v1213, %v1362
      %v1364 = vpop.f32.mrb[0].mxu0
      %1365 = vmatprep.mubr.f32.mxu0 0.0
      %1366 = vmatmul.mubr.f32.gmra.mrb[0].mxu0 %v1223
      %v1367 = vpop.f32.mrb[0].mxu0
      %v1368 = vadd.f32 %v1213, %v1367
      %v1369 = vpop.f32.mrb[0].mxu0
      %1370 = vmatprep.mubr.f32.mxu0 0.0
      %1371 = vmatmul.mubr.f32.gmra.mrb[0].mxu0 %v1226
      %v1372 = vpop.f32.mrb[0].mxu0
      %v1373 = vadd.f32 %v1213, %v1372
      %v1374 = vpop.f32.mrb[0].mxu0
      %1375 = vmatprep.mubr.f32.mxu0 0.0
      %1376 = vmatmul.mubr.f32.gmra.mrb[0].mxu0 %v1229
      %v1377 = vpop.f32.mrb[0].mxu0
      %v1378 = vadd.f32 %v1213, %v1377
      %v1379 = vpop.f32.mrb[0].mxu0
      %1380 = vmatprep.mubr.f32.mxu0 0.0
      %1381 = vmatmul.mubr.f32.gmra.mrb[0].mxu0 %v1232
      %v1382 = vpop.f32.mrb[0].mxu0
      %v1383 = vadd.f32 %v1213, %v1382
      %v1384 = vpop.f32.mrb[0].mxu0
      %1385 = vmatprep.mubr.f32.mxu0 0.0
      %1386 = vmatmul.mubr.f32.gmra.mrb[0].mxu0 %v1235
      %v1387 = vpop.f32.mrb[0].mxu0
      %v1388 = vadd.f32 %v1213, %v1387
      %v1389 = vpop.f32.mrb[0].mxu0
      %1390 = vmatprep.mubr.f32.mxu0 0.0
      %1391 = vmatmul.mubr.f32.gmra.mrb[0].mxu0 %v1238
      %v1392 = vpop.f32.mrb[0].mxu0
      %v1393 = vadd.f32 %v1213, %v1392
      %v1394 = vpop.f32.mrb[0].mxu0
      %1395 = vmatprep.mubr.f32.mxu0 0.0
      %1396 = vmatmul.mubr.f32.gmra.mrb[0].mxu0 %v1241
      %v1397 = vpop.f32.mrb[0].mxu0
      %v1398 = vadd.f32 %v1213, %v1397
      %v1399 = vpop.f32.mrb[0].mxu0
      %1400 = vmatprep.mubr.f32.mxu0 0.0
      %1401 = vmatmul.mubr.f32.gmra.mrb[0].mxu0 %v1244
      %v1402 = vpop.f32.mrb[0].mxu0
      %v1403 = vadd.f32 %v1213, %v1402
      %v1404 = vpop.f32.mrb[0].mxu0
      %1405 = vmatprep.mubr.f32.mxu0 0.0
      %1406 = vmatmul.mubr.f32.gmra.mrb[0].mxu0 %v1247
      %v1407 = vpop.f32.mrb[0].mxu0
      %v1408 = vadd.f32 %v1213, %v1407
      %v1409 = vpop.f32.mrb[0].mxu0
      %1410 = vmatprep.mubr.f32.mxu0 0.0
      %1411 = vmatmul.mubr.f32.gmra.mrb[0].mxu0 %v1250
      %v1412 = vpop.f32.mrb[0].mxu0
      %v1413 = vadd.f32 %v1213, %v1412
      %v1414 = vpop.f32.mrb[0].mxu0
      %1415 = vmatprep.mubr.f32.mxu0 0.0
      %1416 = vmatmul.mubr.f32.gmra.mrb[0].mxu0 %v1253
      %v1417 = vpop.f32.mrb[0].mxu0
      %v1418 = vadd.f32 %v1213, %v1417
      %v1419 = vpop.f32.mrb[0].mxu0
      %1420 = vmatprep.mubr.f32.mxu0 0.0
      %1421 = vmatmul.mubr.f32.gmra.mrb[0].mxu0 %v1256
      %v1422 = vpop.f32.mrb[0].mxu0
      %v1423 = vadd.f32 %v1213, %v1422
      %v1424 = vpop.f32.mrb[0].mxu0
      %1425 = vmatprep.mubr.f32.mxu0 0.0
      %1426 = vmatmul.mubr.f32.gmra.mrb[0].mxu0 %v1259
      %v1427 = vpop.f32.mrb[0].mxu0
      %v1428 = vadd.f32 %v1213, %v1427
      %v1429 = vpop.f32.mrb[0].mxu0
      %1430 = vmatprep.mubr.f32.mxu0 0.0
      %1431 = vmatmul.mubr.f32.gmra.mrb[0].mxu0 %v1262
      %v1432 = vpop.f32.mrb[0].mxu0
      %v1433 = vadd.f32 %v1213, %v1432
      %v1434 = vpop.f32.mrb[0].mxu0
      %1435 = vmatprep.mubr.f32.mxu0 0.0
      %1436 = vmatmul.mubr.f32.gmra.mrb[0].mxu0 %v1265
      %v1437 = vpop.f32.mrb[0].mxu0
      %v1438 = vadd.f32 %v1213, %v1437
      %v1439 = vpop.f32.mrb[0].mxu0
      %1440 = vmatprep.mubr.f32.mxu0 0.0
      %1441 = vmatmul.mubr.f32.gmra.mrb[0].mxu0 %v1268
      %v1442 = vpop.f32.mrb[0].mxu0
      %v1443 = vadd.f32 %v1213, %v1442
      %v1444 = vpop.f32.mrb[0].mxu0
      %1445 = vmatprep.mubr.f32.mxu0 0.0
      %1446 = vmatmul.mubr.f32.gmra.mrb[0].mxu0 %v1271
      %v1447 = vpop.f32.mrb[0].mxu0
      %v1448 = vadd.f32 %v1213, %v1447
      %v1449 = vpop.f32.mrb[0].mxu0
      %1450 = vmatprep.mubr.f32.mxu0 0.0
      %1451 = vmatmul.mubr.f32.gmra.mrb[0].mxu0 %v1274
      %v1452 = vpop.f32.mrb[0].mxu0
      %v1453 = vadd.f32 %v1213, %v1452
      %v1454 = vpop.f32.mrb[0].mxu0
      %1455 = vmatprep.mubr.f32.mxu0 0.0
      %1456 = vmatmul.mubr.f32.gmra.mrb[0].mxu0 %v1277
      %v1457 = vpop.f32.mrb[0].mxu0
      %v1458 = vadd.f32 %v1213, %v1457
      %v1459 = vpop.f32.mrb[0].mxu0
      %1460 = vmatprep.mubr.f32.mxu0 0.0
      %1461 = vmatmul.mubr.f32.gmra.mrb[0].mxu0 %v1280
      %v1462 = vpop.f32.mrb[0].mxu0
      %v1463 = vadd.f32 %v1213, %v1462
      %v1464 = vpop.f32.mrb[0].mxu0
      %1465 = vmatprep.mubr.f32.mxu0 0.0
      %1466 = vmatmul.mubr.f32.gmra.mrb[0].mxu0 %v1283
      %v1467 = vpop.f32.mrb[0].mxu0
      %v1468 = vadd.f32 %v1213, %v1467
      %v1469 = vpop.f32.mrb[0].mxu0
      %1470 = vmatprep.mubr.f32.mxu0 0.0
      %1471 = vmatmul.mubr.f32.gmra.mrb[0].mxu0 %v1286
      %v1472 = vpop.f32.mrb[0].mxu0
      %v1473 = vadd.f32 %v1213, %v1472
      %v1474 = vpop.f32.mrb[0].mxu0
      %1475 = vmatprep.mubr.f32.mxu0 0.0
      %1476 = vmatmul.mubr.f32.gmra.mrb[0].mxu0 %v1289
      %v1477 = vpop.f32.mrb[0].mxu0
      %v1478 = vadd.f32 %v1213, %v1477
      %v1479 = vpop.f32.mrb[0].mxu0
      %1480 = vdwg.mxu0
      %v1481 = vadd.f32 %v279, %v1358
      %v1482 = vadd.f32 %v280, %v1363
      %v1483 = vadd.f32 %v281, %v1368
      %v1484 = vadd.f32 %v282, %v1373
      %v1485 = vadd.f32 %v283, %v1378
      %v1486 = vadd.f32 %v284, %v1383
      %v1487 = vadd.f32 %v285, %v1388
      %v1488 = vadd.f32 %v286, %v1393
      %v1489 = vadd.f32 %v287, %v1398
      %v1490 = vadd.f32 %v288, %v1403
      %v1491 = vadd.f32 %v289, %v1408
      %v1492 = vadd.f32 %v290, %v1413
      %v1493 = vadd.f32 %v291, %v1418
      %v1494 = vadd.f32 %v292, %v1423
      %v1495 = vadd.f32 %v293, %v1428
      %v1496 = vadd.f32 %v294, %v1433
      %v1497 = vadd.f32 %v295, %v1438
      %v1498 = vadd.f32 %v296, %v1443
      %v1499 = vadd.f32 %v297, %v1448
      %v1500 = vadd.f32 %v298, %v1453
      %v1501 = vadd.f32 %v299, %v1458
      %v1502 = vadd.f32 %v300, %v1463
      %v1503 = vadd.f32 %v301, %v1468
      %v1504 = vadd.f32 %v302, %v1473
      %v1505 = vadd.f32 %v303, %v1478
      %1506 = vst.msk [vmem:[%s278] sm:$0xff] %vm304, %v1481
      %1507 = vst.msk [vmem:[%s278 + $0x8] sm:$0xff] %vm304, %v1482
      %1508 = vst.msk [vmem:[%s278 + $0x10] sm:$0xff] %vm304, %v1483
      %1509 = vst.msk [vmem:[%s278 + $0x18] sm:$0xff] %vm304, %v1484
      %1510 = vst.msk [vmem:[%s278 + $0x20] sm:$0xff] %vm304, %v1485
      %1511 = vst.msk [vmem:[%s278 + $0x28] sm:$0xff] %vm304, %v1486
      %1512 = vst.msk [vmem:[%s278 + $0x30] sm:$0xff] %vm304, %v1487
      %1513 = vst.msk [vmem:[%s278 + $0x38] sm:$0xff] %vm304, %v1488
      %1514 = vst.msk [vmem:[%s278 + $0x40] sm:$0xff] %vm304, %v1489
      %1515 = vst.msk [vmem:[%s278 + $0x48] sm:$0xff] %vm304, %v1490
      %1516 = vst.msk [vmem:[%s278 + $0x50] sm:$0xff] %vm304, %v1491
      %1517 = vst.msk [vmem:[%s278 + $0x58] sm:$0xff] %vm304, %v1492
      %1518 = vst.msk [vmem:[%s278 + $0x60] sm:$0xff] %vm304, %v1493
      %1519 = vst.msk [vmem:[%s278 + $0x68] sm:$0xff] %vm304, %v1494
      %1520 = vst.msk [vmem:[%s278 + $0x70] sm:$0xff] %vm304, %v1495
      %1521 = vst.msk [vmem:[%s278 + $0x78] sm:$0xff] %vm304, %v1496
      %1522 = vst.msk [vmem:[%s278 + $0x80] sm:$0xff] %vm304, %v1497
      %1523 = vst.msk [vmem:[%s278 + $0x88] sm:$0xff] %vm304, %v1498
      %1524 = vst.msk [vmem:[%s278 + $0x90] sm:$0xff] %vm304, %v1499
      %1525 = vst.msk [vmem:[%s278 + $0x98] sm:$0xff] %vm304, %v1500
      %1526 = vst.msk [vmem:[%s278 + $0xa0] sm:$0xff] %vm304, %v1501
      %1527 = vst.msk [vmem:[%s278 + $0xa8] sm:$0xff] %vm304, %v1502
      %1528 = vst.msk [vmem:[%s278 + $0xb0] sm:$0xff] %vm304, %v1503
      %1529 = vst.msk [vmem:[%s278 + $0xb8] sm:$0xff] %vm304, %v1504
      %1530 = vst.msk [vmem:[%s278 + $0xc0] sm:$0xf] %vm377, %v1505
      %p1531 = scmp.lt.s32.totalorder %s18, 1
      %s1532 = scalar_select %p1531, %s18, 1
      %s1533 = smul.addr %s1532, 25
      %s1534 = smul.addr %s1533, 8
      %s1535 = scalar_lea.vmem %s7, %s1534
      // Predicated region
      $region49: #{swin_decoder_forward.8} parent=47 // pred_check
        %p1536 = pneg %p188
      $region50: #{swin_decoder_forward.8} parent=47 // pred_check_branch
        %1538 = sbr.rel (%p1536) target = $region52
      $region51: #{swin_decoder_forward.8} parent=47 // pred_region
        _
      $region52: #{swin_decoder_forward.8} parent=47 // pred_fallthru
        _
    $region48: #{swin_decoder_forward.8} parent=5 // pred_fallthru
      _
    %p1539 = scmp.le.s32.totalorder 2, %s13
    // Predicated region
    $region53: #{swin_decoder_forward.8} parent=5 // pred_check
      %p1540 = pneg %p1539
    $region54: #{swin_decoder_forward.8} parent=5 // pred_check_branch
      %1542 = sbr.rel (%p1540) target = $region56
    $region55: #{swin_decoder_forward.8} parent=5 // pred_region
      %s1543 = ssub.s32 %s13, 2
      // Predicated region
      $region57: #{swin_decoder_forward.8} parent=55 // pred_check
        %p1544 = pneg %p194
      $region58: #{swin_decoder_forward.8} parent=55 // pred_check_branch
        %1546 = sbr.rel (%p1544) target = $region60
      $region59: #{swin_decoder_forward.8} parent=55 // pred_region
        %p1547 = scmp.lt.s32.totalorder %s19, 1
        %s1548 = scalar_select %p1547, %s19, 1
        %s1549 = smul.addr %s1548, 25
        %s1550 = smul.addr %s1549, 8
        %s1551 = scalar_lea.vmem %s7, %s1550
      $region60: #{swin_decoder_forward.8} parent=55 // pred_fallthru
        _
    $region56: #{swin_decoder_forward.8} parent=5 // pred_fallthru
      _
  $region6: #{swin_decoder_forward.8} parent=0 // loop_footer
    %s17 = sadd.s32 1, %s13
  $region7: #{swin_decoder_forward.8} parent=0 // loop_footer_branch
    %12 = sbr.rel target = $region3
  $region8: #{swin_decoder_forward.8} parent=0 // loop_exit
    _

// kernel: swin_decoder_forward.7
$region0: #{swin_decoder_forward.7}
  #allocation0 [shape = 'u32[]', space=smem, size = 0x4, offset = 0x4, fixed_abs, tag = 'smem constant byte address 0x4 - core index']
  #allocation1 [shape = 'u32[144,128]{1,0:T(1,128)}', space=vmem, size = 0x12000, scoped, tag = 'internal scratch']
  %s0 = inlined_call_operand.vmem [shape: f32[8,49,24], index: 0, kind: input, shape index: {}]
  %s1 = inlined_call_operand.vmem [shape: f32[1,24], index: 1, kind: input, shape index: {}]
  %s2 = inlined_call_operand.vmem [shape: f32[1,24], index: 2, kind: input, shape index: {}]
  %s3 = inlined_call_operand.vmem [shape: f32[24,72], index: 3, kind: input, shape index: {}]
  %s4 = inlined_call_operand.vmem [shape: f32[1,72], index: 4, kind: input, shape index: {}]
  %s5 = inlined_call_operand.vmem [shape: f32[24,24], index: 5, kind: input, shape index: {}]
  %s6 = inlined_call_operand.vmem [shape: f32[1,24], index: 6, kind: input, shape index: {}]
  %s7 = inlined_call_operand.vmem [shape: f32[6,49,49], index: 7, kind: input, shape index: {}]
  %s8 = inlined_call_operand.vmem [shape: f32[8,49,49], index: 8, kind: input, shape index: {}]
  %s9 = inlined_call_operand.vmem [shape: f32[8,49,24], index: 9, kind: output, shape index: {}]
  %s10 = sld [smem:[#allocation0]]
  $region69: #{swin_decoder_forward.7} parent=0
    _
  %s12 = ssub.s32 1, %s10
  %s13 = scalar_select 0, %s12, %s10
  loop: start=0, step=1, limit=10
  $region2: #{swin_decoder_forward.7} parent=0 // loop_pre_header
    _
  $region3: #{swin_decoder_forward.7} parent=0 // loop_header
    %s15 = sphi 0, %s19
    %p16 = scmp.ge.s32.totalorder %s15, 10
    %s25 = sphi 0, %s27
    %s28 = sphi 0, %s25
    %s29 = sphi 0, %s28
    %s45 = sphi 0, %s29
    %s49 = sphi 0, %s49
    %s51 = sphi 0, %s49
    %s52 = sphi 0, %s51
    %s66 = sphi 0, %s52
    %s70 = sphi 0, %s70
    %s72 = sphi 0, %s70
    %s73 = sphi 0, %s72
    %s87 = sphi 0, %s73
    %s91 = sphi 0, %s91
    %s93 = sphi 0, %s91
    %s94 = sphi 0, %s93
    %s108 = sphi 0, %s94
    %s112 = sphi 0, %s112
    %s114 = sphi 0, %s112
    %s115 = sphi 0, %s114
    %s129 = sphi 0, %s115
    %s133 = sphi 0, %s133
    %s135 = sphi 0, %s133
    %s136 = sphi 0, %s135
    %s150 = sphi 0, %s136
    %s154 = sphi 0, %s154
    %s156 = sphi 0, %s154
    %s157 = sphi 0, %s156
    %s171 = sphi 0, %s157
    %s175 = sphi 0, %s175
    %s177 = sphi 0, %s175
    %s178 = sphi 0, %s177
    %s192 = sphi 0, %s178
    %s198 = sphi 0, %s200
    %s201 = sphi 0, %s198
    %s202 = sphi 0, %s201
    %s218 = sphi 0, %s202
    %s224 = sphi 0, %s226
    %s227 = sphi 0, %s224
    %s228 = sphi 0, %s227
    %s244 = sphi 0, %s228
  $region4: #{swin_decoder_forward.7} parent=0 // loop_header_branch
    %18 = sbr.rel (%p16) target = $region8
  $region5: #{swin_decoder_forward.7} parent=0 // loop_body
    %s20 = ssub.s32 %s15, 1
    %s21 = ssub.s32 %s15, 2
    %s22 = sadd.s32 %s15, 1
    %s23 = ssub.s32 %s15, %s22
    %p24 = scmp.eq.s32.totalorder %s23, 0
    %s26 = sadd.s32 %s25, 1
    %s27 = scalar_select %p24, %s25, %s26
    %p30 = pneg %p24
    %p31 = scmp.eq.s32.totalorder %s15, 7
    %p32 = por %p30, %p31
    %p33 = scmp.ne.s32.totalorder %s25, %s28
    %p34 = scmp.eq.s32.totalorder %s15, 0
    %p35 = por %p33, %p34
    %p36 = scmp.ne.s32.totalorder %s25, %s28
    %p37 = scmp.eq.s32.totalorder %s20, 7
    %p38 = por %p36, %p37
    %p39 = scmp.ne.s32.totalorder %s28, %s29
    %p40 = scmp.eq.s32.totalorder %s20, 0
    %p41 = por %p39, %p40
    %p42 = scmp.ne.s32.totalorder %s28, %s29
    %p43 = scmp.eq.s32.totalorder %s21, 7
    %p44 = por %p42, %p43
    %p46 = scmp.ne.s32.totalorder %s29, %s45
    %p47 = scmp.eq.s32.totalorder %s21, 0
    %p48 = por %p46, %p47
    %s50 = sadd.s32 %s49, 1
    %p53 = scmp.eq.s32.totalorder %s15, 7
    %p54 = scmp.ne.s32.totalorder %s49, %s51
    %p55 = scmp.eq.s32.totalorder %s15, 0
    %p56 = por %p54, %p55
    %p57 = scmp.ne.s32.totalorder %s49, %s51
    %p58 = scmp.eq.s32.totalorder %s20, 7
    %p59 = por %p57, %p58
    %p60 = scmp.ne.s32.totalorder %s51, %s52
    %p61 = scmp.eq.s32.totalorder %s20, 0
    %p62 = por %p60, %p61
    %p63 = scmp.ne.s32.totalorder %s51, %s52
    %p64 = scmp.eq.s32.totalorder %s21, 7
    %p65 = por %p63, %p64
    %p67 = scmp.ne.s32.totalorder %s52, %s66
    %p68 = scmp.eq.s32.totalorder %s21, 0
    %p69 = por %p67, %p68
    %s71 = sadd.s32 %s70, 1
    %p74 = scmp.eq.s32.totalorder %s15, 7
    %p75 = scmp.ne.s32.totalorder %s70, %s72
    %p76 = scmp.eq.s32.totalorder %s15, 0
    %p77 = por %p75, %p76
    %p78 = scmp.ne.s32.totalorder %s70, %s72
    %p79 = scmp.eq.s32.totalorder %s20, 7
    %p80 = por %p78, %p79
    %p81 = scmp.ne.s32.totalorder %s72, %s73
    %p82 = scmp.eq.s32.totalorder %s20, 0
    %p83 = por %p81, %p82
    %p84 = scmp.ne.s32.totalorder %s72, %s73
    %p85 = scmp.eq.s32.totalorder %s21, 7
    %p86 = por %p84, %p85
    %p88 = scmp.ne.s32.totalorder %s73, %s87
    %p89 = scmp.eq.s32.totalorder %s21, 0
    %p90 = por %p88, %p89
    %s92 = sadd.s32 %s91, 1
    %p95 = scmp.eq.s32.totalorder %s15, 7
    %p96 = scmp.ne.s32.totalorder %s91, %s93
    %p97 = scmp.eq.s32.totalorder %s15, 0
    %p98 = por %p96, %p97
    %p99 = scmp.ne.s32.totalorder %s91, %s93
    %p100 = scmp.eq.s32.totalorder %s20, 7
    %p101 = por %p99, %p100
    %p102 = scmp.ne.s32.totalorder %s93, %s94
    %p103 = scmp.eq.s32.totalorder %s20, 0
    %p104 = por %p102, %p103
    %p105 = scmp.ne.s32.totalorder %s93, %s94
    %p106 = scmp.eq.s32.totalorder %s21, 7
    %p107 = por %p105, %p106
    %p109 = scmp.ne.s32.totalorder %s94, %s108
    %p110 = scmp.eq.s32.totalorder %s21, 0
    %p111 = por %p109, %p110
    %s113 = sadd.s32 %s112, 1
    %p116 = scmp.eq.s32.totalorder %s15, 7
    %p117 = scmp.ne.s32.totalorder %s112, %s114
    %p118 = scmp.eq.s32.totalorder %s15, 0
    %p119 = por %p117, %p118
    %p120 = scmp.ne.s32.totalorder %s112, %s114
    %p121 = scmp.eq.s32.totalorder %s20, 7
    %p122 = por %p120, %p121
    %p123 = scmp.ne.s32.totalorder %s114, %s115
    %p124 = scmp.eq.s32.totalorder %s20, 0
    %p125 = por %p123, %p124
    %p126 = scmp.ne.s32.totalorder %s114, %s115
    %p127 = scmp.eq.s32.totalorder %s21, 7
    %p128 = por %p126, %p127
    %p130 = scmp.ne.s32.totalorder %s115, %s129
    %p131 = scmp.eq.s32.totalorder %s21, 0
    %p132 = por %p130, %p131
    %s134 = sadd.s32 %s133, 1
    %p137 = scmp.eq.s32.totalorder %s15, 7
    %p138 = scmp.ne.s32.totalorder %s133, %s135
    %p139 = scmp.eq.s32.totalorder %s15, 0
    %p140 = por %p138, %p139
    %p141 = scmp.ne.s32.totalorder %s133, %s135
    %p142 = scmp.eq.s32.totalorder %s20, 7
    %p143 = por %p141, %p142
    %p144 = scmp.ne.s32.totalorder %s135, %s136
    %p145 = scmp.eq.s32.totalorder %s20, 0
    %p146 = por %p144, %p145
    %p147 = scmp.ne.s32.totalorder %s135, %s136
    %p148 = scmp.eq.s32.totalorder %s21, 7
    %p149 = por %p147, %p148
    %p151 = scmp.ne.s32.totalorder %s136, %s150
    %p152 = scmp.eq.s32.totalorder %s21, 0
    %p153 = por %p151, %p152
    %s155 = sadd.s32 %s154, 1
    %p158 = scmp.eq.s32.totalorder %s15, 7
    %p159 = scmp.ne.s32.totalorder %s154, %s156
    %p160 = scmp.eq.s32.totalorder %s15, 0
    %p161 = por %p159, %p160
    %p162 = scmp.ne.s32.totalorder %s154, %s156
    %p163 = scmp.eq.s32.totalorder %s20, 7
    %p164 = por %p162, %p163
    %p165 = scmp.ne.s32.totalorder %s156, %s157
    %p166 = scmp.eq.s32.totalorder %s20, 0
    %p167 = por %p165, %p166
    %p168 = scmp.ne.s32.totalorder %s156, %s157
    %p169 = scmp.eq.s32.totalorder %s21, 7
    %p170 = por %p168, %p169
    %p172 = scmp.ne.s32.totalorder %s157, %s171
    %p173 = scmp.eq.s32.totalorder %s21, 0
    %p174 = por %p172, %p173
    %s176 = sadd.s32 %s175, 1
    %p179 = scmp.eq.s32.totalorder %s15, 7
    %p180 = scmp.ne.s32.totalorder %s175, %s177
    %p181 = scmp.eq.s32.totalorder %s15, 0
    %p182 = por %p180, %p181
    %p183 = scmp.ne.s32.totalorder %s175, %s177
    %p184 = scmp.eq.s32.totalorder %s20, 7
    %p185 = por %p183, %p184
    %p186 = scmp.ne.s32.totalorder %s177, %s178
    %p187 = scmp.eq.s32.totalorder %s20, 0
    %p188 = por %p186, %p187
    %p189 = scmp.ne.s32.totalorder %s177, %s178
    %p190 = scmp.eq.s32.totalorder %s21, 7
    %p191 = por %p189, %p190
    %p193 = scmp.ne.s32.totalorder %s178, %s192
    %p194 = scmp.eq.s32.totalorder %s21, 0
    %p195 = por %p193, %p194
    %s196 = ssub.s32 %s15, %s22
    %p197 = scmp.eq.s32.totalorder %s196, 0
    %s199 = sadd.s32 %s198, 1
    %s200 = scalar_select %p197, %s198, %s199
    %p203 = pneg %p197
    %p204 = scmp.eq.s32.totalorder %s15, 7
    %p205 = por %p203, %p204
    %p206 = scmp.ne.s32.totalorder %s198, %s201
    %p207 = scmp.eq.s32.totalorder %s15, 0
    %p208 = por %p206, %p207
    %p209 = scmp.ne.s32.totalorder %s198, %s201
    %p210 = scmp.eq.s32.totalorder %s20, 7
    %p211 = por %p209, %p210
    %p212 = scmp.ne.s32.totalorder %s201, %s202
    %p213 = scmp.eq.s32.totalorder %s20, 0
    %p214 = por %p212, %p213
    %p215 = scmp.ne.s32.totalorder %s201, %s202
    %p216 = scmp.eq.s32.totalorder %s21, 7
    %p217 = por %p215, %p216
    %p219 = scmp.ne.s32.totalorder %s202, %s218
    %p220 = scmp.eq.s32.totalorder %s21, 0
    %p221 = por %p219, %p220
    %s222 = ssub.s32 %s15, %s22
    %p223 = scmp.eq.s32.totalorder %s222, 0
    %s225 = sadd.s32 %s224, 1
    %s226 = scalar_select %p223, %s224, %s225
    %p229 = pneg %p223
    %p230 = scmp.eq.s32.totalorder %s15, 7
    %p231 = por %p229, %p230
    %p232 = scmp.ne.s32.totalorder %s224, %s227
    %p233 = scmp.eq.s32.totalorder %s15, 0
    %p234 = por %p232, %p233
    %p235 = scmp.ne.s32.totalorder %s224, %s227
    %p236 = scmp.eq.s32.totalorder %s20, 7
    %p237 = por %p235, %p236
    %p238 = scmp.ne.s32.totalorder %s227, %s228
    %p239 = scmp.eq.s32.totalorder %s20, 0
    %p240 = por %p238, %p239
    %p241 = scmp.ne.s32.totalorder %s227, %s228
    %p242 = scmp.eq.s32.totalorder %s21, 7
    %p243 = por %p241, %p242
    %p245 = scmp.ne.s32.totalorder %s228, %s244
    %p246 = scmp.eq.s32.totalorder %s21, 0
    %p247 = por %p245, %p246
    %p248 = scmp.le.s32.totalorder 1, %s15
    %p249 = scmp.lt.s32.totalorder %s15, 9
    %p250 = pnand %p248, %p249
    %p251 = pneg %p250
    // Predicated region
    $region9: #{swin_decoder_forward.7} parent=5 // pred_check
      _
    $region10: #{swin_decoder_forward.7} parent=5 // pred_check_branch
      %253 = sbr.rel (%p250) target = $region12
    $region11: #{swin_decoder_forward.7} parent=5 // pred_region
      %s254 = ssub.s32 %s15, 1
      // Predicated region
      $region13: #{swin_decoder_forward.7} parent=11 // pred_check
        %p255 = pneg %p62
      $region14: #{swin_decoder_forward.7} parent=11 // pred_check_branch
        %257 = sbr.rel (%p255) target = $region16
      $region15: #{swin_decoder_forward.7} parent=11 // pred_region
        _
      $region16: #{swin_decoder_forward.7} parent=11 // pred_fallthru
        _
      // Predicated region
      $region17: #{swin_decoder_forward.7} parent=11 // pred_check
        %p258 = pneg %p83
      $region18: #{swin_decoder_forward.7} parent=11 // pred_check_branch
        %260 = sbr.rel (%p258) target = $region20
      $region19: #{swin_decoder_forward.7} parent=11 // pred_region
        _
      $region20: #{swin_decoder_forward.7} parent=11 // pred_fallthru
        _
      // Predicated region
      $region21: #{swin_decoder_forward.7} parent=11 // pred_check
        %p261 = pneg %p104
      $region22: #{swin_decoder_forward.7} parent=11 // pred_check_branch
        %263 = sbr.rel (%p261) target = $region24
      $region23: #{swin_decoder_forward.7} parent=11 // pred_region
        _
      $region24: #{swin_decoder_forward.7} parent=11 // pred_fallthru
        _
      // Predicated region
      $region25: #{swin_decoder_forward.7} parent=11 // pred_check
        %p264 = pneg %p125
      $region26: #{swin_decoder_forward.7} parent=11 // pred_check_branch
        %266 = sbr.rel (%p264) target = $region28
      $region27: #{swin_decoder_forward.7} parent=11 // pred_region
        _
      $region28: #{swin_decoder_forward.7} parent=11 // pred_fallthru
        _
      // Predicated region
      $region29: #{swin_decoder_forward.7} parent=11 // pred_check
        %p267 = pneg %p146
      $region30: #{swin_decoder_forward.7} parent=11 // pred_check_branch
        %269 = sbr.rel (%p267) target = $region32
      $region31: #{swin_decoder_forward.7} parent=11 // pred_region
        _
      $region32: #{swin_decoder_forward.7} parent=11 // pred_fallthru
        _
      // Predicated region
      $region33: #{swin_decoder_forward.7} parent=11 // pred_check
        %p270 = pneg %p167
      $region34: #{swin_decoder_forward.7} parent=11 // pred_check_branch
        %272 = sbr.rel (%p270) target = $region36
      $region35: #{swin_decoder_forward.7} parent=11 // pred_region
        _
      $region36: #{swin_decoder_forward.7} parent=11 // pred_fallthru
        _
      // Predicated region
      $region37: #{swin_decoder_forward.7} parent=11 // pred_check
        %p273 = pneg %p188
      $region38: #{swin_decoder_forward.7} parent=11 // pred_check_branch
        %275 = sbr.rel (%p273) target = $region40
      $region39: #{swin_decoder_forward.7} parent=11 // pred_region
        _
      $region40: #{swin_decoder_forward.7} parent=11 // pred_fallthru
        _
    $region12: #{swin_decoder_forward.7} parent=5 // pred_fallthru
      _
    %p276 = scmp.lt.s32.totalorder %s15, 8
    // Predicated region
    $region41: #{swin_decoder_forward.7} parent=5 // pred_check
      %p277 = pneg %p276
    $region42: #{swin_decoder_forward.7} parent=5 // pred_check_branch
      %279 = sbr.rel (%p277) target = $region44
    $region43: #{swin_decoder_forward.7} parent=5 // pred_region
      // Predicated region
      $region45: #{swin_decoder_forward.7} parent=43 // pred_check
        %p280 = pneg %p35
      $region46: #{swin_decoder_forward.7} parent=43 // pred_check_branch
        %282 = sbr.rel (%p280) target = $region48
      $region47: #{swin_decoder_forward.7} parent=43 // pred_region
        %p283 = scmp.lt.s32.totalorder %s15, 7
        %s284 = scalar_select %p283, %s15, 7
        %s285 = smul.addr %s284, 7
        %s286 = smul.addr %s285, 8
        %s287 = scalar_lea.vmem %s0, %s286
      $region48: #{swin_decoder_forward.7} parent=43 // pred_fallthru
        _
      // Predicated region
      $region49: #{swin_decoder_forward.7} parent=43 // pred_check
        %p288 = pneg %p208
      $region50: #{swin_decoder_forward.7} parent=43 // pred_check_branch
        %290 = sbr.rel (%p288) target = $region52
      $region51: #{swin_decoder_forward.7} parent=43 // pred_region
        %p291 = scmp.lt.s32.totalorder %s15, 7
        %s292 = scalar_select %p291, %s15, 7
        %s293 = smul.addr %s292, 7
        %s294 = smul.addr %s293, 8
        %s295 = scalar_lea.vmem %s8, %s294
      $region52: #{swin_decoder_forward.7} parent=43 // pred_fallthru
        _
    $region44: #{swin_decoder_forward.7} parent=5 // pred_fallthru
      _
    %p296 = scmp.le.s32.totalorder 1, %s15
    %p297 = scmp.lt.s32.totalorder %s15, 9
    %p298 = pnand %p296, %p297
    %p299 = pneg %p298
    // Predicated region
    $region53: #{swin_decoder_forward.7} parent=5 // pred_check
      _
    $region54: #{swin_decoder_forward.7} parent=5 // pred_check_branch
      %301 = sbr.rel (%p298) target = $region56
    $region55: #{swin_decoder_forward.7} parent=5 // pred_region
      %s302 = ssub.s32 %s15, 1
      %p303 = scmp.lt.s32.totalorder %s20, 7
      %s304 = scalar_select %p303, %s20, 7
      %s305 = smul.addr %s304, 7
      %s306 = smul.addr %s305, 8
      %s307 = scalar_lea.vmem %s0, %s306
      %p308 = pneg %p41
      %p309 = pneg %p38
      %p310 = pneg %p62
      %p311 = pneg %p59
      %p312 = pneg %p83
      %p313 = pneg %p80
      %p314 = pneg %p104
      %p315 = pneg %p101
      %p316 = pneg %p125
      %p317 = pneg %p122
      %p318 = pneg %p146
      %p319 = pneg %p143
      %p320 = pneg %p167
      %p321 = pneg %p164
      %p322 = pneg %p188
      %p323 = pneg %p185
      %p324 = scmp.lt.s32.totalorder %s20, 7
      %s325 = scalar_select %p324, %s20, 7
      %s326 = smul.addr %s325, 7
      %s327 = smul.addr %s326, 8
      %s328 = scalar_lea.vmem %s8, %s327
      %p329 = pneg %p214
      %p330 = pneg %p211
      %p331 = pneg %p240
      %p332 = pneg %p237
      %p333 = scmp.lt.s32.totalorder %s20, 7
      %s334 = scalar_select %p333, %s20, 7
      %s335 = smul.addr %s334, 7
      %s336 = smul.addr %s335, 8
      %s337 = scalar_lea.vmem %s9, %s336
      %p338 = scmp.lt.s32.totalorder %s20, 7
      %s339 = scalar_select %p338, %s20, 7
      %s340 = smul.addr %s339, 7
      %s341 = smul.addr %s340, 8
      %s342 = scalar_lea.vmem %s0, %s341
      %p343 = scmp.lt.s32.totalorder %s20, 7
      %s344 = scalar_select %p343, %s20, 7
      %s345 = smul.addr %s344, 7
      %s346 = smul.addr %s345, 8
      %s347 = scalar_lea.vmem %s8, %s346
      %p348 = scmp.lt.s32.totalorder %s20, 7
      %s349 = scalar_select %p348, %s20, 7
      %s350 = smul.addr %s349, 7
      %s351 = smul.addr %s350, 8
      %s352 = scalar_lea.vmem %s9, %s351
      %v353 = vld [vmem:[%s342] sm:$0xff]
      %v354 = vld [vmem:[%s342 + $0x8] sm:$0xff]
      %v355 = vld [vmem:[%s342 + $0x10] sm:$0xff]
      %v356 = vld [vmem:[%s342 + $0x18] sm:$0xff]
      %v357 = vld [vmem:[%s342 + $0x20] sm:$0xff]
      %v358 = vld [vmem:[%s342 + $0x28] sm:$0xff]
      %v359 = vld [vmem:[%s342 + $0x30] sm:$0x1]
      %vm360 = vcmask 195584
      %v361 = vsel %vm360, %v353, 0.0
      %362 = vadd.xlane.f32.xlu0 %v361
      %v363 = vpop.xlane.xlu0 %362
      %v364 = vsel %vm360, %v354, 0.0
      %365 = vadd.xlane.f32.xlu0 %v364
      %v366 = vpop.xlane.xlu0 %365
      %v367 = vsel %vm360, %v355, 0.0
      %368 = vadd.xlane.f32.xlu0 %v367
      %v369 = vpop.xlane.xlu0 %368
      %v370 = vsel %vm360, %v356, 0.0
      %371 = vadd.xlane.f32.xlu0 %v370
      %v372 = vpop.xlane.xlu0 %371
      %v373 = vsel %vm360, %v357, 0.0
      %374 = vadd.xlane.f32.xlu0 %v373
      %v375 = vpop.xlane.xlu0 %374
      %v376 = vsel %vm360, %v358, 0.0
      %377 = vadd.xlane.f32.xlu0 %v376
      %v378 = vpop.xlane.xlu0 %377
      %vm379 = vcmask 188416
      %v380 = vsel %vm379, %v359, 0.0
      %381 = vadd.xlane.f32.xlu0 %v380
      %v382 = vpop.xlane.xlu0 %381
      %v383 = vrcp.pop 24.0
      %v384 = vmul.f32 %v363, %v383
      %v385 = vmul.f32 %v366, %v383
      %v386 = vmul.f32 %v369, %v383
      %v387 = vmul.f32 %v372, %v383
      %v388 = vmul.f32 %v375, %v383
      %v389 = vmul.f32 %v378, %v383
      %v390 = vmul.f32 %v382, %v383
      %v391 = vsub.f32 %v353, %v384
      %v392 = vsub.f32 %v354, %v385
      %v393 = vsub.f32 %v355, %v386
      %v394 = vsub.f32 %v356, %v387
      %v395 = vsub.f32 %v357, %v388
      %v396 = vsub.f32 %v358, %v389
      %v397 = vsub.f32 %v359, %v390
      %v398 = vmul.f32 %v391, %v391
      %v399 = vmul.f32 %v392, %v392
      %v400 = vmul.f32 %v393, %v393
      %v401 = vmul.f32 %v394, %v394
      %v402 = vmul.f32 %v395, %v395
      %v403 = vmul.f32 %v396, %v396
      %v404 = vmul.f32 %v397, %v397
      %v405 = vsel %vm360, %v398, 0.0
      %406 = vadd.xlane.f32.xlu0 %v405
      %v407 = vpop.xlane.xlu0 %406
      %v408 = vsel %vm360, %v399, 0.0
      %409 = vadd.xlane.f32.xlu0 %v408
      %v410 = vpop.xlane.xlu0 %409
      %v411 = vsel %vm360, %v400, 0.0
      %412 = vadd.xlane.f32.xlu0 %v411
      %v413 = vpop.xlane.xlu0 %412
      %v414 = vsel %vm360, %v401, 0.0
      %415 = vadd.xlane.f32.xlu0 %v414
      %v416 = vpop.xlane.xlu0 %415
      %v417 = vsel %vm360, %v402, 0.0
      %418 = vadd.xlane.f32.xlu0 %v417
      %v419 = vpop.xlane.xlu0 %418
      %v420 = vsel %vm360, %v403, 0.0
      %421 = vadd.xlane.f32.xlu0 %v420
      %v422 = vpop.xlane.xlu0 %421
      %v423 = vsel %vm379, %v404, 0.0
      %424 = vadd.xlane.f32.xlu0 %v423
      %v425 = vpop.xlane.xlu0 %424
      %v426 = vmul.f32 %v407, %v383
      %v427 = vmul.f32 %v410, %v383
      %v428 = vmul.f32 %v413, %v383
      %v429 = vmul.f32 %v416, %v383
      %v430 = vmul.f32 %v419, %v383
      %v431 = vmul.f32 %v422, %v383
      %v432 = vmul.f32 %v425, %v383
      %v433 = vadd.f32 %v426, 1e-05
      %v434 = vadd.f32 %v427, 1e-05
      %v435 = vadd.f32 %v428, 1e-05
      %v436 = vadd.f32 %v429, 1e-05
      %v437 = vadd.f32 %v430, 1e-05
      %v438 = vadd.f32 %v431, 1e-05
      %v439 = vadd.f32 %v432, 1e-05
      %v440 = vrsqrt.pop %v433
      %v441 = vrsqrt.pop %v434
      %v442 = vrsqrt.pop %v435
      %v443 = vrsqrt.pop %v436
      %v444 = vrsqrt.pop %v437
      %v445 = vrsqrt.pop %v438
      %v446 = vrsqrt.pop %v439
      %v447 = vmul.f32 %v391, %v440
      %v448 = vmul.f32 %v392, %v441
      %v449 = vmul.f32 %v393, %v442
      %v450 = vmul.f32 %v394, %v443
      %v451 = vmul.f32 %v395, %v444
      %v452 = vmul.f32 %v396, %v445
      %v453 = vmul.f32 %v397, %v446
      %v454 = vld [vmem:[%s1] sm:$0x1]
      %v456 = vlaneseq
      %v457 = vshrl.u32 %v456, 7
      %v458 = vsub.s32 0, %v457
      %v459 = vrot.slane %v454, %v458
      %v461 = vmul.f32 %v447, %v459
      %v462 = vmul.f32 %v448, %v459
      %v463 = vmul.f32 %v449, %v459
      %v464 = vmul.f32 %v450, %v459
      %v465 = vmul.f32 %v451, %v459
      %v466 = vmul.f32 %v452, %v459
      %v467 = vmul.f32 %v453, %v459
      %v468 = vld [vmem:[%s2] sm:$0x1]
      %v470 = vlaneseq
      %v471 = vshrl.u32 %v470, 7
      %v472 = vsub.s32 0, %v471
      %v473 = vrot.slane %v468, %v472
      %v475 = vadd.f32 %v461, %v473
      %v476 = vadd.f32 %v462, %v473
      %v477 = vadd.f32 %v463, %v473
      %v478 = vadd.f32 %v464, %v473
      %v479 = vadd.f32 %v465, %v473
      %v480 = vadd.f32 %v466, %v473
      %v481 = vadd.f32 %v467, %v473
      %v482 = vld [vmem:[%s3] sm:$0xff]
      %v483 = vld [vmem:[%s3 + $0x8] sm:$0xff]
      %v484 = vld [vmem:[%s3 + $0x10] sm:$0xff]
      %v485 = vld [vmem:[%s4] sm:$0x1]
      %v487 = vlaneseq
      %v488 = vshrl.u32 %v487, 7
      %v489 = vsub.s32 0, %v488
      %v490 = vrot.slane %v485, %v489
      %v493 = vsel %vm360, %v475, 0
      %v496 = vsel %vm360, %v476, 0
      %v499 = vsel %vm360, %v477, 0
      %v502 = vsel %vm360, %v478, 0
      %v505 = vsel %vm360, %v479, 0
      %v508 = vsel %vm360, %v480, 0
      %v511 = vsel %vm360, %v481, 0
      %513 = vmatprep.subr.mxu0 0.0
      %514 = vmatpush1.msra.mxu0 %v482
      %515 = vmatprep.subr.mxu0 0.0
      %516 = vmatpush1.msra.mxu0 %v483
      %517 = vmatprep.subr.mxu0 0.0
      %518 = vmatpush1.msra.mxu0 %v484
      %519 = vmatprep.subr.mxu0 0.0
      %520 = vmatpush1.msra.mxu0 0.0
      %521 = vmatprep.subr.mxu0 0.0
      %522 = vmatpush1.msra.mxu0 0.0
      %523 = vmatprep.subr.mxu0 0.0
      %524 = vmatpush1.msra.mxu0 0.0
      %525 = vmatprep.subr.mxu0 0.0
      %526 = vmatpush1.msra.mxu0 0.0
      %527 = vmatprep.subr.mxu0 0.0
      %528 = vmatpush1.msra.mxu0 0.0
      %529 = vmatprep.subr.mxu0 0.0
      %530 = vmatpush1.msra.mxu0 0.0
      %531 = vmatprep.subr.mxu0 0.0
      %532 = vmatpush1.msra.mxu0 0.0
      %533 = vmatprep.subr.mxu0 0.0
      %534 = vmatpush1.msra.mxu0 0.0
      %535 = vmatprep.subr.mxu0 0.0
      %536 = vmatpush1.msra.mxu0 0.0
      %537 = vmatprep.subr.mxu0 0.0
      %538 = vmatpush1.msra.mxu0 0.0
      %539 = vmatprep.subr.mxu0 0.0
      %540 = vmatpush1.msra.mxu0 0.0
      %541 = vmatprep.subr.mxu0 0.0
      %542 = vmatpush1.msra.mxu0 0.0
      %543 = vmatprep.subr.mxu0 0.0
      %544 = vmatpush1.msra.mxu0 0.0
      %545 = vmatprep.subr.mxu0 0.0
      %546 = vmatpush1.msra.mxu0 0.0
      %547 = vmatprep.subr.mxu0 0.0
      %548 = vmatpush1.msra.mxu0 0.0
      %549 = vmatprep.subr.mxu0 0.0
      %550 = vmatpush1.msra.mxu0 0.0
      %551 = vmatprep.subr.mxu0 0.0
      %552 = vmatpush1.msra.mxu0 0.0
      %553 = vmatprep.subr.mxu0 0.0
      %554 = vmatpush1.msra.mxu0 0.0
      %555 = vmatprep.subr.mxu0 0.0
      %556 = vmatpush1.msra.mxu0 0.0
      %557 = vmatprep.subr.mxu0 0.0
      %558 = vmatpush1.msra.mxu0 0.0
      %559 = vmatprep.subr.mxu0 0.0
      %560 = vmatpush1.msra.mxu0 0.0
      %561 = vmatprep.subr.mxu0 0.0
      %562 = vmatpush1.msra.mxu0 0.0
      %563 = vmatprep.subr.mxu0 0.0
      %564 = vmatpush1.msra.mxu0 0.0
      %565 = vmatprep.subr.mxu0 0.0
      %566 = vmatpush1.msra.mxu0 0.0
      %567 = vmatprep.subr.mxu0 0.0
      %568 = vmatpush1.msra.mxu0 0.0
      %569 = vmatprep.subr.mxu0 0.0
      %570 = vmatpush1.msra.mxu0 0.0
      %571 = vmatprep.subr.mxu0 0.0
      %572 = vmatpush1.msra.mxu0 0.0
      %573 = vmatprep.subr.mxu0 0.0
      %574 = vmatpush1.msra.mxu0 0.0
      %575 = vmatprep.subr.mxu0 0.0
      %576 = vmatpush1.msra.mxu0 0.0
      %577 = vmatprep.mubr.f32.mxu0 0.0
      %578 = vmatmul.mubr.f32.gmra.mrb[0].mxu0 %v493
      %v579 = vpop.f32.mrb[0].mxu0
      %v580 = vadd.f32 %v490, %v579
      %v581 = vpop.f32.mrb[0].mxu0
      %582 = vmatprep.mubr.f32.mxu0 0.0
      %583 = vmatmul.mubr.f32.gmra.mrb[0].mxu0 %v496
      %v584 = vpop.f32.mrb[0].mxu0
      %v585 = vadd.f32 %v490, %v584
      %v586 = vpop.f32.mrb[0].mxu0
      %587 = vmatprep.mubr.f32.mxu0 0.0
      %588 = vmatmul.mubr.f32.gmra.mrb[0].mxu0 %v499
      %v589 = vpop.f32.mrb[0].mxu0
      %v590 = vadd.f32 %v490, %v589
      %v591 = vpop.f32.mrb[0].mxu0
      %592 = vmatprep.mubr.f32.mxu0 0.0
      %593 = vmatmul.mubr.f32.gmra.mrb[0].mxu0 %v502
      %v594 = vpop.f32.mrb[0].mxu0
      %v595 = vadd.f32 %v490, %v594
      %v596 = vpop.f32.mrb[0].mxu0
      %597 = vmatprep.mubr.f32.mxu0 0.0
      %598 = vmatmul.mubr.f32.gmra.mrb[0].mxu0 %v505
      %v599 = vpop.f32.mrb[0].mxu0
      %v600 = vadd.f32 %v490, %v599
      %v601 = vpop.f32.mrb[0].mxu0
      %602 = vmatprep.mubr.f32.mxu0 0.0
      %603 = vmatmul.mubr.f32.gmra.mrb[0].mxu0 %v508
      %v604 = vpop.f32.mrb[0].mxu0
      %v605 = vadd.f32 %v490, %v604
      %v606 = vpop.f32.mrb[0].mxu0
      %607 = vmatprep.mubr.f32.mxu0 0.0
      %608 = vmatmul.mubr.f32.gmra.mrb[0].mxu0 %v511
      %v609 = vpop.f32.mrb[0].mxu0
      %v610 = vadd.f32 %v490, %v609
      %v611 = vpop.f32.mrb[0].mxu0
      %612 = vdwg.mxu0
      %v613 = vld [vmem:[%s5] sm:$0xff]
      %v614 = vld [vmem:[%s5 + $0x8] sm:$0xff]
      %v615 = vld [vmem:[%s5 + $0x10] sm:$0xff]
      %v616 = vld [vmem:[%s347] sm:$0xff]
      %v617 = vld [vmem:[%s347 + $0x8] sm:$0xff]
      %v618 = vld [vmem:[%s347 + $0x10] sm:$0xff]
      %v619 = vld [vmem:[%s347 + $0x18] sm:$0xff]
      %v620 = vld [vmem:[%s347 + $0x20] sm:$0xff]
      %v621 = vld [vmem:[%s347 + $0x28] sm:$0xff]
      %v622 = vld [vmem:[%s347 + $0x30] sm:$0x1]
      %v623 = vmul.f32 %v580, 0.5
      %v624 = vmul.f32 %v585, 0.5
      %v625 = vmul.f32 %v590, 0.5
      %v626 = vmul.f32 %v595, 0.5
      %v627 = vmul.f32 %v600, 0.5
      %v628 = vmul.f32 %v605, 0.5
      %v629 = vmul.f32 %v610, 0.5
      %v630 = vld [vmem:[%s7] sm:$0xff]
      %v631 = vld [vmem:[%s7 + $0x8] sm:$0xff]
      %v632 = vld [vmem:[%s7 + $0x10] sm:$0xff]
      %v633 = vld [vmem:[%s7 + $0x18] sm:$0xff]
      %v634 = vld [vmem:[%s7 + $0x20] sm:$0xff]
      %v635 = vld [vmem:[%s7 + $0x28] sm:$0xff]
      %v636 = vld [vmem:[%s7 + $0x30] sm:$0x1]
      %644 = vrot.lane.b32.xlu0 %v580, 104
      %v645 = vpop.permute.xlu0 %644
      %646 = vrot.lane.b32.xlu0 %v585, 104
      %v647 = vpop.permute.xlu0 %646
      %648 = vrot.lane.b32.xlu0 %v590, 104
      %v649 = vpop.permute.xlu0 %648
      %650 = vrot.lane.b32.xlu0 %v595, 104
      %v651 = vpop.permute.xlu0 %650
      %652 = vrot.lane.b32.xlu0 %v600, 104
      %v653 = vpop.permute.xlu0 %652
      %654 = vrot.lane.b32.xlu0 %v605, 104
      %v655 = vpop.permute.xlu0 %654
      %656 = vrot.lane.b32.xlu0 %v610, 104
      %v657 = vpop.permute.xlu0 %656
      %vm658 = vcmask 31744
      %v660 = vsel %vm658, %v623, 0
      %v663 = vsel %vm658, %v624, 0
      %v666 = vsel %vm658, %v625, 0
      %v669 = vsel %vm658, %v626, 0
      %v672 = vsel %vm658, %v627, 0
      %v675 = vsel %vm658, %v628, 0
      %v678 = vsel %vm658, %v629, 0
      %v680 = vsel %vm658, %v645, 0
      %v682 = vsel %vm658, %v647, 0
      %v684 = vsel %vm658, %v649, 0
      %v686 = vsel %vm658, %v651, 0
      %v688 = vsel %vm658, %v653, 0
      %v690 = vsel %vm658, %v655, 0
      %v692 = vsel %vm658, %v657, 0
      %694 = vmatprep.subr.mxu0 0.0
      %695 = vmatpush1.xpose.msra.mxu0 %v680
      %696 = vmatprep.subr.mxu0 0.0
      %697 = vmatpush1.xpose.msra.mxu0 %v682
      %698 = vmatprep.subr.mxu0 0.0
      %699 = vmatpush1.xpose.msra.mxu0 %v684
      %700 = vmatprep.subr.mxu0 0.0
      %701 = vmatpush1.xpose.msra.mxu0 %v686
      %702 = vmatprep.subr.mxu0 0.0
      %703 = vmatpush1.xpose.msra.mxu0 %v688
      %704 = vmatprep.subr.mxu0 0.0
      %705 = vmatpush1.xpose.msra.mxu0 %v690
      %706 = vmatprep.subr.mxu0 0.0
      %707 = vmatpush1.xpose.msra.mxu0 %v692
      %708 = vmatprep.subr.mxu0 0.0
      %709 = vmatpush1.xpose.msra.mxu0 0.0
      %710 = vmatprep.subr.mxu0 0.0
      %711 = vmatpush1.xpose.msra.mxu0 0.0
      %712 = vmatprep.subr.mxu0 0.0
      %713 = vmatpush1.xpose.msra.mxu0 0.0
      %714 = vmatprep.subr.mxu0 0.0
      %715 = vmatpush1.xpose.msra.mxu0 0.0
      %716 = vmatprep.subr.mxu0 0.0
      %717 = vmatpush1.xpose.msra.mxu0 0.0
      %718 = vmatprep.subr.mxu0 0.0
      %719 = vmatpush1.xpose.msra.mxu0 0.0
      %720 = vmatprep.subr.mxu0 0.0
      %721 = vmatpush1.xpose.msra.mxu0 0.0
      %722 = vmatprep.subr.mxu0 0.0
      %723 = vmatpush1.xpose.msra.mxu0 0.0
      %724 = vmatprep.subr.mxu0 0.0
      %725 = vmatpush1.xpose.msra.mxu0 0.0
      %726 = vmatprep.subr.mxu0 0.0
      %727 = vmatpush1.xpose.msra.mxu0 0.0
      %728 = vmatprep.subr.mxu0 0.0
      %729 = vmatpush1.xpose.msra.mxu0 0.0
      %730 = vmatprep.subr.mxu0 0.0
      %731 = vmatpush1.xpose.msra.mxu0 0.0
      %732 = vmatprep.subr.mxu0 0.0
      %733 = vmatpush1.xpose.msra.mxu0 0.0
      %734 = vmatprep.subr.mxu0 0.0
      %735 = vmatpush1.xpose.msra.mxu0 0.0
      %736 = vmatprep.subr.mxu0 0.0
      %737 = vmatpush1.xpose.msra.mxu0 0.0
      %738 = vmatprep.subr.mxu0 0.0
      %739 = vmatpush1.xpose.msra.mxu0 0.0
      %740 = vmatprep.subr.mxu0 0.0
      %741 = vmatpush1.xpose.msra.mxu0 0.0
      %742 = vmatprep.subr.mxu0 0.0
      %743 = vmatpush1.xpose.msra.mxu0 0.0
      %744 = vmatprep.subr.mxu0 0.0
      %745 = vmatpush1.xpose.msra.mxu0 0.0
      %746 = vmatprep.subr.mxu0 0.0
      %747 = vmatpush1.xpose.msra.mxu0 0.0
      %748 = vmatprep.subr.mxu0 0.0
      %749 = vmatpush1.xpose.msra.mxu0 0.0
      %750 = vmatprep.subr.mxu0 0.0
      %751 = vmatpush1.xpose.msra.mxu0 0.0
      %752 = vmatprep.subr.mxu0 0.0
      %753 = vmatpush1.xpose.msra.mxu0 0.0
      %754 = vmatprep.subr.mxu0 0.0
      %755 = vmatpush1.xpose.msra.mxu0 0.0
      %756 = vmatprep.subr.mxu0 0.0
      %757 = vmatpush1.xpose.msra.mxu0 0.0
      %758 = vmatprep.mubr.f32.mxu0 0.0
      %759 = vmatmul.mubr.f32.gmra.mrb[0].mxu0 %v660
      %v760 = vpop.f32.mrb[0].mxu0
      %v761 = vadd.f32 %v630, %v760
      %v762 = vpop.f32.mrb[0].mxu0
      %763 = vmatprep.mubr.f32.mxu0 0.0
      %764 = vmatmul.mubr.f32.gmra.mrb[0].mxu0 %v663
      %v765 = vpop.f32.mrb[0].mxu0
      %v766 = vadd.f32 %v631, %v765
      %v767 = vpop.f32.mrb[0].mxu0
      %768 = vmatprep.mubr.f32.mxu0 0.0
      %769 = vmatmul.mubr.f32.gmra.mrb[0].mxu0 %v666
      %v770 = vpop.f32.mrb[0].mxu0
      %v771 = vadd.f32 %v632, %v770
      %v772 = vpop.f32.mrb[0].mxu0
      %773 = vmatprep.mubr.f32.mxu0 0.0
      %774 = vmatmul.mubr.f32.gmra.mrb[0].mxu0 %v669
      %v775 = vpop.f32.mrb[0].mxu0
      %v776 = vadd.f32 %v633, %v775
      %v777 = vpop.f32.mrb[0].mxu0
      %778 = vmatprep.mubr.f32.mxu0 0.0
      %779 = vmatmul.mubr.f32.gmra.mrb[0].mxu0 %v672
      %v780 = vpop.f32.mrb[0].mxu0
      %v781 = vadd.f32 %v634, %v780
      %v782 = vpop.f32.mrb[0].mxu0
      %783 = vmatprep.mubr.f32.mxu0 0.0
      %784 = vmatmul.mubr.f32.gmra.mrb[0].mxu0 %v675
      %v785 = vpop.f32.mrb[0].mxu0
      %v786 = vadd.f32 %v635, %v785
      %v787 = vpop.f32.mrb[0].mxu0
      %788 = vmatprep.mubr.f32.mxu0 0.0
      %789 = vmatmul.mubr.f32.gmra.mrb[0].mxu0 %v678
      %v790 = vpop.f32.mrb[0].mxu0
      %v791 = vadd.f32 %v636, %v790
      %v792 = vpop.f32.mrb[0].mxu0
      %793 = vdwg.mxu0
      %v794 = vadd.f32 %v761, %v616
      %v795 = vadd.f32 %v766, %v617
      %v796 = vadd.f32 %v771, %v618
      %v797 = vadd.f32 %v776, %v619
      %v798 = vadd.f32 %v781, %v620
      %v799 = vadd.f32 %v786, %v621
      %v800 = vadd.f32 %v791, %v622
      %vm801 = vcmask 400384
      %v802 = vsel %vm801, %v794, -inf
      %803 = vmax.xlane.f32.xlu0 %v802
      %v804 = vpop.xlane.xlu0 %803
      %v805 = vsel %vm801, %v795, -inf
      %806 = vmax.xlane.f32.xlu0 %v805
      %v807 = vpop.xlane.xlu0 %806
      %v808 = vsel %vm801, %v796, -inf
      %809 = vmax.xlane.f32.xlu0 %v808
      %v810 = vpop.xlane.xlu0 %809
      %v811 = vsel %vm801, %v797, -inf
      %812 = vmax.xlane.f32.xlu0 %v811
      %v813 = vpop.xlane.xlu0 %812
      %v814 = vsel %vm801, %v798, -inf
      %815 = vmax.xlane.f32.xlu0 %v814
      %v816 = vpop.xlane.xlu0 %815
      %v817 = vsel %vm801, %v799, -inf
      %818 = vmax.xlane.f32.xlu0 %v817
      %v819 = vpop.xlane.xlu0 %818
      %vm820 = vcmask 393216
      %v821 = vsel %vm820, %v800, -inf
      %822 = vmax.xlane.f32.xlu0 %v821
      %v823 = vpop.xlane.xlu0 %822
      %v824 = vsub.f32 %v794, %v804
      %v825 = vsub.f32 %v795, %v807
      %v826 = vsub.f32 %v796, %v810
      %v827 = vsub.f32 %v797, %v813
      %v828 = vsub.f32 %v798, %v816
      %v829 = vsub.f32 %v799, %v819
      %v830 = vsub.f32 %v800, %v823
      %v831 = vmul.f32 %v824, 1.442695
      %v832 = vpow.pop %v831
      %v833 = vmul.f32 %v825, 1.442695
      %v834 = vpow.pop %v833
      %v835 = vmul.f32 %v826, 1.442695
      %v836 = vpow.pop %v835
      %v837 = vmul.f32 %v827, 1.442695
      %v838 = vpow.pop %v837
      %v839 = vmul.f32 %v828, 1.442695
      %v840 = vpow.pop %v839
      %v841 = vmul.f32 %v829, 1.442695
      %v842 = vpow.pop %v841
      %v843 = vmul.f32 %v830, 1.442695
      %v844 = vpow.pop %v843
      %v845 = vsel %vm801, %v832, 0.0
      %846 = vadd.xlane.f32.xlu0 %v845
      %v847 = vpop.xlane.xlu0 %846
      %v848 = vsel %vm801, %v834, 0.0
      %849 = vadd.xlane.f32.xlu0 %v848
      %v850 = vpop.xlane.xlu0 %849
      %v851 = vsel %vm801, %v836, 0.0
      %852 = vadd.xlane.f32.xlu0 %v851
      %v853 = vpop.xlane.xlu0 %852
      %v854 = vsel %vm801, %v838, 0.0
      %855 = vadd.xlane.f32.xlu0 %v854
      %v856 = vpop.xlane.xlu0 %855
      %v857 = vsel %vm801, %v840, 0.0
      %858 = vadd.xlane.f32.xlu0 %v857
      %v859 = vpop.xlane.xlu0 %858
      %v860 = vsel %vm801, %v842, 0.0
      %861 = vadd.xlane.f32.xlu0 %v860
      %v862 = vpop.xlane.xlu0 %861
      %v863 = vsel %vm820, %v844, 0.0
      %864 = vadd.xlane.f32.xlu0 %v863
      %v865 = vpop.xlane.xlu0 %864
      %v866 = vrcp.pop %v847
      %v867 = vmul.f32 %v832, %v866
      %v868 = vrcp.pop %v850
      %v869 = vmul.f32 %v834, %v868
      %v870 = vrcp.pop %v853
      %v871 = vmul.f32 %v836, %v870
      %v872 = vrcp.pop %v856
      %v873 = vmul.f32 %v838, %v872
      %v874 = vrcp.pop %v859
      %v875 = vmul.f32 %v840, %v874
      %v876 = vrcp.pop %v862
      %v877 = vmul.f32 %v842, %v876
      %v878 = vrcp.pop %v865
      %v879 = vmul.f32 %v844, %v878
      %880 = vrot.lane.b32.xlu0 %v580, 80
      %v881 = vpop.permute.xlu0 %880
      %882 = vrot.lane.b32.xlu0 %v585, 80
      %v883 = vpop.permute.xlu0 %882
      %884 = vrot.lane.b32.xlu0 %v590, 80
      %v885 = vpop.permute.xlu0 %884
      %886 = vrot.lane.b32.xlu0 %v595, 80
      %v887 = vpop.permute.xlu0 %886
      %888 = vrot.lane.b32.xlu0 %v600, 80
      %v889 = vpop.permute.xlu0 %888
      %890 = vrot.lane.b32.xlu0 %v605, 80
      %v891 = vpop.permute.xlu0 %890
      %892 = vrot.lane.b32.xlu0 %v610, 80
      %v893 = vpop.permute.xlu0 %892
      %v901 = vsel %vm801, %v867, 0
      %v904 = vsel %vm801, %v869, 0
      %v907 = vsel %vm801, %v871, 0
      %v910 = vsel %vm801, %v873, 0
      %v913 = vsel %vm801, %v875, 0
      %v916 = vsel %vm801, %v877, 0
      %v919 = vsel %vm801, %v879, 0
      %vm921 = vcmask 1040384
      %v922 = vsel %vm921, %v893, 0
      %924 = vmatprep.subr.mxu0 0.0
      %925 = vmatpush1.msra.mxu0 %v881
      %926 = vmatprep.subr.mxu0 0.0
      %927 = vmatpush1.msra.mxu0 %v883
      %928 = vmatprep.subr.mxu0 0.0
      %929 = vmatpush1.msra.mxu0 %v885
      %930 = vmatprep.subr.mxu0 0.0
      %931 = vmatpush1.msra.mxu0 %v887
      %932 = vmatprep.subr.mxu0 0.0
      %933 = vmatpush1.msra.mxu0 %v889
      %934 = vmatprep.subr.mxu0 0.0
      %935 = vmatpush1.msra.mxu0 %v891
      %936 = vmatprep.subr.mxu0 0.0
      %937 = vmatpush1.msra.mxu0 %v922
      %938 = vmatprep.subr.mxu0 0.0
      %939 = vmatpush1.msra.mxu0 0.0
      %940 = vmatprep.subr.mxu0 0.0
      %941 = vmatpush1.msra.mxu0 0.0
      %942 = vmatprep.subr.mxu0 0.0
      %943 = vmatpush1.msra.mxu0 0.0
      %944 = vmatprep.subr.mxu0 0.0
      %945 = vmatpush1.msra.mxu0 0.0
      %946 = vmatprep.subr.mxu0 0.0
      %947 = vmatpush1.msra.mxu0 0.0
      %948 = vmatprep.subr.mxu0 0.0
      %949 = vmatpush1.msra.mxu0 0.0
      %950 = vmatprep.subr.mxu0 0.0
      %951 = vmatpush1.msra.mxu0 0.0
      %952 = vmatprep.subr.mxu0 0.0
      %953 = vmatpush1.msra.mxu0 0.0
      %954 = vmatprep.subr.mxu0 0.0
      %955 = vmatpush1.msra.mxu0 0.0
      %956 = vmatprep.subr.mxu0 0.0
      %957 = vmatpush1.msra.mxu0 0.0
      %958 = vmatprep.subr.mxu0 0.0
      %959 = vmatpush1.msra.mxu0 0.0
      %960 = vmatprep.subr.mxu0 0.0
      %961 = vmatpush1.msra.mxu0 0.0
      %962 = vmatprep.subr.mxu0 0.0
      %963 = vmatpush1.msra.mxu0 0.0
      %964 = vmatprep.subr.mxu0 0.0
      %965 = vmatpush1.msra.mxu0 0.0
      %966 = vmatprep.subr.mxu0 0.0
      %967 = vmatpush1.msra.mxu0 0.0
      %968 = vmatprep.subr.mxu0 0.0
      %969 = vmatpush1.msra.mxu0 0.0
      %970 = vmatprep.subr.mxu0 0.0
      %971 = vmatpush1.msra.mxu0 0.0
      %972 = vmatprep.subr.mxu0 0.0
      %973 = vmatpush1.msra.mxu0 0.0
      %974 = vmatprep.subr.mxu0 0.0
      %975 = vmatpush1.msra.mxu0 0.0
      %976 = vmatprep.subr.mxu0 0.0
      %977 = vmatpush1.msra.mxu0 0.0
      %978 = vmatprep.subr.mxu0 0.0
      %979 = vmatpush1.msra.mxu0 0.0
      %980 = vmatprep.subr.mxu0 0.0
      %981 = vmatpush1.msra.mxu0 0.0
      %982 = vmatprep.subr.mxu0 0.0
      %983 = vmatpush1.msra.mxu0 0.0
      %984 = vmatprep.subr.mxu0 0.0
      %985 = vmatpush1.msra.mxu0 0.0
      %986 = vmatprep.subr.mxu0 0.0
      %987 = vmatpush1.msra.mxu0 0.0
      %988 = vmatprep.mubr.f32.mxu0 0.0
      %989 = vmatmul.mubr.f32.gmra.mrb[0].mxu0 %v901
      %v990 = vpop.f32.mrb[0].mxu0
      %v991 = vadd.f32 0.0, %v990
      %v992 = vpop.f32.mrb[0].mxu0
      %993 = vmatprep.mubr.f32.mxu0 0.0
      %994 = vmatmul.mubr.f32.gmra.mrb[0].mxu0 %v904
      %v995 = vpop.f32.mrb[0].mxu0
      %v996 = vadd.f32 0.0, %v995
      %v997 = vpop.f32.mrb[0].mxu0
      %998 = vmatprep.mubr.f32.mxu0 0.0
      %999 = vmatmul.mubr.f32.gmra.mrb[0].mxu0 %v907
      %v1000 = vpop.f32.mrb[0].mxu0
      %v1001 = vadd.f32 0.0, %v1000
      %v1002 = vpop.f32.mrb[0].mxu0
      %1003 = vmatprep.mubr.f32.mxu0 0.0
      %1004 = vmatmul.mubr.f32.gmra.mrb[0].mxu0 %v910
      %v1005 = vpop.f32.mrb[0].mxu0
      %v1006 = vadd.f32 0.0, %v1005
      %v1007 = vpop.f32.mrb[0].mxu0
      %1008 = vmatprep.mubr.f32.mxu0 0.0
      %1009 = vmatmul.mubr.f32.gmra.mrb[0].mxu0 %v913
      %v1010 = vpop.f32.mrb[0].mxu0
      %v1011 = vadd.f32 0.0, %v1010
      %v1012 = vpop.f32.mrb[0].mxu0
      %1013 = vmatprep.mubr.f32.mxu0 0.0
      %1014 = vmatmul.mubr.f32.gmra.mrb[0].mxu0 %v916
      %v1015 = vpop.f32.mrb[0].mxu0
      %v1016 = vadd.f32 0.0, %v1015
      %v1017 = vpop.f32.mrb[0].mxu0
      %1018 = vmatprep.mubr.f32.mxu0 0.0
      %1019 = vmatmul.mubr.f32.gmra.mrb[0].mxu0 %v919
      %v1020 = vpop.f32.mrb[0].mxu0
      %v1021 = vadd.f32 0.0, %v1020
      %v1022 = vpop.f32.mrb[0].mxu0
      %1023 = vdwg.mxu0
      %s1024 = scalar_lea.vmem %s7, 56
      %v1025 = vld [vmem:[%s1024] sm:$0xff]
      %v1026 = vld [vmem:[%s1024 + $0x8] sm:$0xff]
      %v1027 = vld [vmem:[%s1024 + $0x10] sm:$0xff]
      %v1028 = vld [vmem:[%s1024 + $0x18] sm:$0xff]
      %v1029 = vld [vmem:[%s1024 + $0x20] sm:$0xff]
      %v1030 = vld [vmem:[%s1024 + $0x28] sm:$0xff]
      %v1031 = vld [vmem:[%s1024 + $0x30] sm:$0x1]
      %1032 = vrot.lane.b32.xlu0 %v623, 124
      %v1033 = vpop.permute.xlu0 %1032
      %1034 = vrot.lane.b32.xlu0 %v624, 124
      %v1035 = vpop.permute.xlu0 %1034
      %1036 = vrot.lane.b32.xlu0 %v625, 124
      %v1037 = vpop.permute.xlu0 %1036
      %1038 = vrot.lane.b32.xlu0 %v626, 124
      %v1039 = vpop.permute.xlu0 %1038
      %1040 = vrot.lane.b32.xlu0 %v627, 124
      %v1041 = vpop.permute.xlu0 %1040
      %1042 = vrot.lane.b32.xlu0 %v628, 124
      %v1043 = vpop.permute.xlu0 %1042
      %1044 = vrot.lane.b32.xlu0 %v629, 124
      %v1045 = vpop.permute.xlu0 %1044
      %1046 = vrot.lane.b32.xlu0 %v580, 100
      %v1047 = vpop.permute.xlu0 %1046
      %1048 = vrot.lane.b32.xlu0 %v585, 100
      %v1049 = vpop.permute.xlu0 %1048
      %1050 = vrot.lane.b32.xlu0 %v590, 100
      %v1051 = vpop.permute.xlu0 %1050
      %1052 = vrot.lane.b32.xlu0 %v595, 100
      %v1053 = vpop.permute.xlu0 %1052
      %1054 = vrot.lane.b32.xlu0 %v600, 100
      %v1055 = vpop.permute.xlu0 %1054
      %1056 = vrot.lane.b32.xlu0 %v605, 100
      %v1057 = vpop.permute.xlu0 %1056
      %1058 = vrot.lane.b32.xlu0 %v610, 100
      %v1059 = vpop.permute.xlu0 %1058
      %v1060 = vsel %vm658, %v1033, 0
      %v1062 = vsel %vm658, %v1035, 0
      %v1064 = vsel %vm658, %v1037, 0
      %v1066 = vsel %vm658, %v1039, 0
      %v1068 = vsel %vm658, %v1041, 0
      %v1070 = vsel %vm658, %v1043, 0
      %v1072 = vsel %vm658, %v1045, 0
      %v1074 = vsel %vm658, %v1047, 0
      %v1076 = vsel %vm658, %v1049, 0
      %v1078 = vsel %vm658, %v1051, 0
      %v1080 = vsel %vm658, %v1053, 0
      %v1082 = vsel %vm658, %v1055, 0
      %v1084 = vsel %vm658, %v1057, 0
      %v1086 = vsel %vm658, %v1059, 0
      %1088 = vmatprep.subr.mxu0 0.0
      %1089 = vmatpush1.xpose.msra.mxu0 %v1074
      %1090 = vmatprep.subr.mxu0 0.0
      %1091 = vmatpush1.xpose.msra.mxu0 %v1076
      %1092 = vmatprep.subr.mxu0 0.0
      %1093 = vmatpush1.xpose.msra.mxu0 %v1078
      %1094 = vmatprep.subr.mxu0 0.0
      %1095 = vmatpush1.xpose.msra.mxu0 %v1080
      %1096 = vmatprep.subr.mxu0 0.0
      %1097 = vmatpush1.xpose.msra.mxu0 %v1082
      %1098 = vmatprep.subr.mxu0 0.0
      %1099 = vmatpush1.xpose.msra.mxu0 %v1084
      %1100 = vmatprep.subr.mxu0 0.0
      %1101 = vmatpush1.xpose.msra.mxu0 %v1086
      %1102 = vmatprep.subr.mxu0 0.0
      %1103 = vmatpush1.xpose.msra.mxu0 0.0
      %1104 = vmatprep.subr.mxu0 0.0
      %1105 = vmatpush1.xpose.msra.mxu0 0.0
      %1106 = vmatprep.subr.mxu0 0.0
      %1107 = vmatpush1.xpose.msra.mxu0 0.0
      %1108 = vmatprep.subr.mxu0 0.0
      %1109 = vmatpush1.xpose.msra.mxu0 0.0
      %1110 = vmatprep.subr.mxu0 0.0
      %1111 = vmatpush1.xpose.msra.mxu0 0.0
      %1112 = vmatprep.subr.mxu0 0.0
      %1113 = vmatpush1.xpose.msra.mxu0 0.0
      %1114 = vmatprep.subr.mxu0 0.0
      %1115 = vmatpush1.xpose.msra.mxu0 0.0
      %1116 = vmatprep.subr.mxu0 0.0
      %1117 = vmatpush1.xpose.msra.mxu0 0.0
      %1118 = vmatprep.subr.mxu0 0.0
      %1119 = vmatpush1.xpose.msra.mxu0 0.0
      %1120 = vmatprep.subr.mxu0 0.0
      %1121 = vmatpush1.xpose.msra.mxu0 0.0
      %1122 = vmatprep.subr.mxu0 0.0
      %1123 = vmatpush1.xpose.msra.mxu0 0.0
      %1124 = vmatprep.subr.mxu0 0.0
      %1125 = vmatpush1.xpose.msra.mxu0 0.0
      %1126 = vmatprep.subr.mxu0 0.0
      %1127 = vmatpush1.xpose.msra.mxu0 0.0
      %1128 = vmatprep.subr.mxu0 0.0
      %1129 = vmatpush1.xpose.msra.mxu0 0.0
      %1130 = vmatprep.subr.mxu0 0.0
      %1131 = vmatpush1.xpose.msra.mxu0 0.0
      %1132 = vmatprep.subr.mxu0 0.0
      %1133 = vmatpush1.xpose.msra.mxu0 0.0
      %1134 = vmatprep.subr.mxu0 0.0
      %1135 = vmatpush1.xpose.msra.mxu0 0.0
      %1136 = vmatprep.subr.mxu0 0.0
      %1137 = vmatpush1.xpose.msra.mxu0 0.0
      %1138 = vmatprep.subr.mxu0 0.0
      %1139 = vmatpush1.xpose.msra.mxu0 0.0
      %1140 = vmatprep.subr.mxu0 0.0
      %1141 = vmatpush1.xpose.msra.mxu0 0.0
      %1142 = vmatprep.subr.mxu0 0.0
      %1143 = vmatpush1.xpose.msra.mxu0 0.0
      %1144 = vmatprep.subr.mxu0 0.0
      %1145 = vmatpush1.xpose.msra.mxu0 0.0
      %1146 = vmatprep.subr.mxu0 0.0
      %1147 = vmatpush1.xpose.msra.mxu0 0.0
      %1148 = vmatprep.subr.mxu0 0.0
      %1149 = vmatpush1.xpose.msra.mxu0 0.0
      %1150 = vmatprep.subr.mxu0 0.0
      %1151 = vmatpush1.xpose.msra.mxu0 0.0
      %1152 = vmatprep.mubr.f32.mxu0 0.0
      %1153 = vmatmul.mubr.f32.gmra.mrb[0].mxu0 %v1060
      %v1154 = vpop.f32.mrb[0].mxu0
      %v1155 = vadd.f32 %v1025, %v1154
      %v1156 = vpop.f32.mrb[0].mxu0
      %1157 = vmatprep.mubr.f32.mxu0 0.0
      %1158 = vmatmul.mubr.f32.gmra.mrb[0].mxu0 %v1062
      %v1159 = vpop.f32.mrb[0].mxu0
      %v1160 = vadd.f32 %v1026, %v1159
      %v1161 = vpop.f32.mrb[0].mxu0
      %1162 = vmatprep.mubr.f32.mxu0 0.0
      %1163 = vmatmul.mubr.f32.gmra.mrb[0].mxu0 %v1064
      %v1164 = vpop.f32.mrb[0].mxu0
      %v1165 = vadd.f32 %v1027, %v1164
      %v1166 = vpop.f32.mrb[0].mxu0
      %1167 = vmatprep.mubr.f32.mxu0 0.0
      %1168 = vmatmul.mubr.f32.gmra.mrb[0].mxu0 %v1066
      %v1169 = vpop.f32.mrb[0].mxu0
      %v1170 = vadd.f32 %v1028, %v1169
      %v1171 = vpop.f32.mrb[0].mxu0
      %1172 = vmatprep.mubr.f32.mxu0 0.0
      %1173 = vmatmul.mubr.f32.gmra.mrb[0].mxu0 %v1068
      %v1174 = vpop.f32.mrb[0].mxu0
      %v1175 = vadd.f32 %v1029, %v1174
      %v1176 = vpop.f32.mrb[0].mxu0
      %1177 = vmatprep.mubr.f32.mxu0 0.0
      %1178 = vmatmul.mubr.f32.gmra.mrb[0].mxu0 %v1070
      %v1179 = vpop.f32.mrb[0].mxu0
      %v1180 = vadd.f32 %v1030, %v1179
      %v1181 = vpop.f32.mrb[0].mxu0
      %1182 = vmatprep.mubr.f32.mxu0 0.0
      %1183 = vmatmul.mubr.f32.gmra.mrb[0].mxu0 %v1072
      %v1184 = vpop.f32.mrb[0].mxu0
      %v1185 = vadd.f32 %v1031, %v1184
      %v1186 = vpop.f32.mrb[0].mxu0
      %1187 = vdwg.mxu0
      %v1188 = vadd.f32 %v1155, %v616
      %v1189 = vadd.f32 %v1160, %v617
      %v1190 = vadd.f32 %v1165, %v618
      %v1191 = vadd.f32 %v1170, %v619
      %v1192 = vadd.f32 %v1175, %v620
      %v1193 = vadd.f32 %v1180, %v621
      %v1194 = vadd.f32 %v1185, %v622
      %v1195 = vsel %vm801, %v1188, -inf
      %1196 = vmax.xlane.f32.xlu0 %v1195
      %v1197 = vpop.xlane.xlu0 %1196
      %v1198 = vsel %vm801, %v1189, -inf
      %1199 = vmax.xlane.f32.xlu0 %v1198
      %v1200 = vpop.xlane.xlu0 %1199
      %v1201 = vsel %vm801, %v1190, -inf
      %1202 = vmax.xlane.f32.xlu0 %v1201
      %v1203 = vpop.xlane.xlu0 %1202
      %v1204 = vsel %vm801, %v1191, -inf
      %1205 = vmax.xlane.f32.xlu0 %v1204
      %v1206 = vpop.xlane.xlu0 %1205
      %v1207 = vsel %vm801, %v1192, -inf
      %1208 = vmax.xlane.f32.xlu0 %v1207
      %v1209 = vpop.xlane.xlu0 %1208
      %v1210 = vsel %vm801, %v1193, -inf
      %1211 = vmax.xlane.f32.xlu0 %v1210
      %v1212 = vpop.xlane.xlu0 %1211
      %v1213 = vsel %vm820, %v1194, -inf
      %1214 = vmax.xlane.f32.xlu0 %v1213
      %v1215 = vpop.xlane.xlu0 %1214
      %v1216 = vsub.f32 %v1188, %v1197
      %v1217 = vsub.f32 %v1189, %v1200
      %v1218 = vsub.f32 %v1190, %v1203
      %v1219 = vsub.f32 %v1191, %v1206
      %v1220 = vsub.f32 %v1192, %v1209
      %v1221 = vsub.f32 %v1193, %v1212
      %v1222 = vsub.f32 %v1194, %v1215
      %v1223 = vmul.f32 %v1216, 1.442695
      %v1224 = vpow.pop %v1223
      %v1225 = vmul.f32 %v1217, 1.442695
      %v1226 = vpow.pop %v1225
      %v1227 = vmul.f32 %v1218, 1.442695
      %v1228 = vpow.pop %v1227
      %v1229 = vmul.f32 %v1219, 1.442695
      %v1230 = vpow.pop %v1229
      %v1231 = vmul.f32 %v1220, 1.442695
      %v1232 = vpow.pop %v1231
      %v1233 = vmul.f32 %v1221, 1.442695
      %v1234 = vpow.pop %v1233
      %v1235 = vmul.f32 %v1222, 1.442695
      %v1236 = vpow.pop %v1235
      %v1237 = vsel %vm801, %v1224, 0.0
      %1238 = vadd.xlane.f32.xlu0 %v1237
      %v1239 = vpop.xlane.xlu0 %1238
      %v1240 = vsel %vm801, %v1226, 0.0
      %1241 = vadd.xlane.f32.xlu0 %v1240
      %v1242 = vpop.xlane.xlu0 %1241
      %v1243 = vsel %vm801, %v1228, 0.0
      %1244 = vadd.xlane.f32.xlu0 %v1243
      %v1245 = vpop.xlane.xlu0 %1244
      %v1246 = vsel %vm801, %v1230, 0.0
      %1247 = vadd.xlane.f32.xlu0 %v1246
      %v1248 = vpop.xlane.xlu0 %1247
      %v1249 = vsel %vm801, %v1232, 0.0
      %1250 = vadd.xlane.f32.xlu0 %v1249
      %v1251 = vpop.xlane.xlu0 %1250
      %v1252 = vsel %vm801, %v1234, 0.0
      %1253 = vadd.xlane.f32.xlu0 %v1252
      %v1254 = vpop.xlane.xlu0 %1253
      %v1255 = vsel %vm820, %v1236, 0.0
      %1256 = vadd.xlane.f32.xlu0 %v1255
      %v1257 = vpop.xlane.xlu0 %1256
      %v1258 = vrcp.pop %v1239
      %v1259 = vmul.f32 %v1224, %v1258
      %v1260 = vrcp.pop %v1242
      %v1261 = vmul.f32 %v1226, %v1260
      %v1262 = vrcp.pop %v1245
      %v1263 = vmul.f32 %v1228, %v1262
      %v1264 = vrcp.pop %v1248
      %v1265 = vmul.f32 %v1230, %v1264
      %v1266 = vrcp.pop %v1251
      %v1267 = vmul.f32 %v1232, %v1266
      %v1268 = vrcp.pop %v1254
      %v1269 = vmul.f32 %v1234, %v1268
      %v1270 = vrcp.pop %v1257
      %v1271 = vmul.f32 %v1236, %v1270
      %1272 = vrot.lane.b32.xlu0 %v580, 76
      %v1273 = vpop.permute.xlu0 %1272
      %1274 = vrot.lane.b32.xlu0 %v585, 76
      %v1275 = vpop.permute.xlu0 %1274
      %1276 = vrot.lane.b32.xlu0 %v590, 76
      %v1277 = vpop.permute.xlu0 %1276
      %1278 = vrot.lane.b32.xlu0 %v595, 76
      %v1279 = vpop.permute.xlu0 %1278
      %1280 = vrot.lane.b32.xlu0 %v600, 76
      %v1281 = vpop.permute.xlu0 %1280
      %1282 = vrot.lane.b32.xlu0 %v605, 76
      %v1283 = vpop.permute.xlu0 %1282
      %1284 = vrot.lane.b32.xlu0 %v610, 76
      %v1285 = vpop.permute.xlu0 %1284
      %v1293 = vsel %vm801, %v1259, 0
      %v1296 = vsel %vm801, %v1261, 0
      %v1299 = vsel %vm801, %v1263, 0
      %v1302 = vsel %vm801, %v1265, 0
      %v1305 = vsel %vm801, %v1267, 0
      %v1308 = vsel %vm801, %v1269, 0
      %v1311 = vsel %vm801, %v1271, 0
      %v1313 = vsel %vm921, %v1285, 0
      %1315 = vmatprep.subr.mxu0 0.0
      %1316 = vmatpush1.msra.mxu0 %v1273
      %1317 = vmatprep.subr.mxu0 0.0
      %1318 = vmatpush1.msra.mxu0 %v1275
      %1319 = vmatprep.subr.mxu0 0.0
      %1320 = vmatpush1.msra.mxu0 %v1277
      %1321 = vmatprep.subr.mxu0 0.0
      %1322 = vmatpush1.msra.mxu0 %v1279
      %1323 = vmatprep.subr.mxu0 0.0
      %1324 = vmatpush1.msra.mxu0 %v1281
      %1325 = vmatprep.subr.mxu0 0.0
      %1326 = vmatpush1.msra.mxu0 %v1283
      %1327 = vmatprep.subr.mxu0 0.0
      %1328 = vmatpush1.msra.mxu0 %v1313
      %1329 = vmatprep.subr.mxu0 0.0
      %1330 = vmatpush1.msra.mxu0 0.0
      %1331 = vmatprep.subr.mxu0 0.0
      %1332 = vmatpush1.msra.mxu0 0.0
      %1333 = vmatprep.subr.mxu0 0.0
      %1334 = vmatpush1.msra.mxu0 0.0
      %1335 = vmatprep.subr.mxu0 0.0
      %1336 = vmatpush1.msra.mxu0 0.0
      %1337 = vmatprep.subr.mxu0 0.0
      %1338 = vmatpush1.msra.mxu0 0.0
      %1339 = vmatprep.subr.mxu0 0.0
      %1340 = vmatpush1.msra.mxu0 0.0
      %1341 = vmatprep.subr.mxu0 0.0
      %1342 = vmatpush1.msra.mxu0 0.0
      %1343 = vmatprep.subr.mxu0 0.0
      %1344 = vmatpush1.msra.mxu0 0.0
      %1345 = vmatprep.subr.mxu0 0.0
      %1346 = vmatpush1.msra.mxu0 0.0
      %1347 = vmatprep.subr.mxu0 0.0
      %1348 = vmatpush1.msra.mxu0 0.0
      %1349 = vmatprep.subr.mxu0 0.0
      %1350 = vmatpush1.msra.mxu0 0.0
      %1351 = vmatprep.subr.mxu0 0.0
      %1352 = vmatpush1.msra.mxu0 0.0
      %1353 = vmatprep.subr.mxu0 0.0
      %1354 = vmatpush1.msra.mxu0 0.0
      %1355 = vmatprep.subr.mxu0 0.0
      %1356 = vmatpush1.msra.mxu0 0.0
      %1357 = vmatprep.subr.mxu0 0.0
      %1358 = vmatpush1.msra.mxu0 0.0
      %1359 = vmatprep.subr.mxu0 0.0
      %1360 = vmatpush1.msra.mxu0 0.0
      %1361 = vmatprep.subr.mxu0 0.0
      %1362 = vmatpush1.msra.mxu0 0.0
      %1363 = vmatprep.subr.mxu0 0.0
      %1364 = vmatpush1.msra.mxu0 0.0
      %1365 = vmatprep.subr.mxu0 0.0
      %1366 = vmatpush1.msra.mxu0 0.0
      %1367 = vmatprep.subr.mxu0 0.0
      %1368 = vmatpush1.msra.mxu0 0.0
      %1369 = vmatprep.subr.mxu0 0.0
      %1370 = vmatpush1.msra.mxu0 0.0
      %1371 = vmatprep.subr.mxu0 0.0
      %1372 = vmatpush1.msra.mxu0 0.0
      %1373 = vmatprep.subr.mxu0 0.0
      %1374 = vmatpush1.msra.mxu0 0.0
      %1375 = vmatprep.subr.mxu0 0.0
      %1376 = vmatpush1.msra.mxu0 0.0
      %1377 = vmatprep.subr.mxu0 0.0
      %1378 = vmatpush1.msra.mxu0 0.0
      %1379 = vmatprep.mubr.f32.mxu0 0.0
      %1380 = vmatmul.mubr.f32.gmra.mrb[0].mxu0 %v1293
      %v1381 = vpop.f32.mrb[0].mxu0
      %v1382 = vadd.f32 0.0, %v1381
      %v1383 = vpop.f32.mrb[0].mxu0
      %1384 = vmatprep.mubr.f32.mxu0 0.0
      %1385 = vmatmul.mubr.f32.gmra.mrb[0].mxu0 %v1296
      %v1386 = vpop.f32.mrb[0].mxu0
      %v1387 = vadd.f32 0.0, %v1386
      %v1388 = vpop.f32.mrb[0].mxu0
      %1389 = vmatprep.mubr.f32.mxu0 0.0
      %1390 = vmatmul.mubr.f32.gmra.mrb[0].mxu0 %v1299
      %v1391 = vpop.f32.mrb[0].mxu0
      %v1392 = vadd.f32 0.0, %v1391
      %v1393 = vpop.f32.mrb[0].mxu0
      %1394 = vmatprep.mubr.f32.mxu0 0.0
      %1395 = vmatmul.mubr.f32.gmra.mrb[0].mxu0 %v1302
      %v1396 = vpop.f32.mrb[0].mxu0
      %v1397 = vadd.f32 0.0, %v1396
      %v1398 = vpop.f32.mrb[0].mxu0
      %1399 = vmatprep.mubr.f32.mxu0 0.0
      %1400 = vmatmul.mubr.f32.gmra.mrb[0].mxu0 %v1305
      %v1401 = vpop.f32.mrb[0].mxu0
      %v1402 = vadd.f32 0.0, %v1401
      %v1403 = vpop.f32.mrb[0].mxu0
      %1404 = vmatprep.mubr.f32.mxu0 0.0
      %1405 = vmatmul.mubr.f32.gmra.mrb[0].mxu0 %v1308
      %v1406 = vpop.f32.mrb[0].mxu0
      %v1407 = vadd.f32 0.0, %v1406
      %v1408 = vpop.f32.mrb[0].mxu0
      %1409 = vmatprep.mubr.f32.mxu0 0.0
      %1410 = vmatmul.mubr.f32.gmra.mrb[0].mxu0 %v1311
      %v1411 = vpop.f32.mrb[0].mxu0
      %v1412 = vadd.f32 0.0, %v1411
      %v1413 = vpop.f32.mrb[0].mxu0
      %1414 = vdwg.mxu0
      %v1416 = vrot.slane %v613, 4
      %v1418 = vsel %vm658, %v1382, 0
      %v1421 = vsel %vm658, %v1387, 0
      %v1424 = vsel %vm658, %v1392, 0
      %v1427 = vsel %vm658, %v1397, 0
      %v1430 = vsel %vm658, %v1402, 0
      %v1433 = vsel %vm658, %v1407, 0
      %v1436 = vsel %vm658, %v1412, 0
      %vm1438 = vcmask 1043456
      %v1439 = vsel %vm1438, %v1416, 0
      %1441 = vmatprep.subr.mxu0 0.0
      %1442 = vmatpush1.msra.mxu0 %v1439
      %1443 = vmatprep.subr.mxu0 0.0
      %1444 = vmatpush1.msra.mxu0 0.0
      %1445 = vmatprep.subr.mxu0 0.0
      %1446 = vmatpush1.msra.mxu0 0.0
      %1447 = vmatprep.subr.mxu0 0.0
      %1448 = vmatpush1.msra.mxu0 0.0
      %1449 = vmatprep.subr.mxu0 0.0
      %1450 = vmatpush1.msra.mxu0 0.0
      %1451 = vmatprep.subr.mxu0 0.0
      %1452 = vmatpush1.msra.mxu0 0.0
      %1453 = vmatprep.subr.mxu0 0.0
      %1454 = vmatpush1.msra.mxu0 0.0
      %1455 = vmatprep.subr.mxu0 0.0
      %1456 = vmatpush1.msra.mxu0 0.0
      %1457 = vmatprep.subr.mxu0 0.0
      %1458 = vmatpush1.msra.mxu0 0.0
      %1459 = vmatprep.subr.mxu0 0.0
      %1460 = vmatpush1.msra.mxu0 0.0
      %1461 = vmatprep.subr.mxu0 0.0
      %1462 = vmatpush1.msra.mxu0 0.0
      %1463 = vmatprep.subr.mxu0 0.0
      %1464 = vmatpush1.msra.mxu0 0.0
      %1465 = vmatprep.subr.mxu0 0.0
      %1466 = vmatpush1.msra.mxu0 0.0
      %1467 = vmatprep.subr.mxu0 0.0
      %1468 = vmatpush1.msra.mxu0 0.0
      %1469 = vmatprep.subr.mxu0 0.0
      %1470 = vmatpush1.msra.mxu0 0.0
      %1471 = vmatprep.subr.mxu0 0.0
      %1472 = vmatpush1.msra.mxu0 0.0
      %1473 = vmatprep.subr.mxu0 0.0
      %1474 = vmatpush1.msra.mxu0 0.0
      %1475 = vmatprep.subr.mxu0 0.0
      %1476 = vmatpush1.msra.mxu0 0.0
      %1477 = vmatprep.subr.mxu0 0.0
      %1478 = vmatpush1.msra.mxu0 0.0
      %1479 = vmatprep.subr.mxu0 0.0
      %1480 = vmatpush1.msra.mxu0 0.0
      %1481 = vmatprep.subr.mxu0 0.0
      %1482 = vmatpush1.msra.mxu0 0.0
      %1483 = vmatprep.subr.mxu0 0.0
      %1484 = vmatpush1.msra.mxu0 0.0
      %1485 = vmatprep.subr.mxu0 0.0
      %1486 = vmatpush1.msra.mxu0 0.0
      %1487 = vmatprep.subr.mxu0 0.0
      %1488 = vmatpush1.msra.mxu0 0.0
      %1489 = vmatprep.subr.mxu0 0.0
      %1490 = vmatpush1.msra.mxu0 0.0
      %1491 = vmatprep.subr.mxu0 0.0
      %1492 = vmatpush1.msra.mxu0 0.0
      %1493 = vmatprep.subr.mxu0 0.0
      %1494 = vmatpush1.msra.mxu0 0.0
      %1495 = vmatprep.subr.mxu0 0.0
      %1496 = vmatpush1.msra.mxu0 0.0
      %1497 = vmatprep.subr.mxu0 0.0
      %1498 = vmatpush1.msra.mxu0 0.0
      %1499 = vmatprep.subr.mxu0 0.0
      %1500 = vmatpush1.msra.mxu0 0.0
      %1501 = vmatprep.subr.mxu0 0.0
      %1502 = vmatpush1.msra.mxu0 0.0
      %1503 = vmatprep.subr.mxu0 0.0
      %1504 = vmatpush1.msra.mxu0 0.0
      %1505 = vmatprep.mubr.f32.mxu0 0.0
      %1506 = vmatmul.mubr.f32.gmra.mrb[0].mxu0 %v1418
      %v1507 = vpop.f32.mrb[0].mxu0
      %v1508 = vadd.f32 0.0, %v1507
      %v1509 = vpop.f32.mrb[0].mxu0
      %1510 = vmatprep.mubr.f32.mxu0 0.0
      %1511 = vmatmul.mubr.f32.gmra.mrb[0].mxu0 %v1421
      %v1512 = vpop.f32.mrb[0].mxu0
      %v1513 = vadd.f32 0.0, %v1512
      %v1514 = vpop.f32.mrb[0].mxu0
      %1515 = vmatprep.mubr.f32.mxu0 0.0
      %1516 = vmatmul.mubr.f32.gmra.mrb[0].mxu0 %v1424
      %v1517 = vpop.f32.mrb[0].mxu0
      %v1518 = vadd.f32 0.0, %v1517
      %v1519 = vpop.f32.mrb[0].mxu0
      %1520 = vmatprep.mubr.f32.mxu0 0.0
      %1521 = vmatmul.mubr.f32.gmra.mrb[0].mxu0 %v1427
      %v1522 = vpop.f32.mrb[0].mxu0
      %v1523 = vadd.f32 0.0, %v1522
      %v1524 = vpop.f32.mrb[0].mxu0
      %1525 = vmatprep.mubr.f32.mxu0 0.0
      %1526 = vmatmul.mubr.f32.gmra.mrb[0].mxu0 %v1430
      %v1527 = vpop.f32.mrb[0].mxu0
      %v1528 = vadd.f32 0.0, %v1527
      %v1529 = vpop.f32.mrb[0].mxu0
      %1530 = vmatprep.mubr.f32.mxu0 0.0
      %1531 = vmatmul.mubr.f32.gmra.mrb[0].mxu0 %v1433
      %v1532 = vpop.f32.mrb[0].mxu0
      %v1533 = vadd.f32 0.0, %v1532
      %v1534 = vpop.f32.mrb[0].mxu0
      %1535 = vmatprep.mubr.f32.mxu0 0.0
      %1536 = vmatmul.mubr.f32.gmra.mrb[0].mxu0 %v1436
      %v1537 = vpop.f32.mrb[0].mxu0
      %v1538 = vadd.f32 0.0, %v1537
      %v1539 = vpop.f32.mrb[0].mxu0
      %1540 = vdwg.mxu0
      %v1542 = vsel %vm658, %v991, 0
      %v1545 = vsel %vm658, %v996, 0
      %v1548 = vsel %vm658, %v1001, 0
      %v1551 = vsel %vm658, %v1006, 0
      %v1554 = vsel %vm658, %v1011, 0
      %v1557 = vsel %vm658, %v1016, 0
      %v1560 = vsel %vm658, %v1021, 0
      %v1562 = vsel %vm1438, %v613, 0
      %1564 = vmatprep.subr.mxu0 0.0
      %1565 = vmatpush1.msra.mxu0 %v1562
      %1566 = vmatprep.subr.mxu0 0.0
      %1567 = vmatpush1.msra.mxu0 0.0
      %1568 = vmatprep.subr.mxu0 0.0
      %1569 = vmatpush1.msra.mxu0 0.0
      %1570 = vmatprep.subr.mxu0 0.0
      %1571 = vmatpush1.msra.mxu0 0.0
      %1572 = vmatprep.subr.mxu0 0.0
      %1573 = vmatpush1.msra.mxu0 0.0
      %1574 = vmatprep.subr.mxu0 0.0
      %1575 = vmatpush1.msra.mxu0 0.0
      %1576 = vmatprep.subr.mxu0 0.0
      %1577 = vmatpush1.msra.mxu0 0.0
      %1578 = vmatprep.subr.mxu0 0.0
      %1579 = vmatpush1.msra.mxu0 0.0
      %1580 = vmatprep.subr.mxu0 0.0
      %1581 = vmatpush1.msra.mxu0 0.0
      %1582 = vmatprep.subr.mxu0 0.0
      %1583 = vmatpush1.msra.mxu0 0.0
      %1584 = vmatprep.subr.mxu0 0.0
      %1585 = vmatpush1.msra.mxu0 0.0
      %1586 = vmatprep.subr.mxu0 0.0
      %1587 = vmatpush1.msra.mxu0 0.0
      %1588 = vmatprep.subr.mxu0 0.0
      %1589 = vmatpush1.msra.mxu0 0.0
      %1590 = vmatprep.subr.mxu0 0.0
      %1591 = vmatpush1.msra.mxu0 0.0
      %1592 = vmatprep.subr.mxu0 0.0
      %1593 = vmatpush1.msra.mxu0 0.0
      %1594 = vmatprep.subr.mxu0 0.0
      %1595 = vmatpush1.msra.mxu0 0.0
      %1596 = vmatprep.subr.mxu0 0.0
      %1597 = vmatpush1.msra.mxu0 0.0
      %1598 = vmatprep.subr.mxu0 0.0
      %1599 = vmatpush1.msra.mxu0 0.0
      %1600 = vmatprep.subr.mxu0 0.0
      %1601 = vmatpush1.msra.mxu0 0.0
      %1602 = vmatprep.subr.mxu0 0.0
      %1603 = vmatpush1.msra.mxu0 0.0
      %1604 = vmatprep.subr.mxu0 0.0
      %1605 = vmatpush1.msra.mxu0 0.0
      %1606 = vmatprep.subr.mxu0 0.0
      %1607 = vmatpush1.msra.mxu0 0.0
      %1608 = vmatprep.subr.mxu0 0.0
      %1609 = vmatpush1.msra.mxu0 0.0
      %1610 = vmatprep.subr.mxu0 0.0
      %1611 = vmatpush1.msra.mxu0 0.0
      %1612 = vmatprep.subr.mxu0 0.0
      %1613 = vmatpush1.msra.mxu0 0.0
      %1614 = vmatprep.subr.mxu0 0.0
      %1615 = vmatpush1.msra.mxu0 0.0
      %1616 = vmatprep.subr.mxu0 0.0
      %1617 = vmatpush1.msra.mxu0 0.0
      %1618 = vmatprep.subr.mxu0 0.0
      %1619 = vmatpush1.msra.mxu0 0.0
      %1620 = vmatprep.subr.mxu0 0.0
      %1621 = vmatpush1.msra.mxu0 0.0
      %1622 = vmatprep.subr.mxu0 0.0
      %1623 = vmatpush1.msra.mxu0 0.0
      %1624 = vmatprep.subr.mxu0 0.0
      %1625 = vmatpush1.msra.mxu0 0.0
      %1626 = vmatprep.subr.mxu0 0.0
      %1627 = vmatpush1.msra.mxu0 0.0
      %1628 = vmatprep.mubr.f32.mxu0 0.0
      %1629 = vmatmul.mubr.f32.gmra.mrb[0].mxu0 %v1542
      %v1630 = vpop.f32.mrb[0].mxu0
      %v1631 = vadd.f32 %v1508, %v1630
      %v1632 = vpop.f32.mrb[0].mxu0
      %1633 = vmatprep.mubr.f32.mxu0 0.0
      %1634 = vmatmul.mubr.f32.gmra.mrb[0].mxu0 %v1545
      %v1635 = vpop.f32.mrb[0].mxu0
      %v1636 = vadd.f32 %v1513, %v1635
      %v1637 = vpop.f32.mrb[0].mxu0
      %1638 = vmatprep.mubr.f32.mxu0 0.0
      %1639 = vmatmul.mubr.f32.gmra.mrb[0].mxu0 %v1548
      %v1640 = vpop.f32.mrb[0].mxu0
      %v1641 = vadd.f32 %v1518, %v1640
      %v1642 = vpop.f32.mrb[0].mxu0
      %1643 = vmatprep.mubr.f32.mxu0 0.0
      %1644 = vmatmul.mubr.f32.gmra.mrb[0].mxu0 %v1551
      %v1645 = vpop.f32.mrb[0].mxu0
      %v1646 = vadd.f32 %v1523, %v1645
      %v1647 = vpop.f32.mrb[0].mxu0
      %1648 = vmatprep.mubr.f32.mxu0 0.0
      %1649 = vmatmul.mubr.f32.gmra.mrb[0].mxu0 %v1554
      %v1650 = vpop.f32.mrb[0].mxu0
      %v1651 = vadd.f32 %v1528, %v1650
      %v1652 = vpop.f32.mrb[0].mxu0
      %1653 = vmatprep.mubr.f32.mxu0 0.0
      %1654 = vmatmul.mubr.f32.gmra.mrb[0].mxu0 %v1557
      %v1655 = vpop.f32.mrb[0].mxu0
      %v1656 = vadd.f32 %v1533, %v1655
      %v1657 = vpop.f32.mrb[0].mxu0
      %1658 = vmatprep.mubr.f32.mxu0 0.0
      %1659 = vmatmul.mubr.f32.gmra.mrb[0].mxu0 %v1560
      %v1660 = vpop.f32.mrb[0].mxu0
      %v1661 = vadd.f32 %v1538, %v1660
      %v1662 = vpop.f32.mrb[0].mxu0
      %1663 = vdwg.mxu0
      %s1664 = scalar_lea.vmem %s7, 112
      %v1665 = vld [vmem:[%s1664] sm:$0xff]
      %v1666 = vld [vmem:[%s1664 + $0x8] sm:$0xff]
      %v1667 = vld [vmem:[%s1664 + $0x10] sm:$0xff]
      %v1668 = vld [vmem:[%s1664 + $0x18] sm:$0xff]
      %v1669 = vld [vmem:[%s1664 + $0x20] sm:$0xff]
      %v1670 = vld [vmem:[%s1664 + $0x28] sm:$0xff]
      %v1671 = vld [vmem:[%s1664 + $0x30] sm:$0x1]
      %1672 = vrot.lane.b32.xlu0 %v623, 120
      %v1673 = vpop.permute.xlu0 %1672
      %1674 = vrot.lane.b32.xlu0 %v624, 120
      %v1675 = vpop.permute.xlu0 %1674
      %1676 = vrot.lane.b32.xlu0 %v625, 120
      %v1677 = vpop.permute.xlu0 %1676
      %1678 = vrot.lane.b32.xlu0 %v626, 120
      %v1679 = vpop.permute.xlu0 %1678
      %1680 = vrot.lane.b32.xlu0 %v627, 120
      %v1681 = vpop.permute.xlu0 %1680
      %1682 = vrot.lane.b32.xlu0 %v628, 120
      %v1683 = vpop.permute.xlu0 %1682
      %1684 = vrot.lane.b32.xlu0 %v629, 120
      %v1685 = vpop.permute.xlu0 %1684
      %1686 = vrot.lane.b32.xlu0 %v580, 96
      %v1687 = vpop.permute.xlu0 %1686
      %1688 = vrot.lane.b32.xlu0 %v585, 96
      %v1689 = vpop.permute.xlu0 %1688
      %1690 = vrot.lane.b32.xlu0 %v590, 96
      %v1691 = vpop.permute.xlu0 %1690
      %1692 = vrot.lane.b32.xlu0 %v595, 96
      %v1693 = vpop.permute.xlu0 %1692
      %1694 = vrot.lane.b32.xlu0 %v600, 96
      %v1695 = vpop.permute.xlu0 %1694
      %1696 = vrot.lane.b32.xlu0 %v605, 96
      %v1697 = vpop.permute.xlu0 %1696
      %1698 = vrot.lane.b32.xlu0 %v610, 96
      %v1699 = vpop.permute.xlu0 %1698
      %v1700 = vsel %vm658, %v1673, 0
      %v1702 = vsel %vm658, %v1675, 0
      %v1704 = vsel %vm658, %v1677, 0
      %v1706 = vsel %vm658, %v1679, 0
      %v1708 = vsel %vm658, %v1681, 0
      %v1710 = vsel %vm658, %v1683, 0
      %v1712 = vsel %vm658, %v1685, 0
      %v1714 = vsel %vm658, %v1687, 0
      %v1716 = vsel %vm658, %v1689, 0
      %v1718 = vsel %vm658, %v1691, 0
      %v1720 = vsel %vm658, %v1693, 0
      %v1722 = vsel %vm658, %v1695, 0
      %v1724 = vsel %vm658, %v1697, 0
      %v1726 = vsel %vm658, %v1699, 0
      %1728 = vmatprep.subr.mxu0 0.0
      %1729 = vmatpush1.xpose.msra.mxu0 %v1714
      %1730 = vmatprep.subr.mxu0 0.0
      %1731 = vmatpush1.xpose.msra.mxu0 %v1716
      %1732 = vmatprep.subr.mxu0 0.0
      %1733 = vmatpush1.xpose.msra.mxu0 %v1718
      %1734 = vmatprep.subr.mxu0 0.0
      %1735 = vmatpush1.xpose.msra.mxu0 %v1720
      %1736 = vmatprep.subr.mxu0 0.0
      %1737 = vmatpush1.xpose.msra.mxu0 %v1722
      %1738 = vmatprep.subr.mxu0 0.0
      %1739 = vmatpush1.xpose.msra.mxu0 %v1724
      %1740 = vmatprep.subr.mxu0 0.0
      %1741 = vmatpush1.xpose.msra.mxu0 %v1726
      %1742 = vmatprep.subr.mxu0 0.0
      %1743 = vmatpush1.xpose.msra.mxu0 0.0
      %1744 = vmatprep.subr.mxu0 0.0
      %1745 = vmatpush1.xpose.msra.mxu0 0.0
      %1746 = vmatprep.subr.mxu0 0.0
      %1747 = vmatpush1.xpose.msra.mxu0 0.0
      %1748 = vmatprep.subr.mxu0 0.0
      %1749 = vmatpush1.xpose.msra.mxu0 0.0
      %1750 = vmatprep.subr.mxu0 0.0
      %1751 = vmatpush1.xpose.msra.mxu0 0.0
      %1752 = vmatprep.subr.mxu0 0.0
      %1753 = vmatpush1.xpose.msra.mxu0 0.0
      %1754 = vmatprep.subr.mxu0 0.0
      %1755 = vmatpush1.xpose.msra.mxu0 0.0
      %1756 = vmatprep.subr.mxu0 0.0
      %1757 = vmatpush1.xpose.msra.mxu0 0.0
      %1758 = vmatprep.subr.mxu0 0.0
      %1759 = vmatpush1.xpose.msra.mxu0 0.0
      %1760 = vmatprep.subr.mxu0 0.0
      %1761 = vmatpush1.xpose.msra.mxu0 0.0
      %1762 = vmatprep.subr.mxu0 0.0
      %1763 = vmatpush1.xpose.msra.mxu0 0.0
      %1764 = vmatprep.subr.mxu0 0.0
      %1765 = vmatpush1.xpose.msra.mxu0 0.0
      %1766 = vmatprep.subr.mxu0 0.0
      %1767 = vmatpush1.xpose.msra.mxu0 0.0
      %1768 = vmatprep.subr.mxu0 0.0
      %1769 = vmatpush1.xpose.msra.mxu0 0.0
      %1770 = vmatprep.subr.mxu0 0.0
      %1771 = vmatpush1.xpose.msra.mxu0 0.0
      %1772 = vmatprep.subr.mxu0 0.0
      %1773 = vmatpush1.xpose.msra.mxu0 0.0
      %1774 = vmatprep.subr.mxu0 0.0
      %1775 = vmatpush1.xpose.msra.mxu0 0.0
      %1776 = vmatprep.subr.mxu0 0.0
      %1777 = vmatpush1.xpose.msra.mxu0 0.0
      %1778 = vmatprep.subr.mxu0 0.0
      %1779 = vmatpush1.xpose.msra.mxu0 0.0
      %1780 = vmatprep.subr.mxu0 0.0
      %1781 = vmatpush1.xpose.msra.mxu0 0.0
      %1782 = vmatprep.subr.mxu0 0.0
      %1783 = vmatpush1.xpose.msra.mxu0 0.0
      %1784 = vmatprep.subr.mxu0 0.0
      %1785 = vmatpush1.xpose.msra.mxu0 0.0
      %1786 = vmatprep.subr.mxu0 0.0
      %1787 = vmatpush1.xpose.msra.mxu0 0.0
      %1788 = vmatprep.subr.mxu0 0.0
      %1789 = vmatpush1.xpose.msra.mxu0 0.0
      %1790 = vmatprep.subr.mxu0 0.0
      %1791 = vmatpush1.xpose.msra.mxu0 0.0
      %1792 = vmatprep.mubr.f32.mxu0 0.0
      %1793 = vmatmul.mubr.f32.gmra.mrb[0].mxu0 %v1700
      %v1794 = vpop.f32.mrb[0].mxu0
      %v1795 = vadd.f32 %v1665, %v1794
      %v1796 = vpop.f32.mrb[0].mxu0
      %1797 = vmatprep.mubr.f32.mxu0 0.0
      %1798 = vmatmul.mubr.f32.gmra.mrb[0].mxu0 %v1702
      %v1799 = vpop.f32.mrb[0].mxu0
      %v1800 = vadd.f32 %v1666, %v1799
      %v1801 = vpop.f32.mrb[0].mxu0
      %1802 = vmatprep.mubr.f32.mxu0 0.0
      %1803 = vmatmul.mubr.f32.gmra.mrb[0].mxu0 %v1704
      %v1804 = vpop.f32.mrb[0].mxu0
      %v1805 = vadd.f32 %v1667, %v1804
      %v1806 = vpop.f32.mrb[0].mxu0
      %1807 = vmatprep.mubr.f32.mxu0 0.0
      %1808 = vmatmul.mubr.f32.gmra.mrb[0].mxu0 %v1706
      %v1809 = vpop.f32.mrb[0].mxu0
      %v1810 = vadd.f32 %v1668, %v1809
      %v1811 = vpop.f32.mrb[0].mxu0
      %1812 = vmatprep.mubr.f32.mxu0 0.0
      %1813 = vmatmul.mubr.f32.gmra.mrb[0].mxu0 %v1708
      %v1814 = vpop.f32.mrb[0].mxu0
      %v1815 = vadd.f32 %v1669, %v1814
      %v1816 = vpop.f32.mrb[0].mxu0
      %1817 = vmatprep.mubr.f32.mxu0 0.0
      %1818 = vmatmul.mubr.f32.gmra.mrb[0].mxu0 %v1710
      %v1819 = vpop.f32.mrb[0].mxu0
      %v1820 = vadd.f32 %v1670, %v1819
      %v1821 = vpop.f32.mrb[0].mxu0
      %1822 = vmatprep.mubr.f32.mxu0 0.0
      %1823 = vmatmul.mubr.f32.gmra.mrb[0].mxu0 %v1712
      %v1824 = vpop.f32.mrb[0].mxu0
      %v1825 = vadd.f32 %v1671, %v1824
      %v1826 = vpop.f32.mrb[0].mxu0
      %1827 = vdwg.mxu0
      %v1828 = vadd.f32 %v1795, %v616
      %v1829 = vadd.f32 %v1800, %v617
      %v1830 = vadd.f32 %v1805, %v618
      %v1831 = vadd.f32 %v1810, %v619
      %v1832 = vadd.f32 %v1815, %v620
      %v1833 = vadd.f32 %v1820, %v621
      %v1834 = vadd.f32 %v1825, %v622
      %v1835 = vsel %vm801, %v1828, -inf
      %1836 = vmax.xlane.f32.xlu0 %v1835
      %v1837 = vpop.xlane.xlu0 %1836
      %v1838 = vsel %vm801, %v1829, -inf
      %1839 = vmax.xlane.f32.xlu0 %v1838
      %v1840 = vpop.xlane.xlu0 %1839
      %v1841 = vsel %vm801, %v1830, -inf
      %1842 = vmax.xlane.f32.xlu0 %v1841
      %v1843 = vpop.xlane.xlu0 %1842
      %v1844 = vsel %vm801, %v1831, -inf
      %1845 = vmax.xlane.f32.xlu0 %v1844
      %v1846 = vpop.xlane.xlu0 %1845
      %v1847 = vsel %vm801, %v1832, -inf
      %1848 = vmax.xlane.f32.xlu0 %v1847
      %v1849 = vpop.xlane.xlu0 %1848
      %v1850 = vsel %vm801, %v1833, -inf
      %1851 = vmax.xlane.f32.xlu0 %v1850
      %v1852 = vpop.xlane.xlu0 %1851
      %v1853 = vsel %vm820, %v1834, -inf
      %1854 = vmax.xlane.f32.xlu0 %v1853
      %v1855 = vpop.xlane.xlu0 %1854
      %v1856 = vsub.f32 %v1828, %v1837
      %v1857 = vsub.f32 %v1829, %v1840
      %v1858 = vsub.f32 %v1830, %v1843
      %v1859 = vsub.f32 %v1831, %v1846
      %v1860 = vsub.f32 %v1832, %v1849
      %v1861 = vsub.f32 %v1833, %v1852
      %v1862 = vsub.f32 %v1834, %v1855
      %v1863 = vmul.f32 %v1856, 1.442695
      %v1864 = vpow.pop %v1863
      %v1865 = vmul.f32 %v1857, 1.442695
      %v1866 = vpow.pop %v1865
      %v1867 = vmul.f32 %v1858, 1.442695
      %v1868 = vpow.pop %v1867
      %v1869 = vmul.f32 %v1859, 1.442695
      %v1870 = vpow.pop %v1869
      %v1871 = vmul.f32 %v1860, 1.442695
      %v1872 = vpow.pop %v1871
      %v1873 = vmul.f32 %v1861, 1.442695
      %v1874 = vpow.pop %v1873
      %v1875 = vmul.f32 %v1862, 1.442695
      %v1876 = vpow.pop %v1875
      %v1877 = vsel %vm801, %v1864, 0.0
      %1878 = vadd.xlane.f32.xlu0 %v1877
      %v1879 = vpop.xlane.xlu0 %1878
      %v1880 = vsel %vm801, %v1866, 0.0
      %1881 = vadd.xlane.f32.xlu0 %v1880
      %v1882 = vpop.xlane.xlu0 %1881
      %v1883 = vsel %vm801, %v1868, 0.0
      %1884 = vadd.xlane.f32.xlu0 %v1883
      %v1885 = vpop.xlane.xlu0 %1884
      %v1886 = vsel %vm801, %v1870, 0.0
      %1887 = vadd.xlane.f32.xlu0 %v1886
      %v1888 = vpop.xlane.xlu0 %1887
      %v1889 = vsel %vm801, %v1872, 0.0
      %1890 = vadd.xlane.f32.xlu0 %v1889
      %v1891 = vpop.xlane.xlu0 %1890
      %v1892 = vsel %vm801, %v1874, 0.0
      %1893 = vadd.xlane.f32.xlu0 %v1892
      %v1894 = vpop.xlane.xlu0 %1893
      %v1895 = vsel %vm820, %v1876, 0.0
      %1896 = vadd.xlane.f32.xlu0 %v1895
      %v1897 = vpop.xlane.xlu0 %1896
      %v1898 = vrcp.pop %v1879
      %v1899 = vmul.f32 %v1864, %v1898
      %v1900 = vrcp.pop %v1882
      %v1901 = vmul.f32 %v1866, %v1900
      %v1902 = vrcp.pop %v1885
      %v1903 = vmul.f32 %v1868, %v1902
      %v1904 = vrcp.pop %v1888
      %v1905 = vmul.f32 %v1870, %v1904
      %v1906 = vrcp.pop %v1891
      %v1907 = vmul.f32 %v1872, %v1906
      %v1908 = vrcp.pop %v1894
      %v1909 = vmul.f32 %v1874, %v1908
      %v1910 = vrcp.pop %v1897
      %v1911 = vmul.f32 %v1876, %v1910
      %1912 = vrot.lane.b32.xlu0 %v580, 72
      %v1913 = vpop.permute.xlu0 %1912
      %1914 = vrot.lane.b32.xlu0 %v585, 72
      %v1915 = vpop.permute.xlu0 %1914
      %1916 = vrot.lane.b32.xlu0 %v590, 72
      %v1917 = vpop.permute.xlu0 %1916
      %1918 = vrot.lane.b32.xlu0 %v595, 72
      %v1919 = vpop.permute.xlu0 %1918
      %1920 = vrot.lane.b32.xlu0 %v600, 72
      %v1921 = vpop.permute.xlu0 %1920
      %1922 = vrot.lane.b32.xlu0 %v605, 72
      %v1923 = vpop.permute.xlu0 %1922
      %1924 = vrot.lane.b32.xlu0 %v610, 72
      %v1925 = vpop.permute.xlu0 %1924
      %v1933 = vsel %vm801, %v1899, 0
      %v1936 = vsel %vm801, %v1901, 0
      %v1939 = vsel %vm801, %v1903, 0
      %v1942 = vsel %vm801, %v1905, 0
      %v1945 = vsel %vm801, %v1907, 0
      %v1948 = vsel %vm801, %v1909, 0
      %v1951 = vsel %vm801, %v1911, 0
      %v1953 = vsel %vm921, %v1925, 0
      %1955 = vmatprep.subr.mxu0 0.0
      %1956 = vmatpush1.msra.mxu0 %v1913
      %1957 = vmatprep.subr.mxu0 0.0
      %1958 = vmatpush1.msra.mxu0 %v1915
      %1959 = vmatprep.subr.mxu0 0.0
      %1960 = vmatpush1.msra.mxu0 %v1917
      %1961 = vmatprep.subr.mxu0 0.0
      %1962 = vmatpush1.msra.mxu0 %v1919
      %1963 = vmatprep.subr.mxu0 0.0
      %1964 = vmatpush1.msra.mxu0 %v1921
      %1965 = vmatprep.subr.mxu0 0.0
      %1966 = vmatpush1.msra.mxu0 %v1923
      %1967 = vmatprep.subr.mxu0 0.0
      %1968 = vmatpush1.msra.mxu0 %v1953
      %1969 = vmatprep.subr.mxu0 0.0
      %1970 = vmatpush1.msra.mxu0 0.0
      %1971 = vmatprep.subr.mxu0 0.0
      %1972 = vmatpush1.msra.mxu0 0.0
      %1973 = vmatprep.subr.mxu0 0.0
      %1974 = vmatpush1.msra.mxu0 0.0
      %1975 = vmatprep.subr.mxu0 0.0
      %1976 = vmatpush1.msra.mxu0 0.0
      %1977 = vmatprep.subr.mxu0 0.0
      %1978 = vmatpush1.msra.mxu0 0.0
      %1979 = vmatprep.subr.mxu0 0.0
      %1980 = vmatpush1.msra.mxu0 0.0
      %1981 = vmatprep.subr.mxu0 0.0
      %1982 = vmatpush1.msra.mxu0 0.0
      %1983 = vmatprep.subr.mxu0 0.0
      %1984 = vmatpush1.msra.mxu0 0.0
      %1985 = vmatprep.subr.mxu0 0.0
      %1986 = vmatpush1.msra.mxu0 0.0
      %1987 = vmatprep.subr.mxu0 0.0
      %1988 = vmatpush1.msra.mxu0 0.0
      %1989 = vmatprep.subr.mxu0 0.0
      %1990 = vmatpush1.msra.mxu0 0.0
      %1991 = vmatprep.subr.mxu0 0.0
      %1992 = vmatpush1.msra.mxu0 0.0
      %1993 = vmatprep.subr.mxu0 0.0
      %1994 = vmatpush1.msra.mxu0 0.0
      %1995 = vmatprep.subr.mxu0 0.0
      %1996 = vmatpush1.msra.mxu0 0.0
      %1997 = vmatprep.subr.mxu0 0.0
      %1998 = vmatpush1.msra.mxu0 0.0
      %1999 = vmatprep.subr.mxu0 0.0
      %2000 = vmatpush1.msra.mxu0 0.0
      %2001 = vmatprep.subr.mxu0 0.0
      %2002 = vmatpush1.msra.mxu0 0.0
      %2003 = vmatprep.subr.mxu0 0.0
      %2004 = vmatpush1.msra.mxu0 0.0
      %2005 = vmatprep.subr.mxu0 0.0
      %2006 = vmatpush1.msra.mxu0 0.0
      %2007 = vmatprep.subr.mxu0 0.0
      %2008 = vmatpush1.msra.mxu0 0.0
      %2009 = vmatprep.subr.mxu0 0.0
      %2010 = vmatpush1.msra.mxu0 0.0
      %2011 = vmatprep.subr.mxu0 0.0
      %2012 = vmatpush1.msra.mxu0 0.0
      %2013 = vmatprep.subr.mxu0 0.0
      %2014 = vmatpush1.msra.mxu0 0.0
      %2015 = vmatprep.subr.mxu0 0.0
      %2016 = vmatpush1.msra.mxu0 0.0
      %2017 = vmatprep.subr.mxu0 0.0
      %2018 = vmatpush1.msra.mxu0 0.0
      %2019 = vmatprep.mubr.f32.mxu0 0.0
      %2020 = vmatmul.mubr.f32.gmra.mrb[0].mxu0 %v1933
      %v2021 = vpop.f32.mrb[0].mxu0
      %v2022 = vadd.f32 0.0, %v2021
      %v2023 = vpop.f32.mrb[0].mxu0
      %2024 = vmatprep.mubr.f32.mxu0 0.0
      %2025 = vmatmul.mubr.f32.gmra.mrb[0].mxu0 %v1936
      %v2026 = vpop.f32.mrb[0].mxu0
      %v2027 = vadd.f32 0.0, %v2026
      %v2028 = vpop.f32.mrb[0].mxu0
      %2029 = vmatprep.mubr.f32.mxu0 0.0
      %2030 = vmatmul.mubr.f32.gmra.mrb[0].mxu0 %v1939
      %v2031 = vpop.f32.mrb[0].mxu0
      %v2032 = vadd.f32 0.0, %v2031
      %v2033 = vpop.f32.mrb[0].mxu0
      %2034 = vmatprep.mubr.f32.mxu0 0.0
      %2035 = vmatmul.mubr.f32.gmra.mrb[0].mxu0 %v1942
      %v2036 = vpop.f32.mrb[0].mxu0
      %v2037 = vadd.f32 0.0, %v2036
      %v2038 = vpop.f32.mrb[0].mxu0
      %2039 = vmatprep.mubr.f32.mxu0 0.0
      %2040 = vmatmul.mubr.f32.gmra.mrb[0].mxu0 %v1945
      %v2041 = vpop.f32.mrb[0].mxu0
      %v2042 = vadd.f32 0.0, %v2041
      %v2043 = vpop.f32.mrb[0].mxu0
      %2044 = vmatprep.mubr.f32.mxu0 0.0
      %2045 = vmatmul.mubr.f32.gmra.mrb[0].mxu0 %v1948
      %v2046 = vpop.f32.mrb[0].mxu0
      %v2047 = vadd.f32 0.0, %v2046
      %v2048 = vpop.f32.mrb[0].mxu0
      %2049 = vmatprep.mubr.f32.mxu0 0.0
      %2050 = vmatmul.mubr.f32.gmra.mrb[0].mxu0 %v1951
      %v2051 = vpop.f32.mrb[0].mxu0
      %v2052 = vadd.f32 0.0, %v2051
      %v2053 = vpop.f32.mrb[0].mxu0
      %2054 = vdwg.mxu0
      %v2056 = vsel %vm658, %v2022, 0
      %v2059 = vsel %vm658, %v2027, 0
      %v2062 = vsel %vm658, %v2032, 0
      %v2065 = vsel %vm658, %v2037, 0
      %v2068 = vsel %vm658, %v2042, 0
      %v2071 = vsel %vm658, %v2047, 0
      %v2074 = vsel %vm658, %v2052, 0
      %v2077 = vsel %vm1438, %v614, 0
      %2079 = vmatprep.subr.mxu0 0.0
      %2080 = vmatpush1.msra.mxu0 %v2077
      %2081 = vmatprep.subr.mxu0 0.0
      %2082 = vmatpush1.msra.mxu0 0.0
      %2083 = vmatprep.subr.mxu0 0.0
      %2084 = vmatpush1.msra.mxu0 0.0
      %2085 = vmatprep.subr.mxu0 0.0
      %2086 = vmatpush1.msra.mxu0 0.0
      %2087 = vmatprep.subr.mxu0 0.0
      %2088 = vmatpush1.msra.mxu0 0.0
      %2089 = vmatprep.subr.mxu0 0.0
      %2090 = vmatpush1.msra.mxu0 0.0
      %2091 = vmatprep.subr.mxu0 0.0
      %2092 = vmatpush1.msra.mxu0 0.0
      %2093 = vmatprep.subr.mxu0 0.0
      %2094 = vmatpush1.msra.mxu0 0.0
      %2095 = vmatprep.subr.mxu0 0.0
      %2096 = vmatpush1.msra.mxu0 0.0
      %2097 = vmatprep.subr.mxu0 0.0
      %2098 = vmatpush1.msra.mxu0 0.0
      %2099 = vmatprep.subr.mxu0 0.0
      %2100 = vmatpush1.msra.mxu0 0.0
      %2101 = vmatprep.subr.mxu0 0.0
      %2102 = vmatpush1.msra.mxu0 0.0
      %2103 = vmatprep.subr.mxu0 0.0
      %2104 = vmatpush1.msra.mxu0 0.0
      %2105 = vmatprep.subr.mxu0 0.0
      %2106 = vmatpush1.msra.mxu0 0.0
      %2107 = vmatprep.subr.mxu0 0.0
      %2108 = vmatpush1.msra.mxu0 0.0
      %2109 = vmatprep.subr.mxu0 0.0
      %2110 = vmatpush1.msra.mxu0 0.0
      %2111 = vmatprep.subr.mxu0 0.0
      %2112 = vmatpush1.msra.mxu0 0.0
      %2113 = vmatprep.subr.mxu0 0.0
      %2114 = vmatpush1.msra.mxu0 0.0
      %2115 = vmatprep.subr.mxu0 0.0
      %2116 = vmatpush1.msra.mxu0 0.0
      %2117 = vmatprep.subr.mxu0 0.0
      %2118 = vmatpush1.msra.mxu0 0.0
      %2119 = vmatprep.subr.mxu0 0.0
      %2120 = vmatpush1.msra.mxu0 0.0
      %2121 = vmatprep.subr.mxu0 0.0
      %2122 = vmatpush1.msra.mxu0 0.0
      %2123 = vmatprep.subr.mxu0 0.0
      %2124 = vmatpush1.msra.mxu0 0.0
      %2125 = vmatprep.subr.mxu0 0.0
      %2126 = vmatpush1.msra.mxu0 0.0
      %2127 = vmatprep.subr.mxu0 0.0
      %2128 = vmatpush1.msra.mxu0 0.0
      %2129 = vmatprep.subr.mxu0 0.0
      %2130 = vmatpush1.msra.mxu0 0.0
      %2131 = vmatprep.subr.mxu0 0.0
      %2132 = vmatpush1.msra.mxu0 0.0
      %2133 = vmatprep.subr.mxu0 0.0
      %2134 = vmatpush1.msra.mxu0 0.0
      %2135 = vmatprep.subr.mxu0 0.0
      %2136 = vmatpush1.msra.mxu0 0.0
      %2137 = vmatprep.subr.mxu0 0.0
      %2138 = vmatpush1.msra.mxu0 0.0
      %2139 = vmatprep.subr.mxu0 0.0
      %2140 = vmatpush1.msra.mxu0 0.0
      %2141 = vmatprep.subr.mxu0 0.0
      %2142 = vmatpush1.msra.mxu0 0.0
      %2143 = vmatprep.mubr.f32.mxu0 0.0
      %2144 = vmatmul.mubr.f32.gmra.mrb[0].mxu0 %v2056
      %v2145 = vpop.f32.mrb[0].mxu0
      %v2146 = vadd.f32 0.0, %v2145
      %v2147 = vpop.f32.mrb[0].mxu0
      %2148 = vmatprep.mubr.f32.mxu0 0.0
      %2149 = vmatmul.mubr.f32.gmra.mrb[0].mxu0 %v2059
      %v2150 = vpop.f32.mrb[0].mxu0
      %v2151 = vadd.f32 0.0, %v2150
      %v2152 = vpop.f32.mrb[0].mxu0
      %2153 = vmatprep.mubr.f32.mxu0 0.0
      %2154 = vmatmul.mubr.f32.gmra.mrb[0].mxu0 %v2062
      %v2155 = vpop.f32.mrb[0].mxu0
      %v2156 = vadd.f32 0.0, %v2155
      %v2157 = vpop.f32.mrb[0].mxu0
      %2158 = vmatprep.mubr.f32.mxu0 0.0
      %2159 = vmatmul.mubr.f32.gmra.mrb[0].mxu0 %v2065
      %v2160 = vpop.f32.mrb[0].mxu0
      %v2161 = vadd.f32 0.0, %v2160
      %v2162 = vpop.f32.mrb[0].mxu0
      %2163 = vmatprep.mubr.f32.mxu0 0.0
      %2164 = vmatmul.mubr.f32.gmra.mrb[0].mxu0 %v2068
      %v2165 = vpop.f32.mrb[0].mxu0
      %v2166 = vadd.f32 0.0, %v2165
      %v2167 = vpop.f32.mrb[0].mxu0
      %2168 = vmatprep.mubr.f32.mxu0 0.0
      %2169 = vmatmul.mubr.f32.gmra.mrb[0].mxu0 %v2071
      %v2170 = vpop.f32.mrb[0].mxu0
      %v2171 = vadd.f32 0.0, %v2170
      %v2172 = vpop.f32.mrb[0].mxu0
      %2173 = vmatprep.mubr.f32.mxu0 0.0
      %2174 = vmatmul.mubr.f32.gmra.mrb[0].mxu0 %v2074
      %v2175 = vpop.f32.mrb[0].mxu0
      %v2176 = vadd.f32 0.0, %v2175
      %v2177 = vpop.f32.mrb[0].mxu0
      %2178 = vdwg.mxu0
      %v2179 = vadd.f32 %v1631, %v2146
      %v2180 = vadd.f32 %v1636, %v2151
      %v2181 = vadd.f32 %v1641, %v2156
      %v2182 = vadd.f32 %v1646, %v2161
      %v2183 = vadd.f32 %v1651, %v2166
      %v2184 = vadd.f32 %v1656, %v2171
      %v2185 = vadd.f32 %v1661, %v2176
      %s2186 = scalar_lea.vmem %s7, 168
      %v2187 = vld [vmem:[%s2186] sm:$0xff]
      %v2188 = vld [vmem:[%s2186 + $0x8] sm:$0xff]
      %v2189 = vld [vmem:[%s2186 + $0x10] sm:$0xff]
      %v2190 = vld [vmem:[%s2186 + $0x18] sm:$0xff]
      %v2191 = vld [vmem:[%s2186 + $0x20] sm:$0xff]
      %v2192 = vld [vmem:[%s2186 + $0x28] sm:$0xff]
      %v2193 = vld [vmem:[%s2186 + $0x30] sm:$0x1]
      %2194 = vrot.lane.b32.xlu0 %v623, 116
      %v2195 = vpop.permute.xlu0 %2194
      %2196 = vrot.lane.b32.xlu0 %v624, 116
      %v2197 = vpop.permute.xlu0 %2196
      %2198 = vrot.lane.b32.xlu0 %v625, 116
      %v2199 = vpop.permute.xlu0 %2198
      %2200 = vrot.lane.b32.xlu0 %v626, 116
      %v2201 = vpop.permute.xlu0 %2200
      %2202 = vrot.lane.b32.xlu0 %v627, 116
      %v2203 = vpop.permute.xlu0 %2202
      %2204 = vrot.lane.b32.xlu0 %v628, 116
      %v2205 = vpop.permute.xlu0 %2204
      %2206 = vrot.lane.b32.xlu0 %v629, 116
      %v2207 = vpop.permute.xlu0 %2206
      %2208 = vrot.lane.b32.xlu0 %v580, 92
      %v2209 = vpop.permute.xlu0 %2208
      %2210 = vrot.lane.b32.xlu0 %v585, 92
      %v2211 = vpop.permute.xlu0 %2210
      %2212 = vrot.lane.b32.xlu0 %v590, 92
      %v2213 = vpop.permute.xlu0 %2212
      %2214 = vrot.lane.b32.xlu0 %v595, 92
      %v2215 = vpop.permute.xlu0 %2214
      %2216 = vrot.lane.b32.xlu0 %v600, 92
      %v2217 = vpop.permute.xlu0 %2216
      %2218 = vrot.lane.b32.xlu0 %v605, 92
      %v2219 = vpop.permute.xlu0 %2218
      %2220 = vrot.lane.b32.xlu0 %v610, 92
      %v2221 = vpop.permute.xlu0 %2220
      %v2222 = vsel %vm658, %v2195, 0
      %v2224 = vsel %vm658, %v2197, 0
      %v2226 = vsel %vm658, %v2199, 0
      %v2228 = vsel %vm658, %v2201, 0
      %v2230 = vsel %vm658, %v2203, 0
      %v2232 = vsel %vm658, %v2205, 0
      %v2234 = vsel %vm658, %v2207, 0
      %v2236 = vsel %vm658, %v2209, 0
      %v2238 = vsel %vm658, %v2211, 0
      %v2240 = vsel %vm658, %v2213, 0
      %v2242 = vsel %vm658, %v2215, 0
      %v2244 = vsel %vm658, %v2217, 0
      %v2246 = vsel %vm658, %v2219, 0
      %v2248 = vsel %vm658, %v2221, 0
      %2250 = vmatprep.subr.mxu0 0.0
      %2251 = vmatpush1.xpose.msra.mxu0 %v2236
      %2252 = vmatprep.subr.mxu0 0.0
      %2253 = vmatpush1.xpose.msra.mxu0 %v2238
      %2254 = vmatprep.subr.mxu0 0.0
      %2255 = vmatpush1.xpose.msra.mxu0 %v2240
      %2256 = vmatprep.subr.mxu0 0.0
      %2257 = vmatpush1.xpose.msra.mxu0 %v2242
      %2258 = vmatprep.subr.mxu0 0.0
      %2259 = vmatpush1.xpose.msra.mxu0 %v2244
      %2260 = vmatprep.subr.mxu0 0.0
      %2261 = vmatpush1.xpose.msra.mxu0 %v2246
      %2262 = vmatprep.subr.mxu0 0.0
      %2263 = vmatpush1.xpose.msra.mxu0 %v2248
      %2264 = vmatprep.subr.mxu0 0.0
      %2265 = vmatpush1.xpose.msra.mxu0 0.0
      %2266 = vmatprep.subr.mxu0 0.0
      %2267 = vmatpush1.xpose.msra.mxu0 0.0
      %2268 = vmatprep.subr.mxu0 0.0
      %2269 = vmatpush1.xpose.msra.mxu0 0.0
      %2270 = vmatprep.subr.mxu0 0.0
      %2271 = vmatpush1.xpose.msra.mxu0 0.0
      %2272 = vmatprep.subr.mxu0 0.0
      %2273 = vmatpush1.xpose.msra.mxu0 0.0
      %2274 = vmatprep.subr.mxu0 0.0
      %2275 = vmatpush1.xpose.msra.mxu0 0.0
      %2276 = vmatprep.subr.mxu0 0.0
      %2277 = vmatpush1.xpose.msra.mxu0 0.0
      %2278 = vmatprep.subr.mxu0 0.0
      %2279 = vmatpush1.xpose.msra.mxu0 0.0
      %2280 = vmatprep.subr.mxu0 0.0
      %2281 = vmatpush1.xpose.msra.mxu0 0.0
      %2282 = vmatprep.subr.mxu0 0.0
      %2283 = vmatpush1.xpose.msra.mxu0 0.0
      %2284 = vmatprep.subr.mxu0 0.0
      %2285 = vmatpush1.xpose.msra.mxu0 0.0
      %2286 = vmatprep.subr.mxu0 0.0
      %2287 = vmatpush1.xpose.msra.mxu0 0.0
      %2288 = vmatprep.subr.mxu0 0.0
      %2289 = vmatpush1.xpose.msra.mxu0 0.0
      %2290 = vmatprep.subr.mxu0 0.0
      %2291 = vmatpush1.xpose.msra.mxu0 0.0
      %2292 = vmatprep.subr.mxu0 0.0
      %2293 = vmatpush1.xpose.msra.mxu0 0.0
      %2294 = vmatprep.subr.mxu0 0.0
      %2295 = vmatpush1.xpose.msra.mxu0 0.0
      %2296 = vmatprep.subr.mxu0 0.0
      %2297 = vmatpush1.xpose.msra.mxu0 0.0
      %2298 = vmatprep.subr.mxu0 0.0
      %2299 = vmatpush1.xpose.msra.mxu0 0.0
      %2300 = vmatprep.subr.mxu0 0.0
      %2301 = vmatpush1.xpose.msra.mxu0 0.0
      %2302 = vmatprep.subr.mxu0 0.0
      %2303 = vmatpush1.xpose.msra.mxu0 0.0
      %2304 = vmatprep.subr.mxu0 0.0
      %2305 = vmatpush1.xpose.msra.mxu0 0.0
      %2306 = vmatprep.subr.mxu0 0.0
      %2307 = vmatpush1.xpose.msra.mxu0 0.0
      %2308 = vmatprep.subr.mxu0 0.0
      %2309 = vmatpush1.xpose.msra.mxu0 0.0
      %2310 = vmatprep.subr.mxu0 0.0
      %2311 = vmatpush1.xpose.msra.mxu0 0.0
      %2312 = vmatprep.subr.mxu0 0.0
      %2313 = vmatpush1.xpose.msra.mxu0 0.0
      %2314 = vmatprep.mubr.f32.mxu0 0.0
      %2315 = vmatmul.mubr.f32.gmra.mrb[0].mxu0 %v2222
      %v2316 = vpop.f32.mrb[0].mxu0
      %v2317 = vadd.f32 %v2187, %v2316
      %v2318 = vpop.f32.mrb[0].mxu0
      %2319 = vmatprep.mubr.f32.mxu0 0.0
      %2320 = vmatmul.mubr.f32.gmra.mrb[0].mxu0 %v2224
      %v2321 = vpop.f32.mrb[0].mxu0
      %v2322 = vadd.f32 %v2188, %v2321
      %v2323 = vpop.f32.mrb[0].mxu0
      %2324 = vmatprep.mubr.f32.mxu0 0.0
      %2325 = vmatmul.mubr.f32.gmra.mrb[0].mxu0 %v2226
      %v2326 = vpop.f32.mrb[0].mxu0
      %v2327 = vadd.f32 %v2189, %v2326
      %v2328 = vpop.f32.mrb[0].mxu0
      %2329 = vmatprep.mubr.f32.mxu0 0.0
      %2330 = vmatmul.mubr.f32.gmra.mrb[0].mxu0 %v2228
      %v2331 = vpop.f32.mrb[0].mxu0
      %v2332 = vadd.f32 %v2190, %v2331
      %v2333 = vpop.f32.mrb[0].mxu0
      %2334 = vmatprep.mubr.f32.mxu0 0.0
      %2335 = vmatmul.mubr.f32.gmra.mrb[0].mxu0 %v2230
      %v2336 = vpop.f32.mrb[0].mxu0
      %v2337 = vadd.f32 %v2191, %v2336
      %v2338 = vpop.f32.mrb[0].mxu0
      %2339 = vmatprep.mubr.f32.mxu0 0.0
      %2340 = vmatmul.mubr.f32.gmra.mrb[0].mxu0 %v2232
      %v2341 = vpop.f32.mrb[0].mxu0
      %v2342 = vadd.f32 %v2192, %v2341
      %v2343 = vpop.f32.mrb[0].mxu0
      %2344 = vmatprep.mubr.f32.mxu0 0.0
      %2345 = vmatmul.mubr.f32.gmra.mrb[0].mxu0 %v2234
      %v2346 = vpop.f32.mrb[0].mxu0
      %v2347 = vadd.f32 %v2193, %v2346
      %v2348 = vpop.f32.mrb[0].mxu0
      %2349 = vdwg.mxu0
      %v2350 = vadd.f32 %v2317, %v616
      %v2351 = vadd.f32 %v2322, %v617
      %v2352 = vadd.f32 %v2327, %v618
      %v2353 = vadd.f32 %v2332, %v619
      %v2354 = vadd.f32 %v2337, %v620
      %v2355 = vadd.f32 %v2342, %v621
      %v2356 = vadd.f32 %v2347, %v622
      %v2357 = vsel %vm801, %v2350, -inf
      %2358 = vmax.xlane.f32.xlu0 %v2357
      %v2359 = vpop.xlane.xlu0 %2358
      %v2360 = vsel %vm801, %v2351, -inf
      %2361 = vmax.xlane.f32.xlu0 %v2360
      %v2362 = vpop.xlane.xlu0 %2361
      %v2363 = vsel %vm801, %v2352, -inf
      %2364 = vmax.xlane.f32.xlu0 %v2363
      %v2365 = vpop.xlane.xlu0 %2364
      %v2366 = vsel %vm801, %v2353, -inf
      %2367 = vmax.xlane.f32.xlu0 %v2366
      %v2368 = vpop.xlane.xlu0 %2367
      %v2369 = vsel %vm801, %v2354, -inf
      %2370 = vmax.xlane.f32.xlu0 %v2369
      %v2371 = vpop.xlane.xlu0 %2370
      %v2372 = vsel %vm801, %v2355, -inf
      %2373 = vmax.xlane.f32.xlu0 %v2372
      %v2374 = vpop.xlane.xlu0 %2373
      %v2375 = vsel %vm820, %v2356, -inf
      %2376 = vmax.xlane.f32.xlu0 %v2375
      %v2377 = vpop.xlane.xlu0 %2376
      %v2378 = vsub.f32 %v2350, %v2359
      %v2379 = vsub.f32 %v2351, %v2362
      %v2380 = vsub.f32 %v2352, %v2365
      %v2381 = vsub.f32 %v2353, %v2368
      %v2382 = vsub.f32 %v2354, %v2371
      %v2383 = vsub.f32 %v2355, %v2374
      %v2384 = vsub.f32 %v2356, %v2377
      %v2385 = vmul.f32 %v2378, 1.442695
      %v2386 = vpow.pop %v2385
      %v2387 = vmul.f32 %v2379, 1.442695
      %v2388 = vpow.pop %v2387
      %v2389 = vmul.f32 %v2380, 1.442695
      %v2390 = vpow.pop %v2389
      %v2391 = vmul.f32 %v2381, 1.442695
      %v2392 = vpow.pop %v2391
      %v2393 = vmul.f32 %v2382, 1.442695
      %v2394 = vpow.pop %v2393
      %v2395 = vmul.f32 %v2383, 1.442695
      %v2396 = vpow.pop %v2395
      %v2397 = vmul.f32 %v2384, 1.442695
      %v2398 = vpow.pop %v2397
      %v2399 = vsel %vm801, %v2386, 0.0
      %2400 = vadd.xlane.f32.xlu0 %v2399
      %v2401 = vpop.xlane.xlu0 %2400
      %v2402 = vsel %vm801, %v2388, 0.0
      %2403 = vadd.xlane.f32.xlu0 %v2402
      %v2404 = vpop.xlane.xlu0 %2403
      %v2405 = vsel %vm801, %v2390, 0.0
      %2406 = vadd.xlane.f32.xlu0 %v2405
      %v2407 = vpop.xlane.xlu0 %2406
      %v2408 = vsel %vm801, %v2392, 0.0
      %2409 = vadd.xlane.f32.xlu0 %v2408
      %v2410 = vpop.xlane.xlu0 %2409
      %v2411 = vsel %vm801, %v2394, 0.0
      %2412 = vadd.xlane.f32.xlu0 %v2411
      %v2413 = vpop.xlane.xlu0 %2412
      %v2414 = vsel %vm801, %v2396, 0.0
      %2415 = vadd.xlane.f32.xlu0 %v2414
      %v2416 = vpop.xlane.xlu0 %2415
      %v2417 = vsel %vm820, %v2398, 0.0
      %2418 = vadd.xlane.f32.xlu0 %v2417
      %v2419 = vpop.xlane.xlu0 %2418
      %v2420 = vrcp.pop %v2401
      %v2421 = vmul.f32 %v2386, %v2420
      %v2422 = vrcp.pop %v2404
      %v2423 = vmul.f32 %v2388, %v2422
      %v2424 = vrcp.pop %v2407
      %v2425 = vmul.f32 %v2390, %v2424
      %v2426 = vrcp.pop %v2410
      %v2427 = vmul.f32 %v2392, %v2426
      %v2428 = vrcp.pop %v2413
      %v2429 = vmul.f32 %v2394, %v2428
      %v2430 = vrcp.pop %v2416
      %v2431 = vmul.f32 %v2396, %v2430
      %v2432 = vrcp.pop %v2419
      %v2433 = vmul.f32 %v2398, %v2432
      %2434 = vrot.lane.b32.xlu0 %v580, 68
      %v2435 = vpop.permute.xlu0 %2434
      %2436 = vrot.lane.b32.xlu0 %v585, 68
      %v2437 = vpop.permute.xlu0 %2436
      %2438 = vrot.lane.b32.xlu0 %v590, 68
      %v2439 = vpop.permute.xlu0 %2438
      %2440 = vrot.lane.b32.xlu0 %v595, 68
      %v2441 = vpop.permute.xlu0 %2440
      %2442 = vrot.lane.b32.xlu0 %v600, 68
      %v2443 = vpop.permute.xlu0 %2442
      %2444 = vrot.lane.b32.xlu0 %v605, 68
      %v2445 = vpop.permute.xlu0 %2444
      %2446 = vrot.lane.b32.xlu0 %v610, 68
      %v2447 = vpop.permute.xlu0 %2446
      %v2455 = vsel %vm801, %v2421, 0
      %v2458 = vsel %vm801, %v2423, 0
      %v2461 = vsel %vm801, %v2425, 0
      %v2464 = vsel %vm801, %v2427, 0
      %v2467 = vsel %vm801, %v2429, 0
      %v2470 = vsel %vm801, %v2431, 0
      %v2473 = vsel %vm801, %v2433, 0
      %v2475 = vsel %vm921, %v2447, 0
      %2477 = vmatprep.subr.mxu0 0.0
      %2478 = vmatpush1.msra.mxu0 %v2435
      %2479 = vmatprep.subr.mxu0 0.0
      %2480 = vmatpush1.msra.mxu0 %v2437
      %2481 = vmatprep.subr.mxu0 0.0
      %2482 = vmatpush1.msra.mxu0 %v2439
      %2483 = vmatprep.subr.mxu0 0.0
      %2484 = vmatpush1.msra.mxu0 %v2441
      %2485 = vmatprep.subr.mxu0 0.0
      %2486 = vmatpush1.msra.mxu0 %v2443
      %2487 = vmatprep.subr.mxu0 0.0
      %2488 = vmatpush1.msra.mxu0 %v2445
      %2489 = vmatprep.subr.mxu0 0.0
      %2490 = vmatpush1.msra.mxu0 %v2475
      %2491 = vmatprep.subr.mxu0 0.0
      %2492 = vmatpush1.msra.mxu0 0.0
      %2493 = vmatprep.subr.mxu0 0.0
      %2494 = vmatpush1.msra.mxu0 0.0
      %2495 = vmatprep.subr.mxu0 0.0
      %2496 = vmatpush1.msra.mxu0 0.0
      %2497 = vmatprep.subr.mxu0 0.0
      %2498 = vmatpush1.msra.mxu0 0.0
      %2499 = vmatprep.subr.mxu0 0.0
      %2500 = vmatpush1.msra.mxu0 0.0
      %2501 = vmatprep.subr.mxu0 0.0
      %2502 = vmatpush1.msra.mxu0 0.0
      %2503 = vmatprep.subr.mxu0 0.0
      %2504 = vmatpush1.msra.mxu0 0.0
      %2505 = vmatprep.subr.mxu0 0.0
      %2506 = vmatpush1.msra.mxu0 0.0
      %2507 = vmatprep.subr.mxu0 0.0
      %2508 = vmatpush1.msra.mxu0 0.0
      %2509 = vmatprep.subr.mxu0 0.0
      %2510 = vmatpush1.msra.mxu0 0.0
      %2511 = vmatprep.subr.mxu0 0.0
      %2512 = vmatpush1.msra.mxu0 0.0
      %2513 = vmatprep.subr.mxu0 0.0
      %2514 = vmatpush1.msra.mxu0 0.0
      %2515 = vmatprep.subr.mxu0 0.0
      %2516 = vmatpush1.msra.mxu0 0.0
      %2517 = vmatprep.subr.mxu0 0.0
      %2518 = vmatpush1.msra.mxu0 0.0
      %2519 = vmatprep.subr.mxu0 0.0
      %2520 = vmatpush1.msra.mxu0 0.0
      %2521 = vmatprep.subr.mxu0 0.0
      %2522 = vmatpush1.msra.mxu0 0.0
      %2523 = vmatprep.subr.mxu0 0.0
      %2524 = vmatpush1.msra.mxu0 0.0
      %2525 = vmatprep.subr.mxu0 0.0
      %2526 = vmatpush1.msra.mxu0 0.0
      %2527 = vmatprep.subr.mxu0 0.0
      %2528 = vmatpush1.msra.mxu0 0.0
      %2529 = vmatprep.subr.mxu0 0.0
      %2530 = vmatpush1.msra.mxu0 0.0
      %2531 = vmatprep.subr.mxu0 0.0
      %2532 = vmatpush1.msra.mxu0 0.0
      %2533 = vmatprep.subr.mxu0 0.0
      %2534 = vmatpush1.msra.mxu0 0.0
      %2535 = vmatprep.subr.mxu0 0.0
      %2536 = vmatpush1.msra.mxu0 0.0
      %2537 = vmatprep.subr.mxu0 0.0
      %2538 = vmatpush1.msra.mxu0 0.0
      %2539 = vmatprep.subr.mxu0 0.0
      %2540 = vmatpush1.msra.mxu0 0.0
      %2541 = vmatprep.mubr.f32.mxu0 0.0
      %2542 = vmatmul.mubr.f32.gmra.mrb[0].mxu0 %v2455
      %v2543 = vpop.f32.mrb[0].mxu0
      %v2544 = vadd.f32 0.0, %v2543
      %v2545 = vpop.f32.mrb[0].mxu0
      %2546 = vmatprep.mubr.f32.mxu0 0.0
      %2547 = vmatmul.mubr.f32.gmra.mrb[0].mxu0 %v2458
      %v2548 = vpop.f32.mrb[0].mxu0
      %v2549 = vadd.f32 0.0, %v2548
      %v2550 = vpop.f32.mrb[0].mxu0
      %2551 = vmatprep.mubr.f32.mxu0 0.0
      %2552 = vmatmul.mubr.f32.gmra.mrb[0].mxu0 %v2461
      %v2553 = vpop.f32.mrb[0].mxu0
      %v2554 = vadd.f32 0.0, %v2553
      %v2555 = vpop.f32.mrb[0].mxu0
      %2556 = vmatprep.mubr.f32.mxu0 0.0
      %2557 = vmatmul.mubr.f32.gmra.mrb[0].mxu0 %v2464
      %v2558 = vpop.f32.mrb[0].mxu0
      %v2559 = vadd.f32 0.0, %v2558
      %v2560 = vpop.f32.mrb[0].mxu0
      %2561 = vmatprep.mubr.f32.mxu0 0.0
      %2562 = vmatmul.mubr.f32.gmra.mrb[0].mxu0 %v2467
      %v2563 = vpop.f32.mrb[0].mxu0
      %v2564 = vadd.f32 0.0, %v2563
      %v2565 = vpop.f32.mrb[0].mxu0
      %2566 = vmatprep.mubr.f32.mxu0 0.0
      %2567 = vmatmul.mubr.f32.gmra.mrb[0].mxu0 %v2470
      %v2568 = vpop.f32.mrb[0].mxu0
      %v2569 = vadd.f32 0.0, %v2568
      %v2570 = vpop.f32.mrb[0].mxu0
      %2571 = vmatprep.mubr.f32.mxu0 0.0
      %2572 = vmatmul.mubr.f32.gmra.mrb[0].mxu0 %v2473
      %v2573 = vpop.f32.mrb[0].mxu0
      %v2574 = vadd.f32 0.0, %v2573
      %v2575 = vpop.f32.mrb[0].mxu0
      %2576 = vdwg.mxu0
      %v2577 = vrot.slane %v614, 4
      %v2579 = vsel %vm658, %v2544, 0
      %v2582 = vsel %vm658, %v2549, 0
      %v2585 = vsel %vm658, %v2554, 0
      %v2588 = vsel %vm658, %v2559, 0
      %v2591 = vsel %vm658, %v2564, 0
      %v2594 = vsel %vm658, %v2569, 0
      %v2597 = vsel %vm658, %v2574, 0
      %v2599 = vsel %vm1438, %v2577, 0
      %2601 = vmatprep.subr.mxu0 0.0
      %2602 = vmatpush1.msra.mxu0 %v2599
      %2603 = vmatprep.subr.mxu0 0.0
      %2604 = vmatpush1.msra.mxu0 0.0
      %2605 = vmatprep.subr.mxu0 0.0
      %2606 = vmatpush1.msra.mxu0 0.0
      %2607 = vmatprep.subr.mxu0 0.0
      %2608 = vmatpush1.msra.mxu0 0.0
      %2609 = vmatprep.subr.mxu0 0.0
      %2610 = vmatpush1.msra.mxu0 0.0
      %2611 = vmatprep.subr.mxu0 0.0
      %2612 = vmatpush1.msra.mxu0 0.0
      %2613 = vmatprep.subr.mxu0 0.0
      %2614 = vmatpush1.msra.mxu0 0.0
      %2615 = vmatprep.subr.mxu0 0.0
      %2616 = vmatpush1.msra.mxu0 0.0
      %2617 = vmatprep.subr.mxu0 0.0
      %2618 = vmatpush1.msra.mxu0 0.0
      %2619 = vmatprep.subr.mxu0 0.0
      %2620 = vmatpush1.msra.mxu0 0.0
      %2621 = vmatprep.subr.mxu0 0.0
      %2622 = vmatpush1.msra.mxu0 0.0
      %2623 = vmatprep.subr.mxu0 0.0
      %2624 = vmatpush1.msra.mxu0 0.0
      %2625 = vmatprep.subr.mxu0 0.0
      %2626 = vmatpush1.msra.mxu0 0.0
      %2627 = vmatprep.subr.mxu0 0.0
      %2628 = vmatpush1.msra.mxu0 0.0
      %2629 = vmatprep.subr.mxu0 0.0
      %2630 = vmatpush1.msra.mxu0 0.0
      %2631 = vmatprep.subr.mxu0 0.0
      %2632 = vmatpush1.msra.mxu0 0.0
      %2633 = vmatprep.subr.mxu0 0.0
      %2634 = vmatpush1.msra.mxu0 0.0
      %2635 = vmatprep.subr.mxu0 0.0
      %2636 = vmatpush1.msra.mxu0 0.0
      %2637 = vmatprep.subr.mxu0 0.0
      %2638 = vmatpush1.msra.mxu0 0.0
      %2639 = vmatprep.subr.mxu0 0.0
      %2640 = vmatpush1.msra.mxu0 0.0
      %2641 = vmatprep.subr.mxu0 0.0
      %2642 = vmatpush1.msra.mxu0 0.0
      %2643 = vmatprep.subr.mxu0 0.0
      %2644 = vmatpush1.msra.mxu0 0.0
      %2645 = vmatprep.subr.mxu0 0.0
      %2646 = vmatpush1.msra.mxu0 0.0
      %2647 = vmatprep.subr.mxu0 0.0
      %2648 = vmatpush1.msra.mxu0 0.0
      %2649 = vmatprep.subr.mxu0 0.0
      %2650 = vmatpush1.msra.mxu0 0.0
      %2651 = vmatprep.subr.mxu0 0.0
      %2652 = vmatpush1.msra.mxu0 0.0
      %2653 = vmatprep.subr.mxu0 0.0
      %2654 = vmatpush1.msra.mxu0 0.0
      %2655 = vmatprep.subr.mxu0 0.0
      %2656 = vmatpush1.msra.mxu0 0.0
      %2657 = vmatprep.subr.mxu0 0.0
      %2658 = vmatpush1.msra.mxu0 0.0
      %2659 = vmatprep.subr.mxu0 0.0
      %2660 = vmatpush1.msra.mxu0 0.0
      %2661 = vmatprep.subr.mxu0 0.0
      %2662 = vmatpush1.msra.mxu0 0.0
      %2663 = vmatprep.subr.mxu0 0.0
      %2664 = vmatpush1.msra.mxu0 0.0
      %2665 = vmatprep.mubr.f32.mxu0 0.0
      %2666 = vmatmul.mubr.f32.gmra.mrb[0].mxu0 %v2579
      %v2667 = vpop.f32.mrb[0].mxu0
      %v2668 = vadd.f32 0.0, %v2667
      %v2669 = vpop.f32.mrb[0].mxu0
      %2670 = vmatprep.mubr.f32.mxu0 0.0
      %2671 = vmatmul.mubr.f32.gmra.mrb[0].mxu0 %v2582
      %v2672 = vpop.f32.mrb[0].mxu0
      %v2673 = vadd.f32 0.0, %v2672
      %v2674 = vpop.f32.mrb[0].mxu0
      %2675 = vmatprep.mubr.f32.mxu0 0.0
      %2676 = vmatmul.mubr.f32.gmra.mrb[0].mxu0 %v2585
      %v2677 = vpop.f32.mrb[0].mxu0
      %v2678 = vadd.f32 0.0, %v2677
      %v2679 = vpop.f32.mrb[0].mxu0
      %2680 = vmatprep.mubr.f32.mxu0 0.0
      %2681 = vmatmul.mubr.f32.gmra.mrb[0].mxu0 %v2588
      %v2682 = vpop.f32.mrb[0].mxu0
      %v2683 = vadd.f32 0.0, %v2682
      %v2684 = vpop.f32.mrb[0].mxu0
      %2685 = vmatprep.mubr.f32.mxu0 0.0
      %2686 = vmatmul.mubr.f32.gmra.mrb[0].mxu0 %v2591
      %v2687 = vpop.f32.mrb[0].mxu0
      %v2688 = vadd.f32 0.0, %v2687
      %v2689 = vpop.f32.mrb[0].mxu0
      %2690 = vmatprep.mubr.f32.mxu0 0.0
      %2691 = vmatmul.mubr.f32.gmra.mrb[0].mxu0 %v2594
      %v2692 = vpop.f32.mrb[0].mxu0
      %v2693 = vadd.f32 0.0, %v2692
      %v2694 = vpop.f32.mrb[0].mxu0
      %2695 = vmatprep.mubr.f32.mxu0 0.0
      %2696 = vmatmul.mubr.f32.gmra.mrb[0].mxu0 %v2597
      %v2697 = vpop.f32.mrb[0].mxu0
      %v2698 = vadd.f32 0.0, %v2697
      %v2699 = vpop.f32.mrb[0].mxu0
      %2700 = vdwg.mxu0
      %v2701 = vadd.f32 %v2179, %v2668
      %v2702 = vadd.f32 %v2180, %v2673
      %v2703 = vadd.f32 %v2181, %v2678
      %v2704 = vadd.f32 %v2182, %v2683
      %v2705 = vadd.f32 %v2183, %v2688
      %v2706 = vadd.f32 %v2184, %v2693
      %v2707 = vadd.f32 %v2185, %v2698
      %s2708 = scalar_lea.vmem %s7, 224
      %v2709 = vld [vmem:[%s2708] sm:$0xff]
      %v2710 = vld [vmem:[%s2708 + $0x8] sm:$0xff]
      %v2711 = vld [vmem:[%s2708 + $0x10] sm:$0xff]
      %v2712 = vld [vmem:[%s2708 + $0x18] sm:$0xff]
      %v2713 = vld [vmem:[%s2708 + $0x20] sm:$0xff]
      %v2714 = vld [vmem:[%s2708 + $0x28] sm:$0xff]
      %v2715 = vld [vmem:[%s2708 + $0x30] sm:$0x1]
      %2716 = vrot.lane.b32.xlu0 %v623, 112
      %v2717 = vpop.permute.xlu0 %2716
      %2718 = vrot.lane.b32.xlu0 %v624, 112
      %v2719 = vpop.permute.xlu0 %2718
      %2720 = vrot.lane.b32.xlu0 %v625, 112
      %v2721 = vpop.permute.xlu0 %2720
      %2722 = vrot.lane.b32.xlu0 %v626, 112
      %v2723 = vpop.permute.xlu0 %2722
      %2724 = vrot.lane.b32.xlu0 %v627, 112
      %v2725 = vpop.permute.xlu0 %2724
      %2726 = vrot.lane.b32.xlu0 %v628, 112
      %v2727 = vpop.permute.xlu0 %2726
      %2728 = vrot.lane.b32.xlu0 %v629, 112
      %v2729 = vpop.permute.xlu0 %2728
      %2730 = vrot.lane.b32.xlu0 %v580, 88
      %v2731 = vpop.permute.xlu0 %2730
      %2732 = vrot.lane.b32.xlu0 %v585, 88
      %v2733 = vpop.permute.xlu0 %2732
      %2734 = vrot.lane.b32.xlu0 %v590, 88
      %v2735 = vpop.permute.xlu0 %2734
      %2736 = vrot.lane.b32.xlu0 %v595, 88
      %v2737 = vpop.permute.xlu0 %2736
      %2738 = vrot.lane.b32.xlu0 %v600, 88
      %v2739 = vpop.permute.xlu0 %2738
      %2740 = vrot.lane.b32.xlu0 %v605, 88
      %v2741 = vpop.permute.xlu0 %2740
      %2742 = vrot.lane.b32.xlu0 %v610, 88
      %v2743 = vpop.permute.xlu0 %2742
      %v2744 = vsel %vm658, %v2717, 0
      %v2746 = vsel %vm658, %v2719, 0
      %v2748 = vsel %vm658, %v2721, 0
      %v2750 = vsel %vm658, %v2723, 0
      %v2752 = vsel %vm658, %v2725, 0
      %v2754 = vsel %vm658, %v2727, 0
      %v2756 = vsel %vm658, %v2729, 0
      %v2758 = vsel %vm658, %v2731, 0
      %v2760 = vsel %vm658, %v2733, 0
      %v2762 = vsel %vm658, %v2735, 0
      %v2764 = vsel %vm658, %v2737, 0
      %v2766 = vsel %vm658, %v2739, 0
      %v2768 = vsel %vm658, %v2741, 0
      %v2770 = vsel %vm658, %v2743, 0
      %2772 = vmatprep.subr.mxu0 0.0
      %2773 = vmatpush1.xpose.msra.mxu0 %v2758
      %2774 = vmatprep.subr.mxu0 0.0
      %2775 = vmatpush1.xpose.msra.mxu0 %v2760
      %2776 = vmatprep.subr.mxu0 0.0
      %2777 = vmatpush1.xpose.msra.mxu0 %v2762
      %2778 = vmatprep.subr.mxu0 0.0
      %2779 = vmatpush1.xpose.msra.mxu0 %v2764
      %2780 = vmatprep.subr.mxu0 0.0
      %2781 = vmatpush1.xpose.msra.mxu0 %v2766
      %2782 = vmatprep.subr.mxu0 0.0
      %2783 = vmatpush1.xpose.msra.mxu0 %v2768
      %2784 = vmatprep.subr.mxu0 0.0
      %2785 = vmatpush1.xpose.msra.mxu0 %v2770
      %2786 = vmatprep.subr.mxu0 0.0
      %2787 = vmatpush1.xpose.msra.mxu0 0.0
      %2788 = vmatprep.subr.mxu0 0.0
      %2789 = vmatpush1.xpose.msra.mxu0 0.0
      %2790 = vmatprep.subr.mxu0 0.0
      %2791 = vmatpush1.xpose.msra.mxu0 0.0
      %2792 = vmatprep.subr.mxu0 0.0
      %2793 = vmatpush1.xpose.msra.mxu0 0.0
      %2794 = vmatprep.subr.mxu0 0.0
      %2795 = vmatpush1.xpose.msra.mxu0 0.0
      %2796 = vmatprep.subr.mxu0 0.0
      %2797 = vmatpush1.xpose.msra.mxu0 0.0
      %2798 = vmatprep.subr.mxu0 0.0
      %2799 = vmatpush1.xpose.msra.mxu0 0.0
      %2800 = vmatprep.subr.mxu0 0.0
      %2801 = vmatpush1.xpose.msra.mxu0 0.0
      %2802 = vmatprep.subr.mxu0 0.0
      %2803 = vmatpush1.xpose.msra.mxu0 0.0
      %2804 = vmatprep.subr.mxu0 0.0
      %2805 = vmatpush1.xpose.msra.mxu0 0.0
      %2806 = vmatprep.subr.mxu0 0.0
      %2807 = vmatpush1.xpose.msra.mxu0 0.0
      %2808 = vmatprep.subr.mxu0 0.0
      %2809 = vmatpush1.xpose.msra.mxu0 0.0
      %2810 = vmatprep.subr.mxu0 0.0
      %2811 = vmatpush1.xpose.msra.mxu0 0.0
      %2812 = vmatprep.subr.mxu0 0.0
      %2813 = vmatpush1.xpose.msra.mxu0 0.0
      %2814 = vmatprep.subr.mxu0 0.0
      %2815 = vmatpush1.xpose.msra.mxu0 0.0
      %2816 = vmatprep.subr.mxu0 0.0
      %2817 = vmatpush1.xpose.msra.mxu0 0.0
      %2818 = vmatprep.subr.mxu0 0.0
      %2819 = vmatpush1.xpose.msra.mxu0 0.0
      %2820 = vmatprep.subr.mxu0 0.0
      %2821 = vmatpush1.xpose.msra.mxu0 0.0
      %2822 = vmatprep.subr.mxu0 0.0
      %2823 = vmatpush1.xpose.msra.mxu0 0.0
      %2824 = vmatprep.subr.mxu0 0.0
      %2825 = vmatpush1.xpose.msra.mxu0 0.0
      %2826 = vmatprep.subr.mxu0 0.0
      %2827 = vmatpush1.xpose.msra.mxu0 0.0
      %2828 = vmatprep.subr.mxu0 0.0
      %2829 = vmatpush1.xpose.msra.mxu0 0.0
      %2830 = vmatprep.subr.mxu0 0.0
      %2831 = vmatpush1.xpose.msra.mxu0 0.0
      %2832 = vmatprep.subr.mxu0 0.0
      %2833 = vmatpush1.xpose.msra.mxu0 0.0
      %2834 = vmatprep.subr.mxu0 0.0
      %2835 = vmatpush1.xpose.msra.mxu0 0.0
      %2836 = vmatprep.mubr.f32.mxu0 0.0
      %2837 = vmatmul.mubr.f32.gmra.mrb[0].mxu0 %v2744
      %v2838 = vpop.f32.mrb[0].mxu0
      %v2839 = vadd.f32 %v2709, %v2838
      %v2840 = vpop.f32.mrb[0].mxu0
      %2841 = vmatprep.mubr.f32.mxu0 0.0
      %2842 = vmatmul.mubr.f32.gmra.mrb[0].mxu0 %v2746
      %v2843 = vpop.f32.mrb[0].mxu0
      %v2844 = vadd.f32 %v2710, %v2843
      %v2845 = vpop.f32.mrb[0].mxu0
      %2846 = vmatprep.mubr.f32.mxu0 0.0
      %2847 = vmatmul.mubr.f32.gmra.mrb[0].mxu0 %v2748
      %v2848 = vpop.f32.mrb[0].mxu0
      %v2849 = vadd.f32 %v2711, %v2848
      %v2850 = vpop.f32.mrb[0].mxu0
      %2851 = vmatprep.mubr.f32.mxu0 0.0
      %2852 = vmatmul.mubr.f32.gmra.mrb[0].mxu0 %v2750
      %v2853 = vpop.f32.mrb[0].mxu0
      %v2854 = vadd.f32 %v2712, %v2853
      %v2855 = vpop.f32.mrb[0].mxu0
      %2856 = vmatprep.mubr.f32.mxu0 0.0
      %2857 = vmatmul.mubr.f32.gmra.mrb[0].mxu0 %v2752
      %v2858 = vpop.f32.mrb[0].mxu0
      %v2859 = vadd.f32 %v2713, %v2858
      %v2860 = vpop.f32.mrb[0].mxu0
      %2861 = vmatprep.mubr.f32.mxu0 0.0
      %2862 = vmatmul.mubr.f32.gmra.mrb[0].mxu0 %v2754
      %v2863 = vpop.f32.mrb[0].mxu0
      %v2864 = vadd.f32 %v2714, %v2863
      %v2865 = vpop.f32.mrb[0].mxu0
      %2866 = vmatprep.mubr.f32.mxu0 0.0
      %2867 = vmatmul.mubr.f32.gmra.mrb[0].mxu0 %v2756
      %v2868 = vpop.f32.mrb[0].mxu0
      %v2869 = vadd.f32 %v2715, %v2868
      %v2870 = vpop.f32.mrb[0].mxu0
      %2871 = vdwg.mxu0
      %v2872 = vadd.f32 %v2839, %v616
      %v2873 = vadd.f32 %v2844, %v617
      %v2874 = vadd.f32 %v2849, %v618
      %v2875 = vadd.f32 %v2854, %v619
      %v2876 = vadd.f32 %v2859, %v620
      %v2877 = vadd.f32 %v2864, %v621
      %v2878 = vadd.f32 %v2869, %v622
      %v2879 = vsel %vm801, %v2872, -inf
      %2880 = vmax.xlane.f32.xlu0 %v2879
      %v2881 = vpop.xlane.xlu0 %2880
      %v2882 = vsel %vm801, %v2873, -inf
      %2883 = vmax.xlane.f32.xlu0 %v2882
      %v2884 = vpop.xlane.xlu0 %2883
      %v2885 = vsel %vm801, %v2874, -inf
      %2886 = vmax.xlane.f32.xlu0 %v2885
      %v2887 = vpop.xlane.xlu0 %2886
      %v2888 = vsel %vm801, %v2875, -inf
      %2889 = vmax.xlane.f32.xlu0 %v2888
      %v2890 = vpop.xlane.xlu0 %2889
      %v2891 = vsel %vm801, %v2876, -inf
      %2892 = vmax.xlane.f32.xlu0 %v2891
      %v2893 = vpop.xlane.xlu0 %2892
      %v2894 = vsel %vm801, %v2877, -inf
      %2895 = vmax.xlane.f32.xlu0 %v2894
      %v2896 = vpop.xlane.xlu0 %2895
      %v2897 = vsel %vm820, %v2878, -inf
      %2898 = vmax.xlane.f32.xlu0 %v2897
      %v2899 = vpop.xlane.xlu0 %2898
      %v2900 = vsub.f32 %v2872, %v2881
      %v2901 = vsub.f32 %v2873, %v2884
      %v2902 = vsub.f32 %v2874, %v2887
      %v2903 = vsub.f32 %v2875, %v2890
      %v2904 = vsub.f32 %v2876, %v2893
      %v2905 = vsub.f32 %v2877, %v2896
      %v2906 = vsub.f32 %v2878, %v2899
      %v2907 = vmul.f32 %v2900, 1.442695
      %v2908 = vpow.pop %v2907
      %v2909 = vmul.f32 %v2901, 1.442695
      %v2910 = vpow.pop %v2909
      %v2911 = vmul.f32 %v2902, 1.442695
      %v2912 = vpow.pop %v2911
      %v2913 = vmul.f32 %v2903, 1.442695
      %v2914 = vpow.pop %v2913
      %v2915 = vmul.f32 %v2904, 1.442695
      %v2916 = vpow.pop %v2915
      %v2917 = vmul.f32 %v2905, 1.442695
      %v2918 = vpow.pop %v2917
      %v2919 = vmul.f32 %v2906, 1.442695
      %v2920 = vpow.pop %v2919
      %v2921 = vsel %vm801, %v2908, 0.0
      %2922 = vadd.xlane.f32.xlu0 %v2921
      %v2923 = vpop.xlane.xlu0 %2922
      %v2924 = vsel %vm801, %v2910, 0.0
      %2925 = vadd.xlane.f32.xlu0 %v2924
      %v2926 = vpop.xlane.xlu0 %2925
      %v2927 = vsel %vm801, %v2912, 0.0
      %2928 = vadd.xlane.f32.xlu0 %v2927
      %v2929 = vpop.xlane.xlu0 %2928
      %v2930 = vsel %vm801, %v2914, 0.0
      %2931 = vadd.xlane.f32.xlu0 %v2930
      %v2932 = vpop.xlane.xlu0 %2931
      %v2933 = vsel %vm801, %v2916, 0.0
      %2934 = vadd.xlane.f32.xlu0 %v2933
      %v2935 = vpop.xlane.xlu0 %2934
      %v2936 = vsel %vm801, %v2918, 0.0
      %2937 = vadd.xlane.f32.xlu0 %v2936
      %v2938 = vpop.xlane.xlu0 %2937
      %v2939 = vsel %vm820, %v2920, 0.0
      %2940 = vadd.xlane.f32.xlu0 %v2939
      %v2941 = vpop.xlane.xlu0 %2940
      %v2942 = vrcp.pop %v2923
      %v2943 = vmul.f32 %v2908, %v2942
      %v2944 = vrcp.pop %v2926
      %v2945 = vmul.f32 %v2910, %v2944
      %v2946 = vrcp.pop %v2929
      %v2947 = vmul.f32 %v2912, %v2946
      %v2948 = vrcp.pop %v2932
      %v2949 = vmul.f32 %v2914, %v2948
      %v2950 = vrcp.pop %v2935
      %v2951 = vmul.f32 %v2916, %v2950
      %v2952 = vrcp.pop %v2938
      %v2953 = vmul.f32 %v2918, %v2952
      %v2954 = vrcp.pop %v2941
      %v2955 = vmul.f32 %v2920, %v2954
      %2956 = vrot.lane.b32.xlu0 %v580, 64
      %v2957 = vpop.permute.xlu0 %2956
      %2958 = vrot.lane.b32.xlu0 %v585, 64
      %v2959 = vpop.permute.xlu0 %2958
      %2960 = vrot.lane.b32.xlu0 %v590, 64
      %v2961 = vpop.permute.xlu0 %2960
      %2962 = vrot.lane.b32.xlu0 %v595, 64
      %v2963 = vpop.permute.xlu0 %2962
      %2964 = vrot.lane.b32.xlu0 %v600, 64
      %v2965 = vpop.permute.xlu0 %2964
      %2966 = vrot.lane.b32.xlu0 %v605, 64
      %v2967 = vpop.permute.xlu0 %2966
      %2968 = vrot.lane.b32.xlu0 %v610, 64
      %v2969 = vpop.permute.xlu0 %2968
      %v2977 = vsel %vm801, %v2943, 0
      %v2980 = vsel %vm801, %v2945, 0
      %v2983 = vsel %vm801, %v2947, 0
      %v2986 = vsel %vm801, %v2949, 0
      %v2989 = vsel %vm801, %v2951, 0
      %v2992 = vsel %vm801, %v2953, 0
      %v2995 = vsel %vm801, %v2955, 0
      %v2997 = vsel %vm921, %v2969, 0
      %2999 = vmatprep.subr.mxu0 0.0
      %3000 = vmatpush1.msra.mxu0 %v2957
      %3001 = vmatprep.subr.mxu0 0.0
      %3002 = vmatpush1.msra.mxu0 %v2959
      %3003 = vmatprep.subr.mxu0 0.0
      %3004 = vmatpush1.msra.mxu0 %v2961
      %3005 = vmatprep.subr.mxu0 0.0
      %3006 = vmatpush1.msra.mxu0 %v2963
      %3007 = vmatprep.subr.mxu0 0.0
      %3008 = vmatpush1.msra.mxu0 %v2965
      %3009 = vmatprep.subr.mxu0 0.0
      %3010 = vmatpush1.msra.mxu0 %v2967
      %3011 = vmatprep.subr.mxu0 0.0
      %3012 = vmatpush1.msra.mxu0 %v2997
      %3013 = vmatprep.subr.mxu0 0.0
      %3014 = vmatpush1.msra.mxu0 0.0
      %3015 = vmatprep.subr.mxu0 0.0
      %3016 = vmatpush1.msra.mxu0 0.0
      %3017 = vmatprep.subr.mxu0 0.0
      %3018 = vmatpush1.msra.mxu0 0.0
      %3019 = vmatprep.subr.mxu0 0.0
      %3020 = vmatpush1.msra.mxu0 0.0
      %3021 = vmatprep.subr.mxu0 0.0
      %3022 = vmatpush1.msra.mxu0 0.0
      %3023 = vmatprep.subr.mxu0 0.0
      %3024 = vmatpush1.msra.mxu0 0.0
      %3025 = vmatprep.subr.mxu0 0.0
      %3026 = vmatpush1.msra.mxu0 0.0
      %3027 = vmatprep.subr.mxu0 0.0
      %3028 = vmatpush1.msra.mxu0 0.0
      %3029 = vmatprep.subr.mxu0 0.0
      %3030 = vmatpush1.msra.mxu0 0.0
      %3031 = vmatprep.subr.mxu0 0.0
      %3032 = vmatpush1.msra.mxu0 0.0
      %3033 = vmatprep.subr.mxu0 0.0
      %3034 = vmatpush1.msra.mxu0 0.0
      %3035 = vmatprep.subr.mxu0 0.0
      %3036 = vmatpush1.msra.mxu0 0.0
      %3037 = vmatprep.subr.mxu0 0.0
      %3038 = vmatpush1.msra.mxu0 0.0
      %3039 = vmatprep.subr.mxu0 0.0
      %3040 = vmatpush1.msra.mxu0 0.0
      %3041 = vmatprep.subr.mxu0 0.0
      %3042 = vmatpush1.msra.mxu0 0.0
      %3043 = vmatprep.subr.mxu0 0.0
      %3044 = vmatpush1.msra.mxu0 0.0
      %3045 = vmatprep.subr.mxu0 0.0
      %3046 = vmatpush1.msra.mxu0 0.0
      %3047 = vmatprep.subr.mxu0 0.0
      %3048 = vmatpush1.msra.mxu0 0.0
      %3049 = vmatprep.subr.mxu0 0.0
      %3050 = vmatpush1.msra.mxu0 0.0
      %3051 = vmatprep.subr.mxu0 0.0
      %3052 = vmatpush1.msra.mxu0 0.0
      %3053 = vmatprep.subr.mxu0 0.0
      %3054 = vmatpush1.msra.mxu0 0.0
      %3055 = vmatprep.subr.mxu0 0.0
      %3056 = vmatpush1.msra.mxu0 0.0
      %3057 = vmatprep.subr.mxu0 0.0
      %3058 = vmatpush1.msra.mxu0 0.0
      %3059 = vmatprep.subr.mxu0 0.0
      %3060 = vmatpush1.msra.mxu0 0.0
      %3061 = vmatprep.subr.mxu0 0.0
      %3062 = vmatpush1.msra.mxu0 0.0
      %3063 = vmatprep.mubr.f32.mxu0 0.0
      %3064 = vmatmul.mubr.f32.gmra.mrb[0].mxu0 %v2977
      %v3065 = vpop.f32.mrb[0].mxu0
      %v3066 = vadd.f32 0.0, %v3065
      %v3067 = vpop.f32.mrb[0].mxu0
      %3068 = vmatprep.mubr.f32.mxu0 0.0
      %3069 = vmatmul.mubr.f32.gmra.mrb[0].mxu0 %v2980
      %v3070 = vpop.f32.mrb[0].mxu0
      %v3071 = vadd.f32 0.0, %v3070
      %v3072 = vpop.f32.mrb[0].mxu0
      %3073 = vmatprep.mubr.f32.mxu0 0.0
      %3074 = vmatmul.mubr.f32.gmra.mrb[0].mxu0 %v2983
      %v3075 = vpop.f32.mrb[0].mxu0
      %v3076 = vadd.f32 0.0, %v3075
      %v3077 = vpop.f32.mrb[0].mxu0
      %3078 = vmatprep.mubr.f32.mxu0 0.0
      %3079 = vmatmul.mubr.f32.gmra.mrb[0].mxu0 %v2986
      %v3080 = vpop.f32.mrb[0].mxu0
      %v3081 = vadd.f32 0.0, %v3080
      %v3082 = vpop.f32.mrb[0].mxu0
      %3083 = vmatprep.mubr.f32.mxu0 0.0
      %3084 = vmatmul.mubr.f32.gmra.mrb[0].mxu0 %v2989
      %v3085 = vpop.f32.mrb[0].mxu0
      %v3086 = vadd.f32 0.0, %v3085
      %v3087 = vpop.f32.mrb[0].mxu0
      %3088 = vmatprep.mubr.f32.mxu0 0.0
      %3089 = vmatmul.mubr.f32.gmra.mrb[0].mxu0 %v2992
      %v3090 = vpop.f32.mrb[0].mxu0
      %v3091 = vadd.f32 0.0, %v3090
      %v3092 = vpop.f32.mrb[0].mxu0
      %3093 = vmatprep.mubr.f32.mxu0 0.0
      %3094 = vmatmul.mubr.f32.gmra.mrb[0].mxu0 %v2995
      %v3095 = vpop.f32.mrb[0].mxu0
      %v3096 = vadd.f32 0.0, %v3095
      %v3097 = vpop.f32.mrb[0].mxu0
      %3098 = vdwg.mxu0
      %v3100 = vsel %vm658, %v3066, 0
      %v3103 = vsel %vm658, %v3071, 0
      %v3106 = vsel %vm658, %v3076, 0
      %v3109 = vsel %vm658, %v3081, 0
      %v3112 = vsel %vm658, %v3086, 0
      %v3115 = vsel %vm658, %v3091, 0
      %v3118 = vsel %vm658, %v3096, 0
      %v3121 = vsel %vm1438, %v615, 0
      %3123 = vmatprep.subr.mxu0 0.0
      %3124 = vmatpush1.msra.mxu0 %v3121
      %3125 = vmatprep.subr.mxu0 0.0
      %3126 = vmatpush1.msra.mxu0 0.0
      %3127 = vmatprep.subr.mxu0 0.0
      %3128 = vmatpush1.msra.mxu0 0.0
      %3129 = vmatprep.subr.mxu0 0.0
      %3130 = vmatpush1.msra.mxu0 0.0
      %3131 = vmatprep.subr.mxu0 0.0
      %3132 = vmatpush1.msra.mxu0 0.0
      %3133 = vmatprep.subr.mxu0 0.0
      %3134 = vmatpush1.msra.mxu0 0.0
      %3135 = vmatprep.subr.mxu0 0.0
      %3136 = vmatpush1.msra.mxu0 0.0
      %3137 = vmatprep.subr.mxu0 0.0
      %3138 = vmatpush1.msra.mxu0 0.0
      %3139 = vmatprep.subr.mxu0 0.0
      %3140 = vmatpush1.msra.mxu0 0.0
      %3141 = vmatprep.subr.mxu0 0.0
      %3142 = vmatpush1.msra.mxu0 0.0
      %3143 = vmatprep.subr.mxu0 0.0
      %3144 = vmatpush1.msra.mxu0 0.0
      %3145 = vmatprep.subr.mxu0 0.0
      %3146 = vmatpush1.msra.mxu0 0.0
      %3147 = vmatprep.subr.mxu0 0.0
      %3148 = vmatpush1.msra.mxu0 0.0
      %3149 = vmatprep.subr.mxu0 0.0
      %3150 = vmatpush1.msra.mxu0 0.0
      %3151 = vmatprep.subr.mxu0 0.0
      %3152 = vmatpush1.msra.mxu0 0.0
      %3153 = vmatprep.subr.mxu0 0.0
      %3154 = vmatpush1.msra.mxu0 0.0
      %3155 = vmatprep.subr.mxu0 0.0
      %3156 = vmatpush1.msra.mxu0 0.0
      %3157 = vmatprep.subr.mxu0 0.0
      %3158 = vmatpush1.msra.mxu0 0.0
      %3159 = vmatprep.subr.mxu0 0.0
      %3160 = vmatpush1.msra.mxu0 0.0
      %3161 = vmatprep.subr.mxu0 0.0
      %3162 = vmatpush1.msra.mxu0 0.0
      %3163 = vmatprep.subr.mxu0 0.0
      %3164 = vmatpush1.msra.mxu0 0.0
      %3165 = vmatprep.subr.mxu0 0.0
      %3166 = vmatpush1.msra.mxu0 0.0
      %3167 = vmatprep.subr.mxu0 0.0
      %3168 = vmatpush1.msra.mxu0 0.0
      %3169 = vmatprep.subr.mxu0 0.0
      %3170 = vmatpush1.msra.mxu0 0.0
      %3171 = vmatprep.subr.mxu0 0.0
      %3172 = vmatpush1.msra.mxu0 0.0
      %3173 = vmatprep.subr.mxu0 0.0
      %3174 = vmatpush1.msra.mxu0 0.0
      %3175 = vmatprep.subr.mxu0 0.0
      %3176 = vmatpush1.msra.mxu0 0.0
      %3177 = vmatprep.subr.mxu0 0.0
      %3178 = vmatpush1.msra.mxu0 0.0
      %3179 = vmatprep.subr.mxu0 0.0
      %3180 = vmatpush1.msra.mxu0 0.0
      %3181 = vmatprep.subr.mxu0 0.0
      %3182 = vmatpush1.msra.mxu0 0.0
      %3183 = vmatprep.subr.mxu0 0.0
      %3184 = vmatpush1.msra.mxu0 0.0
      %3185 = vmatprep.subr.mxu0 0.0
      %3186 = vmatpush1.msra.mxu0 0.0
      %3187 = vmatprep.mubr.f32.mxu0 0.0
      %3188 = vmatmul.mubr.f32.gmra.mrb[0].mxu0 %v3100
      %v3189 = vpop.f32.mrb[0].mxu0
      %v3190 = vadd.f32 0.0, %v3189
      %v3191 = vpop.f32.mrb[0].mxu0
      %3192 = vmatprep.mubr.f32.mxu0 0.0
      %3193 = vmatmul.mubr.f32.gmra.mrb[0].mxu0 %v3103
      %v3194 = vpop.f32.mrb[0].mxu0
      %v3195 = vadd.f32 0.0, %v3194
      %v3196 = vpop.f32.mrb[0].mxu0
      %3197 = vmatprep.mubr.f32.mxu0 0.0
      %3198 = vmatmul.mubr.f32.gmra.mrb[0].mxu0 %v3106
      %v3199 = vpop.f32.mrb[0].mxu0
      %v3200 = vadd.f32 0.0, %v3199
      %v3201 = vpop.f32.mrb[0].mxu0
      %3202 = vmatprep.mubr.f32.mxu0 0.0
      %3203 = vmatmul.mubr.f32.gmra.mrb[0].mxu0 %v3109
      %v3204 = vpop.f32.mrb[0].mxu0
      %v3205 = vadd.f32 0.0, %v3204
      %v3206 = vpop.f32.mrb[0].mxu0
      %3207 = vmatprep.mubr.f32.mxu0 0.0
      %3208 = vmatmul.mubr.f32.gmra.mrb[0].mxu0 %v3112
      %v3209 = vpop.f32.mrb[0].mxu0
      %v3210 = vadd.f32 0.0, %v3209
      %v3211 = vpop.f32.mrb[0].mxu0
      %3212 = vmatprep.mubr.f32.mxu0 0.0
      %3213 = vmatmul.mubr.f32.gmra.mrb[0].mxu0 %v3115
      %v3214 = vpop.f32.mrb[0].mxu0
      %v3215 = vadd.f32 0.0, %v3214
      %v3216 = vpop.f32.mrb[0].mxu0
      %3217 = vmatprep.mubr.f32.mxu0 0.0
      %3218 = vmatmul.mubr.f32.gmra.mrb[0].mxu0 %v3118
      %v3219 = vpop.f32.mrb[0].mxu0
      %v3220 = vadd.f32 0.0, %v3219
      %v3221 = vpop.f32.mrb[0].mxu0
      %3222 = vdwg.mxu0
      %v3223 = vadd.f32 %v2701, %v3190
      %v3224 = vadd.f32 %v2702, %v3195
      %v3225 = vadd.f32 %v2703, %v3200
      %v3226 = vadd.f32 %v2704, %v3205
      %v3227 = vadd.f32 %v2705, %v3210
      %v3228 = vadd.f32 %v2706, %v3215
      %v3229 = vadd.f32 %v2707, %v3220
      %s3230 = scalar_lea.vmem %s7, 280
      %v3231 = vld [vmem:[%s3230] sm:$0xff]
      %v3232 = vld [vmem:[%s3230 + $0x8] sm:$0xff]
      %v3233 = vld [vmem:[%s3230 + $0x10] sm:$0xff]
      %v3234 = vld [vmem:[%s3230 + $0x18] sm:$0xff]
      %v3235 = vld [vmem:[%s3230 + $0x20] sm:$0xff]
      %v3236 = vld [vmem:[%s3230 + $0x28] sm:$0xff]
      %v3237 = vld [vmem:[%s3230 + $0x30] sm:$0x1]
      %3238 = vrot.lane.b32.xlu0 %v623, 108
      %v3239 = vpop.permute.xlu0 %3238
      %3240 = vrot.lane.b32.xlu0 %v624, 108
      %v3241 = vpop.permute.xlu0 %3240
      %3242 = vrot.lane.b32.xlu0 %v625, 108
      %v3243 = vpop.permute.xlu0 %3242
      %3244 = vrot.lane.b32.xlu0 %v626, 108
      %v3245 = vpop.permute.xlu0 %3244
      %3246 = vrot.lane.b32.xlu0 %v627, 108
      %v3247 = vpop.permute.xlu0 %3246
      %3248 = vrot.lane.b32.xlu0 %v628, 108
      %v3249 = vpop.permute.xlu0 %3248
      %3250 = vrot.lane.b32.xlu0 %v629, 108
      %v3251 = vpop.permute.xlu0 %3250
      %3252 = vrot.lane.b32.xlu0 %v580, 84
      %v3253 = vpop.permute.xlu0 %3252
      %3254 = vrot.lane.b32.xlu0 %v585, 84
      %v3255 = vpop.permute.xlu0 %3254
      %3256 = vrot.lane.b32.xlu0 %v590, 84
      %v3257 = vpop.permute.xlu0 %3256
      %3258 = vrot.lane.b32.xlu0 %v595, 84
      %v3259 = vpop.permute.xlu0 %3258
      %3260 = vrot.lane.b32.xlu0 %v600, 84
      %v3261 = vpop.permute.xlu0 %3260
      %3262 = vrot.lane.b32.xlu0 %v605, 84
      %v3263 = vpop.permute.xlu0 %3262
      %3264 = vrot.lane.b32.xlu0 %v610, 84
      %v3265 = vpop.permute.xlu0 %3264
      %v3266 = vsel %vm658, %v3239, 0
      %v3268 = vsel %vm658, %v3241, 0
      %v3270 = vsel %vm658, %v3243, 0
      %v3272 = vsel %vm658, %v3245, 0
      %v3274 = vsel %vm658, %v3247, 0
      %v3276 = vsel %vm658, %v3249, 0
      %v3278 = vsel %vm658, %v3251, 0
      %v3280 = vsel %vm658, %v3253, 0
      %v3282 = vsel %vm658, %v3255, 0
      %v3284 = vsel %vm658, %v3257, 0
      %v3286 = vsel %vm658, %v3259, 0
      %v3288 = vsel %vm658, %v3261, 0
      %v3290 = vsel %vm658, %v3263, 0
      %v3292 = vsel %vm658, %v3265, 0
      %3294 = vmatprep.subr.mxu0 0.0
      %3295 = vmatpush1.xpose.msra.mxu0 %v3280
      %3296 = vmatprep.subr.mxu0 0.0
      %3297 = vmatpush1.xpose.msra.mxu0 %v3282
      %3298 = vmatprep.subr.mxu0 0.0
      %3299 = vmatpush1.xpose.msra.mxu0 %v3284
      %3300 = vmatprep.subr.mxu0 0.0
      %3301 = vmatpush1.xpose.msra.mxu0 %v3286
      %3302 = vmatprep.subr.mxu0 0.0
      %3303 = vmatpush1.xpose.msra.mxu0 %v3288
      %3304 = vmatprep.subr.mxu0 0.0
      %3305 = vmatpush1.xpose.msra.mxu0 %v3290
      %3306 = vmatprep.subr.mxu0 0.0
      %3307 = vmatpush1.xpose.msra.mxu0 %v3292
      %3308 = vmatprep.subr.mxu0 0.0
      %3309 = vmatpush1.xpose.msra.mxu0 0.0
      %3310 = vmatprep.subr.mxu0 0.0
      %3311 = vmatpush1.xpose.msra.mxu0 0.0
      %3312 = vmatprep.subr.mxu0 0.0
      %3313 = vmatpush1.xpose.msra.mxu0 0.0
      %3314 = vmatprep.subr.mxu0 0.0
      %3315 = vmatpush1.xpose.msra.mxu0 0.0
      %3316 = vmatprep.subr.mxu0 0.0
      %3317 = vmatpush1.xpose.msra.mxu0 0.0
      %3318 = vmatprep.subr.mxu0 0.0
      %3319 = vmatpush1.xpose.msra.mxu0 0.0
      %3320 = vmatprep.subr.mxu0 0.0
      %3321 = vmatpush1.xpose.msra.mxu0 0.0
      %3322 = vmatprep.subr.mxu0 0.0
      %3323 = vmatpush1.xpose.msra.mxu0 0.0
      %3324 = vmatprep.subr.mxu0 0.0
      %3325 = vmatpush1.xpose.msra.mxu0 0.0
      %3326 = vmatprep.subr.mxu0 0.0
      %3327 = vmatpush1.xpose.msra.mxu0 0.0
      %3328 = vmatprep.subr.mxu0 0.0
      %3329 = vmatpush1.xpose.msra.mxu0 0.0
      %3330 = vmatprep.subr.mxu0 0.0
      %3331 = vmatpush1.xpose.msra.mxu0 0.0
      %3332 = vmatprep.subr.mxu0 0.0
      %3333 = vmatpush1.xpose.msra.mxu0 0.0
      %3334 = vmatprep.subr.mxu0 0.0
      %3335 = vmatpush1.xpose.msra.mxu0 0.0
      %3336 = vmatprep.subr.mxu0 0.0
      %3337 = vmatpush1.xpose.msra.mxu0 0.0
      %3338 = vmatprep.subr.mxu0 0.0
      %3339 = vmatpush1.xpose.msra.mxu0 0.0
      %3340 = vmatprep.subr.mxu0 0.0
      %3341 = vmatpush1.xpose.msra.mxu0 0.0
      %3342 = vmatprep.subr.mxu0 0.0
      %3343 = vmatpush1.xpose.msra.mxu0 0.0
      %3344 = vmatprep.subr.mxu0 0.0
      %3345 = vmatpush1.xpose.msra.mxu0 0.0
      %3346 = vmatprep.subr.mxu0 0.0
      %3347 = vmatpush1.xpose.msra.mxu0 0.0
      %3348 = vmatprep.subr.mxu0 0.0
      %3349 = vmatpush1.xpose.msra.mxu0 0.0
      %3350 = vmatprep.subr.mxu0 0.0
      %3351 = vmatpush1.xpose.msra.mxu0 0.0
      %3352 = vmatprep.subr.mxu0 0.0
      %3353 = vmatpush1.xpose.msra.mxu0 0.0
      %3354 = vmatprep.subr.mxu0 0.0
      %3355 = vmatpush1.xpose.msra.mxu0 0.0
      %3356 = vmatprep.subr.mxu0 0.0
      %3357 = vmatpush1.xpose.msra.mxu0 0.0
      %3358 = vmatprep.mubr.f32.mxu0 0.0
      %3359 = vmatmul.mubr.f32.gmra.mrb[0].mxu0 %v3266
      %v3360 = vpop.f32.mrb[0].mxu0
      %v3361 = vadd.f32 %v3231, %v3360
      %v3362 = vpop.f32.mrb[0].mxu0
      %3363 = vmatprep.mubr.f32.mxu0 0.0
      %3364 = vmatmul.mubr.f32.gmra.mrb[0].mxu0 %v3268
      %v3365 = vpop.f32.mrb[0].mxu0
      %v3366 = vadd.f32 %v3232, %v3365
      %v3367 = vpop.f32.mrb[0].mxu0
      %3368 = vmatprep.mubr.f32.mxu0 0.0
      %3369 = vmatmul.mubr.f32.gmra.mrb[0].mxu0 %v3270
      %v3370 = vpop.f32.mrb[0].mxu0
      %v3371 = vadd.f32 %v3233, %v3370
      %v3372 = vpop.f32.mrb[0].mxu0
      %3373 = vmatprep.mubr.f32.mxu0 0.0
      %3374 = vmatmul.mubr.f32.gmra.mrb[0].mxu0 %v3272
      %v3375 = vpop.f32.mrb[0].mxu0
      %v3376 = vadd.f32 %v3234, %v3375
      %v3377 = vpop.f32.mrb[0].mxu0
      %3378 = vmatprep.mubr.f32.mxu0 0.0
      %3379 = vmatmul.mubr.f32.gmra.mrb[0].mxu0 %v3274
      %v3380 = vpop.f32.mrb[0].mxu0
      %v3381 = vadd.f32 %v3235, %v3380
      %v3382 = vpop.f32.mrb[0].mxu0
      %3383 = vmatprep.mubr.f32.mxu0 0.0
      %3384 = vmatmul.mubr.f32.gmra.mrb[0].mxu0 %v3276
      %v3385 = vpop.f32.mrb[0].mxu0
      %v3386 = vadd.f32 %v3236, %v3385
      %v3387 = vpop.f32.mrb[0].mxu0
      %3388 = vmatprep.mubr.f32.mxu0 0.0
      %3389 = vmatmul.mubr.f32.gmra.mrb[0].mxu0 %v3278
      %v3390 = vpop.f32.mrb[0].mxu0
      %v3391 = vadd.f32 %v3237, %v3390
      %v3392 = vpop.f32.mrb[0].mxu0
      %3393 = vdwg.mxu0
      %v3394 = vadd.f32 %v3361, %v616
      %v3395 = vadd.f32 %v3366, %v617
      %v3396 = vadd.f32 %v3371, %v618
      %v3397 = vadd.f32 %v3376, %v619
      %v3398 = vadd.f32 %v3381, %v620
      %v3399 = vadd.f32 %v3386, %v621
      %v3400 = vadd.f32 %v3391, %v622
      %v3401 = vsel %vm801, %v3394, -inf
      %3402 = vmax.xlane.f32.xlu0 %v3401
      %v3403 = vpop.xlane.xlu0 %3402
      %v3404 = vsel %vm801, %v3395, -inf
      %3405 = vmax.xlane.f32.xlu0 %v3404
      %v3406 = vpop.xlane.xlu0 %3405
      %v3407 = vsel %vm801, %v3396, -inf
      %3408 = vmax.xlane.f32.xlu0 %v3407
      %v3409 = vpop.xlane.xlu0 %3408
      %v3410 = vsel %vm801, %v3397, -inf
      %3411 = vmax.xlane.f32.xlu0 %v3410
      %v3412 = vpop.xlane.xlu0 %3411
      %v3413 = vsel %vm801, %v3398, -inf
      %3414 = vmax.xlane.f32.xlu0 %v3413
      %v3415 = vpop.xlane.xlu0 %3414
      %v3416 = vsel %vm801, %v3399, -inf
      %3417 = vmax.xlane.f32.xlu0 %v3416
      %v3418 = vpop.xlane.xlu0 %3417
      %v3419 = vsel %vm820, %v3400, -inf
      %3420 = vmax.xlane.f32.xlu0 %v3419
      %v3421 = vpop.xlane.xlu0 %3420
      %v3422 = vsub.f32 %v3394, %v3403
      %v3423 = vsub.f32 %v3395, %v3406
      %v3424 = vsub.f32 %v3396, %v3409
      %v3425 = vsub.f32 %v3397, %v3412
      %v3426 = vsub.f32 %v3398, %v3415
      %v3427 = vsub.f32 %v3399, %v3418
      %v3428 = vsub.f32 %v3400, %v3421
      %v3429 = vmul.f32 %v3422, 1.442695
      %v3430 = vpow.pop %v3429
      %v3431 = vmul.f32 %v3423, 1.442695
      %v3432 = vpow.pop %v3431
      %v3433 = vmul.f32 %v3424, 1.442695
      %v3434 = vpow.pop %v3433
      %v3435 = vmul.f32 %v3425, 1.442695
      %v3436 = vpow.pop %v3435
      %v3437 = vmul.f32 %v3426, 1.442695
      %v3438 = vpow.pop %v3437
      %v3439 = vmul.f32 %v3427, 1.442695
      %v3440 = vpow.pop %v3439
      %v3441 = vmul.f32 %v3428, 1.442695
      %v3442 = vpow.pop %v3441
      %v3443 = vsel %vm801, %v3430, 0.0
      %3444 = vadd.xlane.f32.xlu0 %v3443
      %v3445 = vpop.xlane.xlu0 %3444
      %v3446 = vsel %vm801, %v3432, 0.0
      %3447 = vadd.xlane.f32.xlu0 %v3446
      %v3448 = vpop.xlane.xlu0 %3447
      %v3449 = vsel %vm801, %v3434, 0.0
      %3450 = vadd.xlane.f32.xlu0 %v3449
      %v3451 = vpop.xlane.xlu0 %3450
      %v3452 = vsel %vm801, %v3436, 0.0
      %3453 = vadd.xlane.f32.xlu0 %v3452
      %v3454 = vpop.xlane.xlu0 %3453
      %v3455 = vsel %vm801, %v3438, 0.0
      %3456 = vadd.xlane.f32.xlu0 %v3455
      %v3457 = vpop.xlane.xlu0 %3456
      %v3458 = vsel %vm801, %v3440, 0.0
      %3459 = vadd.xlane.f32.xlu0 %v3458
      %v3460 = vpop.xlane.xlu0 %3459
      %v3461 = vsel %vm820, %v3442, 0.0
      %3462 = vadd.xlane.f32.xlu0 %v3461
      %v3463 = vpop.xlane.xlu0 %3462
      %v3464 = vrcp.pop %v3445
      %v3465 = vmul.f32 %v3430, %v3464
      %v3466 = vrcp.pop %v3448
      %v3467 = vmul.f32 %v3432, %v3466
      %v3468 = vrcp.pop %v3451
      %v3469 = vmul.f32 %v3434, %v3468
      %v3470 = vrcp.pop %v3454
      %v3471 = vmul.f32 %v3436, %v3470
      %v3472 = vrcp.pop %v3457
      %v3473 = vmul.f32 %v3438, %v3472
      %v3474 = vrcp.pop %v3460
      %v3475 = vmul.f32 %v3440, %v3474
      %v3476 = vrcp.pop %v3463
      %v3477 = vmul.f32 %v3442, %v3476
      %3478 = vrot.lane.b32.xlu0 %v580, 60
      %v3479 = vpop.permute.xlu0 %3478
      %3480 = vrot.lane.b32.xlu0 %v585, 60
      %v3481 = vpop.permute.xlu0 %3480
      %3482 = vrot.lane.b32.xlu0 %v590, 60
      %v3483 = vpop.permute.xlu0 %3482
      %3484 = vrot.lane.b32.xlu0 %v595, 60
      %v3485 = vpop.permute.xlu0 %3484
      %3486 = vrot.lane.b32.xlu0 %v600, 60
      %v3487 = vpop.permute.xlu0 %3486
      %3488 = vrot.lane.b32.xlu0 %v605, 60
      %v3489 = vpop.permute.xlu0 %3488
      %3490 = vrot.lane.b32.xlu0 %v610, 60
      %v3491 = vpop.permute.xlu0 %3490
      %v3499 = vsel %vm801, %v3465, 0
      %v3502 = vsel %vm801, %v3467, 0
      %v3505 = vsel %vm801, %v3469, 0
      %v3508 = vsel %vm801, %v3471, 0
      %v3511 = vsel %vm801, %v3473, 0
      %v3514 = vsel %vm801, %v3475, 0
      %v3517 = vsel %vm801, %v3477, 0
      %v3519 = vsel %vm921, %v3491, 0
      %3521 = vmatprep.subr.mxu0 0.0
      %3522 = vmatpush1.msra.mxu0 %v3479
      %3523 = vmatprep.subr.mxu0 0.0
      %3524 = vmatpush1.msra.mxu0 %v3481
      %3525 = vmatprep.subr.mxu0 0.0
      %3526 = vmatpush1.msra.mxu0 %v3483
      %3527 = vmatprep.subr.mxu0 0.0
      %3528 = vmatpush1.msra.mxu0 %v3485
      %3529 = vmatprep.subr.mxu0 0.0
      %3530 = vmatpush1.msra.mxu0 %v3487
      %3531 = vmatprep.subr.mxu0 0.0
      %3532 = vmatpush1.msra.mxu0 %v3489
      %3533 = vmatprep.subr.mxu0 0.0
      %3534 = vmatpush1.msra.mxu0 %v3519
      %3535 = vmatprep.subr.mxu0 0.0
      %3536 = vmatpush1.msra.mxu0 0.0
      %3537 = vmatprep.subr.mxu0 0.0
      %3538 = vmatpush1.msra.mxu0 0.0
      %3539 = vmatprep.subr.mxu0 0.0
      %3540 = vmatpush1.msra.mxu0 0.0
      %3541 = vmatprep.subr.mxu0 0.0
      %3542 = vmatpush1.msra.mxu0 0.0
      %3543 = vmatprep.subr.mxu0 0.0
      %3544 = vmatpush1.msra.mxu0 0.0
      %3545 = vmatprep.subr.mxu0 0.0
      %3546 = vmatpush1.msra.mxu0 0.0
      %3547 = vmatprep.subr.mxu0 0.0
      %3548 = vmatpush1.msra.mxu0 0.0
      %3549 = vmatprep.subr.mxu0 0.0
      %3550 = vmatpush1.msra.mxu0 0.0
      %3551 = vmatprep.subr.mxu0 0.0
      %3552 = vmatpush1.msra.mxu0 0.0
      %3553 = vmatprep.subr.mxu0 0.0
      %3554 = vmatpush1.msra.mxu0 0.0
      %3555 = vmatprep.subr.mxu0 0.0
      %3556 = vmatpush1.msra.mxu0 0.0
      %3557 = vmatprep.subr.mxu0 0.0
      %3558 = vmatpush1.msra.mxu0 0.0
      %3559 = vmatprep.subr.mxu0 0.0
      %3560 = vmatpush1.msra.mxu0 0.0
      %3561 = vmatprep.subr.mxu0 0.0
      %3562 = vmatpush1.msra.mxu0 0.0
      %3563 = vmatprep.subr.mxu0 0.0
      %3564 = vmatpush1.msra.mxu0 0.0
      %3565 = vmatprep.subr.mxu0 0.0
      %3566 = vmatpush1.msra.mxu0 0.0
      %3567 = vmatprep.subr.mxu0 0.0
      %3568 = vmatpush1.msra.mxu0 0.0
      %3569 = vmatprep.subr.mxu0 0.0
      %3570 = vmatpush1.msra.mxu0 0.0
      %3571 = vmatprep.subr.mxu0 0.0
      %3572 = vmatpush1.msra.mxu0 0.0
      %3573 = vmatprep.subr.mxu0 0.0
      %3574 = vmatpush1.msra.mxu0 0.0
      %3575 = vmatprep.subr.mxu0 0.0
      %3576 = vmatpush1.msra.mxu0 0.0
      %3577 = vmatprep.subr.mxu0 0.0
      %3578 = vmatpush1.msra.mxu0 0.0
      %3579 = vmatprep.subr.mxu0 0.0
      %3580 = vmatpush1.msra.mxu0 0.0
      %3581 = vmatprep.subr.mxu0 0.0
      %3582 = vmatpush1.msra.mxu0 0.0
      %3583 = vmatprep.subr.mxu0 0.0
      %3584 = vmatpush1.msra.mxu0 0.0
      %3585 = vmatprep.mubr.f32.mxu0 0.0
      %3586 = vmatmul.mubr.f32.gmra.mrb[0].mxu0 %v3499
      %v3587 = vpop.f32.mrb[0].mxu0
      %v3588 = vadd.f32 0.0, %v3587
      %v3589 = vpop.f32.mrb[0].mxu0
      %3590 = vmatprep.mubr.f32.mxu0 0.0
      %3591 = vmatmul.mubr.f32.gmra.mrb[0].mxu0 %v3502
      %v3592 = vpop.f32.mrb[0].mxu0
      %v3593 = vadd.f32 0.0, %v3592
      %v3594 = vpop.f32.mrb[0].mxu0
      %3595 = vmatprep.mubr.f32.mxu0 0.0
      %3596 = vmatmul.mubr.f32.gmra.mrb[0].mxu0 %v3505
      %v3597 = vpop.f32.mrb[0].mxu0
      %v3598 = vadd.f32 0.0, %v3597
      %v3599 = vpop.f32.mrb[0].mxu0
      %3600 = vmatprep.mubr.f32.mxu0 0.0
      %3601 = vmatmul.mubr.f32.gmra.mrb[0].mxu0 %v3508
      %v3602 = vpop.f32.mrb[0].mxu0
      %v3603 = vadd.f32 0.0, %v3602
      %v3604 = vpop.f32.mrb[0].mxu0
      %3605 = vmatprep.mubr.f32.mxu0 0.0
      %3606 = vmatmul.mubr.f32.gmra.mrb[0].mxu0 %v3511
      %v3607 = vpop.f32.mrb[0].mxu0
      %v3608 = vadd.f32 0.0, %v3607
      %v3609 = vpop.f32.mrb[0].mxu0
      %3610 = vmatprep.mubr.f32.mxu0 0.0
      %3611 = vmatmul.mubr.f32.gmra.mrb[0].mxu0 %v3514
      %v3612 = vpop.f32.mrb[0].mxu0
      %v3613 = vadd.f32 0.0, %v3612
      %v3614 = vpop.f32.mrb[0].mxu0
      %3615 = vmatprep.mubr.f32.mxu0 0.0
      %3616 = vmatmul.mubr.f32.gmra.mrb[0].mxu0 %v3517
      %v3617 = vpop.f32.mrb[0].mxu0
      %v3618 = vadd.f32 0.0, %v3617
      %v3619 = vpop.f32.mrb[0].mxu0
      %3620 = vdwg.mxu0
      %v3621 = vrot.slane %v615, 4
      %v3623 = vsel %vm658, %v3588, 0
      %v3626 = vsel %vm658, %v3593, 0
      %v3629 = vsel %vm658, %v3598, 0
      %v3632 = vsel %vm658, %v3603, 0
      %v3635 = vsel %vm658, %v3608, 0
      %v3638 = vsel %vm658, %v3613, 0
      %v3641 = vsel %vm658, %v3618, 0
      %v3643 = vsel %vm1438, %v3621, 0
      %3645 = vmatprep.subr.mxu0 0.0
      %3646 = vmatpush1.msra.mxu0 %v3643
      %3647 = vmatprep.subr.mxu0 0.0
      %3648 = vmatpush1.msra.mxu0 0.0
      %3649 = vmatprep.subr.mxu0 0.0
      %3650 = vmatpush1.msra.mxu0 0.0
      %3651 = vmatprep.subr.mxu0 0.0
      %3652 = vmatpush1.msra.mxu0 0.0
      %3653 = vmatprep.subr.mxu0 0.0
      %3654 = vmatpush1.msra.mxu0 0.0
      %3655 = vmatprep.subr.mxu0 0.0
      %3656 = vmatpush1.msra.mxu0 0.0
      %3657 = vmatprep.subr.mxu0 0.0
      %3658 = vmatpush1.msra.mxu0 0.0
      %3659 = vmatprep.subr.mxu0 0.0
      %3660 = vmatpush1.msra.mxu0 0.0
      %3661 = vmatprep.subr.mxu0 0.0
      %3662 = vmatpush1.msra.mxu0 0.0
      %3663 = vmatprep.subr.mxu0 0.0
      %3664 = vmatpush1.msra.mxu0 0.0
      %3665 = vmatprep.subr.mxu0 0.0
      %3666 = vmatpush1.msra.mxu0 0.0
      %3667 = vmatprep.subr.mxu0 0.0
      %3668 = vmatpush1.msra.mxu0 0.0
      %3669 = vmatprep.subr.mxu0 0.0
      %3670 = vmatpush1.msra.mxu0 0.0
      %3671 = vmatprep.subr.mxu0 0.0
      %3672 = vmatpush1.msra.mxu0 0.0
      %3673 = vmatprep.subr.mxu0 0.0
      %3674 = vmatpush1.msra.mxu0 0.0
      %3675 = vmatprep.subr.mxu0 0.0
      %3676 = vmatpush1.msra.mxu0 0.0
      %3677 = vmatprep.subr.mxu0 0.0
      %3678 = vmatpush1.msra.mxu0 0.0
      %3679 = vmatprep.subr.mxu0 0.0
      %3680 = vmatpush1.msra.mxu0 0.0
      %3681 = vmatprep.subr.mxu0 0.0
      %3682 = vmatpush1.msra.mxu0 0.0
      %3683 = vmatprep.subr.mxu0 0.0
      %3684 = vmatpush1.msra.mxu0 0.0
      %3685 = vmatprep.subr.mxu0 0.0
      %3686 = vmatpush1.msra.mxu0 0.0
      %3687 = vmatprep.subr.mxu0 0.0
      %3688 = vmatpush1.msra.mxu0 0.0
      %3689 = vmatprep.subr.mxu0 0.0
      %3690 = vmatpush1.msra.mxu0 0.0
      %3691 = vmatprep.subr.mxu0 0.0
      %3692 = vmatpush1.msra.mxu0 0.0
      %3693 = vmatprep.subr.mxu0 0.0
      %3694 = vmatpush1.msra.mxu0 0.0
      %3695 = vmatprep.subr.mxu0 0.0
      %3696 = vmatpush1.msra.mxu0 0.0
      %3697 = vmatprep.subr.mxu0 0.0
      %3698 = vmatpush1.msra.mxu0 0.0
      %3699 = vmatprep.subr.mxu0 0.0
      %3700 = vmatpush1.msra.mxu0 0.0
      %3701 = vmatprep.subr.mxu0 0.0
      %3702 = vmatpush1.msra.mxu0 0.0
      %3703 = vmatprep.subr.mxu0 0.0
      %3704 = vmatpush1.msra.mxu0 0.0
      %3705 = vmatprep.subr.mxu0 0.0
      %3706 = vmatpush1.msra.mxu0 0.0
      %3707 = vmatprep.subr.mxu0 0.0
      %3708 = vmatpush1.msra.mxu0 0.0
      %3709 = vmatprep.mubr.f32.mxu0 0.0
      %3710 = vmatmul.mubr.f32.gmra.mrb[0].mxu0 %v3623
      %v3711 = vpop.f32.mrb[0].mxu0
      %v3712 = vadd.f32 0.0, %v3711
      %v3713 = vpop.f32.mrb[0].mxu0
      %3714 = vmatprep.mubr.f32.mxu0 0.0
      %3715 = vmatmul.mubr.f32.gmra.mrb[0].mxu0 %v3626
      %v3716 = vpop.f32.mrb[0].mxu0
      %v3717 = vadd.f32 0.0, %v3716
      %v3718 = vpop.f32.mrb[0].mxu0
      %3719 = vmatprep.mubr.f32.mxu0 0.0
      %3720 = vmatmul.mubr.f32.gmra.mrb[0].mxu0 %v3629
      %v3721 = vpop.f32.mrb[0].mxu0
      %v3722 = vadd.f32 0.0, %v3721
      %v3723 = vpop.f32.mrb[0].mxu0
      %3724 = vmatprep.mubr.f32.mxu0 0.0
      %3725 = vmatmul.mubr.f32.gmra.mrb[0].mxu0 %v3632
      %v3726 = vpop.f32.mrb[0].mxu0
      %v3727 = vadd.f32 0.0, %v3726
      %v3728 = vpop.f32.mrb[0].mxu0
      %3729 = vmatprep.mubr.f32.mxu0 0.0
      %3730 = vmatmul.mubr.f32.gmra.mrb[0].mxu0 %v3635
      %v3731 = vpop.f32.mrb[0].mxu0
      %v3732 = vadd.f32 0.0, %v3731
      %v3733 = vpop.f32.mrb[0].mxu0
      %3734 = vmatprep.mubr.f32.mxu0 0.0
      %3735 = vmatmul.mubr.f32.gmra.mrb[0].mxu0 %v3638
      %v3736 = vpop.f32.mrb[0].mxu0
      %v3737 = vadd.f32 0.0, %v3736
      %v3738 = vpop.f32.mrb[0].mxu0
      %3739 = vmatprep.mubr.f32.mxu0 0.0
      %3740 = vmatmul.mubr.f32.gmra.mrb[0].mxu0 %v3641
      %v3741 = vpop.f32.mrb[0].mxu0
      %v3742 = vadd.f32 0.0, %v3741
      %v3743 = vpop.f32.mrb[0].mxu0
      %3744 = vdwg.mxu0
      %v3745 = vadd.f32 %v3223, %v3712
      %v3746 = vadd.f32 %v3224, %v3717
      %v3747 = vadd.f32 %v3225, %v3722
      %v3748 = vadd.f32 %v3226, %v3727
      %v3749 = vadd.f32 %v3227, %v3732
      %v3750 = vadd.f32 %v3228, %v3737
      %v3751 = vadd.f32 %v3229, %v3742
      %v3752 = vld [vmem:[%s6] sm:$0x1]
      %v3754 = vlaneseq
      %v3755 = vshrl.u32 %v3754, 7
      %v3756 = vsub.s32 0, %v3755
      %v3757 = vrot.slane %v3752, %v3756
      %v3759 = vadd.f32 %v3745, %v3757
      %v3760 = vadd.f32 %v3746, %v3757
      %v3761 = vadd.f32 %v3747, %v3757
      %v3762 = vadd.f32 %v3748, %v3757
      %v3763 = vadd.f32 %v3749, %v3757
      %v3764 = vadd.f32 %v3750, %v3757
      %v3765 = vadd.f32 %v3751, %v3757
      %v3766 = vadd.f32 %v353, %v3759
      %v3767 = vadd.f32 %v354, %v3760
      %v3768 = vadd.f32 %v355, %v3761
      %v3769 = vadd.f32 %v356, %v3762
      %v3770 = vadd.f32 %v357, %v3763
      %v3771 = vadd.f32 %v358, %v3764
      %v3772 = vadd.f32 %v359, %v3765
      %3773 = vst.msk [vmem:[%s352] sm:$0xff] %vm360, %v3766
      %3774 = vst.msk [vmem:[%s352 + $0x8] sm:$0xff] %vm360, %v3767
      %3775 = vst.msk [vmem:[%s352 + $0x10] sm:$0xff] %vm360, %v3768
      %3776 = vst.msk [vmem:[%s352 + $0x18] sm:$0xff] %vm360, %v3769
      %3777 = vst.msk [vmem:[%s352 + $0x20] sm:$0xff] %vm360, %v3770
      %3778 = vst.msk [vmem:[%s352 + $0x28] sm:$0xff] %vm360, %v3771
      %3779 = vst.msk [vmem:[%s352 + $0x30] sm:$0x1] %vm379, %v3772
      %p3780 = scmp.lt.s32.totalorder %s20, 7
      %s3781 = scalar_select %p3780, %s20, 7
      %s3782 = smul.addr %s3781, 7
      %s3783 = smul.addr %s3782, 8
      %s3784 = scalar_lea.vmem %s9, %s3783
      // Predicated region
      $region57: #{swin_decoder_forward.7} parent=55 // pred_check
        %p3785 = pneg %p237
      $region58: #{swin_decoder_forward.7} parent=55 // pred_check_branch
        %3787 = sbr.rel (%p3785) target = $region60
      $region59: #{swin_decoder_forward.7} parent=55 // pred_region
        _
      $region60: #{swin_decoder_forward.7} parent=55 // pred_fallthru
        _
    $region56: #{swin_decoder_forward.7} parent=5 // pred_fallthru
      _
    %p3788 = scmp.le.s32.totalorder 2, %s15
    // Predicated region
    $region61: #{swin_decoder_forward.7} parent=5 // pred_check
      %p3789 = pneg %p3788
    $region62: #{swin_decoder_forward.7} parent=5 // pred_check_branch
      %3791 = sbr.rel (%p3789) target = $region64
    $region63: #{swin_decoder_forward.7} parent=5 // pred_region
      %s3792 = ssub.s32 %s15, 2
      // Predicated region
      $region65: #{swin_decoder_forward.7} parent=63 // pred_check
        %p3793 = pneg %p243
      $region66: #{swin_decoder_forward.7} parent=63 // pred_check_branch
        %3795 = sbr.rel (%p3793) target = $region68
      $region67: #{swin_decoder_forward.7} parent=63 // pred_region
        %p3796 = scmp.lt.s32.totalorder %s21, 7
        %s3797 = scalar_select %p3796, %s21, 7
        %s3798 = smul.addr %s3797, 7
        %s3799 = smul.addr %s3798, 8
        %s3800 = scalar_lea.vmem %s9, %s3799
      $region68: #{swin_decoder_forward.7} parent=63 // pred_fallthru
        _
    $region64: #{swin_decoder_forward.7} parent=5 // pred_fallthru
      _
  $region6: #{swin_decoder_forward.7} parent=0 // loop_footer
    %s19 = sadd.s32 1, %s15
  $region7: #{swin_decoder_forward.7} parent=0 // loop_footer_branch
    %14 = sbr.rel target = $region3
  $region8: #{swin_decoder_forward.7} parent=0 // loop_exit
    _

// kernel: swin_decoder_forward.11
$region0: #{swin_decoder_forward.11}
  #allocation0 [shape = 'u32[]', space=smem, size = 0x4, offset = 0x4, fixed_abs, tag = 'smem constant byte address 0x4 - core index']
  #allocation1 [shape = 'u32[144,128]{1,0:T(1,128)}', space=vmem, size = 0x12000, scoped, tag = 'internal scratch']
  %s0 = inlined_call_operand.vmem [shape: f32[2,196,24], index: 0, kind: input, shape index: {}]
  %s1 = inlined_call_operand.vmem [shape: f32[12,24], index: 1, kind: input, shape index: {}]
  %s2 = inlined_call_operand.vmem [shape: f32[12,1], index: 2, kind: input, shape index: {}]
  %s3 = inlined_call_operand.vmem [shape: f32[2,12,196], index: 3, kind: output, shape index: {}]
  %s4 = sld [smem:[#allocation0]]
  $region45: #{swin_decoder_forward.11} parent=0
    _
  %s6 = ssub.s32 1, %s4
  %s7 = scalar_select 0, %s6, %s4
  loop: start=0, step=1, limit=4
  $region2: #{swin_decoder_forward.11} parent=0 // loop_pre_header
    _
  $region3: #{swin_decoder_forward.11} parent=0 // loop_header
    %s9 = sphi 0, %s13
    %p10 = scmp.ge.s32.totalorder %s9, 4
    %s19 = sphi 0, %s21
    %s22 = sphi 0, %s19
    %s23 = sphi 0, %s22
    %s39 = sphi 0, %s23
    %s43 = sphi 0, %s43
    %s45 = sphi 0, %s43
    %s46 = sphi 0, %s45
    %s60 = sphi 0, %s46
    %s64 = sphi 0, %s64
    %s66 = sphi 0, %s64
    %s67 = sphi 0, %s66
    %s81 = sphi 0, %s67
    %s87 = sphi 0, %s89
    %s90 = sphi 0, %s87
    %s91 = sphi 0, %s90
    %s107 = sphi 0, %s91
  $region4: #{swin_decoder_forward.11} parent=0 // loop_header_branch
    %12 = sbr.rel (%p10) target = $region8
  $region5: #{swin_decoder_forward.11} parent=0 // loop_body
    %s14 = ssub.s32 %s9, 1
    %s15 = ssub.s32 %s9, 2
    %s16 = sadd.s32 %s9, 1
    %s17 = ssub.s32 %s9, %s16
    %p18 = scmp.eq.s32.totalorder %s17, 0
    %s20 = sadd.s32 %s19, 1
    %s21 = scalar_select %p18, %s19, %s20
    %p24 = pneg %p18
    %p25 = scmp.eq.s32.totalorder %s9, 1
    %p26 = por %p24, %p25
    %p27 = scmp.ne.s32.totalorder %s19, %s22
    %p28 = scmp.eq.s32.totalorder %s9, 0
    %p29 = por %p27, %p28
    %p30 = scmp.ne.s32.totalorder %s19, %s22
    %p31 = scmp.eq.s32.totalorder %s14, 1
    %p32 = por %p30, %p31
    %p33 = scmp.ne.s32.totalorder %s22, %s23
    %p34 = scmp.eq.s32.totalorder %s14, 0
    %p35 = por %p33, %p34
    %p36 = scmp.ne.s32.totalorder %s22, %s23
    %p37 = scmp.eq.s32.totalorder %s15, 1
    %p38 = por %p36, %p37
    %p40 = scmp.ne.s32.totalorder %s23, %s39
    %p41 = scmp.eq.s32.totalorder %s15, 0
    %p42 = por %p40, %p41
    %s44 = sadd.s32 %s43, 1
    %p47 = scmp.eq.s32.totalorder %s9, 1
    %p48 = scmp.ne.s32.totalorder %s43, %s45
    %p49 = scmp.eq.s32.totalorder %s9, 0
    %p50 = por %p48, %p49
    %p51 = scmp.ne.s32.totalorder %s43, %s45
    %p52 = scmp.eq.s32.totalorder %s14, 1
    %p53 = por %p51, %p52
    %p54 = scmp.ne.s32.totalorder %s45, %s46
    %p55 = scmp.eq.s32.totalorder %s14, 0
    %p56 = por %p54, %p55
    %p57 = scmp.ne.s32.totalorder %s45, %s46
    %p58 = scmp.eq.s32.totalorder %s15, 1
    %p59 = por %p57, %p58
    %p61 = scmp.ne.s32.totalorder %s46, %s60
    %p62 = scmp.eq.s32.totalorder %s15, 0
    %p63 = por %p61, %p62
    %s65 = sadd.s32 %s64, 1
    %p68 = scmp.eq.s32.totalorder %s9, 1
    %p69 = scmp.ne.s32.totalorder %s64, %s66
    %p70 = scmp.eq.s32.totalorder %s9, 0
    %p71 = por %p69, %p70
    %p72 = scmp.ne.s32.totalorder %s64, %s66
    %p73 = scmp.eq.s32.totalorder %s14, 1
    %p74 = por %p72, %p73
    %p75 = scmp.ne.s32.totalorder %s66, %s67
    %p76 = scmp.eq.s32.totalorder %s14, 0
    %p77 = por %p75, %p76
    %p78 = scmp.ne.s32.totalorder %s66, %s67
    %p79 = scmp.eq.s32.totalorder %s15, 1
    %p80 = por %p78, %p79
    %p82 = scmp.ne.s32.totalorder %s67, %s81
    %p83 = scmp.eq.s32.totalorder %s15, 0
    %p84 = por %p82, %p83
    %s85 = ssub.s32 %s9, %s16
    %p86 = scmp.eq.s32.totalorder %s85, 0
    %s88 = sadd.s32 %s87, 1
    %s89 = scalar_select %p86, %s87, %s88
    %p92 = pneg %p86
    %p93 = scmp.eq.s32.totalorder %s9, 1
    %p94 = por %p92, %p93
    %p95 = scmp.ne.s32.totalorder %s87, %s90
    %p96 = scmp.eq.s32.totalorder %s9, 0
    %p97 = por %p95, %p96
    %p98 = scmp.ne.s32.totalorder %s87, %s90
    %p99 = scmp.eq.s32.totalorder %s14, 1
    %p100 = por %p98, %p99
    %p101 = scmp.ne.s32.totalorder %s90, %s91
    %p102 = scmp.eq.s32.totalorder %s14, 0
    %p103 = por %p101, %p102
    %p104 = scmp.ne.s32.totalorder %s90, %s91
    %p105 = scmp.eq.s32.totalorder %s15, 1
    %p106 = por %p104, %p105
    %p108 = scmp.ne.s32.totalorder %s91, %s107
    %p109 = scmp.eq.s32.totalorder %s15, 0
    %p110 = por %p108, %p109
    %p111 = scmp.le.s32.totalorder 1, %s9
    %p112 = scmp.lt.s32.totalorder %s9, 3
    %p113 = pnand %p111, %p112
    %p114 = pneg %p113
    // Predicated region
    $region9: #{swin_decoder_forward.11} parent=5 // pred_check
      _
    $region10: #{swin_decoder_forward.11} parent=5 // pred_check_branch
      %116 = sbr.rel (%p113) target = $region12
    $region11: #{swin_decoder_forward.11} parent=5 // pred_region
      %s117 = ssub.s32 %s9, 1
      // Predicated region
      $region13: #{swin_decoder_forward.11} parent=11 // pred_check
        %p118 = pneg %p56
      $region14: #{swin_decoder_forward.11} parent=11 // pred_check_branch
        %120 = sbr.rel (%p118) target = $region16
      $region15: #{swin_decoder_forward.11} parent=11 // pred_region
        _
      $region16: #{swin_decoder_forward.11} parent=11 // pred_fallthru
        _
      // Predicated region
      $region17: #{swin_decoder_forward.11} parent=11 // pred_check
        %p121 = pneg %p77
      $region18: #{swin_decoder_forward.11} parent=11 // pred_check_branch
        %123 = sbr.rel (%p121) target = $region20
      $region19: #{swin_decoder_forward.11} parent=11 // pred_region
        _
      $region20: #{swin_decoder_forward.11} parent=11 // pred_fallthru
        _
    $region12: #{swin_decoder_forward.11} parent=5 // pred_fallthru
      _
    %p124 = scmp.lt.s32.totalorder %s9, 2
    // Predicated region
    $region21: #{swin_decoder_forward.11} parent=5 // pred_check
      %p125 = pneg %p124
    $region22: #{swin_decoder_forward.11} parent=5 // pred_check_branch
      %127 = sbr.rel (%p125) target = $region24
    $region23: #{swin_decoder_forward.11} parent=5 // pred_region
      // Predicated region
      $region25: #{swin_decoder_forward.11} parent=23 // pred_check
        %p128 = pneg %p29
      $region26: #{swin_decoder_forward.11} parent=23 // pred_check_branch
        %130 = sbr.rel (%p128) target = $region28
      $region27: #{swin_decoder_forward.11} parent=23 // pred_region
        %p131 = scmp.lt.s32.totalorder %s9, 1
        %s132 = scalar_select %p131, %s9, 1
        %s133 = smul.addr %s132, 25
        %s134 = smul.addr %s133, 8
        %s135 = scalar_lea.vmem %s0, %s134
      $region28: #{swin_decoder_forward.11} parent=23 // pred_fallthru
        _
    $region24: #{swin_decoder_forward.11} parent=5 // pred_fallthru
      _
    %p136 = scmp.le.s32.totalorder 1, %s9
    %p137 = scmp.lt.s32.totalorder %s9, 3
    %p138 = pnand %p136, %p137
    %p139 = pneg %p138
    // Predicated region
    $region29: #{swin_decoder_forward.11} parent=5 // pred_check
      _
    $region30: #{swin_decoder_forward.11} parent=5 // pred_check_branch
      %141 = sbr.rel (%p138) target = $region32
    $region31: #{swin_decoder_forward.11} parent=5 // pred_region
      %s142 = ssub.s32 %s9, 1
      %p143 = scmp.lt.s32.totalorder %s14, 1
      %s144 = scalar_select %p143, %s14, 1
      %s145 = smul.addr %s144, 25
      %s146 = smul.addr %s145, 8
      %s147 = scalar_lea.vmem %s0, %s146
      %p148 = pneg %p35
      %p149 = pneg %p32
      %p150 = pneg %p56
      %p151 = pneg %p53
      %p152 = pneg %p77
      %p153 = pneg %p74
      %p154 = pneg %p103
      %p155 = pneg %p100
      %p156 = scmp.lt.s32.totalorder %s14, 1
      %s157 = scalar_select %p156, %s14, 1
      %s158 = smul.addr %s157, 4
      %s159 = smul.addr %s158, 8
      %s160 = scalar_lea.vmem %s3, %s159
      %p161 = scmp.lt.s32.totalorder %s14, 1
      %s162 = scalar_select %p161, %s14, 1
      %s163 = smul.addr %s162, 25
      %s164 = smul.addr %s163, 8
      %s165 = scalar_lea.vmem %s0, %s164
      %p166 = scmp.lt.s32.totalorder %s14, 1
      %s167 = scalar_select %p166, %s14, 1
      %s168 = smul.addr %s167, 4
      %s169 = smul.addr %s168, 8
      %s170 = scalar_lea.vmem %s3, %s169
      %v171 = vld [vmem:[%s165] sm:$0xff]
      %v172 = vld [vmem:[%s165 + $0x8] sm:$0xff]
      %v173 = vld [vmem:[%s165 + $0x10] sm:$0xff]
      %v174 = vld [vmem:[%s165 + $0x18] sm:$0xff]
      %v175 = vld [vmem:[%s165 + $0x20] sm:$0xff]
      %v176 = vld [vmem:[%s165 + $0x28] sm:$0xff]
      %v177 = vld [vmem:[%s165 + $0x30] sm:$0xff]
      %v178 = vld [vmem:[%s165 + $0x38] sm:$0xff]
      %v179 = vld [vmem:[%s165 + $0x40] sm:$0xff]
      %v180 = vld [vmem:[%s165 + $0x48] sm:$0xff]
      %v181 = vld [vmem:[%s165 + $0x50] sm:$0xff]
      %v182 = vld [vmem:[%s165 + $0x58] sm:$0xff]
      %v183 = vld [vmem:[%s165 + $0x60] sm:$0xff]
      %v184 = vld [vmem:[%s165 + $0x68] sm:$0xff]
      %v185 = vld [vmem:[%s165 + $0x70] sm:$0xff]
      %v186 = vld [vmem:[%s165 + $0x78] sm:$0xff]
      %v187 = vld [vmem:[%s165 + $0x80] sm:$0xff]
      %v188 = vld [vmem:[%s165 + $0x88] sm:$0xff]
      %v189 = vld [vmem:[%s165 + $0x90] sm:$0xff]
      %v190 = vld [vmem:[%s165 + $0x98] sm:$0xff]
      %v191 = vld [vmem:[%s165 + $0xa0] sm:$0xff]
      %v192 = vld [vmem:[%s165 + $0xa8] sm:$0xff]
      %v193 = vld [vmem:[%s165 + $0xb0] sm:$0xff]
      %v194 = vld [vmem:[%s165 + $0xb8] sm:$0xff]
      %v195 = vld [vmem:[%s165 + $0xc0] sm:$0xf]
      %v196 = vld [vmem:[%s1] sm:$0xff]
      %v197 = vld [vmem:[%s1 + $0x8] sm:$0xf]
      %v198 = vld [vmem:[%s2] sm:$0xff]
      %v199 = vld [vmem:[%s2 + $0x8] sm:$0xf]
      %201 = vset.pattern.permute.xlu0 0
      %202 = vperm.xlu0 %201, %v198
      %v203 = vpop.permute.xlu0 %202
      %206 = vset.pattern.permute.xlu0 0
      %207 = vperm.xlu0 %206, %v199
      %v208 = vpop.permute.xlu0 %207
      %vm210 = vcmask 195584
      %v212 = vsel %vm210, %v196, 0
      %v215 = vsel %vm210, %v197, 0
      %v218 = vsel %vm210, %v171, 0
      %v221 = vsel %vm210, %v172, 0
      %v224 = vsel %vm210, %v173, 0
      %v227 = vsel %vm210, %v174, 0
      %v230 = vsel %vm210, %v175, 0
      %v233 = vsel %vm210, %v176, 0
      %v236 = vsel %vm210, %v177, 0
      %v239 = vsel %vm210, %v178, 0
      %v242 = vsel %vm210, %v179, 0
      %v245 = vsel %vm210, %v180, 0
      %v248 = vsel %vm210, %v181, 0
      %v251 = vsel %vm210, %v182, 0
      %v254 = vsel %vm210, %v183, 0
      %v257 = vsel %vm210, %v184, 0
      %v260 = vsel %vm210, %v185, 0
      %v263 = vsel %vm210, %v186, 0
      %v266 = vsel %vm210, %v187, 0
      %v269 = vsel %vm210, %v188, 0
      %v272 = vsel %vm210, %v189, 0
      %v275 = vsel %vm210, %v190, 0
      %v278 = vsel %vm210, %v191, 0
      %v281 = vsel %vm210, %v192, 0
      %v284 = vsel %vm210, %v193, 0
      %v287 = vsel %vm210, %v194, 0
      %v290 = vsel %vm210, %v195, 0
      %292 = vmatprep.subr.mxu0 0.0
      %293 = vmatpush1.xpose.msra.mxu0 %v218
      %294 = vmatprep.subr.mxu0 0.0
      %295 = vmatpush1.xpose.msra.mxu0 %v221
      %296 = vmatprep.subr.mxu0 0.0
      %297 = vmatpush1.xpose.msra.mxu0 %v224
      %298 = vmatprep.subr.mxu0 0.0
      %299 = vmatpush1.xpose.msra.mxu0 %v227
      %300 = vmatprep.subr.mxu0 0.0
      %301 = vmatpush1.xpose.msra.mxu0 %v230
      %302 = vmatprep.subr.mxu0 0.0
      %303 = vmatpush1.xpose.msra.mxu0 %v233
      %304 = vmatprep.subr.mxu0 0.0
      %305 = vmatpush1.xpose.msra.mxu0 %v236
      %306 = vmatprep.subr.mxu0 0.0
      %307 = vmatpush1.xpose.msra.mxu0 %v239
      %308 = vmatprep.subr.mxu0 0.0
      %309 = vmatpush1.xpose.msra.mxu0 %v242
      %310 = vmatprep.subr.mxu0 0.0
      %311 = vmatpush1.xpose.msra.mxu0 %v245
      %312 = vmatprep.subr.mxu0 0.0
      %313 = vmatpush1.xpose.msra.mxu0 %v248
      %314 = vmatprep.subr.mxu0 0.0
      %315 = vmatpush1.xpose.msra.mxu0 %v251
      %316 = vmatprep.subr.mxu0 0.0
      %317 = vmatpush1.xpose.msra.mxu0 %v254
      %318 = vmatprep.subr.mxu0 0.0
      %319 = vmatpush1.xpose.msra.mxu0 %v257
      %320 = vmatprep.subr.mxu0 0.0
      %321 = vmatpush1.xpose.msra.mxu0 %v260
      %322 = vmatprep.subr.mxu0 0.0
      %323 = vmatpush1.xpose.msra.mxu0 %v263
      %324 = vmatprep.subr.mxu0 0.0
      %325 = vmatpush1.xpose.msra.mxu0 %v266
      %326 = vmatprep.subr.mxu0 0.0
      %327 = vmatpush1.xpose.msra.mxu0 %v269
      %328 = vmatprep.subr.mxu0 0.0
      %329 = vmatpush1.xpose.msra.mxu0 %v272
      %330 = vmatprep.subr.mxu0 0.0
      %331 = vmatpush1.xpose.msra.mxu0 %v275
      %332 = vmatprep.subr.mxu0 0.0
      %333 = vmatpush1.xpose.msra.mxu0 %v278
      %334 = vmatprep.subr.mxu0 0.0
      %335 = vmatpush1.xpose.msra.mxu0 %v281
      %336 = vmatprep.subr.mxu0 0.0
      %337 = vmatpush1.xpose.msra.mxu0 %v284
      %338 = vmatprep.subr.mxu0 0.0
      %339 = vmatpush1.xpose.msra.mxu0 %v287
      %340 = vmatprep.subr.mxu0 0.0
      %341 = vmatpush1.xpose.msra.mxu0 %v290
      %342 = vmatprep.subr.mxu0 0.0
      %343 = vmatpush1.xpose.msra.mxu0 0.0
      %344 = vmatprep.subr.mxu0 0.0
      %345 = vmatpush1.xpose.msra.mxu0 0.0
      %346 = vmatprep.subr.mxu0 0.0
      %347 = vmatpush1.xpose.msra.mxu0 0.0
      %348 = vmatprep.subr.mxu0 0.0
      %349 = vmatpush1.xpose.msra.mxu0 0.0
      %350 = vmatprep.subr.mxu0 0.0
      %351 = vmatpush1.xpose.msra.mxu0 0.0
      %352 = vmatprep.subr.mxu0 0.0
      %353 = vmatpush1.xpose.msra.mxu0 0.0
      %354 = vmatprep.subr.mxu0 0.0
      %355 = vmatpush1.xpose.msra.mxu0 0.0
      %356 = vmatprep.mubr.f32.mxu0 0.0
      %357 = vmatmul.mubr.f32.gmra.mrb[0].mxu0 %v212
      %v358 = vpop.f32.mrb[0].mxu0
      %v359 = vadd.f32 %v203, %v358
      %v360 = vpop.f32.mrb[0].mxu0
      %v361 = vadd.f32 %v203, %v360
      %362 = vmatprep.mubr.f32.mxu0 0.0
      %363 = vmatmul.mubr.f32.gmra.mrb[0].mxu0 %v215
      %v364 = vpop.f32.mrb[0].mxu0
      %v365 = vadd.f32 %v208, %v364
      %v366 = vpop.f32.mrb[0].mxu0
      %v367 = vadd.f32 %v208, %v366
      %368 = vdwg.mxu0
      %v369 = vmax.f32 %v359, 0.0
      %v370 = vmax.f32 %v361, 0.0
      %v371 = vmax.f32 %v365, 0.0
      %v372 = vmax.f32 %v367, 0.0
      %373 = vst [vmem:[%s170] sm:$0xff] %v369
      %vm374 = vcmask 556032
      %375 = vst.msk [vmem:[%s170 + $0x8] sm:$0xff] %vm374, %v370
      %376 = vst [vmem:[%s170 + $0x10] sm:$0xf] %v371
      %vm377 = vcmask 551936
      %378 = vst.msk [vmem:[%s170 + $0x18] sm:$0xf] %vm377, %v372
      %p379 = scmp.lt.s32.totalorder %s14, 1
      %s380 = scalar_select %p379, %s14, 1
      %s381 = smul.addr %s380, 4
      %s382 = smul.addr %s381, 8
      %s383 = scalar_lea.vmem %s3, %s382
      // Predicated region
      $region33: #{swin_decoder_forward.11} parent=31 // pred_check
        %p384 = pneg %p100
      $region34: #{swin_decoder_forward.11} parent=31 // pred_check_branch
        %386 = sbr.rel (%p384) target = $region36
      $region35: #{swin_decoder_forward.11} parent=31 // pred_region
        _
      $region36: #{swin_decoder_forward.11} parent=31 // pred_fallthru
        _
    $region32: #{swin_decoder_forward.11} parent=5 // pred_fallthru
      _
    %p387 = scmp.le.s32.totalorder 2, %s9
    // Predicated region
    $region37: #{swin_decoder_forward.11} parent=5 // pred_check
      %p388 = pneg %p387
    $region38: #{swin_decoder_forward.11} parent=5 // pred_check_branch
      %390 = sbr.rel (%p388) target = $region40
    $region39: #{swin_decoder_forward.11} parent=5 // pred_region
      %s391 = ssub.s32 %s9, 2
      // Predicated region
      $region41: #{swin_decoder_forward.11} parent=39 // pred_check
        %p392 = pneg %p106
      $region42: #{swin_decoder_forward.11} parent=39 // pred_check_branch
        %394 = sbr.rel (%p392) target = $region44
      $region43: #{swin_decoder_forward.11} parent=39 // pred_region
        %p395 = scmp.lt.s32.totalorder %s15, 1
        %s396 = scalar_select %p395, %s15, 1
        %s397 = smul.addr %s396, 4
        %s398 = smul.addr %s397, 8
        %s399 = scalar_lea.vmem %s3, %s398
      $region44: #{swin_decoder_forward.11} parent=39 // pred_fallthru
        _
    $region40: #{swin_decoder_forward.11} parent=5 // pred_fallthru
      _
  $region6: #{swin_decoder_forward.11} parent=0 // loop_footer
    %s13 = sadd.s32 1, %s9
  $region7: #{swin_decoder_forward.11} parent=0 // loop_footer_branch
    %8 = sbr.rel target = $region3
  $region8: #{swin_decoder_forward.11} parent=0 // loop_exit
    _

</llo_original>
